<compile_context>
chip_gen: v7x
topology: tpu7x:2x2x1
jax: 0.10.0
libtpu: 0.0.40
codegen_flags: <defaults>
</compile_context>

<pallas_src>
import functools

import numpy as np
import jax
import jax.numpy as jnp
from jax import lax
from jax.experimental import pallas as pl
from jax.experimental.pallas import tpu as pltpu

_EPS = 1e-5
_VMEM = pl.BlockSpec(memory_space=pltpu.MemorySpace.VMEM)


# ---------------------------------------------------------------------------
# In-kernel helpers
# ---------------------------------------------------------------------------
def _bn_relu(x, g, b):
    """Training-mode BatchNorm (biased batch stats over rows) + ReLU, in f32."""
    m = jnp.mean(x, axis=0, keepdims=True)
    v = jnp.mean(jnp.square(x - m), axis=0, keepdims=True)
    return jnp.maximum((x - m) * (g * lax.rsqrt(v + _EPS)) + b, 0.0)


def _mxu(a, b):
    """bf16 operands -> MXU with f32 accumulation."""
    return jnp.dot(a.astype(jnp.bfloat16), b.astype(jnp.bfloat16),
                   preferred_element_type=jnp.float32)


# ---------------------------------------------------------------------------
# Kernels
# ---------------------------------------------------------------------------
def _stem_kernel(cols_ref, w_ref, g_ref, b_ref, smax_ref, o_ref):
    """conv7x7/2 (host im2col) + BN(batch stats) + ReLU + 3x3/2 maxpool.

    Merged across ensemble members along the output-channel (lane) dim, so the
    matmul/store is lane-dense (128 lanes).  Maxpool = elementwise max over 9
    window-position gathers, each a matmul with a 0/1 selection matrix (OOB
    rows are zero, which is safe because the input is post-ReLU >= 0).
    """
    z = _mxu(cols_ref[...], w_ref[...])                    # (M_conv, 128) f32
    y = _bn_relu(z, g_ref[...], b_ref[...]).astype(jnp.bfloat16)
    pooled = _mxu(smax_ref[0], y)
    for d in range(1, smax_ref.shape[0]):
        pooled = jnp.maximum(pooled, _mxu(smax_ref[d], y))
    o_ref[...] = pooled.astype(o_ref.dtype)


def _make_member_kernel(plan):
    """Build the single fused kernel that runs one DenseCNN body end-to-end.

    `plan` contains only static structure (indices into the flat ref tuple);
    all activations stay as VMEM values, the DenseNet concat is a list of
    per-chunk values and every consumer is a sum of per-chunk matmuls.
    """
    def kernel(*refs):
        out_ref = refs[-1]
        R = refs

        def bn_relu_conv1x1(chunks, bn_list):
            acc = None
            for chunk, (gi, bi, wi) in zip(chunks, bn_list):
                y = _bn_relu(chunk, R[gi][...], R[bi][...])
                t = _mxu(y, R[wi][...])
                acc = t if acc is None else acc + t
            return acc

        chunks = [R[plan["x0"]][...].astype(jnp.float32)]
        n_blocks = len(plan["blocks"])
        for bi, bplan in enumerate(plan["blocks"]):
            sconv = R[bplan["sconv"]]                 # (9, M, M) selection mats
            for lplan in bplan["layers"]:
                # BN1 + ReLU + conv1 (1x1), per chunk.
                y1 = bn_relu_conv1x1(chunks, lplan["bn1"])
                # BN2 + ReLU.
                y1 = _bn_relu(y1, R[lplan["g2"]][...], R[lplan["b2"]][...])
                # 3x3 conv (pad=1) = sum over 9 window positions of
                # (zero-padded spatial shift) @ per-position weight slice.
                w2 = R[lplan["w2"]]                   # (9, inter, growth)
                acc = None
                for d in range(sconv.shape[0]):
                    shifted = _mxu(sconv[d], y1)      # exact row gather / zeros
                    t = _mxu(shifted, w2[d])
                    acc = t if acc is None else acc + t
                chunks.append(acc)                    # DenseNet concat, in VMEM
            if bi < n_blocks - 1:
                tplan = plan["trans"][bi]
                y = bn_relu_conv1x1(chunks, tplan["bn"])
                # 2x2 avg-pool as a matmul with the pooling matrix.
                chunks = [_mxu(R[tplan["pool"]][...], y)]
        # Tail: BN_final + ReLU + global avg-pool + FC (weights padded to 128
        # classes so the single HBM store is lane-dense).
        tail = plan["tail"]
        gap = R[tail["gap"]][...]
        logits = None
        for chunk, (gi, bi, wi) in zip(chunks, tail["bn"]):
            z = _bn_relu(chunk, R[gi][...], R[bi][...])
            pooled = _mxu(gap, z)
            t = _mxu(pooled, R[wi][...])
            logits = t if logits is None else logits + t
        out_ref[...] = logits + R[tail["fcb"]][...]
    return kernel


# ---------------------------------------------------------------------------
# Host-side constant matrices (built with numpy at trace time, passed as bf16)
# ---------------------------------------------------------------------------
def _window_gather(N, H, W, k, s, p):
    """(k*k, N*Ho*Wo, N*H*W) 0/1 selection matrices; OOB positions stay zero."""
    Ho = (H + 2 * p - k) // s + 1
    Wo = (W + 2 * p - k) // s + 1
    S = np.zeros((k * k, N * Ho * Wo, N * H * W), np.float32)
    for n in range(N):
        for ho in range(Ho):
            for wo in range(Wo):
                ro = (n * Ho + ho) * Wo + wo
                for i in range(k):
                    for j in range(k):
                        h, w = s * ho - p + i, s * wo - p + j
                        if 0 <= h < H and 0 <= w < W:
                            S[i * k + j, ro, (n * H + h) * W + w] = 1.0
    return jnp.asarray(S, jnp.bfloat16)


def _avgpool2x2_mat(N, H, W):
    # NOTE: assumes even H, W (true for this model's spatial plan).
    Ho, Wo = H // 2, W // 2
    P = np.zeros((N * Ho * Wo, N * H * W), np.float32)
    for n in range(N):
        for ho in range(Ho):
            for wo in range(Wo):
                ro = (n * Ho + ho) * Wo + wo
                for i in range(2):
                    for j in range(2):
                        P[ro, (n * H + 2 * ho + i) * W + 2 * wo + j] = 0.25
    return jnp.asarray(P, jnp.bfloat16)


def _gap_mat(N, H, W, rows_pad):
    G = np.zeros((rows_pad, N * H * W), np.float32)
    for n in range(N):
        G[n, n * H * W:(n + 1) * H * W] = 1.0 / (H * W)
    return jnp.asarray(G, jnp.bfloat16)


def _make_consts(N, H_in, W_in, n_blocks):
    Hs = (H_in + 2 * 3 - 7) // 2 + 1               # stem conv 7x7 s2 p3
    Ws = (W_in + 2 * 3 - 7) // 2 + 1
    consts = {"smax": _window_gather(N, Hs, Ws, k=3, s=2, p=1)}   # maxpool 3/2/1
    H = (Hs + 2 - 3) // 2 + 1
    W = (Ws + 2 - 3) // 2 + 1
    sconv, pool = [], []
    for b in range(n_blocks):
        sconv.append(_window_gather(N, H, W, k=3, s=1, p=1))      # 3x3 conv p1
        if b < n_blocks - 1:
            pool.append(_avgpool2x2_mat(N, H, W))
            H, W = H // 2, W // 2
    consts["sconv"] = sconv
    consts["pool"] = pool
    consts["gap"] = _gap_mat(N, H, W, rows_pad=max(8, N))
    return consts


def _im2col(x, kh, kw, stride, pad):
    # (N,H,W,C) -> (N*Ho*Wo, kh*kw*C), feature order (kh, kw, C).  Host glue.
    N, H, W, C = x.shape
    xp = jnp.pad(x, ((0, 0), (pad, pad), (pad, pad), (0, 0)))
    Ho = (H + 2 * pad - kh) // stride + 1
    Wo = (W + 2 * pad - kw) // stride + 1
    patches = []
    for i in range(kh):
        for j in range(kw):
            patches.append(xp[:, i:i + stride * Ho:stride,
                              j:j + stride * Wo:stride, :])
    cols = jnp.concatenate(patches, axis=-1)
    return cols.reshape(N * Ho * Wo, kh * kw * C)


# ---------------------------------------------------------------------------
# Parameter init (deterministic, synthetic; mirrors the torch module structure)
# ---------------------------------------------------------------------------
def _conv1x1_mat(key, cout, cin):
    w = jax.random.normal(key, (cout, cin), jnp.float32) * 0.05
    return w.T.astype(jnp.bfloat16)                              # (cin, cout)


def _conv_kxk_mat(key, cout, cin, k):
    w = jax.random.normal(key, (cout, cin, k, k), jnp.float32) * 0.05
    return jnp.transpose(w, (2, 3, 1, 0)).reshape(k * k * cin, cout).astype(
        jnp.bfloat16)                                            # (k*k*cin, cout)


def _conv3x3_stack(key, cout, cin):
    w = jax.random.normal(key, (cout, cin, 3, 3), jnp.float32) * 0.05
    return jnp.transpose(w, (2, 3, 1, 0)).reshape(9, cin, cout).astype(
        jnp.bfloat16)                                            # (9, cin, cout)


def _bn_pair(c):
    return jnp.ones((1, c), jnp.float32), jnp.zeros((1, c), jnp.float32)


def init_dense_cnn(key, config, growth=12, init_feat=64, bn_size=4,
                   num_classes=2, fc_pad=128):
    keys = iter(jax.random.split(key, 64))
    p = {"init_feat": init_feat, "growth": growth, "num_classes": num_classes}
    p["stem_w"] = _conv_kxk_mat(next(keys), init_feat, 3, 7)     # (147, 64)
    p["stem_g"], p["stem_b"] = _bn_pair(init_feat)
    p["blocks"], p["trans"] = [], []
    ch = init_feat
    for i, n_layers in enumerate(config):
        blk = []
        for _ in range(n_layers):
            inter = bn_size * growth
            g1, b1 = _bn_pair(ch)
            g2, b2 = _bn_pair(inter)
            blk.append({
                "g1": g1, "b1": b1,
                "conv1_w": _conv1x1_mat(next(keys), inter, ch),      # (ch, 48)
                "g2": g2, "b2": b2,
                "conv2_w": _conv3x3_stack(next(keys), growth, inter),  # (9,48,12)
            })
            ch += growth
        p["blocks"].append(blk)
        if i < len(config) - 1:
            t_out = ch // 2
            g, b = _bn_pair(ch)
            p["trans"].append({"g": g, "b": b,
                               "conv_w": _conv1x1_mat(next(keys), t_out, ch)})
            ch = t_out
    p["gF"], p["bF"] = _bn_pair(ch)
    fcw = jax.random.normal(next(keys), (num_classes, ch), jnp.float32) * 0.05
    fc_full = jnp.zeros((ch, fc_pad), jnp.float32).at[:, :num_classes].set(fcw.T)
    p["fc_w"] = fc_full.astype(jnp.bfloat16)                     # (ch, 128)
    p["fc_b"] = jnp.zeros((1, fc_pad), jnp.float32)
    return p


# ---------------------------------------------------------------------------
# Flat-argument plan for the fused per-member kernel
# ---------------------------------------------------------------------------
def _build_member(p, x0, consts):
    """Returns (flat_args, plan).  Weights/BN params are pre-sliced on the host
    per DenseNet channel chunk, so the kernel never slices lanes/sublanes."""
    args = []

    def add(a):
        args.append(a)
        return len(args) - 1

    plan = {"x0": add(x0), "blocks": [], "trans": []}
    chunk_sizes = [p["init_feat"]]
    n_blocks = len(p["blocks"])
    for bi, blk in enumerate(p["blocks"]):
        bplan = {"sconv": add(consts["sconv"][bi]), "layers": []}
        for lyr in blk:
            lplan = {"bn1": []}
            off = 0
            for c in chunk_sizes:
                lplan["bn1"].append((add(lyr["g1"][:, off:off + c]),
                                     add(lyr["b1"][:, off:off + c]),
                                     add(lyr["conv1_w"][off:off + c, :])))
                off += c
            lplan["g2"] = add(lyr["g2"])
            lplan["b2"] = add(lyr["b2"])
            lplan["w2"] = add(lyr["conv2_w"])
            bplan["layers"].append(lplan)
            chunk_sizes = chunk_sizes + [p["growth"]]
        plan["blocks"].append(bplan)
        if bi < n_blocks - 1:
            t = p["trans"][bi]
            tplan = {"bn": []}
            off = 0
            for c in chunk_sizes:
                tplan["bn"].append((add(t["g"][:, off:off + c]),
                                    add(t["b"][:, off:off + c]),
                                    add(t["conv_w"][off:off + c, :])))
                off += c
            tplan["pool"] = add(consts["pool"][bi])
            plan["trans"].append(tplan)
            chunk_sizes = [sum(chunk_sizes) // 2]
    tail = {"bn": []}
    off = 0
    for c in chunk_sizes:
        tail["bn"].append((add(p["gF"][:, off:off + c]),
                           add(p["bF"][:, off:off + c]),
                           add(p["fc_w"][off:off + c, :])))
        off += c
    tail["gap"] = add(consts["gap"])
    tail["fcb"] = add(p["fc_b"])
    plan["tail"] = tail
    return args, plan


# ---------------------------------------------------------------------------
# Forward pass
# ---------------------------------------------------------------------------
def ensemble_fwd(params_list, x_nchw):
    x = jnp.transpose(x_nchw, (0, 2, 3, 1))                      # NHWC
    N = x.shape[0]
    n_blocks = len(params_list[0]["blocks"])
    consts = _make_consts(N, x.shape[1], x.shape[2], n_blocks)

    # --- shared stem: one merged, lane-dense kernel for all members ---------
    cols = _im2col(x, 7, 7, 2, 3).astype(jnp.bfloat16)           # bf16 DMA
    widths = [p["stem_w"].shape[1] for p in params_list]
    w_m = jnp.concatenate([p["stem_w"] for p in params_list], axis=1)
    g_m = jnp.concatenate([p["stem_g"] for p in params_list], axis=1)
    b_m = jnp.concatenate([p["stem_b"] for p in params_list], axis=1)
    m_pooled = consts["smax"].shape[1]
    stem = pl.pallas_call(
        _stem_kernel,
        out_shape=jax.ShapeDtypeStruct((m_pooled, sum(widths)), jnp.bfloat16),
        in_specs=[_VMEM] * 5,
        out_specs=_VMEM,
    )(cols, w_m, g_m, b_m, consts["smax"])

    # --- one fully-fused kernel per ensemble member --------------------------
    rows_pad = consts["gap"].shape[0]
    logits = []
    off = 0
    for p, cw in zip(params_list, widths):
        x0 = stem[:, off:off + cw]
        off += cw
        args, plan = _build_member(p, x0, consts)
        fc_pad = p["fc_w"].shape[1]
        out = pl.pallas_call(
            _make_member_kernel(plan),
            out_shape=jax.ShapeDtypeStruct((rows_pad, fc_pad), jnp.float32),
            in_specs=[_VMEM] * len(args),
            out_specs=_VMEM,
        )(*args)
        logits.append(out[:N, :p["num_classes"]])
    return jnp.mean(jnp.stack(logits), axis=0)


# ---------------------------------------------------------------------------
if __name__ == "__main__":
    key = jax.random.PRNGKey(0)
    k_x, k_m0, k_m1 = jax.random.split(key, 3)

    configs = [(1, 1), (2, 1)]                 # small ensemble of two DenseCNNs
    params_list = [init_dense_cnn(k, cfg)
                   for k, cfg in zip((k_m0, k_m1), configs)]

    x = jax.random.normal(k_x, (2, 3, 16, 16), jnp.float32)      # NCHW input

    fwd = jax.jit(functools.partial(ensemble_fwd, params_list))
    out = fwd(x)
    jax.block_until_ready(out)
    assert out.shape == (2, 2)
    print("KERNEL_OK")
</pallas_src>

<mosaic_0001>
module attributes {stable_mosaic.version = 11 : i64} {
  func.func @_stem_kernel(%arg0: memref<128x147xbf16, #tpu.memory_space<vmem>>, %arg1: memref<147x128xbf16, #tpu.memory_space<vmem>>, %arg2: memref<1x128xf32, #tpu.memory_space<vmem>>, %arg3: memref<1x128xf32, #tpu.memory_space<vmem>>, %arg4: memref<9x32x128xbf16, #tpu.memory_space<vmem>>, %arg5: memref<32x128xbf16, #tpu.memory_space<vmem>>) attributes {dimension_semantics = [], scalar_prefetch = 0 : i64, scratch_operands = 0 : i64, tpu.core_type = #tpu.core_type<tc>} {
    %c0 = arith.constant 0 : index
    %c0_0 = arith.constant 0 : index
    %0 = vector.load %arg0[%c0, %c0_0] : memref<128x147xbf16, #tpu.memory_space<vmem>>, vector<128x147xbf16>
    %c0_1 = arith.constant 0 : index
    %c0_2 = arith.constant 0 : index
    %1 = vector.load %arg1[%c0_1, %c0_2] : memref<147x128xbf16, #tpu.memory_space<vmem>>, vector<147x128xbf16>
    %cst = arith.constant dense<0.000000e+00> : vector<128x128xf32>
    %2 = tpu.matmul %0, %1, %cst {dimension_numbers = #tpu.dot_dimension_numbers<[1], [0], [0], [1], [0, 0, 1, 1], [], []>} : vector<128x147xbf16>, vector<147x128xbf16>, vector<128x128xf32> -> vector<128x128xf32>
    %c0_3 = arith.constant 0 : index
    %c0_4 = arith.constant 0 : index
    %3 = vector.load %arg2[%c0_3, %c0_4] : memref<1x128xf32, #tpu.memory_space<vmem>>, vector<1x128xf32>
    %c0_5 = arith.constant 0 : index
    %c0_6 = arith.constant 0 : index
    %4 = vector.load %arg3[%c0_5, %c0_6] : memref<1x128xf32, #tpu.memory_space<vmem>>, vector<1x128xf32>
    %cst_7 = arith.constant dense<0.000000e+00> : vector<128xf32>
    %5 = vector.multi_reduction <add>, %2, %cst_7 [0] : vector<128x128xf32> to vector<128xf32>
    %6 = vector.shape_cast %5 : vector<128xf32> to vector<1x128xf32>
    %cst_8 = arith.constant 1.280000e+02 : f32
    %7 = vector.broadcast %cst_8 : f32 to vector<1x128xf32>
    %8 = arith.divf %6, %7 : vector<1x128xf32>
    %9 = vector.broadcast %8 : vector<1x128xf32> to vector<128x128xf32>
    %10 = arith.subf %2, %9 : vector<128x128xf32>
    %11 = arith.mulf %10, %10 : vector<128x128xf32>
    %cst_9 = arith.constant dense<0.000000e+00> : vector<128xf32>
    %12 = vector.multi_reduction <add>, %11, %cst_9 [0] : vector<128x128xf32> to vector<128xf32>
    %13 = vector.shape_cast %12 : vector<128xf32> to vector<1x128xf32>
    %cst_10 = arith.constant 1.280000e+02 : f32
    %14 = vector.broadcast %cst_10 : f32 to vector<1x128xf32>
    %15 = arith.divf %13, %14 : vector<1x128xf32>
    %16 = vector.broadcast %8 : vector<1x128xf32> to vector<128x128xf32>
    %17 = arith.subf %2, %16 : vector<128x128xf32>
    %cst_11 = arith.constant 9.99999974E-6 : f32
    %18 = vector.broadcast %cst_11 : f32 to vector<1x128xf32>
    %19 = arith.addf %15, %18 : vector<1x128xf32>
    %20 = math.rsqrt %19 : vector<1x128xf32>
    %21 = arith.mulf %3, %20 : vector<1x128xf32>
    %22 = vector.broadcast %21 : vector<1x128xf32> to vector<128x128xf32>
    %23 = arith.mulf %17, %22 : vector<128x128xf32>
    %24 = vector.broadcast %4 : vector<1x128xf32> to vector<128x128xf32>
    %25 = arith.addf %23, %24 : vector<128x128xf32>
    %cst_12 = arith.constant 0.000000e+00 : f32
    %26 = vector.broadcast %cst_12 : f32 to vector<128x128xf32>
    %27 = arith.maximumf %25, %26 : vector<128x128xf32>
    %28 = arith.truncf %27 : vector<128x128xf32> to vector<128x128xbf16>
    %c0_13 = arith.constant 0 : index
    %c0_14 = arith.constant 0 : index
    %c0_15 = arith.constant 0 : index
    %29 = vector.load %arg4[%c0_13, %c0_14, %c0_15] : memref<9x32x128xbf16, #tpu.memory_space<vmem>>, vector<1x32x128xbf16>
    %30 = vector.shape_cast %29 : vector<1x32x128xbf16> to vector<32x128xbf16>
    %cst_16 = arith.constant dense<0.000000e+00> : vector<32x128xf32>
    %31 = tpu.matmul %30, %28, %cst_16 {dimension_numbers = #tpu.dot_dimension_numbers<[1], [0], [0], [1], [0, 0, 1, 1], [], []>} : vector<32x128xbf16>, vector<128x128xbf16>, vector<32x128xf32> -> vector<32x128xf32>
    %c1 = arith.constant 1 : index
    %c0_17 = arith.constant 0 : index
    %c0_18 = arith.constant 0 : index
    %32 = vector.load %arg4[%c1, %c0_17, %c0_18] : memref<9x32x128xbf16, #tpu.memory_space<vmem>>, vector<1x32x128xbf16>
    %33 = vector.shape_cast %32 : vector<1x32x128xbf16> to vector<32x128xbf16>
    %cst_19 = arith.constant dense<0.000000e+00> : vector<32x128xf32>
    %34 = tpu.matmul %33, %28, %cst_19 {dimension_numbers = #tpu.dot_dimension_numbers<[1], [0], [0], [1], [0, 0, 1, 1], [], []>} : vector<32x128xbf16>, vector<128x128xbf16>, vector<32x128xf32> -> vector<32x128xf32>
    %35 = arith.maximumf %31, %34 : vector<32x128xf32>
    %c2 = arith.constant 2 : index
    %c0_20 = arith.constant 0 : index
    %c0_21 = arith.constant 0 : index
    %36 = vector.load %arg4[%c2, %c0_20, %c0_21] : memref<9x32x128xbf16, #tpu.memory_space<vmem>>, vector<1x32x128xbf16>
    %37 = vector.shape_cast %36 : vector<1x32x128xbf16> to vector<32x128xbf16>
    %cst_22 = arith.constant dense<0.000000e+00> : vector<32x128xf32>
    %38 = tpu.matmul %37, %28, %cst_22 {dimension_numbers = #tpu.dot_dimension_numbers<[1], [0], [0], [1], [0, 0, 1, 1], [], []>} : vector<32x128xbf16>, vector<128x128xbf16>, vector<32x128xf32> -> vector<32x128xf32>
    %39 = arith.maximumf %35, %38 : vector<32x128xf32>
    %c3 = arith.constant 3 : index
    %c0_23 = arith.constant 0 : index
    %c0_24 = arith.constant 0 : index
    %40 = vector.load %arg4[%c3, %c0_23, %c0_24] : memref<9x32x128xbf16, #tpu.memory_space<vmem>>, vector<1x32x128xbf16>
    %41 = vector.shape_cast %40 : vector<1x32x128xbf16> to vector<32x128xbf16>
    %cst_25 = arith.constant dense<0.000000e+00> : vector<32x128xf32>
    %42 = tpu.matmul %41, %28, %cst_25 {dimension_numbers = #tpu.dot_dimension_numbers<[1], [0], [0], [1], [0, 0, 1, 1], [], []>} : vector<32x128xbf16>, vector<128x128xbf16>, vector<32x128xf32> -> vector<32x128xf32>
    %43 = arith.maximumf %39, %42 : vector<32x128xf32>
    %c4 = arith.constant 4 : index
    %c0_26 = arith.constant 0 : index
    %c0_27 = arith.constant 0 : index
    %44 = vector.load %arg4[%c4, %c0_26, %c0_27] : memref<9x32x128xbf16, #tpu.memory_space<vmem>>, vector<1x32x128xbf16>
    %45 = vector.shape_cast %44 : vector<1x32x128xbf16> to vector<32x128xbf16>
    %cst_28 = arith.constant dense<0.000000e+00> : vector<32x128xf32>
    %46 = tpu.matmul %45, %28, %cst_28 {dimension_numbers = #tpu.dot_dimension_numbers<[1], [0], [0], [1], [0, 0, 1, 1], [], []>} : vector<32x128xbf16>, vector<128x128xbf16>, vector<32x128xf32> -> vector<32x128xf32>
    %47 = arith.maximumf %43, %46 : vector<32x128xf32>
    %c5 = arith.constant 5 : index
    %c0_29 = arith.constant 0 : index
    %c0_30 = arith.constant 0 : index
    %48 = vector.load %arg4[%c5, %c0_29, %c0_30] : memref<9x32x128xbf16, #tpu.memory_space<vmem>>, vector<1x32x128xbf16>
    %49 = vector.shape_cast %48 : vector<1x32x128xbf16> to vector<32x128xbf16>
    %cst_31 = arith.constant dense<0.000000e+00> : vector<32x128xf32>
    %50 = tpu.matmul %49, %28, %cst_31 {dimension_numbers = #tpu.dot_dimension_numbers<[1], [0], [0], [1], [0, 0, 1, 1], [], []>} : vector<32x128xbf16>, vector<128x128xbf16>, vector<32x128xf32> -> vector<32x128xf32>
    %51 = arith.maximumf %47, %50 : vector<32x128xf32>
    %c6 = arith.constant 6 : index
    %c0_32 = arith.constant 0 : index
    %c0_33 = arith.constant 0 : index
    %52 = vector.load %arg4[%c6, %c0_32, %c0_33] : memref<9x32x128xbf16, #tpu.memory_space<vmem>>, vector<1x32x128xbf16>
    %53 = vector.shape_cast %52 : vector<1x32x128xbf16> to vector<32x128xbf16>
    %cst_34 = arith.constant dense<0.000000e+00> : vector<32x128xf32>
    %54 = tpu.matmul %53, %28, %cst_34 {dimension_numbers = #tpu.dot_dimension_numbers<[1], [0], [0], [1], [0, 0, 1, 1], [], []>} : vector<32x128xbf16>, vector<128x128xbf16>, vector<32x128xf32> -> vector<32x128xf32>
    %55 = arith.maximumf %51, %54 : vector<32x128xf32>
    %c7 = arith.constant 7 : index
    %c0_35 = arith.constant 0 : index
    %c0_36 = arith.constant 0 : index
    %56 = vector.load %arg4[%c7, %c0_35, %c0_36] : memref<9x32x128xbf16, #tpu.memory_space<vmem>>, vector<1x32x128xbf16>
    %57 = vector.shape_cast %56 : vector<1x32x128xbf16> to vector<32x128xbf16>
    %cst_37 = arith.constant dense<0.000000e+00> : vector<32x128xf32>
    %58 = tpu.matmul %57, %28, %cst_37 {dimension_numbers = #tpu.dot_dimension_numbers<[1], [0], [0], [1], [0, 0, 1, 1], [], []>} : vector<32x128xbf16>, vector<128x128xbf16>, vector<32x128xf32> -> vector<32x128xf32>
    %59 = arith.maximumf %55, %58 : vector<32x128xf32>
    %c8 = arith.constant 8 : index
    %c0_38 = arith.constant 0 : index
    %c0_39 = arith.constant 0 : index
    %60 = vector.load %arg4[%c8, %c0_38, %c0_39] : memref<9x32x128xbf16, #tpu.memory_space<vmem>>, vector<1x32x128xbf16>
    %61 = vector.shape_cast %60 : vector<1x32x128xbf16> to vector<32x128xbf16>
    %cst_40 = arith.constant dense<0.000000e+00> : vector<32x128xf32>
    %62 = tpu.matmul %61, %28, %cst_40 {dimension_numbers = #tpu.dot_dimension_numbers<[1], [0], [0], [1], [0, 0, 1, 1], [], []>} : vector<32x128xbf16>, vector<128x128xbf16>, vector<32x128xf32> -> vector<32x128xf32>
    %63 = arith.maximumf %59, %62 : vector<32x128xf32>
    %64 = arith.truncf %63 : vector<32x128xf32> to vector<32x128xbf16>
    %c0_41 = arith.constant 0 : index
    %c0_42 = arith.constant 0 : index
    %65 = vector.load %arg5[%c0_41, %c0_42] : memref<32x128xbf16, #tpu.memory_space<vmem>>, vector<32x128xbf16>
    tpu.vector_store %arg5[%c0_41, %c0_42], %64 {strides = array<i32>} : memref<32x128xbf16, #tpu.memory_space<vmem>>, vector<32x128xbf16>,
    return
  }
}

module attributes {stable_mosaic.version = 11 : i64} {
  func.func @kernel(%arg0: memref<32x64xbf16, #tpu.memory_space<vmem>>, %arg1: memref<9x32x32xbf16, #tpu.memory_space<vmem>>, %arg2: memref<1x64xf32, #tpu.memory_space<vmem>>, %arg3: memref<1x64xf32, #tpu.memory_space<vmem>>, %arg4: memref<64x48xbf16, #tpu.memory_space<vmem>>, %arg5: memref<1x48xf32, #tpu.memory_space<vmem>>, %arg6: memref<1x48xf32, #tpu.memory_space<vmem>>, %arg7: memref<9x48x12xbf16, #tpu.memory_space<vmem>>, %arg8: memref<1x64xf32, #tpu.memory_space<vmem>>, %arg9: memref<1x64xf32, #tpu.memory_space<vmem>>, %arg10: memref<64x38xbf16, #tpu.memory_space<vmem>>, %arg11: memref<1x12xf32, #tpu.memory_space<vmem>>, %arg12: memref<1x12xf32, #tpu.memory_space<vmem>>, %arg13: memref<12x38xbf16, #tpu.memory_space<vmem>>, %arg14: memref<8x32xbf16, #tpu.memory_space<vmem>>, %arg15: memref<9x8x8xbf16, #tpu.memory_space<vmem>>, %arg16: memref<1x38xf32, #tpu.memory_space<vmem>>, %arg17: memref<1x38xf32, #tpu.memory_space<vmem>>, %arg18: memref<38x48xbf16, #tpu.memory_space<vmem>>, %arg19: memref<1x48xf32, #tpu.memory_space<vmem>>, %arg20: memref<1x48xf32, #tpu.memory_space<vmem>>, %arg21: memref<9x48x12xbf16, #tpu.memory_space<vmem>>, %arg22: memref<1x38xf32, #tpu.memory_space<vmem>>, %arg23: memref<1x38xf32, #tpu.memory_space<vmem>>, %arg24: memref<38x128xbf16, #tpu.memory_space<vmem>>, %arg25: memref<1x12xf32, #tpu.memory_space<vmem>>, %arg26: memref<1x12xf32, #tpu.memory_space<vmem>>, %arg27: memref<12x128xbf16, #tpu.memory_space<vmem>>, %arg28: memref<8x8xbf16, #tpu.memory_space<vmem>>, %arg29: memref<1x128xf32, #tpu.memory_space<vmem>>, %arg30: memref<8x128xf32, #tpu.memory_space<vmem>>) attributes {dimension_semantics = [], scalar_prefetch = 0 : i64, scratch_operands = 0 : i64, tpu.core_type = #tpu.core_type<tc>} {
    %c0 = arith.constant 0 : index
    %c0_0 = arith.constant 0 : index
    %0 = vector.load %arg0[%c0, %c0_0] : memref<32x64xbf16, #tpu.memory_space<vmem>>, vector<32x64xbf16>
    %1 = arith.extf %0 : vector<32x64xbf16> to vector<32x64xf32>
    %c0_1 = arith.constant 0 : index
    %c0_2 = arith.constant 0 : index
    %2 = vector.load %arg2[%c0_1, %c0_2] : memref<1x64xf32, #tpu.memory_space<vmem>>, vector<1x64xf32>
    %c0_3 = arith.constant 0 : index
    %c0_4 = arith.constant 0 : index
    %3 = vector.load %arg3[%c0_3, %c0_4] : memref<1x64xf32, #tpu.memory_space<vmem>>, vector<1x64xf32>
    %cst = arith.constant dense<0.000000e+00> : vector<64xf32>
    %4 = vector.multi_reduction <add>, %1, %cst [0] : vector<32x64xf32> to vector<64xf32>
    %5 = vector.shape_cast %4 : vector<64xf32> to vector<1x64xf32>
    %cst_5 = arith.constant 3.200000e+01 : f32
    %6 = vector.broadcast %cst_5 : f32 to vector<1x64xf32>
    %7 = arith.divf %5, %6 : vector<1x64xf32>
    %8 = vector.broadcast %7 : vector<1x64xf32> to vector<32x64xf32>
    %9 = arith.subf %1, %8 : vector<32x64xf32>
    %10 = arith.mulf %9, %9 : vector<32x64xf32>
    %cst_6 = arith.constant dense<0.000000e+00> : vector<64xf32>
    %11 = vector.multi_reduction <add>, %10, %cst_6 [0] : vector<32x64xf32> to vector<64xf32>
    %12 = vector.shape_cast %11 : vector<64xf32> to vector<1x64xf32>
    %cst_7 = arith.constant 3.200000e+01 : f32
    %13 = vector.broadcast %cst_7 : f32 to vector<1x64xf32>
    %14 = arith.divf %12, %13 : vector<1x64xf32>
    %15 = vector.broadcast %7 : vector<1x64xf32> to vector<32x64xf32>
    %16 = arith.subf %1, %15 : vector<32x64xf32>
    %cst_8 = arith.constant 9.99999974E-6 : f32
    %17 = vector.broadcast %cst_8 : f32 to vector<1x64xf32>
    %18 = arith.addf %14, %17 : vector<1x64xf32>
    %19 = math.rsqrt %18 : vector<1x64xf32>
    %20 = arith.mulf %2, %19 : vector<1x64xf32>
    %21 = vector.broadcast %20 : vector<1x64xf32> to vector<32x64xf32>
    %22 = arith.mulf %16, %21 : vector<32x64xf32>
    %23 = vector.broadcast %3 : vector<1x64xf32> to vector<32x64xf32>
    %24 = arith.addf %22, %23 : vector<32x64xf32>
    %cst_9 = arith.constant 0.000000e+00 : f32
    %25 = vector.broadcast %cst_9 : f32 to vector<32x64xf32>
    %26 = arith.maximumf %24, %25 : vector<32x64xf32>
    %c0_10 = arith.constant 0 : index
    %c0_11 = arith.constant 0 : index
    %27 = vector.load %arg4[%c0_10, %c0_11] : memref<64x48xbf16, #tpu.memory_space<vmem>>, vector<64x48xbf16>
    %28 = arith.truncf %26 : vector<32x64xf32> to vector<32x64xbf16>
    %cst_12 = arith.constant dense<0.000000e+00> : vector<32x48xf32>
    %29 = tpu.matmul %28, %27, %cst_12 {dimension_numbers = #tpu.dot_dimension_numbers<[1], [0], [0], [1], [0, 0, 1, 1], [], []>} : vector<32x64xbf16>, vector<64x48xbf16>, vector<32x48xf32> -> vector<32x48xf32>
    %c0_13 = arith.constant 0 : index
    %c0_14 = arith.constant 0 : index
    %30 = vector.load %arg5[%c0_13, %c0_14] : memref<1x48xf32, #tpu.memory_space<vmem>>, vector<1x48xf32>
    %c0_15 = arith.constant 0 : index
    %c0_16 = arith.constant 0 : index
    %31 = vector.load %arg6[%c0_15, %c0_16] : memref<1x48xf32, #tpu.memory_space<vmem>>, vector<1x48xf32>
    %cst_17 = arith.constant dense<0.000000e+00> : vector<48xf32>
    %32 = vector.multi_reduction <add>, %29, %cst_17 [0] : vector<32x48xf32> to vector<48xf32>
    %33 = vector.shape_cast %32 : vector<48xf32> to vector<1x48xf32>
    %cst_18 = arith.constant 3.200000e+01 : f32
    %34 = vector.broadcast %cst_18 : f32 to vector<1x48xf32>
    %35 = arith.divf %33, %34 : vector<1x48xf32>
    %36 = vector.broadcast %35 : vector<1x48xf32> to vector<32x48xf32>
    %37 = arith.subf %29, %36 : vector<32x48xf32>
    %38 = arith.mulf %37, %37 : vector<32x48xf32>
    %cst_19 = arith.constant dense<0.000000e+00> : vector<48xf32>
    %39 = vector.multi_reduction <add>, %38, %cst_19 [0] : vector<32x48xf32> to vector<48xf32>
    %40 = vector.shape_cast %39 : vector<48xf32> to vector<1x48xf32>
    %cst_20 = arith.constant 3.200000e+01 : f32
    %41 = vector.broadcast %cst_20 : f32 to vector<1x48xf32>
    %42 = arith.divf %40, %41 : vector<1x48xf32>
    %43 = vector.broadcast %35 : vector<1x48xf32> to vector<32x48xf32>
    %44 = arith.subf %29, %43 : vector<32x48xf32>
    %cst_21 = arith.constant 9.99999974E-6 : f32
    %45 = vector.broadcast %cst_21 : f32 to vector<1x48xf32>
    %46 = arith.addf %42, %45 : vector<1x48xf32>
    %47 = math.rsqrt %46 : vector<1x48xf32>
    %48 = arith.mulf %30, %47 : vector<1x48xf32>
    %49 = vector.broadcast %48 : vector<1x48xf32> to vector<32x48xf32>
    %50 = arith.mulf %44, %49 : vector<32x48xf32>
    %51 = vector.broadcast %31 : vector<1x48xf32> to vector<32x48xf32>
    %52 = arith.addf %50, %51 : vector<32x48xf32>
    %cst_22 = arith.constant 0.000000e+00 : f32
    %53 = vector.broadcast %cst_22 : f32 to vector<32x48xf32>
    %54 = arith.maximumf %52, %53 : vector<32x48xf32>
    %c0_23 = arith.constant 0 : index
    %c0_24 = arith.constant 0 : index
    %c0_25 = arith.constant 0 : index
    %55 = vector.load %arg1[%c0_23, %c0_24, %c0_25] : memref<9x32x32xbf16, #tpu.memory_space<vmem>>, vector<1x32x32xbf16>
    %56 = vector.shape_cast %55 : vector<1x32x32xbf16> to vector<32x32xbf16>
    %57 = arith.truncf %54 : vector<32x48xf32> to vector<32x48xbf16>
    %cst_26 = arith.constant dense<0.000000e+00> : vector<32x48xf32>
    %58 = tpu.matmul %56, %57, %cst_26 {dimension_numbers = #tpu.dot_dimension_numbers<[1], [0], [0], [1], [0, 0, 1, 1], [], []>} : vector<32x32xbf16>, vector<32x48xbf16>, vector<32x48xf32> -> vector<32x48xf32>
    %c0_27 = arith.constant 0 : index
    %c0_28 = arith.constant 0 : index
    %c0_29 = arith.constant 0 : index
    %59 = vector.load %arg7[%c0_27, %c0_28, %c0_29] : memref<9x48x12xbf16, #tpu.memory_space<vmem>>, vector<1x48x12xbf16>
    %60 = vector.shape_cast %59 : vector<1x48x12xbf16> to vector<48x12xbf16>
    %61 = arith.truncf %58 : vector<32x48xf32> to vector<32x48xbf16>
    %cst_30 = arith.constant dense<0.000000e+00> : vector<32x12xf32>
    %62 = tpu.matmul %61, %60, %cst_30 {dimension_numbers = #tpu.dot_dimension_numbers<[1], [0], [0], [1], [0, 0, 1, 1], [], []>} : vector<32x48xbf16>, vector<48x12xbf16>, vector<32x12xf32> -> vector<32x12xf32>
    %c1 = arith.constant 1 : index
    %c0_31 = arith.constant 0 : index
    %c0_32 = arith.constant 0 : index
    %63 = vector.load %arg1[%c1, %c0_31, %c0_32] : memref<9x32x32xbf16, #tpu.memory_space<vmem>>, vector<1x32x32xbf16>
    %64 = vector.shape_cast %63 : vector<1x32x32xbf16> to vector<32x32xbf16>
    %65 = arith.truncf %54 : vector<32x48xf32> to vector<32x48xbf16>
    %cst_33 = arith.constant dense<0.000000e+00> : vector<32x48xf32>
    %66 = tpu.matmul %64, %65, %cst_33 {dimension_numbers = #tpu.dot_dimension_numbers<[1], [0], [0], [1], [0, 0, 1, 1], [], []>} : vector<32x32xbf16>, vector<32x48xbf16>, vector<32x48xf32> -> vector<32x48xf32>
    %c1_34 = arith.constant 1 : index
    %c0_35 = arith.constant 0 : index
    %c0_36 = arith.constant 0 : index
    %67 = vector.load %arg7[%c1_34, %c0_35, %c0_36] : memref<9x48x12xbf16, #tpu.memory_space<vmem>>, vector<1x48x12xbf16>
    %68 = vector.shape_cast %67 : vector<1x48x12xbf16> to vector<48x12xbf16>
    %69 = arith.truncf %66 : vector<32x48xf32> to vector<32x48xbf16>
    %cst_37 = arith.constant dense<0.000000e+00> : vector<32x12xf32>
    %70 = tpu.matmul %69, %68, %cst_37 {dimension_numbers = #tpu.dot_dimension_numbers<[1], [0], [0], [1], [0, 0, 1, 1], [], []>} : vector<32x48xbf16>, vector<48x12xbf16>, vector<32x12xf32> -> vector<32x12xf32>
    %71 = arith.addf %62, %70 : vector<32x12xf32>
    %c2 = arith.constant 2 : index
    %c0_38 = arith.constant 0 : index
    %c0_39 = arith.constant 0 : index
    %72 = vector.load %arg1[%c2, %c0_38, %c0_39] : memref<9x32x32xbf16, #tpu.memory_space<vmem>>, vector<1x32x32xbf16>
    %73 = vector.shape_cast %72 : vector<1x32x32xbf16> to vector<32x32xbf16>
    %74 = arith.truncf %54 : vector<32x48xf32> to vector<32x48xbf16>
    %cst_40 = arith.constant dense<0.000000e+00> : vector<32x48xf32>
    %75 = tpu.matmul %73, %74, %cst_40 {dimension_numbers = #tpu.dot_dimension_numbers<[1], [0], [0], [1], [0, 0, 1, 1], [], []>} : vector<32x32xbf16>, vector<32x48xbf16>, vector<32x48xf32> -> vector<32x48xf32>
    %c2_41 = arith.constant 2 : index
    %c0_42 = arith.constant 0 : index
    %c0_43 = arith.constant 0 : index
    %76 = vector.load %arg7[%c2_41, %c0_42, %c0_43] : memref<9x48x12xbf16, #tpu.memory_space<vmem>>, vector<1x48x12xbf16>
    %77 = vector.shape_cast %76 : vector<1x48x12xbf16> to vector<48x12xbf16>
    %78 = arith.truncf %75 : vector<32x48xf32> to vector<32x48xbf16>
    %cst_44 = arith.constant dense<0.000000e+00> : vector<32x12xf32>
    %79 = tpu.matmul %78, %77, %cst_44 {dimension_numbers = #tpu.dot_dimension_numbers<[1], [0], [0], [1], [0, 0, 1, 1], [], []>} : vector<32x48xbf16>, vector<48x12xbf16>, vector<32x12xf32> -> vector<32x12xf32>
    %80 = arith.addf %71, %79 : vector<32x12xf32>
    %c3 = arith.constant 3 : index
    %c0_45 = arith.constant 0 : index
    %c0_46 = arith.constant 0 : index
    %81 = vector.load %arg1[%c3, %c0_45, %c0_46] : memref<9x32x32xbf16, #tpu.memory_space<vmem>>, vector<1x32x32xbf16>
    %82 = vector.shape_cast %81 : vector<1x32x32xbf16> to vector<32x32xbf16>
    %83 = arith.truncf %54 : vector<32x48xf32> to vector<32x48xbf16>
    %cst_47 = arith.constant dense<0.000000e+00> : vector<32x48xf32>
    %84 = tpu.matmul %82, %83, %cst_47 {dimension_numbers = #tpu.dot_dimension_numbers<[1], [0], [0], [1], [0, 0, 1, 1], [], []>} : vector<32x32xbf16>, vector<32x48xbf16>, vector<32x48xf32> -> vector<32x48xf32>
    %c3_48 = arith.constant 3 : index
    %c0_49 = arith.constant 0 : index
    %c0_50 = arith.constant 0 : index
    %85 = vector.load %arg7[%c3_48, %c0_49, %c0_50] : memref<9x48x12xbf16, #tpu.memory_space<vmem>>, vector<1x48x12xbf16>
    %86 = vector.shape_cast %85 : vector<1x48x12xbf16> to vector<48x12xbf16>
    %87 = arith.truncf %84 : vector<32x48xf32> to vector<32x48xbf16>
    %cst_51 = arith.constant dense<0.000000e+00> : vector<32x12xf32>
    %88 = tpu.matmul %87, %86, %cst_51 {dimension_numbers = #tpu.dot_dimension_numbers<[1], [0], [0], [1], [0, 0, 1, 1], [], []>} : vector<32x48xbf16>, vector<48x12xbf16>, vector<32x12xf32> -> vector<32x12xf32>
    %89 = arith.addf %80, %88 : vector<32x12xf32>
    %c4 = arith.constant 4 : index
    %c0_52 = arith.constant 0 : index
    %c0_53 = arith.constant 0 : index
    %90 = vector.load %arg1[%c4, %c0_52, %c0_53] : memref<9x32x32xbf16, #tpu.memory_space<vmem>>, vector<1x32x32xbf16>
    %91 = vector.shape_cast %90 : vector<1x32x32xbf16> to vector<32x32xbf16>
    %92 = arith.truncf %54 : vector<32x48xf32> to vector<32x48xbf16>
    %cst_54 = arith.constant dense<0.000000e+00> : vector<32x48xf32>
    %93 = tpu.matmul %91, %92, %cst_54 {dimension_numbers = #tpu.dot_dimension_numbers<[1], [0], [0], [1], [0, 0, 1, 1], [], []>} : vector<32x32xbf16>, vector<32x48xbf16>, vector<32x48xf32> -> vector<32x48xf32>
    %c4_55 = arith.constant 4 : index
    %c0_56 = arith.constant 0 : index
    %c0_57 = arith.constant 0 : index
    %94 = vector.load %arg7[%c4_55, %c0_56, %c0_57] : memref<9x48x12xbf16, #tpu.memory_space<vmem>>, vector<1x48x12xbf16>
    %95 = vector.shape_cast %94 : vector<1x48x12xbf16> to vector<48x12xbf16>
    %96 = arith.truncf %93 : vector<32x48xf32> to vector<32x48xbf16>
    %cst_58 = arith.constant dense<0.000000e+00> : vector<32x12xf32>
    %97 = tpu.matmul %96, %95, %cst_58 {dimension_numbers = #tpu.dot_dimension_numbers<[1], [0], [0], [1], [0, 0, 1, 1], [], []>} : vector<32x48xbf16>, vector<48x12xbf16>, vector<32x12xf32> -> vector<32x12xf32>
    %98 = arith.addf %89, %97 : vector<32x12xf32>
    %c5 = arith.constant 5 : index
    %c0_59 = arith.constant 0 : index
    %c0_60 = arith.constant 0 : index
    %99 = vector.load %arg1[%c5, %c0_59, %c0_60] : memref<9x32x32xbf16, #tpu.memory_space<vmem>>, vector<1x32x32xbf16>
    %100 = vector.shape_cast %99 : vector<1x32x32xbf16> to vector<32x32xbf16>
    %101 = arith.truncf %54 : vector<32x48xf32> to vector<32x48xbf16>
    %cst_61 = arith.constant dense<0.000000e+00> : vector<32x48xf32>
    %102 = tpu.matmul %100, %101, %cst_61 {dimension_numbers = #tpu.dot_dimension_numbers<[1], [0], [0], [1], [0, 0, 1, 1], [], []>} : vector<32x32xbf16>, vector<32x48xbf16>, vector<32x48xf32> -> vector<32x48xf32>
    %c5_62 = arith.constant 5 : index
    %c0_63 = arith.constant 0 : index
    %c0_64 = arith.constant 0 : index
    %103 = vector.load %arg7[%c5_62, %c0_63, %c0_64] : memref<9x48x12xbf16, #tpu.memory_space<vmem>>, vector<1x48x12xbf16>
    %104 = vector.shape_cast %103 : vector<1x48x12xbf16> to vector<48x12xbf16>
    %105 = arith.truncf %102 : vector<32x48xf32> to vector<32x48xbf16>
    %cst_65 = arith.constant dense<0.000000e+00> : vector<32x12xf32>
    %106 = tpu.matmul %105, %104, %cst_65 {dimension_numbers = #tpu.dot_dimension_numbers<[1], [0], [0], [1], [0, 0, 1, 1], [], []>} : vector<32x48xbf16>, vector<48x12xbf16>, vector<32x12xf32> -> vector<32x12xf32>
    %107 = arith.addf %98, %106 : vector<32x12xf32>
    %c6 = arith.constant 6 : index
    %c0_66 = arith.constant 0 : index
    %c0_67 = arith.constant 0 : index
    %108 = vector.load %arg1[%c6, %c0_66, %c0_67] : memref<9x32x32xbf16, #tpu.memory_space<vmem>>, vector<1x32x32xbf16>
    %109 = vector.shape_cast %108 : vector<1x32x32xbf16> to vector<32x32xbf16>
    %110 = arith.truncf %54 : vector<32x48xf32> to vector<32x48xbf16>
    %cst_68 = arith.constant dense<0.000000e+00> : vector<32x48xf32>
    %111 = tpu.matmul %109, %110, %cst_68 {dimension_numbers = #tpu.dot_dimension_numbers<[1], [0], [0], [1], [0, 0, 1, 1], [], []>} : vector<32x32xbf16>, vector<32x48xbf16>, vector<32x48xf32> -> vector<32x48xf32>
    %c6_69 = arith.constant 6 : index
    %c0_70 = arith.constant 0 : index
    %c0_71 = arith.constant 0 : index
    %112 = vector.load %arg7[%c6_69, %c0_70, %c0_71] : memref<9x48x12xbf16, #tpu.memory_space<vmem>>, vector<1x48x12xbf16>
    %113 = vector.shape_cast %112 : vector<1x48x12xbf16> to vector<48x12xbf16>
    %114 = arith.truncf %111 : vector<32x48xf32> to vector<32x48xbf16>
    %cst_72 = arith.constant dense<0.000000e+00> : vector<32x12xf32>
    %115 = tpu.matmul %114, %113, %cst_72 {dimension_numbers = #tpu.dot_dimension_numbers<[1], [0], [0], [1], [0, 0, 1, 1], [], []>} : vector<32x48xbf16>, vector<48x12xbf16>, vector<32x12xf32> -> vector<32x12xf32>
    %116 = arith.addf %107, %115 : vector<32x12xf32>
    %c7 = arith.constant 7 : index
    %c0_73 = arith.constant 0 : index
    %c0_74 = arith.constant 0 : index
    %117 = vector.load %arg1[%c7, %c0_73, %c0_74] : memref<9x32x32xbf16, #tpu.memory_space<vmem>>, vector<1x32x32xbf16>
    %118 = vector.shape_cast %117 : vector<1x32x32xbf16> to vector<32x32xbf16>
    %119 = arith.truncf %54 : vector<32x48xf32> to vector<32x48xbf16>
    %cst_75 = arith.constant dense<0.000000e+00> : vector<32x48xf32>
    %120 = tpu.matmul %118, %119, %cst_75 {dimension_numbers = #tpu.dot_dimension_numbers<[1], [0], [0], [1], [0, 0, 1, 1], [], []>} : vector<32x32xbf16>, vector<32x48xbf16>, vector<32x48xf32> -> vector<32x48xf32>
    %c7_76 = arith.constant 7 : index
    %c0_77 = arith.constant 0 : index
    %c0_78 = arith.constant 0 : index
    %121 = vector.load %arg7[%c7_76, %c0_77, %c0_78] : memref<9x48x12xbf16, #tpu.memory_space<vmem>>, vector<1x48x12xbf16>
    %122 = vector.shape_cast %121 : vector<1x48x12xbf16> to vector<48x12xbf16>
    %123 = arith.truncf %120 : vector<32x48xf32> to vector<32x48xbf16>
    %cst_79 = arith.constant dense<0.000000e+00> : vector<32x12xf32>
    %124 = tpu.matmul %123, %122, %cst_79 {dimension_numbers = #tpu.dot_dimension_numbers<[1], [0], [0], [1], [0, 0, 1, 1], [], []>} : vector<32x48xbf16>, vector<48x12xbf16>, vector<32x12xf32> -> vector<32x12xf32>
    %125 = arith.addf %116, %124 : vector<32x12xf32>
    %c8 = arith.constant 8 : index
    %c0_80 = arith.constant 0 : index
    %c0_81 = arith.constant 0 : index
    %126 = vector.load %arg1[%c8, %c0_80, %c0_81] : memref<9x32x32xbf16, #tpu.memory_space<vmem>>, vector<1x32x32xbf16>
    %127 = vector.shape_cast %126 : vector<1x32x32xbf16> to vector<32x32xbf16>
    %128 = arith.truncf %54 : vector<32x48xf32> to vector<32x48xbf16>
    %cst_82 = arith.constant dense<0.000000e+00> : vector<32x48xf32>
    %129 = tpu.matmul %127, %128, %cst_82 {dimension_numbers = #tpu.dot_dimension_numbers<[1], [0], [0], [1], [0, 0, 1, 1], [], []>} : vector<32x32xbf16>, vector<32x48xbf16>, vector<32x48xf32> -> vector<32x48xf32>
    %c8_83 = arith.constant 8 : index
    %c0_84 = arith.constant 0 : index
    %c0_85 = arith.constant 0 : index
    %130 = vector.load %arg7[%c8_83, %c0_84, %c0_85] : memref<9x48x12xbf16, #tpu.memory_space<vmem>>, vector<1x48x12xbf16>
    %131 = vector.shape_cast %130 : vector<1x48x12xbf16> to vector<48x12xbf16>
    %132 = arith.truncf %129 : vector<32x48xf32> to vector<32x48xbf16>
    %cst_86 = arith.constant dense<0.000000e+00> : vector<32x12xf32>
    %133 = tpu.matmul %132, %131, %cst_86 {dimension_numbers = #tpu.dot_dimension_numbers<[1], [0], [0], [1], [0, 0, 1, 1], [], []>} : vector<32x48xbf16>, vector<48x12xbf16>, vector<32x12xf32> -> vector<32x12xf32>
    %134 = arith.addf %125, %133 : vector<32x12xf32>
    %c0_87 = arith.constant 0 : index
    %c0_88 = arith.constant 0 : index
    %135 = vector.load %arg8[%c0_87, %c0_88] : memref<1x64xf32, #tpu.memory_space<vmem>>, vector<1x64xf32>
    %c0_89 = arith.constant 0 : index
    %c0_90 = arith.constant 0 : index
    %136 = vector.load %arg9[%c0_89, %c0_90] : memref<1x64xf32, #tpu.memory_space<vmem>>, vector<1x64xf32>
    %cst_91 = arith.constant dense<0.000000e+00> : vector<64xf32>
    %137 = vector.multi_reduction <add>, %1, %cst_91 [0] : vector<32x64xf32> to vector<64xf32>
    %138 = vector.shape_cast %137 : vector<64xf32> to vector<1x64xf32>
    %cst_92 = arith.constant 3.200000e+01 : f32
    %139 = vector.broadcast %cst_92 : f32 to vector<1x64xf32>
    %140 = arith.divf %138, %139 : vector<1x64xf32>
    %141 = vector.broadcast %140 : vector<1x64xf32> to vector<32x64xf32>
    %142 = arith.subf %1, %141 : vector<32x64xf32>
    %143 = arith.mulf %142, %142 : vector<32x64xf32>
    %cst_93 = arith.constant dense<0.000000e+00> : vector<64xf32>
    %144 = vector.multi_reduction <add>, %143, %cst_93 [0] : vector<32x64xf32> to vector<64xf32>
    %145 = vector.shape_cast %144 : vector<64xf32> to vector<1x64xf32>
    %cst_94 = arith.constant 3.200000e+01 : f32
    %146 = vector.broadcast %cst_94 : f32 to vector<1x64xf32>
    %147 = arith.divf %145, %146 : vector<1x64xf32>
    %148 = vector.broadcast %140 : vector<1x64xf32> to vector<32x64xf32>
    %149 = arith.subf %1, %148 : vector<32x64xf32>
    %cst_95 = arith.constant 9.99999974E-6 : f32
    %150 = vector.broadcast %cst_95 : f32 to vector<1x64xf32>
    %151 = arith.addf %147, %150 : vector<1x64xf32>
    %152 = math.rsqrt %151 : vector<1x64xf32>
    %153 = arith.mulf %135, %152 : vector<1x64xf32>
    %154 = vector.broadcast %153 : vector<1x64xf32> to vector<32x64xf32>
    %155 = arith.mulf %149, %154 : vector<32x64xf32>
    %156 = vector.broadcast %136 : vector<1x64xf32> to vector<32x64xf32>
    %157 = arith.addf %155, %156 : vector<32x64xf32>
    %cst_96 = arith.constant 0.000000e+00 : f32
    %158 = vector.broadcast %cst_96 : f32 to vector<32x64xf32>
    %159 = arith.maximumf %157, %158 : vector<32x64xf32>
    %c0_97 = arith.constant 0 : index
    %c0_98 = arith.constant 0 : index
    %160 = vector.load %arg10[%c0_97, %c0_98] : memref<64x38xbf16, #tpu.memory_space<vmem>>, vector<64x38xbf16>
    %161 = arith.truncf %159 : vector<32x64xf32> to vector<32x64xbf16>
    %cst_99 = arith.constant dense<0.000000e+00> : vector<32x38xf32>
    %162 = tpu.matmul %161, %160, %cst_99 {dimension_numbers = #tpu.dot_dimension_numbers<[1], [0], [0], [1], [0, 0, 1, 1], [], []>} : vector<32x64xbf16>, vector<64x38xbf16>, vector<32x38xf32> -> vector<32x38xf32>
    %c0_100 = arith.constant 0 : index
    %c0_101 = arith.constant 0 : index
    %163 = vector.load %arg11[%c0_100, %c0_101] : memref<1x12xf32, #tpu.memory_space<vmem>>, vector<1x12xf32>
    %c0_102 = arith.constant 0 : index
    %c0_103 = arith.constant 0 : index
    %164 = vector.load %arg12[%c0_102, %c0_103] : memref<1x12xf32, #tpu.memory_space<vmem>>, vector<1x12xf32>
    %cst_104 = arith.constant dense<0.000000e+00> : vector<12xf32>
    %165 = vector.multi_reduction <add>, %134, %cst_104 [0] : vector<32x12xf32> to vector<12xf32>
    %166 = vector.shape_cast %165 : vector<12xf32> to vector<1x12xf32>
    %cst_105 = arith.constant 3.200000e+01 : f32
    %167 = vector.broadcast %cst_105 : f32 to vector<1x12xf32>
    %168 = arith.divf %166, %167 : vector<1x12xf32>
    %169 = vector.broadcast %168 : vector<1x12xf32> to vector<32x12xf32>
    %170 = arith.subf %134, %169 : vector<32x12xf32>
    %171 = arith.mulf %170, %170 : vector<32x12xf32>
    %cst_106 = arith.constant dense<0.000000e+00> : vector<12xf32>
    %172 = vector.multi_reduction <add>, %171, %cst_106 [0] : vector<32x12xf32> to vector<12xf32>
    %173 = vector.shape_cast %172 : vector<12xf32> to vector<1x12xf32>
    %cst_107 = arith.constant 3.200000e+01 : f32
    %174 = vector.broadcast %cst_107 : f32 to vector<1x12xf32>
    %175 = arith.divf %173, %174 : vector<1x12xf32>
    %176 = vector.broadcast %168 : vector<1x12xf32> to vector<32x12xf32>
    %177 = arith.subf %134, %176 : vector<32x12xf32>
    %cst_108 = arith.constant 9.99999974E-6 : f32
    %178 = vector.broadcast %cst_108 : f32 to vector<1x12xf32>
    %179 = arith.addf %175, %178 : vector<1x12xf32>
    %180 = math.rsqrt %179 : vector<1x12xf32>
    %181 = arith.mulf %163, %180 : vector<1x12xf32>
    %182 = vector.broadcast %181 : vector<1x12xf32> to vector<32x12xf32>
    %183 = arith.mulf %177, %182 : vector<32x12xf32>
    %184 = vector.broadcast %164 : vector<1x12xf32> to vector<32x12xf32>
    %185 = arith.addf %183, %184 : vector<32x12xf32>
    %cst_109 = arith.constant 0.000000e+00 : f32
    %186 = vector.broadcast %cst_109 : f32 to vector<32x12xf32>
    %187 = arith.maximumf %185, %186 : vector<32x12xf32>
    %c0_110 = arith.constant 0 : index
    %c0_111 = arith.constant 0 : index
    %188 = vector.load %arg13[%c0_110, %c0_111] : memref<12x38xbf16, #tpu.memory_space<vmem>>, vector<12x38xbf16>
    %189 = arith.truncf %187 : vector<32x12xf32> to vector<32x12xbf16>
    %cst_112 = arith.constant dense<0.000000e+00> : vector<32x38xf32>
    %190 = tpu.matmul %189, %188, %cst_112 {dimension_numbers = #tpu.dot_dimension_numbers<[1], [0], [0], [1], [0, 0, 1, 1], [], []>} : vector<32x12xbf16>, vector<12x38xbf16>, vector<32x38xf32> -> vector<32x38xf32>
    %191 = arith.addf %162, %190 : vector<32x38xf32>
    %c0_113 = arith.constant 0 : index
    %c0_114 = arith.constant 0 : index
    %192 = vector.load %arg14[%c0_113, %c0_114] : memref<8x32xbf16, #tpu.memory_space<vmem>>, vector<8x32xbf16>
    %193 = arith.truncf %191 : vector<32x38xf32> to vector<32x38xbf16>
    %cst_115 = arith.constant dense<0.000000e+00> : vector<8x38xf32>
    %194 = tpu.matmul %192, %193, %cst_115 {dimension_numbers = #tpu.dot_dimension_numbers<[1], [0], [0], [1], [0, 0, 1, 1], [], []>} : vector<8x32xbf16>, vector<32x38xbf16>, vector<8x38xf32> -> vector<8x38xf32>
    %c0_116 = arith.constant 0 : index
    %c0_117 = arith.constant 0 : index
    %195 = vector.load %arg16[%c0_116, %c0_117] : memref<1x38xf32, #tpu.memory_space<vmem>>, vector<1x38xf32>
    %c0_118 = arith.constant 0 : index
    %c0_119 = arith.constant 0 : index
    %196 = vector.load %arg17[%c0_118, %c0_119] : memref<1x38xf32, #tpu.memory_space<vmem>>, vector<1x38xf32>
    %cst_120 = arith.constant dense<0.000000e+00> : vector<38xf32>
    %197 = vector.multi_reduction <add>, %194, %cst_120 [0] : vector<8x38xf32> to vector<38xf32>
    %198 = vector.shape_cast %197 : vector<38xf32> to vector<1x38xf32>
    %cst_121 = arith.constant 8.000000e+00 : f32
    %199 = vector.broadcast %cst_121 : f32 to vector<1x38xf32>
    %200 = arith.divf %198, %199 : vector<1x38xf32>
    %201 = vector.broadcast %200 : vector<1x38xf32> to vector<8x38xf32>
    %202 = arith.subf %194, %201 : vector<8x38xf32>
    %203 = arith.mulf %202, %202 : vector<8x38xf32>
    %cst_122 = arith.constant dense<0.000000e+00> : vector<38xf32>
    %204 = vector.multi_reduction <add>, %203, %cst_122 [0] : vector<8x38xf32> to vector<38xf32>
    %205 = vector.shape_cast %204 : vector<38xf32> to vector<1x38xf32>
    %cst_123 = arith.constant 8.000000e+00 : f32
    %206 = vector.broadcast %cst_123 : f32 to vector<1x38xf32>
    %207 = arith.divf %205, %206 : vector<1x38xf32>
    %208 = vector.broadcast %200 : vector<1x38xf32> to vector<8x38xf32>
    %209 = arith.subf %194, %208 : vector<8x38xf32>
    %cst_124 = arith.constant 9.99999974E-6 : f32
    %210 = vector.broadcast %cst_124 : f32 to vector<1x38xf32>
    %211 = arith.addf %207, %210 : vector<1x38xf32>
    %212 = math.rsqrt %211 : vector<1x38xf32>
    %213 = arith.mulf %195, %212 : vector<1x38xf32>
    %214 = vector.broadcast %213 : vector<1x38xf32> to vector<8x38xf32>
    %215 = arith.mulf %209, %214 : vector<8x38xf32>
    %216 = vector.broadcast %196 : vector<1x38xf32> to vector<8x38xf32>
    %217 = arith.addf %215, %216 : vector<8x38xf32>
    %cst_125 = arith.constant 0.000000e+00 : f32
    %218 = vector.broadcast %cst_125 : f32 to vector<8x38xf32>
    %219 = arith.maximumf %217, %218 : vector<8x38xf32>
    %c0_126 = arith.constant 0 : index
    %c0_127 = arith.constant 0 : index
    %220 = vector.load %arg18[%c0_126, %c0_127] : memref<38x48xbf16, #tpu.memory_space<vmem>>, vector<38x48xbf16>
    %221 = arith.truncf %219 : vector<8x38xf32> to vector<8x38xbf16>
    %cst_128 = arith.constant dense<0.000000e+00> : vector<8x48xf32>
    %222 = tpu.matmul %221, %220, %cst_128 {dimension_numbers = #tpu.dot_dimension_numbers<[1], [0], [0], [1], [0, 0, 1, 1], [], []>} : vector<8x38xbf16>, vector<38x48xbf16>, vector<8x48xf32> -> vector<8x48xf32>
    %c0_129 = arith.constant 0 : index
    %c0_130 = arith.constant 0 : index
    %223 = vector.load %arg19[%c0_129, %c0_130] : memref<1x48xf32, #tpu.memory_space<vmem>>, vector<1x48xf32>
    %c0_131 = arith.constant 0 : index
    %c0_132 = arith.constant 0 : index
    %224 = vector.load %arg20[%c0_131, %c0_132] : memref<1x48xf32, #tpu.memory_space<vmem>>, vector<1x48xf32>
    %cst_133 = arith.constant dense<0.000000e+00> : vector<48xf32>
    %225 = vector.multi_reduction <add>, %222, %cst_133 [0] : vector<8x48xf32> to vector<48xf32>
    %226 = vector.shape_cast %225 : vector<48xf32> to vector<1x48xf32>
    %cst_134 = arith.constant 8.000000e+00 : f32
    %227 = vector.broadcast %cst_134 : f32 to vector<1x48xf32>
    %228 = arith.divf %226, %227 : vector<1x48xf32>
    %229 = vector.broadcast %228 : vector<1x48xf32> to vector<8x48xf32>
    %230 = arith.subf %222, %229 : vector<8x48xf32>
    %231 = arith.mulf %230, %230 : vector<8x48xf32>
    %cst_135 = arith.constant dense<0.000000e+00> : vector<48xf32>
    %232 = vector.multi_reduction <add>, %231, %cst_135 [0] : vector<8x48xf32> to vector<48xf32>
    %233 = vector.shape_cast %232 : vector<48xf32> to vector<1x48xf32>
    %cst_136 = arith.constant 8.000000e+00 : f32
    %234 = vector.broadcast %cst_136 : f32 to vector<1x48xf32>
    %235 = arith.divf %233, %234 : vector<1x48xf32>
    %236 = vector.broadcast %228 : vector<1x48xf32> to vector<8x48xf32>
    %237 = arith.subf %222, %236 : vector<8x48xf32>
    %cst_137 = arith.constant 9.99999974E-6 : f32
    %238 = vector.broadcast %cst_137 : f32 to vector<1x48xf32>
    %239 = arith.addf %235, %238 : vector<1x48xf32>
    %240 = math.rsqrt %239 : vector<1x48xf32>
    %241 = arith.mulf %223, %240 : vector<1x48xf32>
    %242 = vector.broadcast %241 : vector<1x48xf32> to vector<8x48xf32>
    %243 = arith.mulf %237, %242 : vector<8x48xf32>
    %244 = vector.broadcast %224 : vector<1x48xf32> to vector<8x48xf32>
    %245 = arith.addf %243, %244 : vector<8x48xf32>
    %cst_138 = arith.constant 0.000000e+00 : f32
    %246 = vector.broadcast %cst_138 : f32 to vector<8x48xf32>
    %247 = arith.maximumf %245, %246 : vector<8x48xf32>
    %c0_139 = arith.constant 0 : index
    %c0_140 = arith.constant 0 : index
    %c0_141 = arith.constant 0 : index
    %248 = vector.load %arg15[%c0_139, %c0_140, %c0_141] : memref<9x8x8xbf16, #tpu.memory_space<vmem>>, vector<1x8x8xbf16>
    %249 = vector.shape_cast %248 : vector<1x8x8xbf16> to vector<8x8xbf16>
    %250 = arith.truncf %247 : vector<8x48xf32> to vector<8x48xbf16>
    %cst_142 = arith.constant dense<0.000000e+00> : vector<8x48xf32>
    %251 = tpu.matmul %249, %250, %cst_142 {dimension_numbers = #tpu.dot_dimension_numbers<[1], [0], [0], [1], [0, 0, 1, 1], [], []>} : vector<8x8xbf16>, vector<8x48xbf16>, vector<8x48xf32> -> vector<8x48xf32>
    %c0_143 = arith.constant 0 : index
    %c0_144 = arith.constant 0 : index
    %c0_145 = arith.constant 0 : index
    %252 = vector.load %arg21[%c0_143, %c0_144, %c0_145] : memref<9x48x12xbf16, #tpu.memory_space<vmem>>, vector<1x48x12xbf16>
    %253 = vector.shape_cast %252 : vector<1x48x12xbf16> to vector<48x12xbf16>
    %254 = arith.truncf %251 : vector<8x48xf32> to vector<8x48xbf16>
    %cst_146 = arith.constant dense<0.000000e+00> : vector<8x12xf32>
    %255 = tpu.matmul %254, %253, %cst_146 {dimension_numbers = #tpu.dot_dimension_numbers<[1], [0], [0], [1], [0, 0, 1, 1], [], []>} : vector<8x48xbf16>, vector<48x12xbf16>, vector<8x12xf32> -> vector<8x12xf32>
    %c1_147 = arith.constant 1 : index
    %c0_148 = arith.constant 0 : index
    %c0_149 = arith.constant 0 : index
    %256 = vector.load %arg15[%c1_147, %c0_148, %c0_149] : memref<9x8x8xbf16, #tpu.memory_space<vmem>>, vector<1x8x8xbf16>
    %257 = vector.shape_cast %256 : vector<1x8x8xbf16> to vector<8x8xbf16>
    %258 = arith.truncf %247 : vector<8x48xf32> to vector<8x48xbf16>
    %cst_150 = arith.constant dense<0.000000e+00> : vector<8x48xf32>
    %259 = tpu.matmul %257, %258, %cst_150 {dimension_numbers = #tpu.dot_dimension_numbers<[1], [0], [0], [1], [0, 0, 1, 1], [], []>} : vector<8x8xbf16>, vector<8x48xbf16>, vector<8x48xf32> -> vector<8x48xf32>
    %c1_151 = arith.constant 1 : index
    %c0_152 = arith.constant 0 : index
    %c0_153 = arith.constant 0 : index
    %260 = vector.load %arg21[%c1_151, %c0_152, %c0_153] : memref<9x48x12xbf16, #tpu.memory_space<vmem>>, vector<1x48x12xbf16>
    %261 = vector.shape_cast %260 : vector<1x48x12xbf16> to vector<48x12xbf16>
    %262 = arith.truncf %259 : vector<8x48xf32> to vector<8x48xbf16>
    %cst_154 = arith.constant dense<0.000000e+00> : vector<8x12xf32>
    %263 = tpu.matmul %262, %261, %cst_154 {dimension_numbers = #tpu.dot_dimension_numbers<[1], [0], [0], [1], [0, 0, 1, 1], [], []>} : vector<8x48xbf16>, vector<48x12xbf16>, vector<8x12xf32> -> vector<8x12xf32>
    %264 = arith.addf %255, %263 : vector<8x12xf32>
    %c2_155 = arith.constant 2 : index
    %c0_156 = arith.constant 0 : index
    %c0_157 = arith.constant 0 : index
    %265 = vector.load %arg15[%c2_155, %c0_156, %c0_157] : memref<9x8x8xbf16, #tpu.memory_space<vmem>>, vector<1x8x8xbf16>
    %266 = vector.shape_cast %265 : vector<1x8x8xbf16> to vector<8x8xbf16>
    %267 = arith.truncf %247 : vector<8x48xf32> to vector<8x48xbf16>
    %cst_158 = arith.constant dense<0.000000e+00> : vector<8x48xf32>
    %268 = tpu.matmul %266, %267, %cst_158 {dimension_numbers = #tpu.dot_dimension_numbers<[1], [0], [0], [1], [0, 0, 1, 1], [], []>} : vector<8x8xbf16>, vector<8x48xbf16>, vector<8x48xf32> -> vector<8x48xf32>
    %c2_159 = arith.constant 2 : index
    %c0_160 = arith.constant 0 : index
    %c0_161 = arith.constant 0 : index
    %269 = vector.load %arg21[%c2_159, %c0_160, %c0_161] : memref<9x48x12xbf16, #tpu.memory_space<vmem>>, vector<1x48x12xbf16>
    %270 = vector.shape_cast %269 : vector<1x48x12xbf16> to vector<48x12xbf16>
    %271 = arith.truncf %268 : vector<8x48xf32> to vector<8x48xbf16>
    %cst_162 = arith.constant dense<0.000000e+00> : vector<8x12xf32>
    %272 = tpu.matmul %271, %270, %cst_162 {dimension_numbers = #tpu.dot_dimension_numbers<[1], [0], [0], [1], [0, 0, 1, 1], [], []>} : vector<8x48xbf16>, vector<48x12xbf16>, vector<8x12xf32> -> vector<8x12xf32>
    %273 = arith.addf %264, %272 : vector<8x12xf32>
    %c3_163 = arith.constant 3 : index
    %c0_164 = arith.constant 0 : index
    %c0_165 = arith.constant 0 : index
    %274 = vector.load %arg15[%c3_163, %c0_164, %c0_165] : memref<9x8x8xbf16, #tpu.memory_space<vmem>>, vector<1x8x8xbf16>
    %275 = vector.shape_cast %274 : vector<1x8x8xbf16> to vector<8x8xbf16>
    %276 = arith.truncf %247 : vector<8x48xf32> to vector<8x48xbf16>
    %cst_166 = arith.constant dense<0.000000e+00> : vector<8x48xf32>
    %277 = tpu.matmul %275, %276, %cst_166 {dimension_numbers = #tpu.dot_dimension_numbers<[1], [0], [0], [1], [0, 0, 1, 1], [], []>} : vector<8x8xbf16>, vector<8x48xbf16>, vector<8x48xf32> -> vector<8x48xf32>
    %c3_167 = arith.constant 3 : index
    %c0_168 = arith.constant 0 : index
    %c0_169 = arith.constant 0 : index
    %278 = vector.load %arg21[%c3_167, %c0_168, %c0_169] : memref<9x48x12xbf16, #tpu.memory_space<vmem>>, vector<1x48x12xbf16>
    %279 = vector.shape_cast %278 : vector<1x48x12xbf16> to vector<48x12xbf16>
    %280 = arith.truncf %277 : vector<8x48xf32> to vector<8x48xbf16>
    %cst_170 = arith.constant dense<0.000000e+00> : vector<8x12xf32>
    %281 = tpu.matmul %280, %279, %cst_170 {dimension_numbers = #tpu.dot_dimension_numbers<[1], [0], [0], [1], [0, 0, 1, 1], [], []>} : vector<8x48xbf16>, vector<48x12xbf16>, vector<8x12xf32> -> vector<8x12xf32>
    %282 = arith.addf %273, %281 : vector<8x12xf32>
    %c4_171 = arith.constant 4 : index
    %c0_172 = arith.constant 0 : index
    %c0_173 = arith.constant 0 : index
    %283 = vector.load %arg15[%c4_171, %c0_172, %c0_173] : memref<9x8x8xbf16, #tpu.memory_space<vmem>>, vector<1x8x8xbf16>
    %284 = vector.shape_cast %283 : vector<1x8x8xbf16> to vector<8x8xbf16>
    %285 = arith.truncf %247 : vector<8x48xf32> to vector<8x48xbf16>
    %cst_174 = arith.constant dense<0.000000e+00> : vector<8x48xf32>
    %286 = tpu.matmul %284, %285, %cst_174 {dimension_numbers = #tpu.dot_dimension_numbers<[1], [0], [0], [1], [0, 0, 1, 1], [], []>} : vector<8x8xbf16>, vector<8x48xbf16>, vector<8x48xf32> -> vector<8x48xf32>
    %c4_175 = arith.constant 4 : index
    %c0_176 = arith.constant 0 : index
    %c0_177 = arith.constant 0 : index
    %287 = vector.load %arg21[%c4_175, %c0_176, %c0_177] : memref<9x48x12xbf16, #tpu.memory_space<vmem>>, vector<1x48x12xbf16>
    %288 = vector.shape_cast %287 : vector<1x48x12xbf16> to vector<48x12xbf16>
    %289 = arith.truncf %286 : vector<8x48xf32> to vector<8x48xbf16>
    %cst_178 = arith.constant dense<0.000000e+00> : vector<8x12xf32>
    %290 = tpu.matmul %289, %288, %cst_178 {dimension_numbers = #tpu.dot_dimension_numbers<[1], [0], [0], [1], [0, 0, 1, 1], [], []>} : vector<8x48xbf16>, vector<48x12xbf16>, vector<8x12xf32> -> vector<8x12xf32>
    %291 = arith.addf %282, %290 : vector<8x12xf32>
    %c5_179 = arith.constant 5 : index
    %c0_180 = arith.constant 0 : index
    %c0_181 = arith.constant 0 : index
    %292 = vector.load %arg15[%c5_179, %c0_180, %c0_181] : memref<9x8x8xbf16, #tpu.memory_space<vmem>>, vector<1x8x8xbf16>
    %293 = vector.shape_cast %292 : vector<1x8x8xbf16> to vector<8x8xbf16>
    %294 = arith.truncf %247 : vector<8x48xf32> to vector<8x48xbf16>
    %cst_182 = arith.constant dense<0.000000e+00> : vector<8x48xf32>
    %295 = tpu.matmul %293, %294, %cst_182 {dimension_numbers = #tpu.dot_dimension_numbers<[1], [0], [0], [1], [0, 0, 1, 1], [], []>} : vector<8x8xbf16>, vector<8x48xbf16>, vector<8x48xf32> -> vector<8x48xf32>
    %c5_183 = arith.constant 5 : index
    %c0_184 = arith.constant 0 : index
    %c0_185 = arith.constant 0 : index
    %296 = vector.load %arg21[%c5_183, %c0_184, %c0_185] : memref<9x48x12xbf16, #tpu.memory_space<vmem>>, vector<1x48x12xbf16>
    %297 = vector.shape_cast %296 : vector<1x48x12xbf16> to vector<48x12xbf16>
    %298 = arith.truncf %295 : vector<8x48xf32> to vector<8x48xbf16>
    %cst_186 = arith.constant dense<0.000000e+00> : vector<8x12xf32>
    %299 = tpu.matmul %298, %297, %cst_186 {dimension_numbers = #tpu.dot_dimension_numbers<[1], [0], [0], [1], [0, 0, 1, 1], [], []>} : vector<8x48xbf16>, vector<48x12xbf16>, vector<8x12xf32> -> vector<8x12xf32>
    %300 = arith.addf %291, %299 : vector<8x12xf32>
    %c6_187 = arith.constant 6 : index
    %c0_188 = arith.constant 0 : index
    %c0_189 = arith.constant 0 : index
    %301 = vector.load %arg15[%c6_187, %c0_188, %c0_189] : memref<9x8x8xbf16, #tpu.memory_space<vmem>>, vector<1x8x8xbf16>
    %302 = vector.shape_cast %301 : vector<1x8x8xbf16> to vector<8x8xbf16>
    %303 = arith.truncf %247 : vector<8x48xf32> to vector<8x48xbf16>
    %cst_190 = arith.constant dense<0.000000e+00> : vector<8x48xf32>
    %304 = tpu.matmul %302, %303, %cst_190 {dimension_numbers = #tpu.dot_dimension_numbers<[1], [0], [0], [1], [0, 0, 1, 1], [], []>} : vector<8x8xbf16>, vector<8x48xbf16>, vector<8x48xf32> -> vector<8x48xf32>
    %c6_191 = arith.constant 6 : index
    %c0_192 = arith.constant 0 : index
    %c0_193 = arith.constant 0 : index
    %305 = vector.load %arg21[%c6_191, %c0_192, %c0_193] : memref<9x48x12xbf16, #tpu.memory_space<vmem>>, vector<1x48x12xbf16>
    %306 = vector.shape_cast %305 : vector<1x48x12xbf16> to vector<48x12xbf16>
    %307 = arith.truncf %304 : vector<8x48xf32> to vector<8x48xbf16>
    %cst_194 = arith.constant dense<0.000000e+00> : vector<8x12xf32>
    %308 = tpu.matmul %307, %306, %cst_194 {dimension_numbers = #tpu.dot_dimension_numbers<[1], [0], [0], [1], [0, 0, 1, 1], [], []>} : vector<8x48xbf16>, vector<48x12xbf16>, vector<8x12xf32> -> vector<8x12xf32>
    %309 = arith.addf %300, %308 : vector<8x12xf32>
    %c7_195 = arith.constant 7 : index
    %c0_196 = arith.constant 0 : index
    %c0_197 = arith.constant 0 : index
    %310 = vector.load %arg15[%c7_195, %c0_196, %c0_197] : memref<9x8x8xbf16, #tpu.memory_space<vmem>>, vector<1x8x8xbf16>
    %311 = vector.shape_cast %310 : vector<1x8x8xbf16> to vector<8x8xbf16>
    %312 = arith.truncf %247 : vector<8x48xf32> to vector<8x48xbf16>
    %cst_198 = arith.constant dense<0.000000e+00> : vector<8x48xf32>
    %313 = tpu.matmul %311, %312, %cst_198 {dimension_numbers = #tpu.dot_dimension_numbers<[1], [0], [0], [1], [0, 0, 1, 1], [], []>} : vector<8x8xbf16>, vector<8x48xbf16>, vector<8x48xf32> -> vector<8x48xf32>
    %c7_199 = arith.constant 7 : index
    %c0_200 = arith.constant 0 : index
    %c0_201 = arith.constant 0 : index
    %314 = vector.load %arg21[%c7_199, %c0_200, %c0_201] : memref<9x48x12xbf16, #tpu.memory_space<vmem>>, vector<1x48x12xbf16>
    %315 = vector.shape_cast %314 : vector<1x48x12xbf16> to vector<48x12xbf16>
    %316 = arith.truncf %313 : vector<8x48xf32> to vector<8x48xbf16>
    %cst_202 = arith.constant dense<0.000000e+00> : vector<8x12xf32>
    %317 = tpu.matmul %316, %315, %cst_202 {dimension_numbers = #tpu.dot_dimension_numbers<[1], [0], [0], [1], [0, 0, 1, 1], [], []>} : vector<8x48xbf16>, vector<48x12xbf16>, vector<8x12xf32> -> vector<8x12xf32>
    %318 = arith.addf %309, %317 : vector<8x12xf32>
    %c8_203 = arith.constant 8 : index
    %c0_204 = arith.constant 0 : index
    %c0_205 = arith.constant 0 : index
    %319 = vector.load %arg15[%c8_203, %c0_204, %c0_205] : memref<9x8x8xbf16, #tpu.memory_space<vmem>>, vector<1x8x8xbf16>
    %320 = vector.shape_cast %319 : vector<1x8x8xbf16> to vector<8x8xbf16>
    %321 = arith.truncf %247 : vector<8x48xf32> to vector<8x48xbf16>
    %cst_206 = arith.constant dense<0.000000e+00> : vector<8x48xf32>
    %322 = tpu.matmul %320, %321, %cst_206 {dimension_numbers = #tpu.dot_dimension_numbers<[1], [0], [0], [1], [0, 0, 1, 1], [], []>} : vector<8x8xbf16>, vector<8x48xbf16>, vector<8x48xf32> -> vector<8x48xf32>
    %c8_207 = arith.constant 8 : index
    %c0_208 = arith.constant 0 : index
    %c0_209 = arith.constant 0 : index
    %323 = vector.load %arg21[%c8_207, %c0_208, %c0_209] : memref<9x48x12xbf16, #tpu.memory_space<vmem>>, vector<1x48x12xbf16>
    %324 = vector.shape_cast %323 : vector<1x48x12xbf16> to vector<48x12xbf16>
    %325 = arith.truncf %322 : vector<8x48xf32> to vector<8x48xbf16>
    %cst_210 = arith.constant dense<0.000000e+00> : vector<8x12xf32>
    %326 = tpu.matmul %325, %324, %cst_210 {dimension_numbers = #tpu.dot_dimension_numbers<[1], [0], [0], [1], [0, 0, 1, 1], [], []>} : vector<8x48xbf16>, vector<48x12xbf16>, vector<8x12xf32> -> vector<8x12xf32>
    %327 = arith.addf %318, %326 : vector<8x12xf32>
    %c0_211 = arith.constant 0 : index
    %c0_212 = arith.constant 0 : index
    %328 = vector.load %arg28[%c0_211, %c0_212] : memref<8x8xbf16, #tpu.memory_space<vmem>>, vector<8x8xbf16>
    %c0_213 = arith.constant 0 : index
    %c0_214 = arith.constant 0 : index
    %329 = vector.load %arg22[%c0_213, %c0_214] : memref<1x38xf32, #tpu.memory_space<vmem>>, vector<1x38xf32>
    %c0_215 = arith.constant 0 : index
    %c0_216 = arith.constant 0 : index
    %330 = vector.load %arg23[%c0_215, %c0_216] : memref<1x38xf32, #tpu.memory_space<vmem>>, vector<1x38xf32>
    %cst_217 = arith.constant dense<0.000000e+00> : vector<38xf32>
    %331 = vector.multi_reduction <add>, %194, %cst_217 [0] : vector<8x38xf32> to vector<38xf32>
    %332 = vector.shape_cast %331 : vector<38xf32> to vector<1x38xf32>
    %cst_218 = arith.constant 8.000000e+00 : f32
    %333 = vector.broadcast %cst_218 : f32 to vector<1x38xf32>
    %334 = arith.divf %332, %333 : vector<1x38xf32>
    %335 = vector.broadcast %334 : vector<1x38xf32> to vector<8x38xf32>
    %336 = arith.subf %194, %335 : vector<8x38xf32>
    %337 = arith.mulf %336, %336 : vector<8x38xf32>
    %cst_219 = arith.constant dense<0.000000e+00> : vector<38xf32>
    %338 = vector.multi_reduction <add>, %337, %cst_219 [0] : vector<8x38xf32> to vector<38xf32>
    %339 = vector.shape_cast %338 : vector<38xf32> to vector<1x38xf32>
    %cst_220 = arith.constant 8.000000e+00 : f32
    %340 = vector.broadcast %cst_220 : f32 to vector<1x38xf32>
    %341 = arith.divf %339, %340 : vector<1x38xf32>
    %342 = vector.broadcast %334 : vector<1x38xf32> to vector<8x38xf32>
    %343 = arith.subf %194, %342 : vector<8x38xf32>
    %cst_221 = arith.constant 9.99999974E-6 : f32
    %344 = vector.broadcast %cst_221 : f32 to vector<1x38xf32>
    %345 = arith.addf %341, %344 : vector<1x38xf32>
    %346 = math.rsqrt %345 : vector<1x38xf32>
    %347 = arith.mulf %329, %346 : vector<1x38xf32>
    %348 = vector.broadcast %347 : vector<1x38xf32> to vector<8x38xf32>
    %349 = arith.mulf %343, %348 : vector<8x38xf32>
    %350 = vector.broadcast %330 : vector<1x38xf32> to vector<8x38xf32>
    %351 = arith.addf %349, %350 : vector<8x38xf32>
    %cst_222 = arith.constant 0.000000e+00 : f32
    %352 = vector.broadcast %cst_222 : f32 to vector<8x38xf32>
    %353 = arith.maximumf %351, %352 : vector<8x38xf32>
    %354 = arith.truncf %353 : vector<8x38xf32> to vector<8x38xbf16>
    %cst_223 = arith.constant dense<0.000000e+00> : vector<8x38xf32>
    %355 = tpu.matmul %328, %354, %cst_223 {dimension_numbers = #tpu.dot_dimension_numbers<[1], [0], [0], [1], [0, 0, 1, 1], [], []>} : vector<8x8xbf16>, vector<8x38xbf16>, vector<8x38xf32> -> vector<8x38xf32>
    %c0_224 = arith.constant 0 : index
    %c0_225 = arith.constant 0 : index
    %356 = vector.load %arg24[%c0_224, %c0_225] : memref<38x128xbf16, #tpu.memory_space<vmem>>, vector<38x128xbf16>
    %357 = arith.truncf %355 : vector<8x38xf32> to vector<8x38xbf16>
    %cst_226 = arith.constant dense<0.000000e+00> : vector<8x128xf32>
    %358 = tpu.matmul %357, %356, %cst_226 {dimension_numbers = #tpu.dot_dimension_numbers<[1], [0], [0], [1], [0, 0, 1, 1], [], []>} : vector<8x38xbf16>, vector<38x128xbf16>, vector<8x128xf32> -> vector<8x128xf32>
    %c0_227 = arith.constant 0 : index
    %c0_228 = arith.constant 0 : index
    %359 = vector.load %arg25[%c0_227, %c0_228] : memref<1x12xf32, #tpu.memory_space<vmem>>, vector<1x12xf32>
    %c0_229 = arith.constant 0 : index
    %c0_230 = arith.constant 0 : index
    %360 = vector.load %arg26[%c0_229, %c0_230] : memref<1x12xf32, #tpu.memory_space<vmem>>, vector<1x12xf32>
    %cst_231 = arith.constant dense<0.000000e+00> : vector<12xf32>
    %361 = vector.multi_reduction <add>, %327, %cst_231 [0] : vector<8x12xf32> to vector<12xf32>
    %362 = vector.shape_cast %361 : vector<12xf32> to vector<1x12xf32>
    %cst_232 = arith.constant 8.000000e+00 : f32
    %363 = vector.broadcast %cst_232 : f32 to vector<1x12xf32>
    %364 = arith.divf %362, %363 : vector<1x12xf32>
    %365 = vector.broadcast %364 : vector<1x12xf32> to vector<8x12xf32>
    %366 = arith.subf %327, %365 : vector<8x12xf32>
    %367 = arith.mulf %366, %366 : vector<8x12xf32>
    %cst_233 = arith.constant dense<0.000000e+00> : vector<12xf32>
    %368 = vector.multi_reduction <add>, %367, %cst_233 [0] : vector<8x12xf32> to vector<12xf32>
    %369 = vector.shape_cast %368 : vector<12xf32> to vector<1x12xf32>
    %cst_234 = arith.constant 8.000000e+00 : f32
    %370 = vector.broadcast %cst_234 : f32 to vector<1x12xf32>
    %371 = arith.divf %369, %370 : vector<1x12xf32>
    %372 = vector.broadcast %364 : vector<1x12xf32> to vector<8x12xf32>
    %373 = arith.subf %327, %372 : vector<8x12xf32>
    %cst_235 = arith.constant 9.99999974E-6 : f32
    %374 = vector.broadcast %cst_235 : f32 to vector<1x12xf32>
    %375 = arith.addf %371, %374 : vector<1x12xf32>
    %376 = math.rsqrt %375 : vector<1x12xf32>
    %377 = arith.mulf %359, %376 : vector<1x12xf32>
    %378 = vector.broadcast %377 : vector<1x12xf32> to vector<8x12xf32>
    %379 = arith.mulf %373, %378 : vector<8x12xf32>
    %380 = vector.broadcast %360 : vector<1x12xf32> to vector<8x12xf32>
    %381 = arith.addf %379, %380 : vector<8x12xf32>
    %cst_236 = arith.constant 0.000000e+00 : f32
    %382 = vector.broadcast %cst_236 : f32 to vector<8x12xf32>
    %383 = arith.maximumf %381, %382 : vector<8x12xf32>
    %384 = arith.truncf %383 : vector<8x12xf32> to vector<8x12xbf16>
    %cst_237 = arith.constant dense<0.000000e+00> : vector<8x12xf32>
    %385 = tpu.matmul %328, %384, %cst_237 {dimension_numbers = #tpu.dot_dimension_numbers<[1], [0], [0], [1], [0, 0, 1, 1], [], []>} : vector<8x8xbf16>, vector<8x12xbf16>, vector<8x12xf32> -> vector<8x12xf32>
    %c0_238 = arith.constant 0 : index
    %c0_239 = arith.constant 0 : index
    %386 = vector.load %arg27[%c0_238, %c0_239] : memref<12x128xbf16, #tpu.memory_space<vmem>>, vector<12x128xbf16>
    %387 = arith.truncf %385 : vector<8x12xf32> to vector<8x12xbf16>
    %cst_240 = arith.constant dense<0.000000e+00> : vector<8x128xf32>
    %388 = tpu.matmul %387, %386, %cst_240 {dimension_numbers = #tpu.dot_dimension_numbers<[1], [0], [0], [1], [0, 0, 1, 1], [], []>} : vector<8x12xbf16>, vector<12x128xbf16>, vector<8x128xf32> -> vector<8x128xf32>
    %389 = arith.addf %358, %388 : vector<8x128xf32>
    %c0_241 = arith.constant 0 : index
    %c0_242 = arith.constant 0 : index
    %390 = vector.load %arg29[%c0_241, %c0_242] : memref<1x128xf32, #tpu.memory_space<vmem>>, vector<1x128xf32>
    %391 = vector.broadcast %390 : vector<1x128xf32> to vector<8x128xf32>
    %392 = arith.addf %389, %391 : vector<8x128xf32>
    %c0_243 = arith.constant 0 : index
    %c0_244 = arith.constant 0 : index
    %393 = vector.load %arg30[%c0_243, %c0_244] : memref<8x128xf32, #tpu.memory_space<vmem>>, vector<8x128xf32>
    tpu.vector_store %arg30[%c0_243, %c0_244], %392 {strides = array<i32>} : memref<8x128xf32, #tpu.memory_space<vmem>>, vector<8x128xf32>,
    return
  }
}

module attributes {stable_mosaic.version = 11 : i64} {
  func.func @kernel(%arg0: memref<32x64xbf16, #tpu.memory_space<vmem>>, %arg1: memref<9x32x32xbf16, #tpu.memory_space<vmem>>, %arg2: memref<1x64xf32, #tpu.memory_space<vmem>>, %arg3: memref<1x64xf32, #tpu.memory_space<vmem>>, %arg4: memref<64x48xbf16, #tpu.memory_space<vmem>>, %arg5: memref<1x48xf32, #tpu.memory_space<vmem>>, %arg6: memref<1x48xf32, #tpu.memory_space<vmem>>, %arg7: memref<9x48x12xbf16, #tpu.memory_space<vmem>>, %arg8: memref<1x64xf32, #tpu.memory_space<vmem>>, %arg9: memref<1x64xf32, #tpu.memory_space<vmem>>, %arg10: memref<64x48xbf16, #tpu.memory_space<vmem>>, %arg11: memref<1x12xf32, #tpu.memory_space<vmem>>, %arg12: memref<1x12xf32, #tpu.memory_space<vmem>>, %arg13: memref<12x48xbf16, #tpu.memory_space<vmem>>, %arg14: memref<1x48xf32, #tpu.memory_space<vmem>>, %arg15: memref<1x48xf32, #tpu.memory_space<vmem>>, %arg16: memref<9x48x12xbf16, #tpu.memory_space<vmem>>, %arg17: memref<1x64xf32, #tpu.memory_space<vmem>>, %arg18: memref<1x64xf32, #tpu.memory_space<vmem>>, %arg19: memref<64x44xbf16, #tpu.memory_space<vmem>>, %arg20: memref<1x12xf32, #tpu.memory_space<vmem>>, %arg21: memref<1x12xf32, #tpu.memory_space<vmem>>, %arg22: memref<12x44xbf16, #tpu.memory_space<vmem>>, %arg23: memref<1x12xf32, #tpu.memory_space<vmem>>, %arg24: memref<1x12xf32, #tpu.memory_space<vmem>>, %arg25: memref<12x44xbf16, #tpu.memory_space<vmem>>, %arg26: memref<8x32xbf16, #tpu.memory_space<vmem>>, %arg27: memref<9x8x8xbf16, #tpu.memory_space<vmem>>, %arg28: memref<1x44xf32, #tpu.memory_space<vmem>>, %arg29: memref<1x44xf32, #tpu.memory_space<vmem>>, %arg30: memref<44x48xbf16, #tpu.memory_space<vmem>>, %arg31: memref<1x48xf32, #tpu.memory_space<vmem>>, %arg32: memref<1x48xf32, #tpu.memory_space<vmem>>, %arg33: memref<9x48x12xbf16, #tpu.memory_space<vmem>>, %arg34: memref<1x44xf32, #tpu.memory_space<vmem>>, %arg35: memref<1x44xf32, #tpu.memory_space<vmem>>, %arg36: memref<44x128xbf16, #tpu.memory_space<vmem>>, %arg37: memref<1x12xf32, #tpu.memory_space<vmem>>, %arg38: memref<1x12xf32, #tpu.memory_space<vmem>>, %arg39: memref<12x128xbf16, #tpu.memory_space<vmem>>, %arg40: memref<8x8xbf16, #tpu.memory_space<vmem>>, %arg41: memref<1x128xf32, #tpu.memory_space<vmem>>, %arg42: memref<8x128xf32, #tpu.memory_space<vmem>>) attributes {dimension_semantics = [], scalar_prefetch = 0 : i64, scratch_operands = 0 : i64, tpu.core_type = #tpu.core_type<tc>} {
    %c0 = arith.constant 0 : index
    %c0_0 = arith.constant 0 : index
    %0 = vector.load %arg0[%c0, %c0_0] : memref<32x64xbf16, #tpu.memory_space<vmem>>, vector<32x64xbf16>
    %1 = arith.extf %0 : vector<32x64xbf16> to vector<32x64xf32>
    %c0_1 = arith.constant 0 : index
    %c0_2 = arith.constant 0 : index
    %2 = vector.load %arg2[%c0_1, %c0_2] : memref<1x64xf32, #tpu.memory_space<vmem>>, vector<1x64xf32>
    %c0_3 = arith.constant 0 : index
    %c0_4 = arith.constant 0 : index
    %3 = vector.load %arg3[%c0_3, %c0_4] : memref<1x64xf32, #tpu.memory_space<vmem>>, vector<1x64xf32>
    %cst = arith.constant dense<0.000000e+00> : vector<64xf32>
    %4 = vector.multi_reduction <add>, %1, %cst [0] : vector<32x64xf32> to vector<64xf32>
    %5 = vector.shape_cast %4 : vector<64xf32> to vector<1x64xf32>
    %cst_5 = arith.constant 3.200000e+01 : f32
    %6 = vector.broadcast %cst_5 : f32 to vector<1x64xf32>
    %7 = arith.divf %5, %6 : vector<1x64xf32>
    %8 = vector.broadcast %7 : vector<1x64xf32> to vector<32x64xf32>
    %9 = arith.subf %1, %8 : vector<32x64xf32>
    %10 = arith.mulf %9, %9 : vector<32x64xf32>
    %cst_6 = arith.constant dense<0.000000e+00> : vector<64xf32>
    %11 = vector.multi_reduction <add>, %10, %cst_6 [0] : vector<32x64xf32> to vector<64xf32>
    %12 = vector.shape_cast %11 : vector<64xf32> to vector<1x64xf32>
    %cst_7 = arith.constant 3.200000e+01 : f32
    %13 = vector.broadcast %cst_7 : f32 to vector<1x64xf32>
    %14 = arith.divf %12, %13 : vector<1x64xf32>
    %15 = vector.broadcast %7 : vector<1x64xf32> to vector<32x64xf32>
    %16 = arith.subf %1, %15 : vector<32x64xf32>
    %cst_8 = arith.constant 9.99999974E-6 : f32
    %17 = vector.broadcast %cst_8 : f32 to vector<1x64xf32>
    %18 = arith.addf %14, %17 : vector<1x64xf32>
    %19 = math.rsqrt %18 : vector<1x64xf32>
    %20 = arith.mulf %2, %19 : vector<1x64xf32>
    %21 = vector.broadcast %20 : vector<1x64xf32> to vector<32x64xf32>
    %22 = arith.mulf %16, %21 : vector<32x64xf32>
    %23 = vector.broadcast %3 : vector<1x64xf32> to vector<32x64xf32>
    %24 = arith.addf %22, %23 : vector<32x64xf32>
    %cst_9 = arith.constant 0.000000e+00 : f32
    %25 = vector.broadcast %cst_9 : f32 to vector<32x64xf32>
    %26 = arith.maximumf %24, %25 : vector<32x64xf32>
    %c0_10 = arith.constant 0 : index
    %c0_11 = arith.constant 0 : index
    %27 = vector.load %arg4[%c0_10, %c0_11] : memref<64x48xbf16, #tpu.memory_space<vmem>>, vector<64x48xbf16>
    %28 = arith.truncf %26 : vector<32x64xf32> to vector<32x64xbf16>
    %cst_12 = arith.constant dense<0.000000e+00> : vector<32x48xf32>
    %29 = tpu.matmul %28, %27, %cst_12 {dimension_numbers = #tpu.dot_dimension_numbers<[1], [0], [0], [1], [0, 0, 1, 1], [], []>} : vector<32x64xbf16>, vector<64x48xbf16>, vector<32x48xf32> -> vector<32x48xf32>
    %c0_13 = arith.constant 0 : index
    %c0_14 = arith.constant 0 : index
    %30 = vector.load %arg5[%c0_13, %c0_14] : memref<1x48xf32, #tpu.memory_space<vmem>>, vector<1x48xf32>
    %c0_15 = arith.constant 0 : index
    %c0_16 = arith.constant 0 : index
    %31 = vector.load %arg6[%c0_15, %c0_16] : memref<1x48xf32, #tpu.memory_space<vmem>>, vector<1x48xf32>
    %cst_17 = arith.constant dense<0.000000e+00> : vector<48xf32>
    %32 = vector.multi_reduction <add>, %29, %cst_17 [0] : vector<32x48xf32> to vector<48xf32>
    %33 = vector.shape_cast %32 : vector<48xf32> to vector<1x48xf32>
    %cst_18 = arith.constant 3.200000e+01 : f32
    %34 = vector.broadcast %cst_18 : f32 to vector<1x48xf32>
    %35 = arith.divf %33, %34 : vector<1x48xf32>
    %36 = vector.broadcast %35 : vector<1x48xf32> to vector<32x48xf32>
    %37 = arith.subf %29, %36 : vector<32x48xf32>
    %38 = arith.mulf %37, %37 : vector<32x48xf32>
    %cst_19 = arith.constant dense<0.000000e+00> : vector<48xf32>
    %39 = vector.multi_reduction <add>, %38, %cst_19 [0] : vector<32x48xf32> to vector<48xf32>
    %40 = vector.shape_cast %39 : vector<48xf32> to vector<1x48xf32>
    %cst_20 = arith.constant 3.200000e+01 : f32
    %41 = vector.broadcast %cst_20 : f32 to vector<1x48xf32>
    %42 = arith.divf %40, %41 : vector<1x48xf32>
    %43 = vector.broadcast %35 : vector<1x48xf32> to vector<32x48xf32>
    %44 = arith.subf %29, %43 : vector<32x48xf32>
    %cst_21 = arith.constant 9.99999974E-6 : f32
    %45 = vector.broadcast %cst_21 : f32 to vector<1x48xf32>
    %46 = arith.addf %42, %45 : vector<1x48xf32>
    %47 = math.rsqrt %46 : vector<1x48xf32>
    %48 = arith.mulf %30, %47 : vector<1x48xf32>
    %49 = vector.broadcast %48 : vector<1x48xf32> to vector<32x48xf32>
    %50 = arith.mulf %44, %49 : vector<32x48xf32>
    %51 = vector.broadcast %31 : vector<1x48xf32> to vector<32x48xf32>
    %52 = arith.addf %50, %51 : vector<32x48xf32>
    %cst_22 = arith.constant 0.000000e+00 : f32
    %53 = vector.broadcast %cst_22 : f32 to vector<32x48xf32>
    %54 = arith.maximumf %52, %53 : vector<32x48xf32>
    %c0_23 = arith.constant 0 : index
    %c0_24 = arith.constant 0 : index
    %c0_25 = arith.constant 0 : index
    %55 = vector.load %arg1[%c0_23, %c0_24, %c0_25] : memref<9x32x32xbf16, #tpu.memory_space<vmem>>, vector<1x32x32xbf16>
    %56 = vector.shape_cast %55 : vector<1x32x32xbf16> to vector<32x32xbf16>
    %57 = arith.truncf %54 : vector<32x48xf32> to vector<32x48xbf16>
    %cst_26 = arith.constant dense<0.000000e+00> : vector<32x48xf32>
    %58 = tpu.matmul %56, %57, %cst_26 {dimension_numbers = #tpu.dot_dimension_numbers<[1], [0], [0], [1], [0, 0, 1, 1], [], []>} : vector<32x32xbf16>, vector<32x48xbf16>, vector<32x48xf32> -> vector<32x48xf32>
    %c0_27 = arith.constant 0 : index
    %c0_28 = arith.constant 0 : index
    %c0_29 = arith.constant 0 : index
    %59 = vector.load %arg7[%c0_27, %c0_28, %c0_29] : memref<9x48x12xbf16, #tpu.memory_space<vmem>>, vector<1x48x12xbf16>
    %60 = vector.shape_cast %59 : vector<1x48x12xbf16> to vector<48x12xbf16>
    %61 = arith.truncf %58 : vector<32x48xf32> to vector<32x48xbf16>
    %cst_30 = arith.constant dense<0.000000e+00> : vector<32x12xf32>
    %62 = tpu.matmul %61, %60, %cst_30 {dimension_numbers = #tpu.dot_dimension_numbers<[1], [0], [0], [1], [0, 0, 1, 1], [], []>} : vector<32x48xbf16>, vector<48x12xbf16>, vector<32x12xf32> -> vector<32x12xf32>
    %c1 = arith.constant 1 : index
    %c0_31 = arith.constant 0 : index
    %c0_32 = arith.constant 0 : index
    %63 = vector.load %arg1[%c1, %c0_31, %c0_32] : memref<9x32x32xbf16, #tpu.memory_space<vmem>>, vector<1x32x32xbf16>
    %64 = vector.shape_cast %63 : vector<1x32x32xbf16> to vector<32x32xbf16>
    %65 = arith.truncf %54 : vector<32x48xf32> to vector<32x48xbf16>
    %cst_33 = arith.constant dense<0.000000e+00> : vector<32x48xf32>
    %66 = tpu.matmul %64, %65, %cst_33 {dimension_numbers = #tpu.dot_dimension_numbers<[1], [0], [0], [1], [0, 0, 1, 1], [], []>} : vector<32x32xbf16>, vector<32x48xbf16>, vector<32x48xf32> -> vector<32x48xf32>
    %c1_34 = arith.constant 1 : index
    %c0_35 = arith.constant 0 : index
    %c0_36 = arith.constant 0 : index
    %67 = vector.load %arg7[%c1_34, %c0_35, %c0_36] : memref<9x48x12xbf16, #tpu.memory_space<vmem>>, vector<1x48x12xbf16>
    %68 = vector.shape_cast %67 : vector<1x48x12xbf16> to vector<48x12xbf16>
    %69 = arith.truncf %66 : vector<32x48xf32> to vector<32x48xbf16>
    %cst_37 = arith.constant dense<0.000000e+00> : vector<32x12xf32>
    %70 = tpu.matmul %69, %68, %cst_37 {dimension_numbers = #tpu.dot_dimension_numbers<[1], [0], [0], [1], [0, 0, 1, 1], [], []>} : vector<32x48xbf16>, vector<48x12xbf16>, vector<32x12xf32> -> vector<32x12xf32>
    %71 = arith.addf %62, %70 : vector<32x12xf32>
    %c2 = arith.constant 2 : index
    %c0_38 = arith.constant 0 : index
    %c0_39 = arith.constant 0 : index
    %72 = vector.load %arg1[%c2, %c0_38, %c0_39] : memref<9x32x32xbf16, #tpu.memory_space<vmem>>, vector<1x32x32xbf16>
    %73 = vector.shape_cast %72 : vector<1x32x32xbf16> to vector<32x32xbf16>
    %74 = arith.truncf %54 : vector<32x48xf32> to vector<32x48xbf16>
    %cst_40 = arith.constant dense<0.000000e+00> : vector<32x48xf32>
    %75 = tpu.matmul %73, %74, %cst_40 {dimension_numbers = #tpu.dot_dimension_numbers<[1], [0], [0], [1], [0, 0, 1, 1], [], []>} : vector<32x32xbf16>, vector<32x48xbf16>, vector<32x48xf32> -> vector<32x48xf32>
    %c2_41 = arith.constant 2 : index
    %c0_42 = arith.constant 0 : index
    %c0_43 = arith.constant 0 : index
    %76 = vector.load %arg7[%c2_41, %c0_42, %c0_43] : memref<9x48x12xbf16, #tpu.memory_space<vmem>>, vector<1x48x12xbf16>
    %77 = vector.shape_cast %76 : vector<1x48x12xbf16> to vector<48x12xbf16>
    %78 = arith.truncf %75 : vector<32x48xf32> to vector<32x48xbf16>
    %cst_44 = arith.constant dense<0.000000e+00> : vector<32x12xf32>
    %79 = tpu.matmul %78, %77, %cst_44 {dimension_numbers = #tpu.dot_dimension_numbers<[1], [0], [0], [1], [0, 0, 1, 1], [], []>} : vector<32x48xbf16>, vector<48x12xbf16>, vector<32x12xf32> -> vector<32x12xf32>
    %80 = arith.addf %71, %79 : vector<32x12xf32>
    %c3 = arith.constant 3 : index
    %c0_45 = arith.constant 0 : index
    %c0_46 = arith.constant 0 : index
    %81 = vector.load %arg1[%c3, %c0_45, %c0_46] : memref<9x32x32xbf16, #tpu.memory_space<vmem>>, vector<1x32x32xbf16>
    %82 = vector.shape_cast %81 : vector<1x32x32xbf16> to vector<32x32xbf16>
    %83 = arith.truncf %54 : vector<32x48xf32> to vector<32x48xbf16>
    %cst_47 = arith.constant dense<0.000000e+00> : vector<32x48xf32>
    %84 = tpu.matmul %82, %83, %cst_47 {dimension_numbers = #tpu.dot_dimension_numbers<[1], [0], [0], [1], [0, 0, 1, 1], [], []>} : vector<32x32xbf16>, vector<32x48xbf16>, vector<32x48xf32> -> vector<32x48xf32>
    %c3_48 = arith.constant 3 : index
    %c0_49 = arith.constant 0 : index
    %c0_50 = arith.constant 0 : index
    %85 = vector.load %arg7[%c3_48, %c0_49, %c0_50] : memref<9x48x12xbf16, #tpu.memory_space<vmem>>, vector<1x48x12xbf16>
    %86 = vector.shape_cast %85 : vector<1x48x12xbf16> to vector<48x12xbf16>
    %87 = arith.truncf %84 : vector<32x48xf32> to vector<32x48xbf16>
    %cst_51 = arith.constant dense<0.000000e+00> : vector<32x12xf32>
    %88 = tpu.matmul %87, %86, %cst_51 {dimension_numbers = #tpu.dot_dimension_numbers<[1], [0], [0], [1], [0, 0, 1, 1], [], []>} : vector<32x48xbf16>, vector<48x12xbf16>, vector<32x12xf32> -> vector<32x12xf32>
    %89 = arith.addf %80, %88 : vector<32x12xf32>
    %c4 = arith.constant 4 : index
    %c0_52 = arith.constant 0 : index
    %c0_53 = arith.constant 0 : index
    %90 = vector.load %arg1[%c4, %c0_52, %c0_53] : memref<9x32x32xbf16, #tpu.memory_space<vmem>>, vector<1x32x32xbf16>
    %91 = vector.shape_cast %90 : vector<1x32x32xbf16> to vector<32x32xbf16>
    %92 = arith.truncf %54 : vector<32x48xf32> to vector<32x48xbf16>
    %cst_54 = arith.constant dense<0.000000e+00> : vector<32x48xf32>
    %93 = tpu.matmul %91, %92, %cst_54 {dimension_numbers = #tpu.dot_dimension_numbers<[1], [0], [0], [1], [0, 0, 1, 1], [], []>} : vector<32x32xbf16>, vector<32x48xbf16>, vector<32x48xf32> -> vector<32x48xf32>
    %c4_55 = arith.constant 4 : index
    %c0_56 = arith.constant 0 : index
    %c0_57 = arith.constant 0 : index
    %94 = vector.load %arg7[%c4_55, %c0_56, %c0_57] : memref<9x48x12xbf16, #tpu.memory_space<vmem>>, vector<1x48x12xbf16>
    %95 = vector.shape_cast %94 : vector<1x48x12xbf16> to vector<48x12xbf16>
    %96 = arith.truncf %93 : vector<32x48xf32> to vector<32x48xbf16>
    %cst_58 = arith.constant dense<0.000000e+00> : vector<32x12xf32>
    %97 = tpu.matmul %96, %95, %cst_58 {dimension_numbers = #tpu.dot_dimension_numbers<[1], [0], [0], [1], [0, 0, 1, 1], [], []>} : vector<32x48xbf16>, vector<48x12xbf16>, vector<32x12xf32> -> vector<32x12xf32>
    %98 = arith.addf %89, %97 : vector<32x12xf32>
    %c5 = arith.constant 5 : index
    %c0_59 = arith.constant 0 : index
    %c0_60 = arith.constant 0 : index
    %99 = vector.load %arg1[%c5, %c0_59, %c0_60] : memref<9x32x32xbf16, #tpu.memory_space<vmem>>, vector<1x32x32xbf16>
    %100 = vector.shape_cast %99 : vector<1x32x32xbf16> to vector<32x32xbf16>
    %101 = arith.truncf %54 : vector<32x48xf32> to vector<32x48xbf16>
    %cst_61 = arith.constant dense<0.000000e+00> : vector<32x48xf32>
    %102 = tpu.matmul %100, %101, %cst_61 {dimension_numbers = #tpu.dot_dimension_numbers<[1], [0], [0], [1], [0, 0, 1, 1], [], []>} : vector<32x32xbf16>, vector<32x48xbf16>, vector<32x48xf32> -> vector<32x48xf32>
    %c5_62 = arith.constant 5 : index
    %c0_63 = arith.constant 0 : index
    %c0_64 = arith.constant 0 : index
    %103 = vector.load %arg7[%c5_62, %c0_63, %c0_64] : memref<9x48x12xbf16, #tpu.memory_space<vmem>>, vector<1x48x12xbf16>
    %104 = vector.shape_cast %103 : vector<1x48x12xbf16> to vector<48x12xbf16>
    %105 = arith.truncf %102 : vector<32x48xf32> to vector<32x48xbf16>
    %cst_65 = arith.constant dense<0.000000e+00> : vector<32x12xf32>
    %106 = tpu.matmul %105, %104, %cst_65 {dimension_numbers = #tpu.dot_dimension_numbers<[1], [0], [0], [1], [0, 0, 1, 1], [], []>} : vector<32x48xbf16>, vector<48x12xbf16>, vector<32x12xf32> -> vector<32x12xf32>
    %107 = arith.addf %98, %106 : vector<32x12xf32>
    %c6 = arith.constant 6 : index
    %c0_66 = arith.constant 0 : index
    %c0_67 = arith.constant 0 : index
    %108 = vector.load %arg1[%c6, %c0_66, %c0_67] : memref<9x32x32xbf16, #tpu.memory_space<vmem>>, vector<1x32x32xbf16>
    %109 = vector.shape_cast %108 : vector<1x32x32xbf16> to vector<32x32xbf16>
    %110 = arith.truncf %54 : vector<32x48xf32> to vector<32x48xbf16>
    %cst_68 = arith.constant dense<0.000000e+00> : vector<32x48xf32>
    %111 = tpu.matmul %109, %110, %cst_68 {dimension_numbers = #tpu.dot_dimension_numbers<[1], [0], [0], [1], [0, 0, 1, 1], [], []>} : vector<32x32xbf16>, vector<32x48xbf16>, vector<32x48xf32> -> vector<32x48xf32>
    %c6_69 = arith.constant 6 : index
    %c0_70 = arith.constant 0 : index
    %c0_71 = arith.constant 0 : index
    %112 = vector.load %arg7[%c6_69, %c0_70, %c0_71] : memref<9x48x12xbf16, #tpu.memory_space<vmem>>, vector<1x48x12xbf16>
    %113 = vector.shape_cast %112 : vector<1x48x12xbf16> to vector<48x12xbf16>
    %114 = arith.truncf %111 : vector<32x48xf32> to vector<32x48xbf16>
    %cst_72 = arith.constant dense<0.000000e+00> : vector<32x12xf32>
    %115 = tpu.matmul %114, %113, %cst_72 {dimension_numbers = #tpu.dot_dimension_numbers<[1], [0], [0], [1], [0, 0, 1, 1], [], []>} : vector<32x48xbf16>, vector<48x12xbf16>, vector<32x12xf32> -> vector<32x12xf32>
    %116 = arith.addf %107, %115 : vector<32x12xf32>
    %c7 = arith.constant 7 : index
    %c0_73 = arith.constant 0 : index
    %c0_74 = arith.constant 0 : index
    %117 = vector.load %arg1[%c7, %c0_73, %c0_74] : memref<9x32x32xbf16, #tpu.memory_space<vmem>>, vector<1x32x32xbf16>
    %118 = vector.shape_cast %117 : vector<1x32x32xbf16> to vector<32x32xbf16>
    %119 = arith.truncf %54 : vector<32x48xf32> to vector<32x48xbf16>
    %cst_75 = arith.constant dense<0.000000e+00> : vector<32x48xf32>
    %120 = tpu.matmul %118, %119, %cst_75 {dimension_numbers = #tpu.dot_dimension_numbers<[1], [0], [0], [1], [0, 0, 1, 1], [], []>} : vector<32x32xbf16>, vector<32x48xbf16>, vector<32x48xf32> -> vector<32x48xf32>
    %c7_76 = arith.constant 7 : index
    %c0_77 = arith.constant 0 : index
    %c0_78 = arith.constant 0 : index
    %121 = vector.load %arg7[%c7_76, %c0_77, %c0_78] : memref<9x48x12xbf16, #tpu.memory_space<vmem>>, vector<1x48x12xbf16>
    %122 = vector.shape_cast %121 : vector<1x48x12xbf16> to vector<48x12xbf16>
    %123 = arith.truncf %120 : vector<32x48xf32> to vector<32x48xbf16>
    %cst_79 = arith.constant dense<0.000000e+00> : vector<32x12xf32>
    %124 = tpu.matmul %123, %122, %cst_79 {dimension_numbers = #tpu.dot_dimension_numbers<[1], [0], [0], [1], [0, 0, 1, 1], [], []>} : vector<32x48xbf16>, vector<48x12xbf16>, vector<32x12xf32> -> vector<32x12xf32>
    %125 = arith.addf %116, %124 : vector<32x12xf32>
    %c8 = arith.constant 8 : index
    %c0_80 = arith.constant 0 : index
    %c0_81 = arith.constant 0 : index
    %126 = vector.load %arg1[%c8, %c0_80, %c0_81] : memref<9x32x32xbf16, #tpu.memory_space<vmem>>, vector<1x32x32xbf16>
    %127 = vector.shape_cast %126 : vector<1x32x32xbf16> to vector<32x32xbf16>
    %128 = arith.truncf %54 : vector<32x48xf32> to vector<32x48xbf16>
    %cst_82 = arith.constant dense<0.000000e+00> : vector<32x48xf32>
    %129 = tpu.matmul %127, %128, %cst_82 {dimension_numbers = #tpu.dot_dimension_numbers<[1], [0], [0], [1], [0, 0, 1, 1], [], []>} : vector<32x32xbf16>, vector<32x48xbf16>, vector<32x48xf32> -> vector<32x48xf32>
    %c8_83 = arith.constant 8 : index
    %c0_84 = arith.constant 0 : index
    %c0_85 = arith.constant 0 : index
    %130 = vector.load %arg7[%c8_83, %c0_84, %c0_85] : memref<9x48x12xbf16, #tpu.memory_space<vmem>>, vector<1x48x12xbf16>
    %131 = vector.shape_cast %130 : vector<1x48x12xbf16> to vector<48x12xbf16>
    %132 = arith.truncf %129 : vector<32x48xf32> to vector<32x48xbf16>
    %cst_86 = arith.constant dense<0.000000e+00> : vector<32x12xf32>
    %133 = tpu.matmul %132, %131, %cst_86 {dimension_numbers = #tpu.dot_dimension_numbers<[1], [0], [0], [1], [0, 0, 1, 1], [], []>} : vector<32x48xbf16>, vector<48x12xbf16>, vector<32x12xf32> -> vector<32x12xf32>
    %134 = arith.addf %125, %133 : vector<32x12xf32>
    %c0_87 = arith.constant 0 : index
    %c0_88 = arith.constant 0 : index
    %135 = vector.load %arg8[%c0_87, %c0_88] : memref<1x64xf32, #tpu.memory_space<vmem>>, vector<1x64xf32>
    %c0_89 = arith.constant 0 : index
    %c0_90 = arith.constant 0 : index
    %136 = vector.load %arg9[%c0_89, %c0_90] : memref<1x64xf32, #tpu.memory_space<vmem>>, vector<1x64xf32>
    %cst_91 = arith.constant dense<0.000000e+00> : vector<64xf32>
    %137 = vector.multi_reduction <add>, %1, %cst_91 [0] : vector<32x64xf32> to vector<64xf32>
    %138 = vector.shape_cast %137 : vector<64xf32> to vector<1x64xf32>
    %cst_92 = arith.constant 3.200000e+01 : f32
    %139 = vector.broadcast %cst_92 : f32 to vector<1x64xf32>
    %140 = arith.divf %138, %139 : vector<1x64xf32>
    %141 = vector.broadcast %140 : vector<1x64xf32> to vector<32x64xf32>
    %142 = arith.subf %1, %141 : vector<32x64xf32>
    %143 = arith.mulf %142, %142 : vector<32x64xf32>
    %cst_93 = arith.constant dense<0.000000e+00> : vector<64xf32>
    %144 = vector.multi_reduction <add>, %143, %cst_93 [0] : vector<32x64xf32> to vector<64xf32>
    %145 = vector.shape_cast %144 : vector<64xf32> to vector<1x64xf32>
    %cst_94 = arith.constant 3.200000e+01 : f32
    %146 = vector.broadcast %cst_94 : f32 to vector<1x64xf32>
    %147 = arith.divf %145, %146 : vector<1x64xf32>
    %148 = vector.broadcast %140 : vector<1x64xf32> to vector<32x64xf32>
    %149 = arith.subf %1, %148 : vector<32x64xf32>
    %cst_95 = arith.constant 9.99999974E-6 : f32
    %150 = vector.broadcast %cst_95 : f32 to vector<1x64xf32>
    %151 = arith.addf %147, %150 : vector<1x64xf32>
    %152 = math.rsqrt %151 : vector<1x64xf32>
    %153 = arith.mulf %135, %152 : vector<1x64xf32>
    %154 = vector.broadcast %153 : vector<1x64xf32> to vector<32x64xf32>
    %155 = arith.mulf %149, %154 : vector<32x64xf32>
    %156 = vector.broadcast %136 : vector<1x64xf32> to vector<32x64xf32>
    %157 = arith.addf %155, %156 : vector<32x64xf32>
    %cst_96 = arith.constant 0.000000e+00 : f32
    %158 = vector.broadcast %cst_96 : f32 to vector<32x64xf32>
    %159 = arith.maximumf %157, %158 : vector<32x64xf32>
    %c0_97 = arith.constant 0 : index
    %c0_98 = arith.constant 0 : index
    %160 = vector.load %arg10[%c0_97, %c0_98] : memref<64x48xbf16, #tpu.memory_space<vmem>>, vector<64x48xbf16>
    %161 = arith.truncf %159 : vector<32x64xf32> to vector<32x64xbf16>
    %cst_99 = arith.constant dense<0.000000e+00> : vector<32x48xf32>
    %162 = tpu.matmul %161, %160, %cst_99 {dimension_numbers = #tpu.dot_dimension_numbers<[1], [0], [0], [1], [0, 0, 1, 1], [], []>} : vector<32x64xbf16>, vector<64x48xbf16>, vector<32x48xf32> -> vector<32x48xf32>
    %c0_100 = arith.constant 0 : index
    %c0_101 = arith.constant 0 : index
    %163 = vector.load %arg11[%c0_100, %c0_101] : memref<1x12xf32, #tpu.memory_space<vmem>>, vector<1x12xf32>
    %c0_102 = arith.constant 0 : index
    %c0_103 = arith.constant 0 : index
    %164 = vector.load %arg12[%c0_102, %c0_103] : memref<1x12xf32, #tpu.memory_space<vmem>>, vector<1x12xf32>
    %cst_104 = arith.constant dense<0.000000e+00> : vector<12xf32>
    %165 = vector.multi_reduction <add>, %134, %cst_104 [0] : vector<32x12xf32> to vector<12xf32>
    %166 = vector.shape_cast %165 : vector<12xf32> to vector<1x12xf32>
    %cst_105 = arith.constant 3.200000e+01 : f32
    %167 = vector.broadcast %cst_105 : f32 to vector<1x12xf32>
    %168 = arith.divf %166, %167 : vector<1x12xf32>
    %169 = vector.broadcast %168 : vector<1x12xf32> to vector<32x12xf32>
    %170 = arith.subf %134, %169 : vector<32x12xf32>
    %171 = arith.mulf %170, %170 : vector<32x12xf32>
    %cst_106 = arith.constant dense<0.000000e+00> : vector<12xf32>
    %172 = vector.multi_reduction <add>, %171, %cst_106 [0] : vector<32x12xf32> to vector<12xf32>
    %173 = vector.shape_cast %172 : vector<12xf32> to vector<1x12xf32>
    %cst_107 = arith.constant 3.200000e+01 : f32
    %174 = vector.broadcast %cst_107 : f32 to vector<1x12xf32>
    %175 = arith.divf %173, %174 : vector<1x12xf32>
    %176 = vector.broadcast %168 : vector<1x12xf32> to vector<32x12xf32>
    %177 = arith.subf %134, %176 : vector<32x12xf32>
    %cst_108 = arith.constant 9.99999974E-6 : f32
    %178 = vector.broadcast %cst_108 : f32 to vector<1x12xf32>
    %179 = arith.addf %175, %178 : vector<1x12xf32>
    %180 = math.rsqrt %179 : vector<1x12xf32>
    %181 = arith.mulf %163, %180 : vector<1x12xf32>
    %182 = vector.broadcast %181 : vector<1x12xf32> to vector<32x12xf32>
    %183 = arith.mulf %177, %182 : vector<32x12xf32>
    %184 = vector.broadcast %164 : vector<1x12xf32> to vector<32x12xf32>
    %185 = arith.addf %183, %184 : vector<32x12xf32>
    %cst_109 = arith.constant 0.000000e+00 : f32
    %186 = vector.broadcast %cst_109 : f32 to vector<32x12xf32>
    %187 = arith.maximumf %185, %186 : vector<32x12xf32>
    %c0_110 = arith.constant 0 : index
    %c0_111 = arith.constant 0 : index
    %188 = vector.load %arg13[%c0_110, %c0_111] : memref<12x48xbf16, #tpu.memory_space<vmem>>, vector<12x48xbf16>
    %189 = arith.truncf %187 : vector<32x12xf32> to vector<32x12xbf16>
    %cst_112 = arith.constant dense<0.000000e+00> : vector<32x48xf32>
    %190 = tpu.matmul %189, %188, %cst_112 {dimension_numbers = #tpu.dot_dimension_numbers<[1], [0], [0], [1], [0, 0, 1, 1], [], []>} : vector<32x12xbf16>, vector<12x48xbf16>, vector<32x48xf32> -> vector<32x48xf32>
    %191 = arith.addf %162, %190 : vector<32x48xf32>
    %c0_113 = arith.constant 0 : index
    %c0_114 = arith.constant 0 : index
    %192 = vector.load %arg14[%c0_113, %c0_114] : memref<1x48xf32, #tpu.memory_space<vmem>>, vector<1x48xf32>
    %c0_115 = arith.constant 0 : index
    %c0_116 = arith.constant 0 : index
    %193 = vector.load %arg15[%c0_115, %c0_116] : memref<1x48xf32, #tpu.memory_space<vmem>>, vector<1x48xf32>
    %cst_117 = arith.constant dense<0.000000e+00> : vector<48xf32>
    %194 = vector.multi_reduction <add>, %191, %cst_117 [0] : vector<32x48xf32> to vector<48xf32>
    %195 = vector.shape_cast %194 : vector<48xf32> to vector<1x48xf32>
    %cst_118 = arith.constant 3.200000e+01 : f32
    %196 = vector.broadcast %cst_118 : f32 to vector<1x48xf32>
    %197 = arith.divf %195, %196 : vector<1x48xf32>
    %198 = vector.broadcast %197 : vector<1x48xf32> to vector<32x48xf32>
    %199 = arith.subf %191, %198 : vector<32x48xf32>
    %200 = arith.mulf %199, %199 : vector<32x48xf32>
    %cst_119 = arith.constant dense<0.000000e+00> : vector<48xf32>
    %201 = vector.multi_reduction <add>, %200, %cst_119 [0] : vector<32x48xf32> to vector<48xf32>
    %202 = vector.shape_cast %201 : vector<48xf32> to vector<1x48xf32>
    %cst_120 = arith.constant 3.200000e+01 : f32
    %203 = vector.broadcast %cst_120 : f32 to vector<1x48xf32>
    %204 = arith.divf %202, %203 : vector<1x48xf32>
    %205 = vector.broadcast %197 : vector<1x48xf32> to vector<32x48xf32>
    %206 = arith.subf %191, %205 : vector<32x48xf32>
    %cst_121 = arith.constant 9.99999974E-6 : f32
    %207 = vector.broadcast %cst_121 : f32 to vector<1x48xf32>
    %208 = arith.addf %204, %207 : vector<1x48xf32>
    %209 = math.rsqrt %208 : vector<1x48xf32>
    %210 = arith.mulf %192, %209 : vector<1x48xf32>
    %211 = vector.broadcast %210 : vector<1x48xf32> to vector<32x48xf32>
    %212 = arith.mulf %206, %211 : vector<32x48xf32>
    %213 = vector.broadcast %193 : vector<1x48xf32> to vector<32x48xf32>
    %214 = arith.addf %212, %213 : vector<32x48xf32>
    %cst_122 = arith.constant 0.000000e+00 : f32
    %215 = vector.broadcast %cst_122 : f32 to vector<32x48xf32>
    %216 = arith.maximumf %214, %215 : vector<32x48xf32>
    %c0_123 = arith.constant 0 : index
    %c0_124 = arith.constant 0 : index
    %c0_125 = arith.constant 0 : index
    %217 = vector.load %arg1[%c0_123, %c0_124, %c0_125] : memref<9x32x32xbf16, #tpu.memory_space<vmem>>, vector<1x32x32xbf16>
    %218 = vector.shape_cast %217 : vector<1x32x32xbf16> to vector<32x32xbf16>
    %219 = arith.truncf %216 : vector<32x48xf32> to vector<32x48xbf16>
    %cst_126 = arith.constant dense<0.000000e+00> : vector<32x48xf32>
    %220 = tpu.matmul %218, %219, %cst_126 {dimension_numbers = #tpu.dot_dimension_numbers<[1], [0], [0], [1], [0, 0, 1, 1], [], []>} : vector<32x32xbf16>, vector<32x48xbf16>, vector<32x48xf32> -> vector<32x48xf32>
    %c0_127 = arith.constant 0 : index
    %c0_128 = arith.constant 0 : index
    %c0_129 = arith.constant 0 : index
    %221 = vector.load %arg16[%c0_127, %c0_128, %c0_129] : memref<9x48x12xbf16, #tpu.memory_space<vmem>>, vector<1x48x12xbf16>
    %222 = vector.shape_cast %221 : vector<1x48x12xbf16> to vector<48x12xbf16>
    %223 = arith.truncf %220 : vector<32x48xf32> to vector<32x48xbf16>
    %cst_130 = arith.constant dense<0.000000e+00> : vector<32x12xf32>
    %224 = tpu.matmul %223, %222, %cst_130 {dimension_numbers = #tpu.dot_dimension_numbers<[1], [0], [0], [1], [0, 0, 1, 1], [], []>} : vector<32x48xbf16>, vector<48x12xbf16>, vector<32x12xf32> -> vector<32x12xf32>
    %c1_131 = arith.constant 1 : index
    %c0_132 = arith.constant 0 : index
    %c0_133 = arith.constant 0 : index
    %225 = vector.load %arg1[%c1_131, %c0_132, %c0_133] : memref<9x32x32xbf16, #tpu.memory_space<vmem>>, vector<1x32x32xbf16>
    %226 = vector.shape_cast %225 : vector<1x32x32xbf16> to vector<32x32xbf16>
    %227 = arith.truncf %216 : vector<32x48xf32> to vector<32x48xbf16>
    %cst_134 = arith.constant dense<0.000000e+00> : vector<32x48xf32>
    %228 = tpu.matmul %226, %227, %cst_134 {dimension_numbers = #tpu.dot_dimension_numbers<[1], [0], [0], [1], [0, 0, 1, 1], [], []>} : vector<32x32xbf16>, vector<32x48xbf16>, vector<32x48xf32> -> vector<32x48xf32>
    %c1_135 = arith.constant 1 : index
    %c0_136 = arith.constant 0 : index
    %c0_137 = arith.constant 0 : index
    %229 = vector.load %arg16[%c1_135, %c0_136, %c0_137] : memref<9x48x12xbf16, #tpu.memory_space<vmem>>, vector<1x48x12xbf16>
    %230 = vector.shape_cast %229 : vector<1x48x12xbf16> to vector<48x12xbf16>
    %231 = arith.truncf %228 : vector<32x48xf32> to vector<32x48xbf16>
    %cst_138 = arith.constant dense<0.000000e+00> : vector<32x12xf32>
    %232 = tpu.matmul %231, %230, %cst_138 {dimension_numbers = #tpu.dot_dimension_numbers<[1], [0], [0], [1], [0, 0, 1, 1], [], []>} : vector<32x48xbf16>, vector<48x12xbf16>, vector<32x12xf32> -> vector<32x12xf32>
    %233 = arith.addf %224, %232 : vector<32x12xf32>
    %c2_139 = arith.constant 2 : index
    %c0_140 = arith.constant 0 : index
    %c0_141 = arith.constant 0 : index
    %234 = vector.load %arg1[%c2_139, %c0_140, %c0_141] : memref<9x32x32xbf16, #tpu.memory_space<vmem>>, vector<1x32x32xbf16>
    %235 = vector.shape_cast %234 : vector<1x32x32xbf16> to vector<32x32xbf16>
    %236 = arith.truncf %216 : vector<32x48xf32> to vector<32x48xbf16>
    %cst_142 = arith.constant dense<0.000000e+00> : vector<32x48xf32>
    %237 = tpu.matmul %235, %236, %cst_142 {dimension_numbers = #tpu.dot_dimension_numbers<[1], [0], [0], [1], [0, 0, 1, 1], [], []>} : vector<32x32xbf16>, vector<32x48xbf16>, vector<32x48xf32> -> vector<32x48xf32>
    %c2_143 = arith.constant 2 : index
    %c0_144 = arith.constant 0 : index
    %c0_145 = arith.constant 0 : index
    %238 = vector.load %arg16[%c2_143, %c0_144, %c0_145] : memref<9x48x12xbf16, #tpu.memory_space<vmem>>, vector<1x48x12xbf16>
    %239 = vector.shape_cast %238 : vector<1x48x12xbf16> to vector<48x12xbf16>
    %240 = arith.truncf %237 : vector<32x48xf32> to vector<32x48xbf16>
    %cst_146 = arith.constant dense<0.000000e+00> : vector<32x12xf32>
    %241 = tpu.matmul %240, %239, %cst_146 {dimension_numbers = #tpu.dot_dimension_numbers<[1], [0], [0], [1], [0, 0, 1, 1], [], []>} : vector<32x48xbf16>, vector<48x12xbf16>, vector<32x12xf32> -> vector<32x12xf32>
    %242 = arith.addf %233, %241 : vector<32x12xf32>
    %c3_147 = arith.constant 3 : index
    %c0_148 = arith.constant 0 : index
    %c0_149 = arith.constant 0 : index
    %243 = vector.load %arg1[%c3_147, %c0_148, %c0_149] : memref<9x32x32xbf16, #tpu.memory_space<vmem>>, vector<1x32x32xbf16>
    %244 = vector.shape_cast %243 : vector<1x32x32xbf16> to vector<32x32xbf16>
    %245 = arith.truncf %216 : vector<32x48xf32> to vector<32x48xbf16>
    %cst_150 = arith.constant dense<0.000000e+00> : vector<32x48xf32>
    %246 = tpu.matmul %244, %245, %cst_150 {dimension_numbers = #tpu.dot_dimension_numbers<[1], [0], [0], [1], [0, 0, 1, 1], [], []>} : vector<32x32xbf16>, vector<32x48xbf16>, vector<32x48xf32> -> vector<32x48xf32>
    %c3_151 = arith.constant 3 : index
    %c0_152 = arith.constant 0 : index
    %c0_153 = arith.constant 0 : index
    %247 = vector.load %arg16[%c3_151, %c0_152, %c0_153] : memref<9x48x12xbf16, #tpu.memory_space<vmem>>, vector<1x48x12xbf16>
    %248 = vector.shape_cast %247 : vector<1x48x12xbf16> to vector<48x12xbf16>
    %249 = arith.truncf %246 : vector<32x48xf32> to vector<32x48xbf16>
    %cst_154 = arith.constant dense<0.000000e+00> : vector<32x12xf32>
    %250 = tpu.matmul %249, %248, %cst_154 {dimension_numbers = #tpu.dot_dimension_numbers<[1], [0], [0], [1], [0, 0, 1, 1], [], []>} : vector<32x48xbf16>, vector<48x12xbf16>, vector<32x12xf32> -> vector<32x12xf32>
    %251 = arith.addf %242, %250 : vector<32x12xf32>
    %c4_155 = arith.constant 4 : index
    %c0_156 = arith.constant 0 : index
    %c0_157 = arith.constant 0 : index
    %252 = vector.load %arg1[%c4_155, %c0_156, %c0_157] : memref<9x32x32xbf16, #tpu.memory_space<vmem>>, vector<1x32x32xbf16>
    %253 = vector.shape_cast %252 : vector<1x32x32xbf16> to vector<32x32xbf16>
    %254 = arith.truncf %216 : vector<32x48xf32> to vector<32x48xbf16>
    %cst_158 = arith.constant dense<0.000000e+00> : vector<32x48xf32>
    %255 = tpu.matmul %253, %254, %cst_158 {dimension_numbers = #tpu.dot_dimension_numbers<[1], [0], [0], [1], [0, 0, 1, 1], [], []>} : vector<32x32xbf16>, vector<32x48xbf16>, vector<32x48xf32> -> vector<32x48xf32>
    %c4_159 = arith.constant 4 : index
    %c0_160 = arith.constant 0 : index
    %c0_161 = arith.constant 0 : index
    %256 = vector.load %arg16[%c4_159, %c0_160, %c0_161] : memref<9x48x12xbf16, #tpu.memory_space<vmem>>, vector<1x48x12xbf16>
    %257 = vector.shape_cast %256 : vector<1x48x12xbf16> to vector<48x12xbf16>
    %258 = arith.truncf %255 : vector<32x48xf32> to vector<32x48xbf16>
    %cst_162 = arith.constant dense<0.000000e+00> : vector<32x12xf32>
    %259 = tpu.matmul %258, %257, %cst_162 {dimension_numbers = #tpu.dot_dimension_numbers<[1], [0], [0], [1], [0, 0, 1, 1], [], []>} : vector<32x48xbf16>, vector<48x12xbf16>, vector<32x12xf32> -> vector<32x12xf32>
    %260 = arith.addf %251, %259 : vector<32x12xf32>
    %c5_163 = arith.constant 5 : index
    %c0_164 = arith.constant 0 : index
    %c0_165 = arith.constant 0 : index
    %261 = vector.load %arg1[%c5_163, %c0_164, %c0_165] : memref<9x32x32xbf16, #tpu.memory_space<vmem>>, vector<1x32x32xbf16>
    %262 = vector.shape_cast %261 : vector<1x32x32xbf16> to vector<32x32xbf16>
    %263 = arith.truncf %216 : vector<32x48xf32> to vector<32x48xbf16>
    %cst_166 = arith.constant dense<0.000000e+00> : vector<32x48xf32>
    %264 = tpu.matmul %262, %263, %cst_166 {dimension_numbers = #tpu.dot_dimension_numbers<[1], [0], [0], [1], [0, 0, 1, 1], [], []>} : vector<32x32xbf16>, vector<32x48xbf16>, vector<32x48xf32> -> vector<32x48xf32>
    %c5_167 = arith.constant 5 : index
    %c0_168 = arith.constant 0 : index
    %c0_169 = arith.constant 0 : index
    %265 = vector.load %arg16[%c5_167, %c0_168, %c0_169] : memref<9x48x12xbf16, #tpu.memory_space<vmem>>, vector<1x48x12xbf16>
    %266 = vector.shape_cast %265 : vector<1x48x12xbf16> to vector<48x12xbf16>
    %267 = arith.truncf %264 : vector<32x48xf32> to vector<32x48xbf16>
    %cst_170 = arith.constant dense<0.000000e+00> : vector<32x12xf32>
    %268 = tpu.matmul %267, %266, %cst_170 {dimension_numbers = #tpu.dot_dimension_numbers<[1], [0], [0], [1], [0, 0, 1, 1], [], []>} : vector<32x48xbf16>, vector<48x12xbf16>, vector<32x12xf32> -> vector<32x12xf32>
    %269 = arith.addf %260, %268 : vector<32x12xf32>
    %c6_171 = arith.constant 6 : index
    %c0_172 = arith.constant 0 : index
    %c0_173 = arith.constant 0 : index
    %270 = vector.load %arg1[%c6_171, %c0_172, %c0_173] : memref<9x32x32xbf16, #tpu.memory_space<vmem>>, vector<1x32x32xbf16>
    %271 = vector.shape_cast %270 : vector<1x32x32xbf16> to vector<32x32xbf16>
    %272 = arith.truncf %216 : vector<32x48xf32> to vector<32x48xbf16>
    %cst_174 = arith.constant dense<0.000000e+00> : vector<32x48xf32>
    %273 = tpu.matmul %271, %272, %cst_174 {dimension_numbers = #tpu.dot_dimension_numbers<[1], [0], [0], [1], [0, 0, 1, 1], [], []>} : vector<32x32xbf16>, vector<32x48xbf16>, vector<32x48xf32> -> vector<32x48xf32>
    %c6_175 = arith.constant 6 : index
    %c0_176 = arith.constant 0 : index
    %c0_177 = arith.constant 0 : index
    %274 = vector.load %arg16[%c6_175, %c0_176, %c0_177] : memref<9x48x12xbf16, #tpu.memory_space<vmem>>, vector<1x48x12xbf16>
    %275 = vector.shape_cast %274 : vector<1x48x12xbf16> to vector<48x12xbf16>
    %276 = arith.truncf %273 : vector<32x48xf32> to vector<32x48xbf16>
    %cst_178 = arith.constant dense<0.000000e+00> : vector<32x12xf32>
    %277 = tpu.matmul %276, %275, %cst_178 {dimension_numbers = #tpu.dot_dimension_numbers<[1], [0], [0], [1], [0, 0, 1, 1], [], []>} : vector<32x48xbf16>, vector<48x12xbf16>, vector<32x12xf32> -> vector<32x12xf32>
    %278 = arith.addf %269, %277 : vector<32x12xf32>
    %c7_179 = arith.constant 7 : index
    %c0_180 = arith.constant 0 : index
    %c0_181 = arith.constant 0 : index
    %279 = vector.load %arg1[%c7_179, %c0_180, %c0_181] : memref<9x32x32xbf16, #tpu.memory_space<vmem>>, vector<1x32x32xbf16>
    %280 = vector.shape_cast %279 : vector<1x32x32xbf16> to vector<32x32xbf16>
    %281 = arith.truncf %216 : vector<32x48xf32> to vector<32x48xbf16>
    %cst_182 = arith.constant dense<0.000000e+00> : vector<32x48xf32>
    %282 = tpu.matmul %280, %281, %cst_182 {dimension_numbers = #tpu.dot_dimension_numbers<[1], [0], [0], [1], [0, 0, 1, 1], [], []>} : vector<32x32xbf16>, vector<32x48xbf16>, vector<32x48xf32> -> vector<32x48xf32>
    %c7_183 = arith.constant 7 : index
    %c0_184 = arith.constant 0 : index
    %c0_185 = arith.constant 0 : index
    %283 = vector.load %arg16[%c7_183, %c0_184, %c0_185] : memref<9x48x12xbf16, #tpu.memory_space<vmem>>, vector<1x48x12xbf16>
    %284 = vector.shape_cast %283 : vector<1x48x12xbf16> to vector<48x12xbf16>
    %285 = arith.truncf %282 : vector<32x48xf32> to vector<32x48xbf16>
    %cst_186 = arith.constant dense<0.000000e+00> : vector<32x12xf32>
    %286 = tpu.matmul %285, %284, %cst_186 {dimension_numbers = #tpu.dot_dimension_numbers<[1], [0], [0], [1], [0, 0, 1, 1], [], []>} : vector<32x48xbf16>, vector<48x12xbf16>, vector<32x12xf32> -> vector<32x12xf32>
    %287 = arith.addf %278, %286 : vector<32x12xf32>
    %c8_187 = arith.constant 8 : index
    %c0_188 = arith.constant 0 : index
    %c0_189 = arith.constant 0 : index
    %288 = vector.load %arg1[%c8_187, %c0_188, %c0_189] : memref<9x32x32xbf16, #tpu.memory_space<vmem>>, vector<1x32x32xbf16>
    %289 = vector.shape_cast %288 : vector<1x32x32xbf16> to vector<32x32xbf16>
    %290 = arith.truncf %216 : vector<32x48xf32> to vector<32x48xbf16>
    %cst_190 = arith.constant dense<0.000000e+00> : vector<32x48xf32>
    %291 = tpu.matmul %289, %290, %cst_190 {dimension_numbers = #tpu.dot_dimension_numbers<[1], [0], [0], [1], [0, 0, 1, 1], [], []>} : vector<32x32xbf16>, vector<32x48xbf16>, vector<32x48xf32> -> vector<32x48xf32>
    %c8_191 = arith.constant 8 : index
    %c0_192 = arith.constant 0 : index
    %c0_193 = arith.constant 0 : index
    %292 = vector.load %arg16[%c8_191, %c0_192, %c0_193] : memref<9x48x12xbf16, #tpu.memory_space<vmem>>, vector<1x48x12xbf16>
    %293 = vector.shape_cast %292 : vector<1x48x12xbf16> to vector<48x12xbf16>
    %294 = arith.truncf %291 : vector<32x48xf32> to vector<32x48xbf16>
    %cst_194 = arith.constant dense<0.000000e+00> : vector<32x12xf32>
    %295 = tpu.matmul %294, %293, %cst_194 {dimension_numbers = #tpu.dot_dimension_numbers<[1], [0], [0], [1], [0, 0, 1, 1], [], []>} : vector<32x48xbf16>, vector<48x12xbf16>, vector<32x12xf32> -> vector<32x12xf32>
    %296 = arith.addf %287, %295 : vector<32x12xf32>
    %c0_195 = arith.constant 0 : index
    %c0_196 = arith.constant 0 : index
    %297 = vector.load %arg17[%c0_195, %c0_196] : memref<1x64xf32, #tpu.memory_space<vmem>>, vector<1x64xf32>
    %c0_197 = arith.constant 0 : index
    %c0_198 = arith.constant 0 : index
    %298 = vector.load %arg18[%c0_197, %c0_198] : memref<1x64xf32, #tpu.memory_space<vmem>>, vector<1x64xf32>
    %cst_199 = arith.constant dense<0.000000e+00> : vector<64xf32>
    %299 = vector.multi_reduction <add>, %1, %cst_199 [0] : vector<32x64xf32> to vector<64xf32>
    %300 = vector.shape_cast %299 : vector<64xf32> to vector<1x64xf32>
    %cst_200 = arith.constant 3.200000e+01 : f32
    %301 = vector.broadcast %cst_200 : f32 to vector<1x64xf32>
    %302 = arith.divf %300, %301 : vector<1x64xf32>
    %303 = vector.broadcast %302 : vector<1x64xf32> to vector<32x64xf32>
    %304 = arith.subf %1, %303 : vector<32x64xf32>
    %305 = arith.mulf %304, %304 : vector<32x64xf32>
    %cst_201 = arith.constant dense<0.000000e+00> : vector<64xf32>
    %306 = vector.multi_reduction <add>, %305, %cst_201 [0] : vector<32x64xf32> to vector<64xf32>
    %307 = vector.shape_cast %306 : vector<64xf32> to vector<1x64xf32>
    %cst_202 = arith.constant 3.200000e+01 : f32
    %308 = vector.broadcast %cst_202 : f32 to vector<1x64xf32>
    %309 = arith.divf %307, %308 : vector<1x64xf32>
    %310 = vector.broadcast %302 : vector<1x64xf32> to vector<32x64xf32>
    %311 = arith.subf %1, %310 : vector<32x64xf32>
    %cst_203 = arith.constant 9.99999974E-6 : f32
    %312 = vector.broadcast %cst_203 : f32 to vector<1x64xf32>
    %313 = arith.addf %309, %312 : vector<1x64xf32>
    %314 = math.rsqrt %313 : vector<1x64xf32>
    %315 = arith.mulf %297, %314 : vector<1x64xf32>
    %316 = vector.broadcast %315 : vector<1x64xf32> to vector<32x64xf32>
    %317 = arith.mulf %311, %316 : vector<32x64xf32>
    %318 = vector.broadcast %298 : vector<1x64xf32> to vector<32x64xf32>
    %319 = arith.addf %317, %318 : vector<32x64xf32>
    %cst_204 = arith.constant 0.000000e+00 : f32
    %320 = vector.broadcast %cst_204 : f32 to vector<32x64xf32>
    %321 = arith.maximumf %319, %320 : vector<32x64xf32>
    %c0_205 = arith.constant 0 : index
    %c0_206 = arith.constant 0 : index
    %322 = vector.load %arg19[%c0_205, %c0_206] : memref<64x44xbf16, #tpu.memory_space<vmem>>, vector<64x44xbf16>
    %323 = arith.truncf %321 : vector<32x64xf32> to vector<32x64xbf16>
    %cst_207 = arith.constant dense<0.000000e+00> : vector<32x44xf32>
    %324 = tpu.matmul %323, %322, %cst_207 {dimension_numbers = #tpu.dot_dimension_numbers<[1], [0], [0], [1], [0, 0, 1, 1], [], []>} : vector<32x64xbf16>, vector<64x44xbf16>, vector<32x44xf32> -> vector<32x44xf32>
    %c0_208 = arith.constant 0 : index
    %c0_209 = arith.constant 0 : index
    %325 = vector.load %arg20[%c0_208, %c0_209] : memref<1x12xf32, #tpu.memory_space<vmem>>, vector<1x12xf32>
    %c0_210 = arith.constant 0 : index
    %c0_211 = arith.constant 0 : index
    %326 = vector.load %arg21[%c0_210, %c0_211] : memref<1x12xf32, #tpu.memory_space<vmem>>, vector<1x12xf32>
    %cst_212 = arith.constant dense<0.000000e+00> : vector<12xf32>
    %327 = vector.multi_reduction <add>, %134, %cst_212 [0] : vector<32x12xf32> to vector<12xf32>
    %328 = vector.shape_cast %327 : vector<12xf32> to vector<1x12xf32>
    %cst_213 = arith.constant 3.200000e+01 : f32
    %329 = vector.broadcast %cst_213 : f32 to vector<1x12xf32>
    %330 = arith.divf %328, %329 : vector<1x12xf32>
    %331 = vector.broadcast %330 : vector<1x12xf32> to vector<32x12xf32>
    %332 = arith.subf %134, %331 : vector<32x12xf32>
    %333 = arith.mulf %332, %332 : vector<32x12xf32>
    %cst_214 = arith.constant dense<0.000000e+00> : vector<12xf32>
    %334 = vector.multi_reduction <add>, %333, %cst_214 [0] : vector<32x12xf32> to vector<12xf32>
    %335 = vector.shape_cast %334 : vector<12xf32> to vector<1x12xf32>
    %cst_215 = arith.constant 3.200000e+01 : f32
    %336 = vector.broadcast %cst_215 : f32 to vector<1x12xf32>
    %337 = arith.divf %335, %336 : vector<1x12xf32>
    %338 = vector.broadcast %330 : vector<1x12xf32> to vector<32x12xf32>
    %339 = arith.subf %134, %338 : vector<32x12xf32>
    %cst_216 = arith.constant 9.99999974E-6 : f32
    %340 = vector.broadcast %cst_216 : f32 to vector<1x12xf32>
    %341 = arith.addf %337, %340 : vector<1x12xf32>
    %342 = math.rsqrt %341 : vector<1x12xf32>
    %343 = arith.mulf %325, %342 : vector<1x12xf32>
    %344 = vector.broadcast %343 : vector<1x12xf32> to vector<32x12xf32>
    %345 = arith.mulf %339, %344 : vector<32x12xf32>
    %346 = vector.broadcast %326 : vector<1x12xf32> to vector<32x12xf32>
    %347 = arith.addf %345, %346 : vector<32x12xf32>
    %cst_217 = arith.constant 0.000000e+00 : f32
    %348 = vector.broadcast %cst_217 : f32 to vector<32x12xf32>
    %349 = arith.maximumf %347, %348 : vector<32x12xf32>
    %c0_218 = arith.constant 0 : index
    %c0_219 = arith.constant 0 : index
    %350 = vector.load %arg22[%c0_218, %c0_219] : memref<12x44xbf16, #tpu.memory_space<vmem>>, vector<12x44xbf16>
    %351 = arith.truncf %349 : vector<32x12xf32> to vector<32x12xbf16>
    %cst_220 = arith.constant dense<0.000000e+00> : vector<32x44xf32>
    %352 = tpu.matmul %351, %350, %cst_220 {dimension_numbers = #tpu.dot_dimension_numbers<[1], [0], [0], [1], [0, 0, 1, 1], [], []>} : vector<32x12xbf16>, vector<12x44xbf16>, vector<32x44xf32> -> vector<32x44xf32>
    %353 = arith.addf %324, %352 : vector<32x44xf32>
    %c0_221 = arith.constant 0 : index
    %c0_222 = arith.constant 0 : index
    %354 = vector.load %arg23[%c0_221, %c0_222] : memref<1x12xf32, #tpu.memory_space<vmem>>, vector<1x12xf32>
    %c0_223 = arith.constant 0 : index
    %c0_224 = arith.constant 0 : index
    %355 = vector.load %arg24[%c0_223, %c0_224] : memref<1x12xf32, #tpu.memory_space<vmem>>, vector<1x12xf32>
    %cst_225 = arith.constant dense<0.000000e+00> : vector<12xf32>
    %356 = vector.multi_reduction <add>, %296, %cst_225 [0] : vector<32x12xf32> to vector<12xf32>
    %357 = vector.shape_cast %356 : vector<12xf32> to vector<1x12xf32>
    %cst_226 = arith.constant 3.200000e+01 : f32
    %358 = vector.broadcast %cst_226 : f32 to vector<1x12xf32>
    %359 = arith.divf %357, %358 : vector<1x12xf32>
    %360 = vector.broadcast %359 : vector<1x12xf32> to vector<32x12xf32>
    %361 = arith.subf %296, %360 : vector<32x12xf32>
    %362 = arith.mulf %361, %361 : vector<32x12xf32>
    %cst_227 = arith.constant dense<0.000000e+00> : vector<12xf32>
    %363 = vector.multi_reduction <add>, %362, %cst_227 [0] : vector<32x12xf32> to vector<12xf32>
    %364 = vector.shape_cast %363 : vector<12xf32> to vector<1x12xf32>
    %cst_228 = arith.constant 3.200000e+01 : f32
    %365 = vector.broadcast %cst_228 : f32 to vector<1x12xf32>
    %366 = arith.divf %364, %365 : vector<1x12xf32>
    %367 = vector.broadcast %359 : vector<1x12xf32> to vector<32x12xf32>
    %368 = arith.subf %296, %367 : vector<32x12xf32>
    %cst_229 = arith.constant 9.99999974E-6 : f32
    %369 = vector.broadcast %cst_229 : f32 to vector<1x12xf32>
    %370 = arith.addf %366, %369 : vector<1x12xf32>
    %371 = math.rsqrt %370 : vector<1x12xf32>
    %372 = arith.mulf %354, %371 : vector<1x12xf32>
    %373 = vector.broadcast %372 : vector<1x12xf32> to vector<32x12xf32>
    %374 = arith.mulf %368, %373 : vector<32x12xf32>
    %375 = vector.broadcast %355 : vector<1x12xf32> to vector<32x12xf32>
    %376 = arith.addf %374, %375 : vector<32x12xf32>
    %cst_230 = arith.constant 0.000000e+00 : f32
    %377 = vector.broadcast %cst_230 : f32 to vector<32x12xf32>
    %378 = arith.maximumf %376, %377 : vector<32x12xf32>
    %c0_231 = arith.constant 0 : index
    %c0_232 = arith.constant 0 : index
    %379 = vector.load %arg25[%c0_231, %c0_232] : memref<12x44xbf16, #tpu.memory_space<vmem>>, vector<12x44xbf16>
    %380 = arith.truncf %378 : vector<32x12xf32> to vector<32x12xbf16>
    %cst_233 = arith.constant dense<0.000000e+00> : vector<32x44xf32>
    %381 = tpu.matmul %380, %379, %cst_233 {dimension_numbers = #tpu.dot_dimension_numbers<[1], [0], [0], [1], [0, 0, 1, 1], [], []>} : vector<32x12xbf16>, vector<12x44xbf16>, vector<32x44xf32> -> vector<32x44xf32>
    %382 = arith.addf %353, %381 : vector<32x44xf32>
    %c0_234 = arith.constant 0 : index
    %c0_235 = arith.constant 0 : index
    %383 = vector.load %arg26[%c0_234, %c0_235] : memref<8x32xbf16, #tpu.memory_space<vmem>>, vector<8x32xbf16>
    %384 = arith.truncf %382 : vector<32x44xf32> to vector<32x44xbf16>
    %cst_236 = arith.constant dense<0.000000e+00> : vector<8x44xf32>
    %385 = tpu.matmul %383, %384, %cst_236 {dimension_numbers = #tpu.dot_dimension_numbers<[1], [0], [0], [1], [0, 0, 1, 1], [], []>} : vector<8x32xbf16>, vector<32x44xbf16>, vector<8x44xf32> -> vector<8x44xf32>
    %c0_237 = arith.constant 0 : index
    %c0_238 = arith.constant 0 : index
    %386 = vector.load %arg28[%c0_237, %c0_238] : memref<1x44xf32, #tpu.memory_space<vmem>>, vector<1x44xf32>
    %c0_239 = arith.constant 0 : index
    %c0_240 = arith.constant 0 : index
    %387 = vector.load %arg29[%c0_239, %c0_240] : memref<1x44xf32, #tpu.memory_space<vmem>>, vector<1x44xf32>
    %cst_241 = arith.constant dense<0.000000e+00> : vector<44xf32>
    %388 = vector.multi_reduction <add>, %385, %cst_241 [0] : vector<8x44xf32> to vector<44xf32>
    %389 = vector.shape_cast %388 : vector<44xf32> to vector<1x44xf32>
    %cst_242 = arith.constant 8.000000e+00 : f32
    %390 = vector.broadcast %cst_242 : f32 to vector<1x44xf32>
    %391 = arith.divf %389, %390 : vector<1x44xf32>
    %392 = vector.broadcast %391 : vector<1x44xf32> to vector<8x44xf32>
    %393 = arith.subf %385, %392 : vector<8x44xf32>
    %394 = arith.mulf %393, %393 : vector<8x44xf32>
    %cst_243 = arith.constant dense<0.000000e+00> : vector<44xf32>
    %395 = vector.multi_reduction <add>, %394, %cst_243 [0] : vector<8x44xf32> to vector<44xf32>
    %396 = vector.shape_cast %395 : vector<44xf32> to vector<1x44xf32>
    %cst_244 = arith.constant 8.000000e+00 : f32
    %397 = vector.broadcast %cst_244 : f32 to vector<1x44xf32>
    %398 = arith.divf %396, %397 : vector<1x44xf32>
    %399 = vector.broadcast %391 : vector<1x44xf32> to vector<8x44xf32>
    %400 = arith.subf %385, %399 : vector<8x44xf32>
    %cst_245 = arith.constant 9.99999974E-6 : f32
    %401 = vector.broadcast %cst_245 : f32 to vector<1x44xf32>
    %402 = arith.addf %398, %401 : vector<1x44xf32>
    %403 = math.rsqrt %402 : vector<1x44xf32>
    %404 = arith.mulf %386, %403 : vector<1x44xf32>
    %405 = vector.broadcast %404 : vector<1x44xf32> to vector<8x44xf32>
    %406 = arith.mulf %400, %405 : vector<8x44xf32>
    %407 = vector.broadcast %387 : vector<1x44xf32> to vector<8x44xf32>
    %408 = arith.addf %406, %407 : vector<8x44xf32>
    %cst_246 = arith.constant 0.000000e+00 : f32
    %409 = vector.broadcast %cst_246 : f32 to vector<8x44xf32>
    %410 = arith.maximumf %408, %409 : vector<8x44xf32>
    %c0_247 = arith.constant 0 : index
    %c0_248 = arith.constant 0 : index
    %411 = vector.load %arg30[%c0_247, %c0_248] : memref<44x48xbf16, #tpu.memory_space<vmem>>, vector<44x48xbf16>
    %412 = arith.truncf %410 : vector<8x44xf32> to vector<8x44xbf16>
    %cst_249 = arith.constant dense<0.000000e+00> : vector<8x48xf32>
    %413 = tpu.matmul %412, %411, %cst_249 {dimension_numbers = #tpu.dot_dimension_numbers<[1], [0], [0], [1], [0, 0, 1, 1], [], []>} : vector<8x44xbf16>, vector<44x48xbf16>, vector<8x48xf32> -> vector<8x48xf32>
    %c0_250 = arith.constant 0 : index
    %c0_251 = arith.constant 0 : index
    %414 = vector.load %arg31[%c0_250, %c0_251] : memref<1x48xf32, #tpu.memory_space<vmem>>, vector<1x48xf32>
    %c0_252 = arith.constant 0 : index
    %c0_253 = arith.constant 0 : index
    %415 = vector.load %arg32[%c0_252, %c0_253] : memref<1x48xf32, #tpu.memory_space<vmem>>, vector<1x48xf32>
    %cst_254 = arith.constant dense<0.000000e+00> : vector<48xf32>
    %416 = vector.multi_reduction <add>, %413, %cst_254 [0] : vector<8x48xf32> to vector<48xf32>
    %417 = vector.shape_cast %416 : vector<48xf32> to vector<1x48xf32>
    %cst_255 = arith.constant 8.000000e+00 : f32
    %418 = vector.broadcast %cst_255 : f32 to vector<1x48xf32>
    %419 = arith.divf %417, %418 : vector<1x48xf32>
    %420 = vector.broadcast %419 : vector<1x48xf32> to vector<8x48xf32>
    %421 = arith.subf %413, %420 : vector<8x48xf32>
    %422 = arith.mulf %421, %421 : vector<8x48xf32>
    %cst_256 = arith.constant dense<0.000000e+00> : vector<48xf32>
    %423 = vector.multi_reduction <add>, %422, %cst_256 [0] : vector<8x48xf32> to vector<48xf32>
    %424 = vector.shape_cast %423 : vector<48xf32> to vector<1x48xf32>
    %cst_257 = arith.constant 8.000000e+00 : f32
    %425 = vector.broadcast %cst_257 : f32 to vector<1x48xf32>
    %426 = arith.divf %424, %425 : vector<1x48xf32>
    %427 = vector.broadcast %419 : vector<1x48xf32> to vector<8x48xf32>
    %428 = arith.subf %413, %427 : vector<8x48xf32>
    %cst_258 = arith.constant 9.99999974E-6 : f32
    %429 = vector.broadcast %cst_258 : f32 to vector<1x48xf32>
    %430 = arith.addf %426, %429 : vector<1x48xf32>
    %431 = math.rsqrt %430 : vector<1x48xf32>
    %432 = arith.mulf %414, %431 : vector<1x48xf32>
    %433 = vector.broadcast %432 : vector<1x48xf32> to vector<8x48xf32>
    %434 = arith.mulf %428, %433 : vector<8x48xf32>
    %435 = vector.broadcast %415 : vector<1x48xf32> to vector<8x48xf32>
    %436 = arith.addf %434, %435 : vector<8x48xf32>
    %cst_259 = arith.constant 0.000000e+00 : f32
    %437 = vector.broadcast %cst_259 : f32 to vector<8x48xf32>
    %438 = arith.maximumf %436, %437 : vector<8x48xf32>
    %c0_260 = arith.constant 0 : index
    %c0_261 = arith.constant 0 : index
    %c0_262 = arith.constant 0 : index
    %439 = vector.load %arg27[%c0_260, %c0_261, %c0_262] : memref<9x8x8xbf16, #tpu.memory_space<vmem>>, vector<1x8x8xbf16>
    %440 = vector.shape_cast %439 : vector<1x8x8xbf16> to vector<8x8xbf16>
    %441 = arith.truncf %438 : vector<8x48xf32> to vector<8x48xbf16>
    %cst_263 = arith.constant dense<0.000000e+00> : vector<8x48xf32>
    %442 = tpu.matmul %440, %441, %cst_263 {dimension_numbers = #tpu.dot_dimension_numbers<[1], [0], [0], [1], [0, 0, 1, 1], [], []>} : vector<8x8xbf16>, vector<8x48xbf16>, vector<8x48xf32> -> vector<8x48xf32>
    %c0_264 = arith.constant 0 : index
    %c0_265 = arith.constant 0 : index
    %c0_266 = arith.constant 0 : index
    %443 = vector.load %arg33[%c0_264, %c0_265, %c0_266] : memref<9x48x12xbf16, #tpu.memory_space<vmem>>, vector<1x48x12xbf16>
    %444 = vector.shape_cast %443 : vector<1x48x12xbf16> to vector<48x12xbf16>
    %445 = arith.truncf %442 : vector<8x48xf32> to vector<8x48xbf16>
    %cst_267 = arith.constant dense<0.000000e+00> : vector<8x12xf32>
    %446 = tpu.matmul %445, %444, %cst_267 {dimension_numbers = #tpu.dot_dimension_numbers<[1], [0], [0], [1], [0, 0, 1, 1], [], []>} : vector<8x48xbf16>, vector<48x12xbf16>, vector<8x12xf32> -> vector<8x12xf32>
    %c1_268 = arith.constant 1 : index
    %c0_269 = arith.constant 0 : index
    %c0_270 = arith.constant 0 : index
    %447 = vector.load %arg27[%c1_268, %c0_269, %c0_270] : memref<9x8x8xbf16, #tpu.memory_space<vmem>>, vector<1x8x8xbf16>
    %448 = vector.shape_cast %447 : vector<1x8x8xbf16> to vector<8x8xbf16>
    %449 = arith.truncf %438 : vector<8x48xf32> to vector<8x48xbf16>
    %cst_271 = arith.constant dense<0.000000e+00> : vector<8x48xf32>
    %450 = tpu.matmul %448, %449, %cst_271 {dimension_numbers = #tpu.dot_dimension_numbers<[1], [0], [0], [1], [0, 0, 1, 1], [], []>} : vector<8x8xbf16>, vector<8x48xbf16>, vector<8x48xf32> -> vector<8x48xf32>
    %c1_272 = arith.constant 1 : index
    %c0_273 = arith.constant 0 : index
    %c0_274 = arith.constant 0 : index
    %451 = vector.load %arg33[%c1_272, %c0_273, %c0_274] : memref<9x48x12xbf16, #tpu.memory_space<vmem>>, vector<1x48x12xbf16>
    %452 = vector.shape_cast %451 : vector<1x48x12xbf16> to vector<48x12xbf16>
    %453 = arith.truncf %450 : vector<8x48xf32> to vector<8x48xbf16>
    %cst_275 = arith.constant dense<0.000000e+00> : vector<8x12xf32>
    %454 = tpu.matmul %453, %452, %cst_275 {dimension_numbers = #tpu.dot_dimension_numbers<[1], [0], [0], [1], [0, 0, 1, 1], [], []>} : vector<8x48xbf16>, vector<48x12xbf16>, vector<8x12xf32> -> vector<8x12xf32>
    %455 = arith.addf %446, %454 : vector<8x12xf32>
    %c2_276 = arith.constant 2 : index
    %c0_277 = arith.constant 0 : index
    %c0_278 = arith.constant 0 : index
    %456 = vector.load %arg27[%c2_276, %c0_277, %c0_278] : memref<9x8x8xbf16, #tpu.memory_space<vmem>>, vector<1x8x8xbf16>
    %457 = vector.shape_cast %456 : vector<1x8x8xbf16> to vector<8x8xbf16>
    %458 = arith.truncf %438 : vector<8x48xf32> to vector<8x48xbf16>
    %cst_279 = arith.constant dense<0.000000e+00> : vector<8x48xf32>
    %459 = tpu.matmul %457, %458, %cst_279 {dimension_numbers = #tpu.dot_dimension_numbers<[1], [0], [0], [1], [0, 0, 1, 1], [], []>} : vector<8x8xbf16>, vector<8x48xbf16>, vector<8x48xf32> -> vector<8x48xf32>
    %c2_280 = arith.constant 2 : index
    %c0_281 = arith.constant 0 : index
    %c0_282 = arith.constant 0 : index
    %460 = vector.load %arg33[%c2_280, %c0_281, %c0_282] : memref<9x48x12xbf16, #tpu.memory_space<vmem>>, vector<1x48x12xbf16>
    %461 = vector.shape_cast %460 : vector<1x48x12xbf16> to vector<48x12xbf16>
    %462 = arith.truncf %459 : vector<8x48xf32> to vector<8x48xbf16>
    %cst_283 = arith.constant dense<0.000000e+00> : vector<8x12xf32>
    %463 = tpu.matmul %462, %461, %cst_283 {dimension_numbers = #tpu.dot_dimension_numbers<[1], [0], [0], [1], [0, 0, 1, 1], [], []>} : vector<8x48xbf16>, vector<48x12xbf16>, vector<8x12xf32> -> vector<8x12xf32>
    %464 = arith.addf %455, %463 : vector<8x12xf32>
    %c3_284 = arith.constant 3 : index
    %c0_285 = arith.constant 0 : index
    %c0_286 = arith.constant 0 : index
    %465 = vector.load %arg27[%c3_284, %c0_285, %c0_286] : memref<9x8x8xbf16, #tpu.memory_space<vmem>>, vector<1x8x8xbf16>
    %466 = vector.shape_cast %465 : vector<1x8x8xbf16> to vector<8x8xbf16>
    %467 = arith.truncf %438 : vector<8x48xf32> to vector<8x48xbf16>
    %cst_287 = arith.constant dense<0.000000e+00> : vector<8x48xf32>
    %468 = tpu.matmul %466, %467, %cst_287 {dimension_numbers = #tpu.dot_dimension_numbers<[1], [0], [0], [1], [0, 0, 1, 1], [], []>} : vector<8x8xbf16>, vector<8x48xbf16>, vector<8x48xf32> -> vector<8x48xf32>
    %c3_288 = arith.constant 3 : index
    %c0_289 = arith.constant 0 : index
    %c0_290 = arith.constant 0 : index
    %469 = vector.load %arg33[%c3_288, %c0_289, %c0_290] : memref<9x48x12xbf16, #tpu.memory_space<vmem>>, vector<1x48x12xbf16>
    %470 = vector.shape_cast %469 : vector<1x48x12xbf16> to vector<48x12xbf16>
    %471 = arith.truncf %468 : vector<8x48xf32> to vector<8x48xbf16>
    %cst_291 = arith.constant dense<0.000000e+00> : vector<8x12xf32>
    %472 = tpu.matmul %471, %470, %cst_291 {dimension_numbers = #tpu.dot_dimension_numbers<[1], [0], [0], [1], [0, 0, 1, 1], [], []>} : vector<8x48xbf16>, vector<48x12xbf16>, vector<8x12xf32> -> vector<8x12xf32>
    %473 = arith.addf %464, %472 : vector<8x12xf32>
    %c4_292 = arith.constant 4 : index
    %c0_293 = arith.constant 0 : index
    %c0_294 = arith.constant 0 : index
    %474 = vector.load %arg27[%c4_292, %c0_293, %c0_294] : memref<9x8x8xbf16, #tpu.memory_space<vmem>>, vector<1x8x8xbf16>
    %475 = vector.shape_cast %474 : vector<1x8x8xbf16> to vector<8x8xbf16>
    %476 = arith.truncf %438 : vector<8x48xf32> to vector<8x48xbf16>
    %cst_295 = arith.constant dense<0.000000e+00> : vector<8x48xf32>
    %477 = tpu.matmul %475, %476, %cst_295 {dimension_numbers = #tpu.dot_dimension_numbers<[1], [0], [0], [1], [0, 0, 1, 1], [], []>} : vector<8x8xbf16>, vector<8x48xbf16>, vector<8x48xf32> -> vector<8x48xf32>
    %c4_296 = arith.constant 4 : index
    %c0_297 = arith.constant 0 : index
    %c0_298 = arith.constant 0 : index
    %478 = vector.load %arg33[%c4_296, %c0_297, %c0_298] : memref<9x48x12xbf16, #tpu.memory_space<vmem>>, vector<1x48x12xbf16>
    %479 = vector.shape_cast %478 : vector<1x48x12xbf16> to vector<48x12xbf16>
    %480 = arith.truncf %477 : vector<8x48xf32> to vector<8x48xbf16>
    %cst_299 = arith.constant dense<0.000000e+00> : vector<8x12xf32>
    %481 = tpu.matmul %480, %479, %cst_299 {dimension_numbers = #tpu.dot_dimension_numbers<[1], [0], [0], [1], [0, 0, 1, 1], [], []>} : vector<8x48xbf16>, vector<48x12xbf16>, vector<8x12xf32> -> vector<8x12xf32>
    %482 = arith.addf %473, %481 : vector<8x12xf32>
    %c5_300 = arith.constant 5 : index
    %c0_301 = arith.constant 0 : index
    %c0_302 = arith.constant 0 : index
    %483 = vector.load %arg27[%c5_300, %c0_301, %c0_302] : memref<9x8x8xbf16, #tpu.memory_space<vmem>>, vector<1x8x8xbf16>
    %484 = vector.shape_cast %483 : vector<1x8x8xbf16> to vector<8x8xbf16>
    %485 = arith.truncf %438 : vector<8x48xf32> to vector<8x48xbf16>
    %cst_303 = arith.constant dense<0.000000e+00> : vector<8x48xf32>
    %486 = tpu.matmul %484, %485, %cst_303 {dimension_numbers = #tpu.dot_dimension_numbers<[1], [0], [0], [1], [0, 0, 1, 1], [], []>} : vector<8x8xbf16>, vector<8x48xbf16>, vector<8x48xf32> -> vector<8x48xf32>
    %c5_304 = arith.constant 5 : index
    %c0_305 = arith.constant 0 : index
    %c0_306 = arith.constant 0 : index
    %487 = vector.load %arg33[%c5_304, %c0_305, %c0_306] : memref<9x48x12xbf16, #tpu.memory_space<vmem>>, vector<1x48x12xbf16>
    %488 = vector.shape_cast %487 : vector<1x48x12xbf16> to vector<48x12xbf16>
    %489 = arith.truncf %486 : vector<8x48xf32> to vector<8x48xbf16>
    %cst_307 = arith.constant dense<0.000000e+00> : vector<8x12xf32>
    %490 = tpu.matmul %489, %488, %cst_307 {dimension_numbers = #tpu.dot_dimension_numbers<[1], [0], [0], [1], [0, 0, 1, 1], [], []>} : vector<8x48xbf16>, vector<48x12xbf16>, vector<8x12xf32> -> vector<8x12xf32>
    %491 = arith.addf %482, %490 : vector<8x12xf32>
    %c6_308 = arith.constant 6 : index
    %c0_309 = arith.constant 0 : index
    %c0_310 = arith.constant 0 : index
    %492 = vector.load %arg27[%c6_308, %c0_309, %c0_310] : memref<9x8x8xbf16, #tpu.memory_space<vmem>>, vector<1x8x8xbf16>
    %493 = vector.shape_cast %492 : vector<1x8x8xbf16> to vector<8x8xbf16>
    %494 = arith.truncf %438 : vector<8x48xf32> to vector<8x48xbf16>
    %cst_311 = arith.constant dense<0.000000e+00> : vector<8x48xf32>
    %495 = tpu.matmul %493, %494, %cst_311 {dimension_numbers = #tpu.dot_dimension_numbers<[1], [0], [0], [1], [0, 0, 1, 1], [], []>} : vector<8x8xbf16>, vector<8x48xbf16>, vector<8x48xf32> -> vector<8x48xf32>
    %c6_312 = arith.constant 6 : index
    %c0_313 = arith.constant 0 : index
    %c0_314 = arith.constant 0 : index
    %496 = vector.load %arg33[%c6_312, %c0_313, %c0_314] : memref<9x48x12xbf16, #tpu.memory_space<vmem>>, vector<1x48x12xbf16>
    %497 = vector.shape_cast %496 : vector<1x48x12xbf16> to vector<48x12xbf16>
    %498 = arith.truncf %495 : vector<8x48xf32> to vector<8x48xbf16>
    %cst_315 = arith.constant dense<0.000000e+00> : vector<8x12xf32>
    %499 = tpu.matmul %498, %497, %cst_315 {dimension_numbers = #tpu.dot_dimension_numbers<[1], [0], [0], [1], [0, 0, 1, 1], [], []>} : vector<8x48xbf16>, vector<48x12xbf16>, vector<8x12xf32> -> vector<8x12xf32>
    %500 = arith.addf %491, %499 : vector<8x12xf32>
    %c7_316 = arith.constant 7 : index
    %c0_317 = arith.constant 0 : index
    %c0_318 = arith.constant 0 : index
    %501 = vector.load %arg27[%c7_316, %c0_317, %c0_318] : memref<9x8x8xbf16, #tpu.memory_space<vmem>>, vector<1x8x8xbf16>
    %502 = vector.shape_cast %501 : vector<1x8x8xbf16> to vector<8x8xbf16>
    %503 = arith.truncf %438 : vector<8x48xf32> to vector<8x48xbf16>
    %cst_319 = arith.constant dense<0.000000e+00> : vector<8x48xf32>
    %504 = tpu.matmul %502, %503, %cst_319 {dimension_numbers = #tpu.dot_dimension_numbers<[1], [0], [0], [1], [0, 0, 1, 1], [], []>} : vector<8x8xbf16>, vector<8x48xbf16>, vector<8x48xf32> -> vector<8x48xf32>
    %c7_320 = arith.constant 7 : index
    %c0_321 = arith.constant 0 : index
    %c0_322 = arith.constant 0 : index
    %505 = vector.load %arg33[%c7_320, %c0_321, %c0_322] : memref<9x48x12xbf16, #tpu.memory_space<vmem>>, vector<1x48x12xbf16>
    %506 = vector.shape_cast %505 : vector<1x48x12xbf16> to vector<48x12xbf16>
    %507 = arith.truncf %504 : vector<8x48xf32> to vector<8x48xbf16>
    %cst_323 = arith.constant dense<0.000000e+00> : vector<8x12xf32>
    %508 = tpu.matmul %507, %506, %cst_323 {dimension_numbers = #tpu.dot_dimension_numbers<[1], [0], [0], [1], [0, 0, 1, 1], [], []>} : vector<8x48xbf16>, vector<48x12xbf16>, vector<8x12xf32> -> vector<8x12xf32>
    %509 = arith.addf %500, %508 : vector<8x12xf32>
    %c8_324 = arith.constant 8 : index
    %c0_325 = arith.constant 0 : index
    %c0_326 = arith.constant 0 : index
    %510 = vector.load %arg27[%c8_324, %c0_325, %c0_326] : memref<9x8x8xbf16, #tpu.memory_space<vmem>>, vector<1x8x8xbf16>
    %511 = vector.shape_cast %510 : vector<1x8x8xbf16> to vector<8x8xbf16>
    %512 = arith.truncf %438 : vector<8x48xf32> to vector<8x48xbf16>
    %cst_327 = arith.constant dense<0.000000e+00> : vector<8x48xf32>
    %513 = tpu.matmul %511, %512, %cst_327 {dimension_numbers = #tpu.dot_dimension_numbers<[1], [0], [0], [1], [0, 0, 1, 1], [], []>} : vector<8x8xbf16>, vector<8x48xbf16>, vector<8x48xf32> -> vector<8x48xf32>
    %c8_328 = arith.constant 8 : index
    %c0_329 = arith.constant 0 : index
    %c0_330 = arith.constant 0 : index
    %514 = vector.load %arg33[%c8_328, %c0_329, %c0_330] : memref<9x48x12xbf16, #tpu.memory_space<vmem>>, vector<1x48x12xbf16>
    %515 = vector.shape_cast %514 : vector<1x48x12xbf16> to vector<48x12xbf16>
    %516 = arith.truncf %513 : vector<8x48xf32> to vector<8x48xbf16>
    %cst_331 = arith.constant dense<0.000000e+00> : vector<8x12xf32>
    %517 = tpu.matmul %516, %515, %cst_331 {dimension_numbers = #tpu.dot_dimension_numbers<[1], [0], [0], [1], [0, 0, 1, 1], [], []>} : vector<8x48xbf16>, vector<48x12xbf16>, vector<8x12xf32> -> vector<8x12xf32>
    %518 = arith.addf %509, %517 : vector<8x12xf32>
    %c0_332 = arith.constant 0 : index
    %c0_333 = arith.constant 0 : index
    %519 = vector.load %arg40[%c0_332, %c0_333] : memref<8x8xbf16, #tpu.memory_space<vmem>>, vector<8x8xbf16>
    %c0_334 = arith.constant 0 : index
    %c0_335 = arith.constant 0 : index
    %520 = vector.load %arg34[%c0_334, %c0_335] : memref<1x44xf32, #tpu.memory_space<vmem>>, vector<1x44xf32>
    %c0_336 = arith.constant 0 : index
    %c0_337 = arith.constant 0 : index
    %521 = vector.load %arg35[%c0_336, %c0_337] : memref<1x44xf32, #tpu.memory_space<vmem>>, vector<1x44xf32>
    %cst_338 = arith.constant dense<0.000000e+00> : vector<44xf32>
    %522 = vector.multi_reduction <add>, %385, %cst_338 [0] : vector<8x44xf32> to vector<44xf32>
    %523 = vector.shape_cast %522 : vector<44xf32> to vector<1x44xf32>
    %cst_339 = arith.constant 8.000000e+00 : f32
    %524 = vector.broadcast %cst_339 : f32 to vector<1x44xf32>
    %525 = arith.divf %523, %524 : vector<1x44xf32>
    %526 = vector.broadcast %525 : vector<1x44xf32> to vector<8x44xf32>
    %527 = arith.subf %385, %526 : vector<8x44xf32>
    %528 = arith.mulf %527, %527 : vector<8x44xf32>
    %cst_340 = arith.constant dense<0.000000e+00> : vector<44xf32>
    %529 = vector.multi_reduction <add>, %528, %cst_340 [0] : vector<8x44xf32> to vector<44xf32>
    %530 = vector.shape_cast %529 : vector<44xf32> to vector<1x44xf32>
    %cst_341 = arith.constant 8.000000e+00 : f32
    %531 = vector.broadcast %cst_341 : f32 to vector<1x44xf32>
    %532 = arith.divf %530, %531 : vector<1x44xf32>
    %533 = vector.broadcast %525 : vector<1x44xf32> to vector<8x44xf32>
    %534 = arith.subf %385, %533 : vector<8x44xf32>
    %cst_342 = arith.constant 9.99999974E-6 : f32
    %535 = vector.broadcast %cst_342 : f32 to vector<1x44xf32>
    %536 = arith.addf %532, %535 : vector<1x44xf32>
    %537 = math.rsqrt %536 : vector<1x44xf32>
    %538 = arith.mulf %520, %537 : vector<1x44xf32>
    %539 = vector.broadcast %538 : vector<1x44xf32> to vector<8x44xf32>
    %540 = arith.mulf %534, %539 : vector<8x44xf32>
    %541 = vector.broadcast %521 : vector<1x44xf32> to vector<8x44xf32>
    %542 = arith.addf %540, %541 : vector<8x44xf32>
    %cst_343 = arith.constant 0.000000e+00 : f32
    %543 = vector.broadcast %cst_343 : f32 to vector<8x44xf32>
    %544 = arith.maximumf %542, %543 : vector<8x44xf32>
    %545 = arith.truncf %544 : vector<8x44xf32> to vector<8x44xbf16>
    %cst_344 = arith.constant dense<0.000000e+00> : vector<8x44xf32>
    %546 = tpu.matmul %519, %545, %cst_344 {dimension_numbers = #tpu.dot_dimension_numbers<[1], [0], [0], [1], [0, 0, 1, 1], [], []>} : vector<8x8xbf16>, vector<8x44xbf16>, vector<8x44xf32> -> vector<8x44xf32>
    %c0_345 = arith.constant 0 : index
    %c0_346 = arith.constant 0 : index
    %547 = vector.load %arg36[%c0_345, %c0_346] : memref<44x128xbf16, #tpu.memory_space<vmem>>, vector<44x128xbf16>
    %548 = arith.truncf %546 : vector<8x44xf32> to vector<8x44xbf16>
    %cst_347 = arith.constant dense<0.000000e+00> : vector<8x128xf32>
    %549 = tpu.matmul %548, %547, %cst_347 {dimension_numbers = #tpu.dot_dimension_numbers<[1], [0], [0], [1], [0, 0, 1, 1], [], []>} : vector<8x44xbf16>, vector<44x128xbf16>, vector<8x128xf32> -> vector<8x128xf32>
    %c0_348 = arith.constant 0 : index
    %c0_349 = arith.constant 0 : index
    %550 = vector.load %arg37[%c0_348, %c0_349] : memref<1x12xf32, #tpu.memory_space<vmem>>, vector<1x12xf32>
    %c0_350 = arith.constant 0 : index
    %c0_351 = arith.constant 0 : index
    %551 = vector.load %arg38[%c0_350, %c0_351] : memref<1x12xf32, #tpu.memory_space<vmem>>, vector<1x12xf32>
    %cst_352 = arith.constant dense<0.000000e+00> : vector<12xf32>
    %552 = vector.multi_reduction <add>, %518, %cst_352 [0] : vector<8x12xf32> to vector<12xf32>
    %553 = vector.shape_cast %552 : vector<12xf32> to vector<1x12xf32>
    %cst_353 = arith.constant 8.000000e+00 : f32
    %554 = vector.broadcast %cst_353 : f32 to vector<1x12xf32>
    %555 = arith.divf %553, %554 : vector<1x12xf32>
    %556 = vector.broadcast %555 : vector<1x12xf32> to vector<8x12xf32>
    %557 = arith.subf %518, %556 : vector<8x12xf32>
    %558 = arith.mulf %557, %557 : vector<8x12xf32>
    %cst_354 = arith.constant dense<0.000000e+00> : vector<12xf32>
    %559 = vector.multi_reduction <add>, %558, %cst_354 [0] : vector<8x12xf32> to vector<12xf32>
    %560 = vector.shape_cast %559 : vector<12xf32> to vector<1x12xf32>
    %cst_355 = arith.constant 8.000000e+00 : f32
    %561 = vector.broadcast %cst_355 : f32 to vector<1x12xf32>
    %562 = arith.divf %560, %561 : vector<1x12xf32>
    %563 = vector.broadcast %555 : vector<1x12xf32> to vector<8x12xf32>
    %564 = arith.subf %518, %563 : vector<8x12xf32>
    %cst_356 = arith.constant 9.99999974E-6 : f32
    %565 = vector.broadcast %cst_356 : f32 to vector<1x12xf32>
    %566 = arith.addf %562, %565 : vector<1x12xf32>
    %567 = math.rsqrt %566 : vector<1x12xf32>
    %568 = arith.mulf %550, %567 : vector<1x12xf32>
    %569 = vector.broadcast %568 : vector<1x12xf32> to vector<8x12xf32>
    %570 = arith.mulf %564, %569 : vector<8x12xf32>
    %571 = vector.broadcast %551 : vector<1x12xf32> to vector<8x12xf32>
    %572 = arith.addf %570, %571 : vector<8x12xf32>
    %cst_357 = arith.constant 0.000000e+00 : f32
    %573 = vector.broadcast %cst_357 : f32 to vector<8x12xf32>
    %574 = arith.maximumf %572, %573 : vector<8x12xf32>
    %575 = arith.truncf %574 : vector<8x12xf32> to vector<8x12xbf16>
    %cst_358 = arith.constant dense<0.000000e+00> : vector<8x12xf32>
    %576 = tpu.matmul %519, %575, %cst_358 {dimension_numbers = #tpu.dot_dimension_numbers<[1], [0], [0], [1], [0, 0, 1, 1], [], []>} : vector<8x8xbf16>, vector<8x12xbf16>, vector<8x12xf32> -> vector<8x12xf32>
    %c0_359 = arith.constant 0 : index
    %c0_360 = arith.constant 0 : index
    %577 = vector.load %arg39[%c0_359, %c0_360] : memref<12x128xbf16, #tpu.memory_space<vmem>>, vector<12x128xbf16>
    %578 = arith.truncf %576 : vector<8x12xf32> to vector<8x12xbf16>
    %cst_361 = arith.constant dense<0.000000e+00> : vector<8x128xf32>
    %579 = tpu.matmul %578, %577, %cst_361 {dimension_numbers = #tpu.dot_dimension_numbers<[1], [0], [0], [1], [0, 0, 1, 1], [], []>} : vector<8x12xbf16>, vector<12x128xbf16>, vector<8x128xf32> -> vector<8x128xf32>
    %580 = arith.addf %549, %579 : vector<8x128xf32>
    %c0_362 = arith.constant 0 : index
    %c0_363 = arith.constant 0 : index
    %581 = vector.load %arg41[%c0_362, %c0_363] : memref<1x128xf32, #tpu.memory_space<vmem>>, vector<1x128xf32>
    %582 = vector.broadcast %581 : vector<1x128xf32> to vector<8x128xf32>
    %583 = arith.addf %580, %582 : vector<8x128xf32>
    %c0_364 = arith.constant 0 : index
    %c0_365 = arith.constant 0 : index
    %584 = vector.load %arg42[%c0_364, %c0_365] : memref<8x128xf32, #tpu.memory_space<vmem>>, vector<8x128xf32>
    tpu.vector_store %arg42[%c0_364, %c0_365], %583 {strides = array<i32>} : memref<8x128xf32, #tpu.memory_space<vmem>>, vector<8x128xf32>,
    return
  }
}

</mosaic_0001>

<llo_original>
// kernel: ensemble_fwd.3
$region0: #{ensemble_fwd.3}
  #allocation0 [shape = 'u32[]', space=smem, size = 0x4, offset = 0x4, fixed_abs, tag = 'smem constant byte address 0x4 - core index']
  #allocation1 [shape = 'u32[144,128]{1,0:T(1,128)}', space=vmem, size = 0x12000, scoped, tag = 'internal scratch']
  %s0 = inlined_call_operand.vmem [shape: bf16[128,147], index: 0, kind: input, shape index: {}]
  %s1 = inlined_call_operand.vmem [shape: bf16[147,128], index: 1, kind: input, shape index: {}]
  %s2 = inlined_call_operand.vmem [shape: f32[1,128], index: 2, kind: input, shape index: {}]
  %s3 = inlined_call_operand.vmem [shape: f32[1,128], index: 3, kind: input, shape index: {}]
  %s4 = inlined_call_operand.vmem [shape: bf16[9,32,128], index: 4, kind: input, shape index: {}]
  %s5 = inlined_call_operand.vmem [shape: bf16[32,128], index: 5, kind: output, shape index: {}]
  %s6 = sld [smem:[#allocation0]]
  $region30: #{ensemble_fwd.3} parent=0
    _
  %s8 = ssub.s32 1, %s6
  %s9 = scalar_select 0, %s8, %s6
  // Predicated region
  $region2: #{ensemble_fwd.3} parent=0 // pred_check
    _
  $region3: #{ensemble_fwd.3} parent=0 // pred_check_branch
    %11 = sbr.rel (0) target = $region5
  $region4: #{ensemble_fwd.3} parent=0 // pred_region
    _
  $region5: #{ensemble_fwd.3} parent=0 // pred_fallthru
    _
  // Predicated region
  $region6: #{ensemble_fwd.3} parent=0 // pred_check
    _
  $region7: #{ensemble_fwd.3} parent=0 // pred_check_branch
    %13 = sbr.rel (0) target = $region9
  $region8: #{ensemble_fwd.3} parent=0 // pred_region
    _
  $region9: #{ensemble_fwd.3} parent=0 // pred_fallthru
    _
  // Predicated region
  $region10: #{ensemble_fwd.3} parent=0 // pred_check
    _
  $region11: #{ensemble_fwd.3} parent=0 // pred_check_branch
    %15 = sbr.rel (0) target = $region13
  $region12: #{ensemble_fwd.3} parent=0 // pred_region
    _
  $region13: #{ensemble_fwd.3} parent=0 // pred_fallthru
    _
  // Predicated region
  $region14: #{ensemble_fwd.3} parent=0 // pred_check
    _
  $region15: #{ensemble_fwd.3} parent=0 // pred_check_branch
    %17 = sbr.rel (0) target = $region17
  $region16: #{ensemble_fwd.3} parent=0 // pred_region
    _
  $region17: #{ensemble_fwd.3} parent=0 // pred_fallthru
    _
  // Predicated region
  $region18: #{ensemble_fwd.3} parent=0 // pred_check
    _
  $region19: #{ensemble_fwd.3} parent=0 // pred_check_branch
    %19 = sbr.rel (0) target = $region21
  $region20: #{ensemble_fwd.3} parent=0 // pred_region
    _
  $region21: #{ensemble_fwd.3} parent=0 // pred_fallthru
    _
  %v21 = vld [vmem:[%s0] sm:$0xff]
  %v22 = vld [vmem:[%s0 + $0x8] sm:$0xff]
  %v23 = vld [vmem:[%s0 + $0x10] sm:$0xff]
  %v24 = vld [vmem:[%s0 + $0x18] sm:$0xff]
  %v25 = vld [vmem:[%s0 + $0x20] sm:$0xff]
  %v26 = vld [vmem:[%s0 + $0x28] sm:$0xff]
  %v27 = vld [vmem:[%s0 + $0x30] sm:$0xff]
  %v28 = vld [vmem:[%s0 + $0x38] sm:$0xff]
  %v29 = vld [vmem:[%s0 + $0x40] sm:$0xff]
  %v30 = vld [vmem:[%s0 + $0x48] sm:$0xff]
  %v31 = vld [vmem:[%s0 + $0x50] sm:$0xff]
  %v32 = vld [vmem:[%s0 + $0x58] sm:$0xff]
  %v33 = vld [vmem:[%s0 + $0x60] sm:$0xff]
  %v34 = vld [vmem:[%s0 + $0x68] sm:$0xff]
  %v35 = vld [vmem:[%s0 + $0x70] sm:$0xff]
  %v36 = vld [vmem:[%s0 + $0x78] sm:$0xff]
  %v37 = vld [vmem:[%s1] sm:$0xf]
  %v38 = vld [vmem:[%s1 + $0x4] sm:$0xf]
  %v39 = vld [vmem:[%s1 + $0x8] sm:$0xf]
  %v40 = vld [vmem:[%s1 + $0xc] sm:$0xf]
  %v41 = vld [vmem:[%s1 + $0x10] sm:$0xf]
  %v42 = vld [vmem:[%s1 + $0x14] sm:$0xf]
  %v43 = vld [vmem:[%s1 + $0x18] sm:$0xf]
  %v44 = vld [vmem:[%s1 + $0x1c] sm:$0xf]
  %v45 = vld [vmem:[%s1 + $0x20] sm:$0xf]
  %v46 = vld [vmem:[%s1 + $0x24] sm:$0xf]
  %v47 = vld [vmem:[%s1 + $0x28] sm:$0xf]
  %v48 = vld [vmem:[%s1 + $0x2c] sm:$0xf]
  %v49 = vld [vmem:[%s1 + $0x30] sm:$0xf]
  %v50 = vld [vmem:[%s1 + $0x34] sm:$0xf]
  %v51 = vld [vmem:[%s1 + $0x38] sm:$0xf]
  %v52 = vld [vmem:[%s1 + $0x3c] sm:$0xf]
  %v53 = vld [vmem:[%s1 + $0x40] sm:$0xf]
  %v54 = vld [vmem:[%s1 + $0x44] sm:$0xf]
  %v55 = vld [vmem:[%s1 + $0x48] sm:$0x3]
  %v72 = vunpack.c.l.b16 %v21
  %v73 = vunpack.c.h.b16 %v21
  %v74 = vunpack.c.l.b16 %v22
  %v75 = vunpack.c.h.b16 %v22
  %v76 = vunpack.c.l.b16 %v23
  %v77 = vunpack.c.h.b16 %v23
  %v78 = vunpack.c.l.b16 %v24
  %v79 = vunpack.c.h.b16 %v24
  %v80 = vunpack.c.l.b16 %v25
  %v81 = vunpack.c.h.b16 %v25
  %v82 = vunpack.c.l.b16 %v26
  %v83 = vunpack.c.h.b16 %v26
  %v84 = vunpack.c.l.b16 %v27
  %v85 = vunpack.c.h.b16 %v27
  %v86 = vunpack.c.l.b16 %v28
  %v87 = vunpack.c.h.b16 %v28
  %v88 = vunpack.c.l.b16 %v29
  %v89 = vunpack.c.h.b16 %v29
  %v90 = vunpack.c.l.b16 %v30
  %v91 = vunpack.c.h.b16 %v30
  %v92 = vunpack.c.l.b16 %v31
  %v93 = vunpack.c.h.b16 %v31
  %v94 = vunpack.c.l.b16 %v32
  %v95 = vunpack.c.h.b16 %v32
  %v96 = vunpack.c.l.b16 %v33
  %v97 = vunpack.c.h.b16 %v33
  %v98 = vunpack.c.l.b16 %v34
  %v99 = vunpack.c.h.b16 %v34
  %v100 = vunpack.c.l.b16 %v35
  %v101 = vunpack.c.h.b16 %v35
  %v102 = vunpack.c.l.b16 %v36
  %v103 = vunpack.c.h.b16 %v36
  %v104 = vpack.c.b16 %v74, %v72
  %v105 = vpack.c.b16 %v75, %v73
  %v106 = vpack.c.b16 %v78, %v76
  %v107 = vpack.c.b16 %v79, %v77
  %v108 = vpack.c.b16 %v82, %v80
  %v109 = vpack.c.b16 %v83, %v81
  %v110 = vpack.c.b16 %v86, %v84
  %v111 = vpack.c.b16 %v87, %v85
  %v112 = vpack.c.b16 %v90, %v88
  %v113 = vpack.c.b16 %v91, %v89
  %v114 = vpack.c.b16 %v94, %v92
  %v115 = vpack.c.b16 %v95, %v93
  %v116 = vpack.c.b16 %v98, %v96
  %v117 = vpack.c.b16 %v99, %v97
  %v118 = vpack.c.b16 %v102, %v100
  %v119 = vpack.c.b16 %v103, %v101
  %v147 = vunpack.c.l.b16 %v37
  %v148 = vunpack.c.l.b16 %v38
  %v149 = vunpack.c.l.b16 %v39
  %v150 = vunpack.c.l.b16 %v40
  %v151 = vunpack.c.l.b16 %v41
  %v152 = vunpack.c.l.b16 %v42
  %v153 = vunpack.c.l.b16 %v43
  %v154 = vunpack.c.l.b16 %v44
  %v155 = vunpack.c.l.b16 %v45
  %v156 = vunpack.c.l.b16 %v46
  %v157 = vunpack.c.l.b16 %v47
  %v158 = vunpack.c.l.b16 %v48
  %v159 = vunpack.c.l.b16 %v49
  %v160 = vunpack.c.l.b16 %v50
  %v161 = vunpack.c.l.b16 %v51
  %v162 = vunpack.c.l.b16 %v52
  %v163 = vunpack.c.l.b16 %v53
  %v164 = vunpack.c.l.b16 %v54
  %v165 = vunpack.c.l.b16 %v55
  %v166 = vpack.c.b16 %v148, %v147
  %v167 = vpack.c.b16 %v150, %v149
  %v168 = vpack.c.b16 %v152, %v151
  %v169 = vpack.c.b16 %v154, %v153
  %v170 = vpack.c.b16 %v156, %v155
  %v171 = vpack.c.b16 %v158, %v157
  %v172 = vpack.c.b16 %v160, %v159
  %v173 = vpack.c.b16 %v162, %v161
  %v174 = vpack.c.b16 %v164, %v163
  %v175 = vpack.c.b16 %v165, %v165
  %vm185 = vcmask 154624
  %v187 = vsel %vm185, %v105, 0
  %v190 = vsel %vm185, %v107, 0
  %v193 = vsel %vm185, %v109, 0
  %v196 = vsel %vm185, %v111, 0
  %v199 = vsel %vm185, %v113, 0
  %v202 = vsel %vm185, %v115, 0
  %v205 = vsel %vm185, %v117, 0
  %v208 = vsel %vm185, %v119, 0
  %vm210 = vcmask 1040384
  %vm211 = vcmask 1041408
  %v212 = vsel %vm210, 4294967295, 65535
  %v213 = vsel %vm211, %v212, 0
  %v215 = vand.u32 %v175, %v213
  %217 = vmatprep.subr.bf16.mxu0 0
  %218 = vmatpush1.bf16.msra.mxu0 %v166
  %219 = vmatprep.subr.bf16.mxu0 0
  %220 = vmatpush1.bf16.msra.mxu0 %v167
  %221 = vmatprep.subr.bf16.mxu0 0
  %222 = vmatpush1.bf16.msra.mxu0 %v168
  %223 = vmatprep.subr.bf16.mxu0 0
  %224 = vmatpush1.bf16.msra.mxu0 %v169
  %225 = vmatprep.subr.bf16.mxu0 0
  %226 = vmatpush1.bf16.msra.mxu0 %v170
  %227 = vmatprep.subr.bf16.mxu0 0
  %228 = vmatpush1.bf16.msra.mxu0 %v171
  %229 = vmatprep.subr.bf16.mxu0 0
  %230 = vmatpush1.bf16.msra.mxu0 %v172
  %231 = vmatprep.subr.bf16.mxu0 0
  %232 = vmatpush1.bf16.msra.mxu0 %v173
  %233 = vmatprep.subr.bf16.mxu0 0
  %234 = vmatpush1.bf16.msra.mxu0 %v174
  %235 = vmatprep.subr.bf16.mxu0 0
  %236 = vmatpush1.bf16.msra.mxu0 %v215
  %237 = vmatprep.subr.bf16.mxu0 0
  %238 = vmatpush1.bf16.msra.mxu0 0
  %239 = vmatprep.subr.bf16.mxu0 0
  %240 = vmatpush1.bf16.msra.mxu0 0
  %241 = vmatprep.subr.bf16.mxu0 0
  %242 = vmatpush1.bf16.msra.mxu0 0
  %243 = vmatprep.subr.bf16.mxu0 0
  %244 = vmatpush1.bf16.msra.mxu0 0
  %245 = vmatprep.subr.bf16.mxu0 0
  %246 = vmatpush1.bf16.msra.mxu0 0
  %247 = vmatprep.subr.bf16.mxu0 0
  %248 = vmatpush1.bf16.msra.mxu0 0
  %249 = vmatprep.mubr.bf16.mxu0 %v187
  %250 = vmatmul.mubr.bf16.gmra.mrb[0].mxu0 %v104
  %v251 = vpop.f32.mrb[0].mxu0
  %v252 = vadd.f32 0.0, %v251
  %v253 = vpop.f32.mrb[0].mxu0
  %v254 = vpop.f32.mrb[0].mxu0
  %v255 = vadd.f32 0.0, %v254
  %v256 = vpop.f32.mrb[0].mxu0
  %257 = vmatprep.mubr.bf16.mxu0 %v190
  %258 = vmatmul.mubr.bf16.gmra.mrb[0].mxu0 %v106
  %v259 = vpop.f32.mrb[0].mxu0
  %v260 = vadd.f32 0.0, %v259
  %v261 = vpop.f32.mrb[0].mxu0
  %v262 = vpop.f32.mrb[0].mxu0
  %v263 = vadd.f32 0.0, %v262
  %v264 = vpop.f32.mrb[0].mxu0
  %265 = vmatprep.mubr.bf16.mxu0 %v193
  %266 = vmatmul.mubr.bf16.gmra.mrb[0].mxu0 %v108
  %v267 = vpop.f32.mrb[0].mxu0
  %v268 = vadd.f32 0.0, %v267
  %v269 = vpop.f32.mrb[0].mxu0
  %v270 = vpop.f32.mrb[0].mxu0
  %v271 = vadd.f32 0.0, %v270
  %v272 = vpop.f32.mrb[0].mxu0
  %273 = vmatprep.mubr.bf16.mxu0 %v196
  %274 = vmatmul.mubr.bf16.gmra.mrb[0].mxu0 %v110
  %v275 = vpop.f32.mrb[0].mxu0
  %v276 = vadd.f32 0.0, %v275
  %v277 = vpop.f32.mrb[0].mxu0
  %v278 = vpop.f32.mrb[0].mxu0
  %v279 = vadd.f32 0.0, %v278
  %v280 = vpop.f32.mrb[0].mxu0
  %281 = vmatprep.mubr.bf16.mxu0 %v199
  %282 = vmatmul.mubr.bf16.gmra.mrb[0].mxu0 %v112
  %v283 = vpop.f32.mrb[0].mxu0
  %v284 = vadd.f32 0.0, %v283
  %v285 = vpop.f32.mrb[0].mxu0
  %v286 = vpop.f32.mrb[0].mxu0
  %v287 = vadd.f32 0.0, %v286
  %v288 = vpop.f32.mrb[0].mxu0
  %289 = vmatprep.mubr.bf16.mxu0 %v202
  %290 = vmatmul.mubr.bf16.gmra.mrb[0].mxu0 %v114
  %v291 = vpop.f32.mrb[0].mxu0
  %v292 = vadd.f32 0.0, %v291
  %v293 = vpop.f32.mrb[0].mxu0
  %v294 = vpop.f32.mrb[0].mxu0
  %v295 = vadd.f32 0.0, %v294
  %v296 = vpop.f32.mrb[0].mxu0
  %297 = vmatprep.mubr.bf16.mxu0 %v205
  %298 = vmatmul.mubr.bf16.gmra.mrb[0].mxu0 %v116
  %v299 = vpop.f32.mrb[0].mxu0
  %v300 = vadd.f32 0.0, %v299
  %v301 = vpop.f32.mrb[0].mxu0
  %v302 = vpop.f32.mrb[0].mxu0
  %v303 = vadd.f32 0.0, %v302
  %v304 = vpop.f32.mrb[0].mxu0
  %305 = vmatprep.mubr.bf16.mxu0 %v208
  %306 = vmatmul.mubr.bf16.gmra.mrb[0].mxu0 %v118
  %v307 = vpop.f32.mrb[0].mxu0
  %v308 = vadd.f32 0.0, %v307
  %v309 = vpop.f32.mrb[0].mxu0
  %v310 = vpop.f32.mrb[0].mxu0
  %v311 = vadd.f32 0.0, %v310
  %v312 = vpop.f32.mrb[0].mxu0
  %313 = vdwg.mxu0
  %v314 = vld [vmem:[%s2] sm:$0x1]
  %v315 = vld [vmem:[%s3] sm:$0x1]
  %v316 = vadd.f32 %v252, %v255
  %v317 = vadd.f32 %v316, %v260
  %v318 = vadd.f32 %v317, %v263
  %v319 = vadd.f32 %v318, %v268
  %v320 = vadd.f32 %v319, %v271
  %v321 = vadd.f32 %v320, %v276
  %v322 = vadd.f32 %v321, %v279
  %v323 = vadd.f32 %v322, %v284
  %v324 = vadd.f32 %v323, %v287
  %v325 = vadd.f32 %v324, %v292
  %v326 = vadd.f32 %v325, %v295
  %v327 = vadd.f32 %v326, %v300
  %v328 = vadd.f32 %v327, %v303
  %v329 = vadd.f32 %v328, %v308
  %v330 = vadd.f32 %v329, %v311
  %v331 = vrot.slane %v330, 4
  %v332 = vadd.f32 %v330, %v331
  %v333 = vrot.slane %v332, 2
  %v334 = vadd.f32 %v332, %v333
  %v335 = vrot.slane %v334, 1
  %v336 = vadd.f32 %v334, %v335
  %v337 = vrcp.pop 128.0
  %v338 = vmul.f32 %v336, %v337
  %v339 = vsub.f32 %v252, %v338
  %v340 = vsub.f32 %v255, %v338
  %v341 = vsub.f32 %v260, %v338
  %v342 = vsub.f32 %v263, %v338
  %v343 = vsub.f32 %v268, %v338
  %v344 = vsub.f32 %v271, %v338
  %v345 = vsub.f32 %v276, %v338
  %v346 = vsub.f32 %v279, %v338
  %v347 = vsub.f32 %v284, %v338
  %v348 = vsub.f32 %v287, %v338
  %v349 = vsub.f32 %v292, %v338
  %v350 = vsub.f32 %v295, %v338
  %v351 = vsub.f32 %v300, %v338
  %v352 = vsub.f32 %v303, %v338
  %v353 = vsub.f32 %v308, %v338
  %v354 = vsub.f32 %v311, %v338
  %v355 = vmul.f32 %v339, %v339
  %v356 = vmul.f32 %v340, %v340
  %v357 = vmul.f32 %v341, %v341
  %v358 = vmul.f32 %v342, %v342
  %v359 = vmul.f32 %v343, %v343
  %v360 = vmul.f32 %v344, %v344
  %v361 = vmul.f32 %v345, %v345
  %v362 = vmul.f32 %v346, %v346
  %v363 = vmul.f32 %v347, %v347
  %v364 = vmul.f32 %v348, %v348
  %v365 = vmul.f32 %v349, %v349
  %v366 = vmul.f32 %v350, %v350
  %v367 = vmul.f32 %v351, %v351
  %v368 = vmul.f32 %v352, %v352
  %v369 = vmul.f32 %v353, %v353
  %v370 = vmul.f32 %v354, %v354
  %v371 = vadd.f32 %v355, %v356
  %v372 = vadd.f32 %v371, %v357
  %v373 = vadd.f32 %v372, %v358
  %v374 = vadd.f32 %v373, %v359
  %v375 = vadd.f32 %v374, %v360
  %v376 = vadd.f32 %v375, %v361
  %v377 = vadd.f32 %v376, %v362
  %v378 = vadd.f32 %v377, %v363
  %v379 = vadd.f32 %v378, %v364
  %v380 = vadd.f32 %v379, %v365
  %v381 = vadd.f32 %v380, %v366
  %v382 = vadd.f32 %v381, %v367
  %v383 = vadd.f32 %v382, %v368
  %v384 = vadd.f32 %v383, %v369
  %v385 = vadd.f32 %v384, %v370
  %v386 = vrot.slane %v385, 4
  %v387 = vadd.f32 %v385, %v386
  %v388 = vrot.slane %v387, 2
  %v389 = vadd.f32 %v387, %v388
  %v390 = vrot.slane %v389, 1
  %v391 = vadd.f32 %v389, %v390
  %v392 = vmul.f32 %v391, %v337
  %v393 = vadd.f32 %v392, 1e-05
  %v394 = vrsqrt.pop %v393
  %v395 = vmul.f32 %v314, %v394
  %v397 = vlaneseq
  %v398 = vshrl.u32 %v397, 7
  %v399 = vsub.s32 0, %v398
  %v400 = vrot.slane %v395, %v399
  %v402 = vmul.f32 %v339, %v400
  %v403 = vmul.f32 %v340, %v400
  %v404 = vmul.f32 %v341, %v400
  %v405 = vmul.f32 %v342, %v400
  %v406 = vmul.f32 %v343, %v400
  %v407 = vmul.f32 %v344, %v400
  %v408 = vmul.f32 %v345, %v400
  %v409 = vmul.f32 %v346, %v400
  %v410 = vmul.f32 %v347, %v400
  %v411 = vmul.f32 %v348, %v400
  %v412 = vmul.f32 %v349, %v400
  %v413 = vmul.f32 %v350, %v400
  %v414 = vmul.f32 %v351, %v400
  %v415 = vmul.f32 %v352, %v400
  %v416 = vmul.f32 %v353, %v400
  %v417 = vmul.f32 %v354, %v400
  %v419 = vlaneseq
  %v420 = vshrl.u32 %v419, 7
  %v421 = vsub.s32 0, %v420
  %v422 = vrot.slane %v315, %v421
  %v424 = vadd.f32 %v402, %v422
  %v425 = vadd.f32 %v403, %v422
  %v426 = vadd.f32 %v404, %v422
  %v427 = vadd.f32 %v405, %v422
  %v428 = vadd.f32 %v406, %v422
  %v429 = vadd.f32 %v407, %v422
  %v430 = vadd.f32 %v408, %v422
  %v431 = vadd.f32 %v409, %v422
  %v432 = vadd.f32 %v410, %v422
  %v433 = vadd.f32 %v411, %v422
  %v434 = vadd.f32 %v412, %v422
  %v435 = vadd.f32 %v413, %v422
  %v436 = vadd.f32 %v414, %v422
  %v437 = vadd.f32 %v415, %v422
  %v438 = vadd.f32 %v416, %v422
  %v439 = vadd.f32 %v417, %v422
  %v440 = vmax.f32 %v424, 0.0
  %v441 = vmax.f32 %v425, 0.0
  %v442 = vmax.f32 %v426, 0.0
  %v443 = vmax.f32 %v427, 0.0
  %v444 = vmax.f32 %v428, 0.0
  %v445 = vmax.f32 %v429, 0.0
  %v446 = vmax.f32 %v430, 0.0
  %v447 = vmax.f32 %v431, 0.0
  %v448 = vmax.f32 %v432, 0.0
  %v449 = vmax.f32 %v433, 0.0
  %v450 = vmax.f32 %v434, 0.0
  %v451 = vmax.f32 %v435, 0.0
  %v452 = vmax.f32 %v436, 0.0
  %v453 = vmax.f32 %v437, 0.0
  %v454 = vmax.f32 %v438, 0.0
  %v455 = vmax.f32 %v439, 0.0
  %v456 = vpack.c.bf16 %v441, %v440
  %v457 = vpack.c.bf16 %v443, %v442
  %v458 = vpack.c.bf16 %v445, %v444
  %v459 = vpack.c.bf16 %v447, %v446
  %v460 = vpack.c.bf16 %v449, %v448
  %v461 = vpack.c.bf16 %v451, %v450
  %v462 = vpack.c.bf16 %v453, %v452
  %v463 = vpack.c.bf16 %v455, %v454
  %v464 = vld [vmem:[%s4] sm:$0xf]
  %v465 = vld [vmem:[%s4 + $0x4] sm:$0xf]
  %v466 = vld [vmem:[%s4 + $0x8] sm:$0xf]
  %v467 = vld [vmem:[%s4 + $0xc] sm:$0xf]
  %v472 = vunpack.c.l.b16 %v464
  %v473 = vunpack.c.l.b16 %v465
  %v474 = vunpack.c.l.b16 %v466
  %v475 = vunpack.c.l.b16 %v467
  %v476 = vpack.c.b16 %v473, %v472
  %v477 = vpack.c.b16 %v475, %v474
  %480 = vmatprep.subr.bf16.mxu0 0
  %481 = vmatpush1.bf16.msra.mxu0 %v456
  %482 = vmatprep.subr.bf16.mxu0 0
  %483 = vmatpush1.bf16.msra.mxu0 %v457
  %484 = vmatprep.subr.bf16.mxu0 0
  %485 = vmatpush1.bf16.msra.mxu0 %v458
  %486 = vmatprep.subr.bf16.mxu0 0
  %487 = vmatpush1.bf16.msra.mxu0 %v459
  %488 = vmatprep.subr.bf16.mxu0 0
  %489 = vmatpush1.bf16.msra.mxu0 %v460
  %490 = vmatprep.subr.bf16.mxu0 0
  %491 = vmatpush1.bf16.msra.mxu0 %v461
  %492 = vmatprep.subr.bf16.mxu0 0
  %493 = vmatpush1.bf16.msra.mxu0 %v462
  %494 = vmatprep.subr.bf16.mxu0 0
  %495 = vmatpush1.bf16.msra.mxu0 %v463
  %496 = vmatprep.subr.bf16.mxu0 0
  %497 = vmatpush1.bf16.msra.mxu0 0
  %498 = vmatprep.subr.bf16.mxu0 0
  %499 = vmatpush1.bf16.msra.mxu0 0
  %500 = vmatprep.subr.bf16.mxu0 0
  %501 = vmatpush1.bf16.msra.mxu0 0
  %502 = vmatprep.subr.bf16.mxu0 0
  %503 = vmatpush1.bf16.msra.mxu0 0
  %504 = vmatprep.subr.bf16.mxu0 0
  %505 = vmatpush1.bf16.msra.mxu0 0
  %506 = vmatprep.subr.bf16.mxu0 0
  %507 = vmatpush1.bf16.msra.mxu0 0
  %508 = vmatprep.subr.bf16.mxu0 0
  %509 = vmatpush1.bf16.msra.mxu0 0
  %510 = vmatprep.subr.bf16.mxu0 0
  %511 = vmatpush1.bf16.msra.mxu0 0
  %512 = vmatprep.mubr.bf16.mxu0 0
  %513 = vmatmul.mubr.bf16.gmra.mrb[0].mxu0 %v476
  %v514 = vpop.f32.mrb[0].mxu0
  %v515 = vadd.f32 0.0, %v514
  %v516 = vpop.f32.mrb[0].mxu0
  %v517 = vpop.f32.mrb[0].mxu0
  %v518 = vadd.f32 0.0, %v517
  %v519 = vpop.f32.mrb[0].mxu0
  %520 = vmatprep.mubr.bf16.mxu0 0
  %521 = vmatmul.mubr.bf16.gmra.mrb[0].mxu0 %v477
  %v522 = vpop.f32.mrb[0].mxu0
  %v523 = vadd.f32 0.0, %v522
  %v524 = vpop.f32.mrb[0].mxu0
  %v525 = vpop.f32.mrb[0].mxu0
  %v526 = vadd.f32 0.0, %v525
  %v527 = vpop.f32.mrb[0].mxu0
  %528 = vdwg.mxu0
  %s529 = scalar_lea.vmem %s4, 16
  %v530 = vld [vmem:[%s529] sm:$0xf]
  %v531 = vld [vmem:[%s529 + $0x4] sm:$0xf]
  %v532 = vld [vmem:[%s529 + $0x8] sm:$0xf]
  %v533 = vld [vmem:[%s529 + $0xc] sm:$0xf]
  %v538 = vunpack.c.l.b16 %v530
  %v539 = vunpack.c.l.b16 %v531
  %v540 = vunpack.c.l.b16 %v532
  %v541 = vunpack.c.l.b16 %v533
  %v542 = vpack.c.b16 %v539, %v538
  %v543 = vpack.c.b16 %v541, %v540
  %546 = vmatprep.subr.bf16.mxu0 0
  %547 = vmatpush1.bf16.msra.mxu0 %v456
  %548 = vmatprep.subr.bf16.mxu0 0
  %549 = vmatpush1.bf16.msra.mxu0 %v457
  %550 = vmatprep.subr.bf16.mxu0 0
  %551 = vmatpush1.bf16.msra.mxu0 %v458
  %552 = vmatprep.subr.bf16.mxu0 0
  %553 = vmatpush1.bf16.msra.mxu0 %v459
  %554 = vmatprep.subr.bf16.mxu0 0
  %555 = vmatpush1.bf16.msra.mxu0 %v460
  %556 = vmatprep.subr.bf16.mxu0 0
  %557 = vmatpush1.bf16.msra.mxu0 %v461
  %558 = vmatprep.subr.bf16.mxu0 0
  %559 = vmatpush1.bf16.msra.mxu0 %v462
  %560 = vmatprep.subr.bf16.mxu0 0
  %561 = vmatpush1.bf16.msra.mxu0 %v463
  %562 = vmatprep.subr.bf16.mxu0 0
  %563 = vmatpush1.bf16.msra.mxu0 0
  %564 = vmatprep.subr.bf16.mxu0 0
  %565 = vmatpush1.bf16.msra.mxu0 0
  %566 = vmatprep.subr.bf16.mxu0 0
  %567 = vmatpush1.bf16.msra.mxu0 0
  %568 = vmatprep.subr.bf16.mxu0 0
  %569 = vmatpush1.bf16.msra.mxu0 0
  %570 = vmatprep.subr.bf16.mxu0 0
  %571 = vmatpush1.bf16.msra.mxu0 0
  %572 = vmatprep.subr.bf16.mxu0 0
  %573 = vmatpush1.bf16.msra.mxu0 0
  %574 = vmatprep.subr.bf16.mxu0 0
  %575 = vmatpush1.bf16.msra.mxu0 0
  %576 = vmatprep.subr.bf16.mxu0 0
  %577 = vmatpush1.bf16.msra.mxu0 0
  %578 = vmatprep.mubr.bf16.mxu0 0
  %579 = vmatmul.mubr.bf16.gmra.mrb[0].mxu0 %v542
  %v580 = vpop.f32.mrb[0].mxu0
  %v581 = vadd.f32 0.0, %v580
  %v582 = vpop.f32.mrb[0].mxu0
  %v583 = vpop.f32.mrb[0].mxu0
  %v584 = vadd.f32 0.0, %v583
  %v585 = vpop.f32.mrb[0].mxu0
  %586 = vmatprep.mubr.bf16.mxu0 0
  %587 = vmatmul.mubr.bf16.gmra.mrb[0].mxu0 %v543
  %v588 = vpop.f32.mrb[0].mxu0
  %v589 = vadd.f32 0.0, %v588
  %v590 = vpop.f32.mrb[0].mxu0
  %v591 = vpop.f32.mrb[0].mxu0
  %v592 = vadd.f32 0.0, %v591
  %v593 = vpop.f32.mrb[0].mxu0
  %594 = vdwg.mxu0
  %v595 = vmax.f32 %v515, %v581
  %v596 = vmax.f32 %v518, %v584
  %v597 = vmax.f32 %v523, %v589
  %v598 = vmax.f32 %v526, %v592
  %s599 = scalar_lea.vmem %s4, 32
  %v600 = vld [vmem:[%s599] sm:$0xf]
  %v601 = vld [vmem:[%s599 + $0x4] sm:$0xf]
  %v602 = vld [vmem:[%s599 + $0x8] sm:$0xf]
  %v603 = vld [vmem:[%s599 + $0xc] sm:$0xf]
  %v608 = vunpack.c.l.b16 %v600
  %v609 = vunpack.c.l.b16 %v601
  %v610 = vunpack.c.l.b16 %v602
  %v611 = vunpack.c.l.b16 %v603
  %v612 = vpack.c.b16 %v609, %v608
  %v613 = vpack.c.b16 %v611, %v610
  %616 = vmatprep.subr.bf16.mxu0 0
  %617 = vmatpush1.bf16.msra.mxu0 %v456
  %618 = vmatprep.subr.bf16.mxu0 0
  %619 = vmatpush1.bf16.msra.mxu0 %v457
  %620 = vmatprep.subr.bf16.mxu0 0
  %621 = vmatpush1.bf16.msra.mxu0 %v458
  %622 = vmatprep.subr.bf16.mxu0 0
  %623 = vmatpush1.bf16.msra.mxu0 %v459
  %624 = vmatprep.subr.bf16.mxu0 0
  %625 = vmatpush1.bf16.msra.mxu0 %v460
  %626 = vmatprep.subr.bf16.mxu0 0
  %627 = vmatpush1.bf16.msra.mxu0 %v461
  %628 = vmatprep.subr.bf16.mxu0 0
  %629 = vmatpush1.bf16.msra.mxu0 %v462
  %630 = vmatprep.subr.bf16.mxu0 0
  %631 = vmatpush1.bf16.msra.mxu0 %v463
  %632 = vmatprep.subr.bf16.mxu0 0
  %633 = vmatpush1.bf16.msra.mxu0 0
  %634 = vmatprep.subr.bf16.mxu0 0
  %635 = vmatpush1.bf16.msra.mxu0 0
  %636 = vmatprep.subr.bf16.mxu0 0
  %637 = vmatpush1.bf16.msra.mxu0 0
  %638 = vmatprep.subr.bf16.mxu0 0
  %639 = vmatpush1.bf16.msra.mxu0 0
  %640 = vmatprep.subr.bf16.mxu0 0
  %641 = vmatpush1.bf16.msra.mxu0 0
  %642 = vmatprep.subr.bf16.mxu0 0
  %643 = vmatpush1.bf16.msra.mxu0 0
  %644 = vmatprep.subr.bf16.mxu0 0
  %645 = vmatpush1.bf16.msra.mxu0 0
  %646 = vmatprep.subr.bf16.mxu0 0
  %647 = vmatpush1.bf16.msra.mxu0 0
  %648 = vmatprep.mubr.bf16.mxu0 0
  %649 = vmatmul.mubr.bf16.gmra.mrb[0].mxu0 %v612
  %v650 = vpop.f32.mrb[0].mxu0
  %v651 = vadd.f32 0.0, %v650
  %v652 = vpop.f32.mrb[0].mxu0
  %v653 = vpop.f32.mrb[0].mxu0
  %v654 = vadd.f32 0.0, %v653
  %v655 = vpop.f32.mrb[0].mxu0
  %656 = vmatprep.mubr.bf16.mxu0 0
  %657 = vmatmul.mubr.bf16.gmra.mrb[0].mxu0 %v613
  %v658 = vpop.f32.mrb[0].mxu0
  %v659 = vadd.f32 0.0, %v658
  %v660 = vpop.f32.mrb[0].mxu0
  %v661 = vpop.f32.mrb[0].mxu0
  %v662 = vadd.f32 0.0, %v661
  %v663 = vpop.f32.mrb[0].mxu0
  %664 = vdwg.mxu0
  %v665 = vmax.f32 %v595, %v651
  %v666 = vmax.f32 %v596, %v654
  %v667 = vmax.f32 %v597, %v659
  %v668 = vmax.f32 %v598, %v662
  %s669 = scalar_lea.vmem %s4, 48
  %v670 = vld [vmem:[%s669] sm:$0xf]
  %v671 = vld [vmem:[%s669 + $0x4] sm:$0xf]
  %v672 = vld [vmem:[%s669 + $0x8] sm:$0xf]
  %v673 = vld [vmem:[%s669 + $0xc] sm:$0xf]
  %v678 = vunpack.c.l.b16 %v670
  %v679 = vunpack.c.l.b16 %v671
  %v680 = vunpack.c.l.b16 %v672
  %v681 = vunpack.c.l.b16 %v673
  %v682 = vpack.c.b16 %v679, %v678
  %v683 = vpack.c.b16 %v681, %v680
  %686 = vmatprep.subr.bf16.mxu0 0
  %687 = vmatpush1.bf16.msra.mxu0 %v456
  %688 = vmatprep.subr.bf16.mxu0 0
  %689 = vmatpush1.bf16.msra.mxu0 %v457
  %690 = vmatprep.subr.bf16.mxu0 0
  %691 = vmatpush1.bf16.msra.mxu0 %v458
  %692 = vmatprep.subr.bf16.mxu0 0
  %693 = vmatpush1.bf16.msra.mxu0 %v459
  %694 = vmatprep.subr.bf16.mxu0 0
  %695 = vmatpush1.bf16.msra.mxu0 %v460
  %696 = vmatprep.subr.bf16.mxu0 0
  %697 = vmatpush1.bf16.msra.mxu0 %v461
  %698 = vmatprep.subr.bf16.mxu0 0
  %699 = vmatpush1.bf16.msra.mxu0 %v462
  %700 = vmatprep.subr.bf16.mxu0 0
  %701 = vmatpush1.bf16.msra.mxu0 %v463
  %702 = vmatprep.subr.bf16.mxu0 0
  %703 = vmatpush1.bf16.msra.mxu0 0
  %704 = vmatprep.subr.bf16.mxu0 0
  %705 = vmatpush1.bf16.msra.mxu0 0
  %706 = vmatprep.subr.bf16.mxu0 0
  %707 = vmatpush1.bf16.msra.mxu0 0
  %708 = vmatprep.subr.bf16.mxu0 0
  %709 = vmatpush1.bf16.msra.mxu0 0
  %710 = vmatprep.subr.bf16.mxu0 0
  %711 = vmatpush1.bf16.msra.mxu0 0
  %712 = vmatprep.subr.bf16.mxu0 0
  %713 = vmatpush1.bf16.msra.mxu0 0
  %714 = vmatprep.subr.bf16.mxu0 0
  %715 = vmatpush1.bf16.msra.mxu0 0
  %716 = vmatprep.subr.bf16.mxu0 0
  %717 = vmatpush1.bf16.msra.mxu0 0
  %718 = vmatprep.mubr.bf16.mxu0 0
  %719 = vmatmul.mubr.bf16.gmra.mrb[0].mxu0 %v682
  %v720 = vpop.f32.mrb[0].mxu0
  %v721 = vadd.f32 0.0, %v720
  %v722 = vpop.f32.mrb[0].mxu0
  %v723 = vpop.f32.mrb[0].mxu0
  %v724 = vadd.f32 0.0, %v723
  %v725 = vpop.f32.mrb[0].mxu0
  %726 = vmatprep.mubr.bf16.mxu0 0
  %727 = vmatmul.mubr.bf16.gmra.mrb[0].mxu0 %v683
  %v728 = vpop.f32.mrb[0].mxu0
  %v729 = vadd.f32 0.0, %v728
  %v730 = vpop.f32.mrb[0].mxu0
  %v731 = vpop.f32.mrb[0].mxu0
  %v732 = vadd.f32 0.0, %v731
  %v733 = vpop.f32.mrb[0].mxu0
  %734 = vdwg.mxu0
  %v735 = vmax.f32 %v665, %v721
  %v736 = vmax.f32 %v666, %v724
  %v737 = vmax.f32 %v667, %v729
  %v738 = vmax.f32 %v668, %v732
  %s739 = scalar_lea.vmem %s4, 64
  %v740 = vld [vmem:[%s739] sm:$0xf]
  %v741 = vld [vmem:[%s739 + $0x4] sm:$0xf]
  %v742 = vld [vmem:[%s739 + $0x8] sm:$0xf]
  %v743 = vld [vmem:[%s739 + $0xc] sm:$0xf]
  %v748 = vunpack.c.l.b16 %v740
  %v749 = vunpack.c.l.b16 %v741
  %v750 = vunpack.c.l.b16 %v742
  %v751 = vunpack.c.l.b16 %v743
  %v752 = vpack.c.b16 %v749, %v748
  %v753 = vpack.c.b16 %v751, %v750
  %756 = vmatprep.subr.bf16.mxu0 0
  %757 = vmatpush1.bf16.msra.mxu0 %v456
  %758 = vmatprep.subr.bf16.mxu0 0
  %759 = vmatpush1.bf16.msra.mxu0 %v457
  %760 = vmatprep.subr.bf16.mxu0 0
  %761 = vmatpush1.bf16.msra.mxu0 %v458
  %762 = vmatprep.subr.bf16.mxu0 0
  %763 = vmatpush1.bf16.msra.mxu0 %v459
  %764 = vmatprep.subr.bf16.mxu0 0
  %765 = vmatpush1.bf16.msra.mxu0 %v460
  %766 = vmatprep.subr.bf16.mxu0 0
  %767 = vmatpush1.bf16.msra.mxu0 %v461
  %768 = vmatprep.subr.bf16.mxu0 0
  %769 = vmatpush1.bf16.msra.mxu0 %v462
  %770 = vmatprep.subr.bf16.mxu0 0
  %771 = vmatpush1.bf16.msra.mxu0 %v463
  %772 = vmatprep.subr.bf16.mxu0 0
  %773 = vmatpush1.bf16.msra.mxu0 0
  %774 = vmatprep.subr.bf16.mxu0 0
  %775 = vmatpush1.bf16.msra.mxu0 0
  %776 = vmatprep.subr.bf16.mxu0 0
  %777 = vmatpush1.bf16.msra.mxu0 0
  %778 = vmatprep.subr.bf16.mxu0 0
  %779 = vmatpush1.bf16.msra.mxu0 0
  %780 = vmatprep.subr.bf16.mxu0 0
  %781 = vmatpush1.bf16.msra.mxu0 0
  %782 = vmatprep.subr.bf16.mxu0 0
  %783 = vmatpush1.bf16.msra.mxu0 0
  %784 = vmatprep.subr.bf16.mxu0 0
  %785 = vmatpush1.bf16.msra.mxu0 0
  %786 = vmatprep.subr.bf16.mxu0 0
  %787 = vmatpush1.bf16.msra.mxu0 0
  %788 = vmatprep.mubr.bf16.mxu0 0
  %789 = vmatmul.mubr.bf16.gmra.mrb[0].mxu0 %v752
  %v790 = vpop.f32.mrb[0].mxu0
  %v791 = vadd.f32 0.0, %v790
  %v792 = vpop.f32.mrb[0].mxu0
  %v793 = vpop.f32.mrb[0].mxu0
  %v794 = vadd.f32 0.0, %v793
  %v795 = vpop.f32.mrb[0].mxu0
  %796 = vmatprep.mubr.bf16.mxu0 0
  %797 = vmatmul.mubr.bf16.gmra.mrb[0].mxu0 %v753
  %v798 = vpop.f32.mrb[0].mxu0
  %v799 = vadd.f32 0.0, %v798
  %v800 = vpop.f32.mrb[0].mxu0
  %v801 = vpop.f32.mrb[0].mxu0
  %v802 = vadd.f32 0.0, %v801
  %v803 = vpop.f32.mrb[0].mxu0
  %804 = vdwg.mxu0
  %v805 = vmax.f32 %v735, %v791
  %v806 = vmax.f32 %v736, %v794
  %v807 = vmax.f32 %v737, %v799
  %v808 = vmax.f32 %v738, %v802
  %s809 = scalar_lea.vmem %s4, 80
  %v810 = vld [vmem:[%s809] sm:$0xf]
  %v811 = vld [vmem:[%s809 + $0x4] sm:$0xf]
  %v812 = vld [vmem:[%s809 + $0x8] sm:$0xf]
  %v813 = vld [vmem:[%s809 + $0xc] sm:$0xf]
  %v818 = vunpack.c.l.b16 %v810
  %v819 = vunpack.c.l.b16 %v811
  %v820 = vunpack.c.l.b16 %v812
  %v821 = vunpack.c.l.b16 %v813
  %v822 = vpack.c.b16 %v819, %v818
  %v823 = vpack.c.b16 %v821, %v820
  %826 = vmatprep.subr.bf16.mxu0 0
  %827 = vmatpush1.bf16.msra.mxu0 %v456
  %828 = vmatprep.subr.bf16.mxu0 0
  %829 = vmatpush1.bf16.msra.mxu0 %v457
  %830 = vmatprep.subr.bf16.mxu0 0
  %831 = vmatpush1.bf16.msra.mxu0 %v458
  %832 = vmatprep.subr.bf16.mxu0 0
  %833 = vmatpush1.bf16.msra.mxu0 %v459
  %834 = vmatprep.subr.bf16.mxu0 0
  %835 = vmatpush1.bf16.msra.mxu0 %v460
  %836 = vmatprep.subr.bf16.mxu0 0
  %837 = vmatpush1.bf16.msra.mxu0 %v461
  %838 = vmatprep.subr.bf16.mxu0 0
  %839 = vmatpush1.bf16.msra.mxu0 %v462
  %840 = vmatprep.subr.bf16.mxu0 0
  %841 = vmatpush1.bf16.msra.mxu0 %v463
  %842 = vmatprep.subr.bf16.mxu0 0
  %843 = vmatpush1.bf16.msra.mxu0 0
  %844 = vmatprep.subr.bf16.mxu0 0
  %845 = vmatpush1.bf16.msra.mxu0 0
  %846 = vmatprep.subr.bf16.mxu0 0
  %847 = vmatpush1.bf16.msra.mxu0 0
  %848 = vmatprep.subr.bf16.mxu0 0
  %849 = vmatpush1.bf16.msra.mxu0 0
  %850 = vmatprep.subr.bf16.mxu0 0
  %851 = vmatpush1.bf16.msra.mxu0 0
  %852 = vmatprep.subr.bf16.mxu0 0
  %853 = vmatpush1.bf16.msra.mxu0 0
  %854 = vmatprep.subr.bf16.mxu0 0
  %855 = vmatpush1.bf16.msra.mxu0 0
  %856 = vmatprep.subr.bf16.mxu0 0
  %857 = vmatpush1.bf16.msra.mxu0 0
  %858 = vmatprep.mubr.bf16.mxu0 0
  %859 = vmatmul.mubr.bf16.gmra.mrb[0].mxu0 %v822
  %v860 = vpop.f32.mrb[0].mxu0
  %v861 = vadd.f32 0.0, %v860
  %v862 = vpop.f32.mrb[0].mxu0
  %v863 = vpop.f32.mrb[0].mxu0
  %v864 = vadd.f32 0.0, %v863
  %v865 = vpop.f32.mrb[0].mxu0
  %866 = vmatprep.mubr.bf16.mxu0 0
  %867 = vmatmul.mubr.bf16.gmra.mrb[0].mxu0 %v823
  %v868 = vpop.f32.mrb[0].mxu0
  %v869 = vadd.f32 0.0, %v868
  %v870 = vpop.f32.mrb[0].mxu0
  %v871 = vpop.f32.mrb[0].mxu0
  %v872 = vadd.f32 0.0, %v871
  %v873 = vpop.f32.mrb[0].mxu0
  %874 = vdwg.mxu0
  %v875 = vmax.f32 %v805, %v861
  %v876 = vmax.f32 %v806, %v864
  %v877 = vmax.f32 %v807, %v869
  %v878 = vmax.f32 %v808, %v872
  %s879 = scalar_lea.vmem %s4, 96
  %v880 = vld [vmem:[%s879] sm:$0xf]
  %v881 = vld [vmem:[%s879 + $0x4] sm:$0xf]
  %v882 = vld [vmem:[%s879 + $0x8] sm:$0xf]
  %v883 = vld [vmem:[%s879 + $0xc] sm:$0xf]
  %v888 = vunpack.c.l.b16 %v880
  %v889 = vunpack.c.l.b16 %v881
  %v890 = vunpack.c.l.b16 %v882
  %v891 = vunpack.c.l.b16 %v883
  %v892 = vpack.c.b16 %v889, %v888
  %v893 = vpack.c.b16 %v891, %v890
  %896 = vmatprep.subr.bf16.mxu0 0
  %897 = vmatpush1.bf16.msra.mxu0 %v456
  %898 = vmatprep.subr.bf16.mxu0 0
  %899 = vmatpush1.bf16.msra.mxu0 %v457
  %900 = vmatprep.subr.bf16.mxu0 0
  %901 = vmatpush1.bf16.msra.mxu0 %v458
  %902 = vmatprep.subr.bf16.mxu0 0
  %903 = vmatpush1.bf16.msra.mxu0 %v459
  %904 = vmatprep.subr.bf16.mxu0 0
  %905 = vmatpush1.bf16.msra.mxu0 %v460
  %906 = vmatprep.subr.bf16.mxu0 0
  %907 = vmatpush1.bf16.msra.mxu0 %v461
  %908 = vmatprep.subr.bf16.mxu0 0
  %909 = vmatpush1.bf16.msra.mxu0 %v462
  %910 = vmatprep.subr.bf16.mxu0 0
  %911 = vmatpush1.bf16.msra.mxu0 %v463
  %912 = vmatprep.subr.bf16.mxu0 0
  %913 = vmatpush1.bf16.msra.mxu0 0
  %914 = vmatprep.subr.bf16.mxu0 0
  %915 = vmatpush1.bf16.msra.mxu0 0
  %916 = vmatprep.subr.bf16.mxu0 0
  %917 = vmatpush1.bf16.msra.mxu0 0
  %918 = vmatprep.subr.bf16.mxu0 0
  %919 = vmatpush1.bf16.msra.mxu0 0
  %920 = vmatprep.subr.bf16.mxu0 0
  %921 = vmatpush1.bf16.msra.mxu0 0
  %922 = vmatprep.subr.bf16.mxu0 0
  %923 = vmatpush1.bf16.msra.mxu0 0
  %924 = vmatprep.subr.bf16.mxu0 0
  %925 = vmatpush1.bf16.msra.mxu0 0
  %926 = vmatprep.subr.bf16.mxu0 0
  %927 = vmatpush1.bf16.msra.mxu0 0
  %928 = vmatprep.mubr.bf16.mxu0 0
  %929 = vmatmul.mubr.bf16.gmra.mrb[0].mxu0 %v892
  %v930 = vpop.f32.mrb[0].mxu0
  %v931 = vadd.f32 0.0, %v930
  %v932 = vpop.f32.mrb[0].mxu0
  %v933 = vpop.f32.mrb[0].mxu0
  %v934 = vadd.f32 0.0, %v933
  %v935 = vpop.f32.mrb[0].mxu0
  %936 = vmatprep.mubr.bf16.mxu0 0
  %937 = vmatmul.mubr.bf16.gmra.mrb[0].mxu0 %v893
  %v938 = vpop.f32.mrb[0].mxu0
  %v939 = vadd.f32 0.0, %v938
  %v940 = vpop.f32.mrb[0].mxu0
  %v941 = vpop.f32.mrb[0].mxu0
  %v942 = vadd.f32 0.0, %v941
  %v943 = vpop.f32.mrb[0].mxu0
  %944 = vdwg.mxu0
  %v945 = vmax.f32 %v875, %v931
  %v946 = vmax.f32 %v876, %v934
  %v947 = vmax.f32 %v877, %v939
  %v948 = vmax.f32 %v878, %v942
  %s949 = scalar_lea.vmem %s4, 112
  %v950 = vld [vmem:[%s949] sm:$0xf]
  %v951 = vld [vmem:[%s949 + $0x4] sm:$0xf]
  %v952 = vld [vmem:[%s949 + $0x8] sm:$0xf]
  %v953 = vld [vmem:[%s949 + $0xc] sm:$0xf]
  %v958 = vunpack.c.l.b16 %v950
  %v959 = vunpack.c.l.b16 %v951
  %v960 = vunpack.c.l.b16 %v952
  %v961 = vunpack.c.l.b16 %v953
  %v962 = vpack.c.b16 %v959, %v958
  %v963 = vpack.c.b16 %v961, %v960
  %966 = vmatprep.subr.bf16.mxu0 0
  %967 = vmatpush1.bf16.msra.mxu0 %v456
  %968 = vmatprep.subr.bf16.mxu0 0
  %969 = vmatpush1.bf16.msra.mxu0 %v457
  %970 = vmatprep.subr.bf16.mxu0 0
  %971 = vmatpush1.bf16.msra.mxu0 %v458
  %972 = vmatprep.subr.bf16.mxu0 0
  %973 = vmatpush1.bf16.msra.mxu0 %v459
  %974 = vmatprep.subr.bf16.mxu0 0
  %975 = vmatpush1.bf16.msra.mxu0 %v460
  %976 = vmatprep.subr.bf16.mxu0 0
  %977 = vmatpush1.bf16.msra.mxu0 %v461
  %978 = vmatprep.subr.bf16.mxu0 0
  %979 = vmatpush1.bf16.msra.mxu0 %v462
  %980 = vmatprep.subr.bf16.mxu0 0
  %981 = vmatpush1.bf16.msra.mxu0 %v463
  %982 = vmatprep.subr.bf16.mxu0 0
  %983 = vmatpush1.bf16.msra.mxu0 0
  %984 = vmatprep.subr.bf16.mxu0 0
  %985 = vmatpush1.bf16.msra.mxu0 0
  %986 = vmatprep.subr.bf16.mxu0 0
  %987 = vmatpush1.bf16.msra.mxu0 0
  %988 = vmatprep.subr.bf16.mxu0 0
  %989 = vmatpush1.bf16.msra.mxu0 0
  %990 = vmatprep.subr.bf16.mxu0 0
  %991 = vmatpush1.bf16.msra.mxu0 0
  %992 = vmatprep.subr.bf16.mxu0 0
  %993 = vmatpush1.bf16.msra.mxu0 0
  %994 = vmatprep.subr.bf16.mxu0 0
  %995 = vmatpush1.bf16.msra.mxu0 0
  %996 = vmatprep.subr.bf16.mxu0 0
  %997 = vmatpush1.bf16.msra.mxu0 0
  %998 = vmatprep.mubr.bf16.mxu0 0
  %999 = vmatmul.mubr.bf16.gmra.mrb[0].mxu0 %v962
  %v1000 = vpop.f32.mrb[0].mxu0
  %v1001 = vadd.f32 0.0, %v1000
  %v1002 = vpop.f32.mrb[0].mxu0
  %v1003 = vpop.f32.mrb[0].mxu0
  %v1004 = vadd.f32 0.0, %v1003
  %v1005 = vpop.f32.mrb[0].mxu0
  %1006 = vmatprep.mubr.bf16.mxu0 0
  %1007 = vmatmul.mubr.bf16.gmra.mrb[0].mxu0 %v963
  %v1008 = vpop.f32.mrb[0].mxu0
  %v1009 = vadd.f32 0.0, %v1008
  %v1010 = vpop.f32.mrb[0].mxu0
  %v1011 = vpop.f32.mrb[0].mxu0
  %v1012 = vadd.f32 0.0, %v1011
  %v1013 = vpop.f32.mrb[0].mxu0
  %1014 = vdwg.mxu0
  %v1015 = vmax.f32 %v945, %v1001
  %v1016 = vmax.f32 %v946, %v1004
  %v1017 = vmax.f32 %v947, %v1009
  %v1018 = vmax.f32 %v948, %v1012
  %s1019 = scalar_lea.vmem %s4, 128
  %v1020 = vld [vmem:[%s1019] sm:$0xf]
  %v1021 = vld [vmem:[%s1019 + $0x4] sm:$0xf]
  %v1022 = vld [vmem:[%s1019 + $0x8] sm:$0xf]
  %v1023 = vld [vmem:[%s1019 + $0xc] sm:$0xf]
  %v1028 = vunpack.c.l.b16 %v1020
  %v1029 = vunpack.c.l.b16 %v1021
  %v1030 = vunpack.c.l.b16 %v1022
  %v1031 = vunpack.c.l.b16 %v1023
  %v1032 = vpack.c.b16 %v1029, %v1028
  %v1033 = vpack.c.b16 %v1031, %v1030
  %1036 = vmatprep.subr.bf16.mxu0 0
  %1037 = vmatpush1.bf16.msra.mxu0 %v456
  %1038 = vmatprep.subr.bf16.mxu0 0
  %1039 = vmatpush1.bf16.msra.mxu0 %v457
  %1040 = vmatprep.subr.bf16.mxu0 0
  %1041 = vmatpush1.bf16.msra.mxu0 %v458
  %1042 = vmatprep.subr.bf16.mxu0 0
  %1043 = vmatpush1.bf16.msra.mxu0 %v459
  %1044 = vmatprep.subr.bf16.mxu0 0
  %1045 = vmatpush1.bf16.msra.mxu0 %v460
  %1046 = vmatprep.subr.bf16.mxu0 0
  %1047 = vmatpush1.bf16.msra.mxu0 %v461
  %1048 = vmatprep.subr.bf16.mxu0 0
  %1049 = vmatpush1.bf16.msra.mxu0 %v462
  %1050 = vmatprep.subr.bf16.mxu0 0
  %1051 = vmatpush1.bf16.msra.mxu0 %v463
  %1052 = vmatprep.subr.bf16.mxu0 0
  %1053 = vmatpush1.bf16.msra.mxu0 0
  %1054 = vmatprep.subr.bf16.mxu0 0
  %1055 = vmatpush1.bf16.msra.mxu0 0
  %1056 = vmatprep.subr.bf16.mxu0 0
  %1057 = vmatpush1.bf16.msra.mxu0 0
  %1058 = vmatprep.subr.bf16.mxu0 0
  %1059 = vmatpush1.bf16.msra.mxu0 0
  %1060 = vmatprep.subr.bf16.mxu0 0
  %1061 = vmatpush1.bf16.msra.mxu0 0
  %1062 = vmatprep.subr.bf16.mxu0 0
  %1063 = vmatpush1.bf16.msra.mxu0 0
  %1064 = vmatprep.subr.bf16.mxu0 0
  %1065 = vmatpush1.bf16.msra.mxu0 0
  %1066 = vmatprep.subr.bf16.mxu0 0
  %1067 = vmatpush1.bf16.msra.mxu0 0
  %1068 = vmatprep.mubr.bf16.mxu0 0
  %1069 = vmatmul.mubr.bf16.gmra.mrb[0].mxu0 %v1032
  %v1070 = vpop.f32.mrb[0].mxu0
  %v1071 = vadd.f32 0.0, %v1070
  %v1072 = vpop.f32.mrb[0].mxu0
  %v1073 = vpop.f32.mrb[0].mxu0
  %v1074 = vadd.f32 0.0, %v1073
  %v1075 = vpop.f32.mrb[0].mxu0
  %1076 = vmatprep.mubr.bf16.mxu0 0
  %1077 = vmatmul.mubr.bf16.gmra.mrb[0].mxu0 %v1033
  %v1078 = vpop.f32.mrb[0].mxu0
  %v1079 = vadd.f32 0.0, %v1078
  %v1080 = vpop.f32.mrb[0].mxu0
  %v1081 = vpop.f32.mrb[0].mxu0
  %v1082 = vadd.f32 0.0, %v1081
  %v1083 = vpop.f32.mrb[0].mxu0
  %1084 = vdwg.mxu0
  %v1085 = vmax.f32 %v1015, %v1071
  %v1086 = vmax.f32 %v1016, %v1074
  %v1087 = vmax.f32 %v1017, %v1079
  %v1088 = vmax.f32 %v1018, %v1082
  %v1089 = vpack.c.bf16 %v1086, %v1085
  %v1090 = vpack.c.bf16 %v1088, %v1087
  %v1093 = vunpack.c.l.b16 %v1089
  %v1094 = vunpack.c.h.b16 %v1089
  %v1095 = vunpack.c.l.b16 %v1090
  %v1096 = vunpack.c.h.b16 %v1090
  %v1097 = vpack.c.b16 %v1093, %v1093
  %v1098 = vpack.c.b16 %v1094, %v1094
  %v1099 = vpack.c.b16 %v1095, %v1095
  %v1100 = vpack.c.b16 %v1096, %v1096
  %1105 = vst [vmem:[%s5] sm:$0xf] %v1097
  %1106 = vst [vmem:[%s5 + $0x4] sm:$0xf] %v1098
  %1107 = vst [vmem:[%s5 + $0x8] sm:$0xf] %v1099
  %1108 = vst [vmem:[%s5 + $0xc] sm:$0xf] %v1100
  // Predicated region
  $region22: #{ensemble_fwd.3} parent=0 // pred_check
    _
  $region23: #{ensemble_fwd.3} parent=0 // pred_check_branch
    %1110 = sbr.rel (0) target = $region25
  $region24: #{ensemble_fwd.3} parent=0 // pred_region
    _
  $region25: #{ensemble_fwd.3} parent=0 // pred_fallthru
    _
  // Predicated region
  $region26: #{ensemble_fwd.3} parent=0 // pred_check
    _
  $region27: #{ensemble_fwd.3} parent=0 // pred_check_branch
    %1112 = sbr.rel (0) target = $region29
  $region28: #{ensemble_fwd.3} parent=0 // pred_region
    _
  $region29: #{ensemble_fwd.3} parent=0 // pred_fallthru
    _

// kernel: ensemble_fwd.4
$region0: #{ensemble_fwd.4}
  #allocation0 [shape = 'u32[]', space=smem, size = 0x4, offset = 0x4, fixed_abs, tag = 'smem constant byte address 0x4 - core index']
  #allocation1 [shape = 'u32[144,128]{1,0:T(1,128)}', space=vmem, size = 0x12000, scoped, tag = 'internal scratch']
  %s0 = inlined_call_operand.smem [shape: u32[31], index: -1, kind: input, shape index: {}]
  %s1 = sld [smem:[%s0]]
  %s2 = scalar_lea.smem %s0, 1
  %s3 = sld [smem:[%s2]]
  %s4 = scalar_lea.smem %s0, 2
  %s5 = sld [smem:[%s4]]
  %s6 = scalar_lea.smem %s0, 3
  %s7 = sld [smem:[%s6]]
  %s8 = scalar_lea.smem %s0, 4
  %s9 = sld [smem:[%s8]]
  %s10 = scalar_lea.smem %s0, 5
  %s11 = sld [smem:[%s10]]
  %s12 = scalar_lea.smem %s0, 6
  %s13 = sld [smem:[%s12]]
  %s14 = scalar_lea.smem %s0, 7
  %s15 = sld [smem:[%s14]]
  %s16 = scalar_lea.smem %s0, 8
  %s17 = sld [smem:[%s16]]
  %s18 = scalar_lea.smem %s0, 9
  %s19 = sld [smem:[%s18]]
  %s20 = scalar_lea.smem %s0, 10
  %s21 = sld [smem:[%s20]]
  %s22 = scalar_lea.smem %s0, 11
  %s23 = sld [smem:[%s22]]
  %s24 = scalar_lea.smem %s0, 12
  %s25 = sld [smem:[%s24]]
  %s26 = scalar_lea.smem %s0, 13
  %s27 = sld [smem:[%s26]]
  %s28 = scalar_lea.smem %s0, 14
  %s29 = sld [smem:[%s28]]
  %s30 = scalar_lea.smem %s0, 15
  %s31 = sld [smem:[%s30]]
  %s32 = scalar_lea.smem %s0, 16
  %s33 = sld [smem:[%s32]]
  %s34 = scalar_lea.smem %s0, 17
  %s35 = sld [smem:[%s34]]
  %s36 = scalar_lea.smem %s0, 18
  %s37 = sld [smem:[%s36]]
  %s38 = scalar_lea.smem %s0, 19
  %s39 = sld [smem:[%s38]]
  %s40 = scalar_lea.smem %s0, 20
  %s41 = sld [smem:[%s40]]
  %s42 = scalar_lea.smem %s0, 21
  %s43 = sld [smem:[%s42]]
  %s44 = scalar_lea.smem %s0, 22
  %s45 = sld [smem:[%s44]]
  %s46 = scalar_lea.smem %s0, 23
  %s47 = sld [smem:[%s46]]
  %s48 = scalar_lea.smem %s0, 24
  %s49 = sld [smem:[%s48]]
  %s50 = scalar_lea.smem %s0, 25
  %s51 = sld [smem:[%s50]]
  %s52 = scalar_lea.smem %s0, 26
  %s53 = sld [smem:[%s52]]
  %s54 = scalar_lea.smem %s0, 27
  %s55 = sld [smem:[%s54]]
  %s56 = scalar_lea.smem %s0, 28
  %s57 = sld [smem:[%s56]]
  %s58 = scalar_lea.smem %s0, 29
  %s59 = sld [smem:[%s58]]
  %s60 = scalar_lea.smem %s0, 30
  %s61 = sld [smem:[%s60]]
  %s62 = sld [smem:[#allocation0]]
  $region130: #{ensemble_fwd.4} parent=0
    _
  %s64 = ssub.s32 1, %s62
  %s65 = scalar_select 0, %s64, %s62
  // Predicated region
  $region2: #{ensemble_fwd.4} parent=0 // pred_check
    _
  $region3: #{ensemble_fwd.4} parent=0 // pred_check_branch
    %67 = sbr.rel (0) target = $region5
  $region4: #{ensemble_fwd.4} parent=0 // pred_region
    _
  $region5: #{ensemble_fwd.4} parent=0 // pred_fallthru
    _
  // Predicated region
  $region6: #{ensemble_fwd.4} parent=0 // pred_check
    _
  $region7: #{ensemble_fwd.4} parent=0 // pred_check_branch
    %69 = sbr.rel (0) target = $region9
  $region8: #{ensemble_fwd.4} parent=0 // pred_region
    _
  $region9: #{ensemble_fwd.4} parent=0 // pred_fallthru
    _
  // Predicated region
  $region10: #{ensemble_fwd.4} parent=0 // pred_check
    _
  $region11: #{ensemble_fwd.4} parent=0 // pred_check_branch
    %71 = sbr.rel (0) target = $region13
  $region12: #{ensemble_fwd.4} parent=0 // pred_region
    _
  $region13: #{ensemble_fwd.4} parent=0 // pred_fallthru
    _
  // Predicated region
  $region14: #{ensemble_fwd.4} parent=0 // pred_check
    _
  $region15: #{ensemble_fwd.4} parent=0 // pred_check_branch
    %73 = sbr.rel (0) target = $region17
  $region16: #{ensemble_fwd.4} parent=0 // pred_region
    _
  $region17: #{ensemble_fwd.4} parent=0 // pred_fallthru
    _
  // Predicated region
  $region18: #{ensemble_fwd.4} parent=0 // pred_check
    _
  $region19: #{ensemble_fwd.4} parent=0 // pred_check_branch
    %75 = sbr.rel (0) target = $region21
  $region20: #{ensemble_fwd.4} parent=0 // pred_region
    _
  $region21: #{ensemble_fwd.4} parent=0 // pred_fallthru
    _
  // Predicated region
  $region22: #{ensemble_fwd.4} parent=0 // pred_check
    _
  $region23: #{ensemble_fwd.4} parent=0 // pred_check_branch
    %77 = sbr.rel (0) target = $region25
  $region24: #{ensemble_fwd.4} parent=0 // pred_region
    _
  $region25: #{ensemble_fwd.4} parent=0 // pred_fallthru
    _
  // Predicated region
  $region26: #{ensemble_fwd.4} parent=0 // pred_check
    _
  $region27: #{ensemble_fwd.4} parent=0 // pred_check_branch
    %79 = sbr.rel (0) target = $region29
  $region28: #{ensemble_fwd.4} parent=0 // pred_region
    _
  $region29: #{ensemble_fwd.4} parent=0 // pred_fallthru
    _
  // Predicated region
  $region30: #{ensemble_fwd.4} parent=0 // pred_check
    _
  $region31: #{ensemble_fwd.4} parent=0 // pred_check_branch
    %81 = sbr.rel (0) target = $region33
  $region32: #{ensemble_fwd.4} parent=0 // pred_region
    _
  $region33: #{ensemble_fwd.4} parent=0 // pred_fallthru
    _
  // Predicated region
  $region34: #{ensemble_fwd.4} parent=0 // pred_check
    _
  $region35: #{ensemble_fwd.4} parent=0 // pred_check_branch
    %83 = sbr.rel (0) target = $region37
  $region36: #{ensemble_fwd.4} parent=0 // pred_region
    _
  $region37: #{ensemble_fwd.4} parent=0 // pred_fallthru
    _
  // Predicated region
  $region38: #{ensemble_fwd.4} parent=0 // pred_check
    _
  $region39: #{ensemble_fwd.4} parent=0 // pred_check_branch
    %85 = sbr.rel (0) target = $region41
  $region40: #{ensemble_fwd.4} parent=0 // pred_region
    _
  $region41: #{ensemble_fwd.4} parent=0 // pred_fallthru
    _
  // Predicated region
  $region42: #{ensemble_fwd.4} parent=0 // pred_check
    _
  $region43: #{ensemble_fwd.4} parent=0 // pred_check_branch
    %87 = sbr.rel (0) target = $region45
  $region44: #{ensemble_fwd.4} parent=0 // pred_region
    _
  $region45: #{ensemble_fwd.4} parent=0 // pred_fallthru
    _
  // Predicated region
  $region46: #{ensemble_fwd.4} parent=0 // pred_check
    _
  $region47: #{ensemble_fwd.4} parent=0 // pred_check_branch
    %89 = sbr.rel (0) target = $region49
  $region48: #{ensemble_fwd.4} parent=0 // pred_region
    _
  $region49: #{ensemble_fwd.4} parent=0 // pred_fallthru
    _
  // Predicated region
  $region50: #{ensemble_fwd.4} parent=0 // pred_check
    _
  $region51: #{ensemble_fwd.4} parent=0 // pred_check_branch
    %91 = sbr.rel (0) target = $region53
  $region52: #{ensemble_fwd.4} parent=0 // pred_region
    _
  $region53: #{ensemble_fwd.4} parent=0 // pred_fallthru
    _
  // Predicated region
  $region54: #{ensemble_fwd.4} parent=0 // pred_check
    _
  $region55: #{ensemble_fwd.4} parent=0 // pred_check_branch
    %93 = sbr.rel (0) target = $region57
  $region56: #{ensemble_fwd.4} parent=0 // pred_region
    _
  $region57: #{ensemble_fwd.4} parent=0 // pred_fallthru
    _
  // Predicated region
  $region58: #{ensemble_fwd.4} parent=0 // pred_check
    _
  $region59: #{ensemble_fwd.4} parent=0 // pred_check_branch
    %95 = sbr.rel (0) target = $region61
  $region60: #{ensemble_fwd.4} parent=0 // pred_region
    _
  $region61: #{ensemble_fwd.4} parent=0 // pred_fallthru
    _
  // Predicated region
  $region62: #{ensemble_fwd.4} parent=0 // pred_check
    _
  $region63: #{ensemble_fwd.4} parent=0 // pred_check_branch
    %97 = sbr.rel (0) target = $region65
  $region64: #{ensemble_fwd.4} parent=0 // pred_region
    _
  $region65: #{ensemble_fwd.4} parent=0 // pred_fallthru
    _
  // Predicated region
  $region66: #{ensemble_fwd.4} parent=0 // pred_check
    _
  $region67: #{ensemble_fwd.4} parent=0 // pred_check_branch
    %99 = sbr.rel (0) target = $region69
  $region68: #{ensemble_fwd.4} parent=0 // pred_region
    _
  $region69: #{ensemble_fwd.4} parent=0 // pred_fallthru
    _
  // Predicated region
  $region70: #{ensemble_fwd.4} parent=0 // pred_check
    _
  $region71: #{ensemble_fwd.4} parent=0 // pred_check_branch
    %101 = sbr.rel (0) target = $region73
  $region72: #{ensemble_fwd.4} parent=0 // pred_region
    _
  $region73: #{ensemble_fwd.4} parent=0 // pred_fallthru
    _
  // Predicated region
  $region74: #{ensemble_fwd.4} parent=0 // pred_check
    _
  $region75: #{ensemble_fwd.4} parent=0 // pred_check_branch
    %103 = sbr.rel (0) target = $region77
  $region76: #{ensemble_fwd.4} parent=0 // pred_region
    _
  $region77: #{ensemble_fwd.4} parent=0 // pred_fallthru
    _
  // Predicated region
  $region78: #{ensemble_fwd.4} parent=0 // pred_check
    _
  $region79: #{ensemble_fwd.4} parent=0 // pred_check_branch
    %105 = sbr.rel (0) target = $region81
  $region80: #{ensemble_fwd.4} parent=0 // pred_region
    _
  $region81: #{ensemble_fwd.4} parent=0 // pred_fallthru
    _
  // Predicated region
  $region82: #{ensemble_fwd.4} parent=0 // pred_check
    _
  $region83: #{ensemble_fwd.4} parent=0 // pred_check_branch
    %107 = sbr.rel (0) target = $region85
  $region84: #{ensemble_fwd.4} parent=0 // pred_region
    _
  $region85: #{ensemble_fwd.4} parent=0 // pred_fallthru
    _
  // Predicated region
  $region86: #{ensemble_fwd.4} parent=0 // pred_check
    _
  $region87: #{ensemble_fwd.4} parent=0 // pred_check_branch
    %109 = sbr.rel (0) target = $region89
  $region88: #{ensemble_fwd.4} parent=0 // pred_region
    _
  $region89: #{ensemble_fwd.4} parent=0 // pred_fallthru
    _
  // Predicated region
  $region90: #{ensemble_fwd.4} parent=0 // pred_check
    _
  $region91: #{ensemble_fwd.4} parent=0 // pred_check_branch
    %111 = sbr.rel (0) target = $region93
  $region92: #{ensemble_fwd.4} parent=0 // pred_region
    _
  $region93: #{ensemble_fwd.4} parent=0 // pred_fallthru
    _
  // Predicated region
  $region94: #{ensemble_fwd.4} parent=0 // pred_check
    _
  $region95: #{ensemble_fwd.4} parent=0 // pred_check_branch
    %113 = sbr.rel (0) target = $region97
  $region96: #{ensemble_fwd.4} parent=0 // pred_region
    _
  $region97: #{ensemble_fwd.4} parent=0 // pred_fallthru
    _
  // Predicated region
  $region98: #{ensemble_fwd.4} parent=0 // pred_check
    _
  $region99: #{ensemble_fwd.4} parent=0 // pred_check_branch
    %115 = sbr.rel (0) target = $region101
  $region100: #{ensemble_fwd.4} parent=0 // pred_region
    _
  $region101: #{ensemble_fwd.4} parent=0 // pred_fallthru
    _
  // Predicated region
  $region102: #{ensemble_fwd.4} parent=0 // pred_check
    _
  $region103: #{ensemble_fwd.4} parent=0 // pred_check_branch
    %117 = sbr.rel (0) target = $region105
  $region104: #{ensemble_fwd.4} parent=0 // pred_region
    _
  $region105: #{ensemble_fwd.4} parent=0 // pred_fallthru
    _
  // Predicated region
  $region106: #{ensemble_fwd.4} parent=0 // pred_check
    _
  $region107: #{ensemble_fwd.4} parent=0 // pred_check_branch
    %119 = sbr.rel (0) target = $region109
  $region108: #{ensemble_fwd.4} parent=0 // pred_region
    _
  $region109: #{ensemble_fwd.4} parent=0 // pred_fallthru
    _
  // Predicated region
  $region110: #{ensemble_fwd.4} parent=0 // pred_check
    _
  $region111: #{ensemble_fwd.4} parent=0 // pred_check_branch
    %121 = sbr.rel (0) target = $region113
  $region112: #{ensemble_fwd.4} parent=0 // pred_region
    _
  $region113: #{ensemble_fwd.4} parent=0 // pred_fallthru
    _
  // Predicated region
  $region114: #{ensemble_fwd.4} parent=0 // pred_check
    _
  $region115: #{ensemble_fwd.4} parent=0 // pred_check_branch
    %123 = sbr.rel (0) target = $region117
  $region116: #{ensemble_fwd.4} parent=0 // pred_region
    _
  $region117: #{ensemble_fwd.4} parent=0 // pred_fallthru
    _
  // Predicated region
  $region118: #{ensemble_fwd.4} parent=0 // pred_check
    _
  $region119: #{ensemble_fwd.4} parent=0 // pred_check_branch
    %125 = sbr.rel (0) target = $region121
  $region120: #{ensemble_fwd.4} parent=0 // pred_region
    _
  $region121: #{ensemble_fwd.4} parent=0 // pred_fallthru
    _
  %v127 = vld [vmem:[%s1] sm:$0xf]
  %v128 = vld [vmem:[%s1 + $0x4] sm:$0xf]
  %v129 = vld [vmem:[%s1 + $0x8] sm:$0xf]
  %v130 = vld [vmem:[%s1 + $0xc] sm:$0xf]
  %v131 = vunpack.c.l.bf16 %v127
  %v132 = vunpack.c.l.bf16 %v128
  %v133 = vunpack.c.l.bf16 %v129
  %v134 = vunpack.c.l.bf16 %v130
  %v135 = vld [vmem:[%s5] sm:$0x1]
  %v136 = vld [vmem:[%s7] sm:$0x1]
  %vm137 = vcmask 523264
  %v138 = vsel %vm137, %v131, 0.0
  %v139 = vsel %vm137, %v132, 0.0
  %v140 = vadd.f32 %v138, %v139
  %v141 = vsel %vm137, %v133, 0.0
  %v142 = vadd.f32 %v140, %v141
  %v143 = vsel %vm137, %v134, 0.0
  %v144 = vadd.f32 %v142, %v143
  %v145 = vrot.slane %v144, 4
  %v146 = vadd.f32 %v144, %v145
  %v147 = vrot.slane %v146, 2
  %v148 = vadd.f32 %v146, %v147
  %v149 = vrot.slane %v148, 1
  %v150 = vadd.f32 %v148, %v149
  %v151 = vrcp.pop 32.0
  %v152 = vmul.f32 %v150, %v151
  %v153 = vsub.f32 %v131, %v152
  %v154 = vsub.f32 %v132, %v152
  %v155 = vsub.f32 %v133, %v152
  %v156 = vsub.f32 %v134, %v152
  %v157 = vmul.f32 %v153, %v153
  %v158 = vmul.f32 %v154, %v154
  %v159 = vmul.f32 %v155, %v155
  %v160 = vmul.f32 %v156, %v156
  %v161 = vsel %vm137, %v157, 0.0
  %v162 = vsel %vm137, %v158, 0.0
  %v163 = vadd.f32 %v161, %v162
  %v164 = vsel %vm137, %v159, 0.0
  %v165 = vadd.f32 %v163, %v164
  %v166 = vsel %vm137, %v160, 0.0
  %v167 = vadd.f32 %v165, %v166
  %v168 = vrot.slane %v167, 4
  %v169 = vadd.f32 %v167, %v168
  %v170 = vrot.slane %v169, 2
  %v171 = vadd.f32 %v169, %v170
  %v172 = vrot.slane %v171, 1
  %v173 = vadd.f32 %v171, %v172
  %v174 = vmul.f32 %v173, %v151
  %v175 = vadd.f32 %v174, 1e-05
  %v176 = vrsqrt.pop %v175
  %v177 = vmul.f32 %v135, %v176
  %v179 = vlaneseq
  %v180 = vshrl.u32 %v179, 7
  %v181 = vsub.s32 0, %v180
  %v182 = vrot.slane %v177, %v181
  %v184 = vmul.f32 %v153, %v182
  %v185 = vmul.f32 %v154, %v182
  %v186 = vmul.f32 %v155, %v182
  %v187 = vmul.f32 %v156, %v182
  %v189 = vlaneseq
  %v190 = vshrl.u32 %v189, 7
  %v191 = vsub.s32 0, %v190
  %v192 = vrot.slane %v136, %v191
  %v194 = vadd.f32 %v184, %v192
  %v195 = vadd.f32 %v185, %v192
  %v196 = vadd.f32 %v186, %v192
  %v197 = vadd.f32 %v187, %v192
  %v198 = vmax.f32 %v194, 0.0
  %v199 = vmax.f32 %v195, 0.0
  %v200 = vmax.f32 %v196, 0.0
  %v201 = vmax.f32 %v197, 0.0
  %v202 = vld [vmem:[%s9] sm:$0xf]
  %v203 = vld [vmem:[%s9 + $0x4] sm:$0xf]
  %v204 = vld [vmem:[%s9 + $0x8] sm:$0xf]
  %v205 = vld [vmem:[%s9 + $0xc] sm:$0xf]
  %v206 = vld [vmem:[%s9 + $0x10] sm:$0xf]
  %v207 = vld [vmem:[%s9 + $0x14] sm:$0xf]
  %v208 = vld [vmem:[%s9 + $0x18] sm:$0xf]
  %v209 = vld [vmem:[%s9 + $0x1c] sm:$0xf]
  %v210 = vpack.c.bf16 %v199, %v198
  %v211 = vpack.c.bf16 %v201, %v200
  %v220 = vunpack.c.l.b16 %v202
  %v221 = vunpack.c.l.b16 %v203
  %v222 = vunpack.c.l.b16 %v204
  %v223 = vunpack.c.l.b16 %v205
  %v224 = vunpack.c.l.b16 %v206
  %v225 = vunpack.c.l.b16 %v207
  %v226 = vunpack.c.l.b16 %v208
  %v227 = vunpack.c.l.b16 %v209
  %v228 = vpack.c.b16 %v221, %v220
  %v229 = vpack.c.b16 %v223, %v222
  %v230 = vpack.c.b16 %v225, %v224
  %v231 = vpack.c.b16 %v227, %v226
  %v237 = vsel %vm137, %v210, 0
  %v240 = vsel %vm137, %v211, 0
  %242 = vmatprep.subr.bf16.mxu0 0
  %243 = vmatpush1.bf16.msra.mxu0 %v228
  %244 = vmatprep.subr.bf16.mxu0 0
  %245 = vmatpush1.bf16.msra.mxu0 %v229
  %246 = vmatprep.subr.bf16.mxu0 0
  %247 = vmatpush1.bf16.msra.mxu0 %v230
  %248 = vmatprep.subr.bf16.mxu0 0
  %249 = vmatpush1.bf16.msra.mxu0 %v231
  %250 = vmatprep.subr.bf16.mxu0 0
  %251 = vmatpush1.bf16.msra.mxu0 0
  %252 = vmatprep.subr.bf16.mxu0 0
  %253 = vmatpush1.bf16.msra.mxu0 0
  %254 = vmatprep.subr.bf16.mxu0 0
  %255 = vmatpush1.bf16.msra.mxu0 0
  %256 = vmatprep.subr.bf16.mxu0 0
  %257 = vmatpush1.bf16.msra.mxu0 0
  %258 = vmatprep.subr.bf16.mxu0 0
  %259 = vmatpush1.bf16.msra.mxu0 0
  %260 = vmatprep.subr.bf16.mxu0 0
  %261 = vmatpush1.bf16.msra.mxu0 0
  %262 = vmatprep.subr.bf16.mxu0 0
  %263 = vmatpush1.bf16.msra.mxu0 0
  %264 = vmatprep.subr.bf16.mxu0 0
  %265 = vmatpush1.bf16.msra.mxu0 0
  %266 = vmatprep.subr.bf16.mxu0 0
  %267 = vmatpush1.bf16.msra.mxu0 0
  %268 = vmatprep.subr.bf16.mxu0 0
  %269 = vmatpush1.bf16.msra.mxu0 0
  %270 = vmatprep.subr.bf16.mxu0 0
  %271 = vmatpush1.bf16.msra.mxu0 0
  %272 = vmatprep.subr.bf16.mxu0 0
  %273 = vmatpush1.bf16.msra.mxu0 0
  %274 = vmatprep.mubr.bf16.mxu0 0
  %275 = vmatmul.mubr.bf16.gmra.mrb[0].mxu0 %v237
  %v276 = vpop.f32.mrb[0].mxu0
  %v277 = vadd.f32 0.0, %v276
  %v278 = vpop.f32.mrb[0].mxu0
  %v279 = vpop.f32.mrb[0].mxu0
  %v280 = vadd.f32 0.0, %v279
  %v281 = vpop.f32.mrb[0].mxu0
  %282 = vmatprep.mubr.bf16.mxu0 0
  %283 = vmatmul.mubr.bf16.gmra.mrb[0].mxu0 %v240
  %v284 = vpop.f32.mrb[0].mxu0
  %v285 = vadd.f32 0.0, %v284
  %v286 = vpop.f32.mrb[0].mxu0
  %v287 = vpop.f32.mrb[0].mxu0
  %v288 = vadd.f32 0.0, %v287
  %v289 = vpop.f32.mrb[0].mxu0
  %290 = vdwg.mxu0
  %v291 = vld [vmem:[%s11] sm:$0x1]
  %v292 = vld [vmem:[%s13] sm:$0x1]
  %vm293 = vcmask 392192
  %v294 = vsel %vm293, %v277, 0.0
  %v295 = vsel %vm293, %v280, 0.0
  %v296 = vadd.f32 %v294, %v295
  %v297 = vsel %vm293, %v285, 0.0
  %v298 = vadd.f32 %v296, %v297
  %v299 = vsel %vm293, %v288, 0.0
  %v300 = vadd.f32 %v298, %v299
  %v301 = vrot.slane %v300, 4
  %v302 = vadd.f32 %v300, %v301
  %v303 = vrot.slane %v302, 2
  %v304 = vadd.f32 %v302, %v303
  %v305 = vrot.slane %v304, 1
  %v306 = vadd.f32 %v304, %v305
  %v307 = vmul.f32 %v306, %v151
  %v308 = vsub.f32 %v277, %v307
  %v309 = vsub.f32 %v280, %v307
  %v310 = vsub.f32 %v285, %v307
  %v311 = vsub.f32 %v288, %v307
  %v312 = vmul.f32 %v308, %v308
  %v313 = vmul.f32 %v309, %v309
  %v314 = vmul.f32 %v310, %v310
  %v315 = vmul.f32 %v311, %v311
  %v316 = vsel %vm293, %v312, 0.0
  %v317 = vsel %vm293, %v313, 0.0
  %v318 = vadd.f32 %v316, %v317
  %v319 = vsel %vm293, %v314, 0.0
  %v320 = vadd.f32 %v318, %v319
  %v321 = vsel %vm293, %v315, 0.0
  %v322 = vadd.f32 %v320, %v321
  %v323 = vrot.slane %v322, 4
  %v324 = vadd.f32 %v322, %v323
  %v325 = vrot.slane %v324, 2
  %v326 = vadd.f32 %v324, %v325
  %v327 = vrot.slane %v326, 1
  %v328 = vadd.f32 %v326, %v327
  %v329 = vmul.f32 %v328, %v151
  %v330 = vadd.f32 %v329, 1e-05
  %v331 = vrsqrt.pop %v330
  %v332 = vmul.f32 %v291, %v331
  %v334 = vlaneseq
  %v335 = vshrl.u32 %v334, 7
  %v336 = vsub.s32 0, %v335
  %v337 = vrot.slane %v332, %v336
  %v339 = vmul.f32 %v308, %v337
  %v340 = vmul.f32 %v309, %v337
  %v341 = vmul.f32 %v310, %v337
  %v342 = vmul.f32 %v311, %v337
  %v344 = vlaneseq
  %v345 = vshrl.u32 %v344, 7
  %v346 = vsub.s32 0, %v345
  %v347 = vrot.slane %v292, %v346
  %v349 = vadd.f32 %v339, %v347
  %v350 = vadd.f32 %v340, %v347
  %v351 = vadd.f32 %v341, %v347
  %v352 = vadd.f32 %v342, %v347
  %v353 = vmax.f32 %v349, 0.0
  %v354 = vmax.f32 %v350, 0.0
  %v355 = vmax.f32 %v351, 0.0
  %v356 = vmax.f32 %v352, 0.0
  %v357 = vld [vmem:[%s3] sm:$0xf]
  %v358 = vld [vmem:[%s3 + $0x4] sm:$0xf]
  %v359 = vld [vmem:[%s3 + $0x8] sm:$0xf]
  %v360 = vld [vmem:[%s3 + $0xc] sm:$0xf]
  %v361 = vpack.c.bf16 %v354, %v353
  %v362 = vpack.c.bf16 %v356, %v355
  %v367 = vunpack.c.l.b16 %v357
  %v368 = vunpack.c.l.b16 %v358
  %v369 = vunpack.c.l.b16 %v359
  %v370 = vunpack.c.l.b16 %v360
  %v371 = vpack.c.b16 %v368, %v367
  %v372 = vpack.c.b16 %v370, %v369
  %vm373 = vcmask 261120
  %v375 = vsel %vm373, %v371, 0
  %v378 = vsel %vm373, %v372, 0
  %380 = vmatprep.subr.bf16.mxu0 0
  %381 = vmatpush1.bf16.msra.mxu0 %v361
  %382 = vmatprep.subr.bf16.mxu0 0
  %383 = vmatpush1.bf16.msra.mxu0 %v362
  %384 = vmatprep.subr.bf16.mxu0 0
  %385 = vmatpush1.bf16.msra.mxu0 0
  %386 = vmatprep.subr.bf16.mxu0 0
  %387 = vmatpush1.bf16.msra.mxu0 0
  %388 = vmatprep.subr.bf16.mxu0 0
  %389 = vmatpush1.bf16.msra.mxu0 0
  %390 = vmatprep.subr.bf16.mxu0 0
  %391 = vmatpush1.bf16.msra.mxu0 0
  %392 = vmatprep.subr.bf16.mxu0 0
  %393 = vmatpush1.bf16.msra.mxu0 0
  %394 = vmatprep.subr.bf16.mxu0 0
  %395 = vmatpush1.bf16.msra.mxu0 0
  %396 = vmatprep.subr.bf16.mxu0 0
  %397 = vmatpush1.bf16.msra.mxu0 0
  %398 = vmatprep.subr.bf16.mxu0 0
  %399 = vmatpush1.bf16.msra.mxu0 0
  %400 = vmatprep.subr.bf16.mxu0 0
  %401 = vmatpush1.bf16.msra.mxu0 0
  %402 = vmatprep.subr.bf16.mxu0 0
  %403 = vmatpush1.bf16.msra.mxu0 0
  %404 = vmatprep.subr.bf16.mxu0 0
  %405 = vmatpush1.bf16.msra.mxu0 0
  %406 = vmatprep.subr.bf16.mxu0 0
  %407 = vmatpush1.bf16.msra.mxu0 0
  %408 = vmatprep.subr.bf16.mxu0 0
  %409 = vmatpush1.bf16.msra.mxu0 0
  %410 = vmatprep.subr.bf16.mxu0 0
  %411 = vmatpush1.bf16.msra.mxu0 0
  %412 = vmatprep.mubr.bf16.mxu0 0
  %413 = vmatmul.mubr.bf16.gmra.mrb[0].mxu0 %v375
  %v414 = vpop.f32.mrb[0].mxu0
  %v415 = vadd.f32 0.0, %v414
  %v416 = vpop.f32.mrb[0].mxu0
  %v417 = vpop.f32.mrb[0].mxu0
  %v418 = vadd.f32 0.0, %v417
  %v419 = vpop.f32.mrb[0].mxu0
  %420 = vmatprep.mubr.bf16.mxu0 0
  %421 = vmatmul.mubr.bf16.gmra.mrb[0].mxu0 %v378
  %v422 = vpop.f32.mrb[0].mxu0
  %v423 = vadd.f32 0.0, %v422
  %v424 = vpop.f32.mrb[0].mxu0
  %v425 = vpop.f32.mrb[0].mxu0
  %v426 = vadd.f32 0.0, %v425
  %v427 = vpop.f32.mrb[0].mxu0
  %428 = vdwg.mxu0
  %v429 = vld [vmem:[%s15] sm:$0xf]
  %v430 = vld [vmem:[%s15 + $0x4] sm:$0xf]
  %v431 = vld [vmem:[%s15 + $0x8] sm:$0xf]
  %v432 = vld [vmem:[%s15 + $0xc] sm:$0xf]
  %v433 = vld [vmem:[%s15 + $0x10] sm:$0xf]
  %v434 = vld [vmem:[%s15 + $0x14] sm:$0xf]
  %v435 = vpack.c.bf16 %v418, %v415
  %v436 = vpack.c.bf16 %v426, %v423
  %s437 = scalar_lea.vmem %s3, 16
  %v438 = vld [vmem:[%s437] sm:$0xf]
  %v439 = vld [vmem:[%s437 + $0x4] sm:$0xf]
  %v440 = vld [vmem:[%s437 + $0x8] sm:$0xf]
  %v441 = vld [vmem:[%s437 + $0xc] sm:$0xf]
  %v446 = vunpack.c.l.b16 %v438
  %v447 = vunpack.c.l.b16 %v439
  %v448 = vunpack.c.l.b16 %v440
  %v449 = vunpack.c.l.b16 %v441
  %v450 = vpack.c.b16 %v447, %v446
  %v451 = vpack.c.b16 %v449, %v448
  %v453 = vsel %vm373, %v450, 0
  %v456 = vsel %vm373, %v451, 0
  %458 = vmatprep.subr.bf16.mxu0 0
  %459 = vmatpush1.bf16.msra.mxu0 %v361
  %460 = vmatprep.subr.bf16.mxu0 0
  %461 = vmatpush1.bf16.msra.mxu0 %v362
  %462 = vmatprep.subr.bf16.mxu0 0
  %463 = vmatpush1.bf16.msra.mxu0 0
  %464 = vmatprep.subr.bf16.mxu0 0
  %465 = vmatpush1.bf16.msra.mxu0 0
  %466 = vmatprep.subr.bf16.mxu0 0
  %467 = vmatpush1.bf16.msra.mxu0 0
  %468 = vmatprep.subr.bf16.mxu0 0
  %469 = vmatpush1.bf16.msra.mxu0 0
  %470 = vmatprep.subr.bf16.mxu0 0
  %471 = vmatpush1.bf16.msra.mxu0 0
  %472 = vmatprep.subr.bf16.mxu0 0
  %473 = vmatpush1.bf16.msra.mxu0 0
  %474 = vmatprep.subr.bf16.mxu0 0
  %475 = vmatpush1.bf16.msra.mxu0 0
  %476 = vmatprep.subr.bf16.mxu0 0
  %477 = vmatpush1.bf16.msra.mxu0 0
  %478 = vmatprep.subr.bf16.mxu0 0
  %479 = vmatpush1.bf16.msra.mxu0 0
  %480 = vmatprep.subr.bf16.mxu0 0
  %481 = vmatpush1.bf16.msra.mxu0 0
  %482 = vmatprep.subr.bf16.mxu0 0
  %483 = vmatpush1.bf16.msra.mxu0 0
  %484 = vmatprep.subr.bf16.mxu0 0
  %485 = vmatpush1.bf16.msra.mxu0 0
  %486 = vmatprep.subr.bf16.mxu0 0
  %487 = vmatpush1.bf16.msra.mxu0 0
  %488 = vmatprep.subr.bf16.mxu0 0
  %489 = vmatpush1.bf16.msra.mxu0 0
  %490 = vmatprep.mubr.bf16.mxu0 0
  %491 = vmatmul.mubr.bf16.gmra.mrb[0].mxu0 %v453
  %v492 = vpop.f32.mrb[0].mxu0
  %v493 = vadd.f32 0.0, %v492
  %v494 = vpop.f32.mrb[0].mxu0
  %v495 = vpop.f32.mrb[0].mxu0
  %v496 = vadd.f32 0.0, %v495
  %v497 = vpop.f32.mrb[0].mxu0
  %498 = vmatprep.mubr.bf16.mxu0 0
  %499 = vmatmul.mubr.bf16.gmra.mrb[0].mxu0 %v456
  %v500 = vpop.f32.mrb[0].mxu0
  %v501 = vadd.f32 0.0, %v500
  %v502 = vpop.f32.mrb[0].mxu0
  %v503 = vpop.f32.mrb[0].mxu0
  %v504 = vadd.f32 0.0, %v503
  %v505 = vpop.f32.mrb[0].mxu0
  %506 = vdwg.mxu0
  %s507 = scalar_lea.vmem %s15, 24
  %v508 = vld [vmem:[%s507] sm:$0xf]
  %v509 = vld [vmem:[%s507 + $0x4] sm:$0xf]
  %v510 = vld [vmem:[%s507 + $0x8] sm:$0xf]
  %v511 = vld [vmem:[%s507 + $0xc] sm:$0xf]
  %v512 = vld [vmem:[%s507 + $0x10] sm:$0xf]
  %v513 = vld [vmem:[%s507 + $0x14] sm:$0xf]
  %v514 = vpack.c.bf16 %v496, %v493
  %v515 = vpack.c.bf16 %v504, %v501
  %v522 = vunpack.c.l.b16 %v508
  %v523 = vunpack.c.l.b16 %v509
  %v524 = vunpack.c.l.b16 %v510
  %v525 = vunpack.c.l.b16 %v511
  %v526 = vunpack.c.l.b16 %v512
  %v527 = vunpack.c.l.b16 %v513
  %v528 = vpack.c.b16 %v523, %v522
  %v529 = vpack.c.b16 %v525, %v524
  %v530 = vpack.c.b16 %v527, %v526
  %v535 = vsel %vm293, %v514, 0
  %v538 = vsel %vm293, %v515, 0
  %540 = vmatprep.subr.bf16.mxu0 0
  %541 = vmatpush1.bf16.msra.mxu0 %v528
  %542 = vmatprep.subr.bf16.mxu0 0
  %543 = vmatpush1.bf16.msra.mxu0 %v529
  %544 = vmatprep.subr.bf16.mxu0 0
  %545 = vmatpush1.bf16.msra.mxu0 %v530
  %546 = vmatprep.subr.bf16.mxu0 0
  %547 = vmatpush1.bf16.msra.mxu0 0
  %548 = vmatprep.subr.bf16.mxu0 0
  %549 = vmatpush1.bf16.msra.mxu0 0
  %550 = vmatprep.subr.bf16.mxu0 0
  %551 = vmatpush1.bf16.msra.mxu0 0
  %552 = vmatprep.subr.bf16.mxu0 0
  %553 = vmatpush1.bf16.msra.mxu0 0
  %554 = vmatprep.subr.bf16.mxu0 0
  %555 = vmatpush1.bf16.msra.mxu0 0
  %556 = vmatprep.subr.bf16.mxu0 0
  %557 = vmatpush1.bf16.msra.mxu0 0
  %558 = vmatprep.subr.bf16.mxu0 0
  %559 = vmatpush1.bf16.msra.mxu0 0
  %560 = vmatprep.subr.bf16.mxu0 0
  %561 = vmatpush1.bf16.msra.mxu0 0
  %562 = vmatprep.subr.bf16.mxu0 0
  %563 = vmatpush1.bf16.msra.mxu0 0
  %564 = vmatprep.subr.bf16.mxu0 0
  %565 = vmatpush1.bf16.msra.mxu0 0
  %566 = vmatprep.subr.bf16.mxu0 0
  %567 = vmatpush1.bf16.msra.mxu0 0
  %568 = vmatprep.subr.bf16.mxu0 0
  %569 = vmatpush1.bf16.msra.mxu0 0
  %570 = vmatprep.subr.bf16.mxu0 0
  %571 = vmatpush1.bf16.msra.mxu0 0
  %572 = vmatprep.mubr.bf16.mxu0 0
  %573 = vmatmul.mubr.bf16.gmra.mrb[0].mxu0 %v535
  %v574 = vpop.f32.mrb[0].mxu0
  %v575 = vadd.f32 0.0, %v574
  %v576 = vpop.f32.mrb[0].mxu0
  %v577 = vpop.f32.mrb[0].mxu0
  %v578 = vadd.f32 0.0, %v577
  %v579 = vpop.f32.mrb[0].mxu0
  %580 = vmatprep.mubr.bf16.mxu0 0
  %581 = vmatmul.mubr.bf16.gmra.mrb[0].mxu0 %v538
  %v582 = vpop.f32.mrb[0].mxu0
  %v583 = vadd.f32 0.0, %v582
  %v584 = vpop.f32.mrb[0].mxu0
  %v585 = vpop.f32.mrb[0].mxu0
  %v586 = vadd.f32 0.0, %v585
  %v587 = vpop.f32.mrb[0].mxu0
  %588 = vdwg.mxu0
  %v595 = vunpack.c.l.b16 %v429
  %v596 = vunpack.c.l.b16 %v430
  %v597 = vunpack.c.l.b16 %v431
  %v598 = vunpack.c.l.b16 %v432
  %v599 = vunpack.c.l.b16 %v433
  %v600 = vunpack.c.l.b16 %v434
  %v601 = vpack.c.b16 %v596, %v595
  %v602 = vpack.c.b16 %v598, %v597
  %v603 = vpack.c.b16 %v600, %v599
  %v608 = vsel %vm293, %v435, 0
  %v611 = vsel %vm293, %v436, 0
  %613 = vmatprep.subr.bf16.mxu0 0
  %614 = vmatpush1.bf16.msra.mxu0 %v601
  %615 = vmatprep.subr.bf16.mxu0 0
  %616 = vmatpush1.bf16.msra.mxu0 %v602
  %617 = vmatprep.subr.bf16.mxu0 0
  %618 = vmatpush1.bf16.msra.mxu0 %v603
  %619 = vmatprep.subr.bf16.mxu0 0
  %620 = vmatpush1.bf16.msra.mxu0 0
  %621 = vmatprep.subr.bf16.mxu0 0
  %622 = vmatpush1.bf16.msra.mxu0 0
  %623 = vmatprep.subr.bf16.mxu0 0
  %624 = vmatpush1.bf16.msra.mxu0 0
  %625 = vmatprep.subr.bf16.mxu0 0
  %626 = vmatpush1.bf16.msra.mxu0 0
  %627 = vmatprep.subr.bf16.mxu0 0
  %628 = vmatpush1.bf16.msra.mxu0 0
  %629 = vmatprep.subr.bf16.mxu0 0
  %630 = vmatpush1.bf16.msra.mxu0 0
  %631 = vmatprep.subr.bf16.mxu0 0
  %632 = vmatpush1.bf16.msra.mxu0 0
  %633 = vmatprep.subr.bf16.mxu0 0
  %634 = vmatpush1.bf16.msra.mxu0 0
  %635 = vmatprep.subr.bf16.mxu0 0
  %636 = vmatpush1.bf16.msra.mxu0 0
  %637 = vmatprep.subr.bf16.mxu0 0
  %638 = vmatpush1.bf16.msra.mxu0 0
  %639 = vmatprep.subr.bf16.mxu0 0
  %640 = vmatpush1.bf16.msra.mxu0 0
  %641 = vmatprep.subr.bf16.mxu0 0
  %642 = vmatpush1.bf16.msra.mxu0 0
  %643 = vmatprep.subr.bf16.mxu0 0
  %644 = vmatpush1.bf16.msra.mxu0 0
  %645 = vmatprep.mubr.bf16.mxu0 0
  %646 = vmatmul.mubr.bf16.gmra.mrb[0].mxu0 %v608
  %v647 = vpop.f32.mrb[0].mxu0
  %v648 = vadd.f32 %v575, %v647
  %v649 = vpop.f32.mrb[0].mxu0
  %v650 = vpop.f32.mrb[0].mxu0
  %v651 = vadd.f32 %v578, %v650
  %v652 = vpop.f32.mrb[0].mxu0
  %653 = vmatprep.mubr.bf16.mxu0 0
  %654 = vmatmul.mubr.bf16.gmra.mrb[0].mxu0 %v611
  %v655 = vpop.f32.mrb[0].mxu0
  %v656 = vadd.f32 %v583, %v655
  %v657 = vpop.f32.mrb[0].mxu0
  %v658 = vpop.f32.mrb[0].mxu0
  %v659 = vadd.f32 %v586, %v658
  %v660 = vpop.f32.mrb[0].mxu0
  %661 = vdwg.mxu0
  %s662 = scalar_lea.vmem %s3, 32
  %v663 = vld [vmem:[%s662] sm:$0xf]
  %v664 = vld [vmem:[%s662 + $0x4] sm:$0xf]
  %v665 = vld [vmem:[%s662 + $0x8] sm:$0xf]
  %v666 = vld [vmem:[%s662 + $0xc] sm:$0xf]
  %v671 = vunpack.c.l.b16 %v663
  %v672 = vunpack.c.l.b16 %v664
  %v673 = vunpack.c.l.b16 %v665
  %v674 = vunpack.c.l.b16 %v666
  %v675 = vpack.c.b16 %v672, %v671
  %v676 = vpack.c.b16 %v674, %v673
  %v678 = vsel %vm373, %v675, 0
  %v681 = vsel %vm373, %v676, 0
  %683 = vmatprep.subr.bf16.mxu0 0
  %684 = vmatpush1.bf16.msra.mxu0 %v361
  %685 = vmatprep.subr.bf16.mxu0 0
  %686 = vmatpush1.bf16.msra.mxu0 %v362
  %687 = vmatprep.subr.bf16.mxu0 0
  %688 = vmatpush1.bf16.msra.mxu0 0
  %689 = vmatprep.subr.bf16.mxu0 0
  %690 = vmatpush1.bf16.msra.mxu0 0
  %691 = vmatprep.subr.bf16.mxu0 0
  %692 = vmatpush1.bf16.msra.mxu0 0
  %693 = vmatprep.subr.bf16.mxu0 0
  %694 = vmatpush1.bf16.msra.mxu0 0
  %695 = vmatprep.subr.bf16.mxu0 0
  %696 = vmatpush1.bf16.msra.mxu0 0
  %697 = vmatprep.subr.bf16.mxu0 0
  %698 = vmatpush1.bf16.msra.mxu0 0
  %699 = vmatprep.subr.bf16.mxu0 0
  %700 = vmatpush1.bf16.msra.mxu0 0
  %701 = vmatprep.subr.bf16.mxu0 0
  %702 = vmatpush1.bf16.msra.mxu0 0
  %703 = vmatprep.subr.bf16.mxu0 0
  %704 = vmatpush1.bf16.msra.mxu0 0
  %705 = vmatprep.subr.bf16.mxu0 0
  %706 = vmatpush1.bf16.msra.mxu0 0
  %707 = vmatprep.subr.bf16.mxu0 0
  %708 = vmatpush1.bf16.msra.mxu0 0
  %709 = vmatprep.subr.bf16.mxu0 0
  %710 = vmatpush1.bf16.msra.mxu0 0
  %711 = vmatprep.subr.bf16.mxu0 0
  %712 = vmatpush1.bf16.msra.mxu0 0
  %713 = vmatprep.subr.bf16.mxu0 0
  %714 = vmatpush1.bf16.msra.mxu0 0
  %715 = vmatprep.mubr.bf16.mxu0 0
  %716 = vmatmul.mubr.bf16.gmra.mrb[0].mxu0 %v678
  %v717 = vpop.f32.mrb[0].mxu0
  %v718 = vadd.f32 0.0, %v717
  %v719 = vpop.f32.mrb[0].mxu0
  %v720 = vpop.f32.mrb[0].mxu0
  %v721 = vadd.f32 0.0, %v720
  %v722 = vpop.f32.mrb[0].mxu0
  %723 = vmatprep.mubr.bf16.mxu0 0
  %724 = vmatmul.mubr.bf16.gmra.mrb[0].mxu0 %v681
  %v725 = vpop.f32.mrb[0].mxu0
  %v726 = vadd.f32 0.0, %v725
  %v727 = vpop.f32.mrb[0].mxu0
  %v728 = vpop.f32.mrb[0].mxu0
  %v729 = vadd.f32 0.0, %v728
  %v730 = vpop.f32.mrb[0].mxu0
  %731 = vdwg.mxu0
  %s732 = scalar_lea.vmem %s15, 48
  %v733 = vld [vmem:[%s732] sm:$0xf]
  %v734 = vld [vmem:[%s732 + $0x4] sm:$0xf]
  %v735 = vld [vmem:[%s732 + $0x8] sm:$0xf]
  %v736 = vld [vmem:[%s732 + $0xc] sm:$0xf]
  %v737 = vld [vmem:[%s732 + $0x10] sm:$0xf]
  %v738 = vld [vmem:[%s732 + $0x14] sm:$0xf]
  %v739 = vpack.c.bf16 %v721, %v718
  %v740 = vpack.c.bf16 %v729, %v726
  %v747 = vunpack.c.l.b16 %v733
  %v748 = vunpack.c.l.b16 %v734
  %v749 = vunpack.c.l.b16 %v735
  %v750 = vunpack.c.l.b16 %v736
  %v751 = vunpack.c.l.b16 %v737
  %v752 = vunpack.c.l.b16 %v738
  %v753 = vpack.c.b16 %v748, %v747
  %v754 = vpack.c.b16 %v750, %v749
  %v755 = vpack.c.b16 %v752, %v751
  %v760 = vsel %vm293, %v739, 0
  %v763 = vsel %vm293, %v740, 0
  %765 = vmatprep.subr.bf16.mxu0 0
  %766 = vmatpush1.bf16.msra.mxu0 %v753
  %767 = vmatprep.subr.bf16.mxu0 0
  %768 = vmatpush1.bf16.msra.mxu0 %v754
  %769 = vmatprep.subr.bf16.mxu0 0
  %770 = vmatpush1.bf16.msra.mxu0 %v755
  %771 = vmatprep.subr.bf16.mxu0 0
  %772 = vmatpush1.bf16.msra.mxu0 0
  %773 = vmatprep.subr.bf16.mxu0 0
  %774 = vmatpush1.bf16.msra.mxu0 0
  %775 = vmatprep.subr.bf16.mxu0 0
  %776 = vmatpush1.bf16.msra.mxu0 0
  %777 = vmatprep.subr.bf16.mxu0 0
  %778 = vmatpush1.bf16.msra.mxu0 0
  %779 = vmatprep.subr.bf16.mxu0 0
  %780 = vmatpush1.bf16.msra.mxu0 0
  %781 = vmatprep.subr.bf16.mxu0 0
  %782 = vmatpush1.bf16.msra.mxu0 0
  %783 = vmatprep.subr.bf16.mxu0 0
  %784 = vmatpush1.bf16.msra.mxu0 0
  %785 = vmatprep.subr.bf16.mxu0 0
  %786 = vmatpush1.bf16.msra.mxu0 0
  %787 = vmatprep.subr.bf16.mxu0 0
  %788 = vmatpush1.bf16.msra.mxu0 0
  %789 = vmatprep.subr.bf16.mxu0 0
  %790 = vmatpush1.bf16.msra.mxu0 0
  %791 = vmatprep.subr.bf16.mxu0 0
  %792 = vmatpush1.bf16.msra.mxu0 0
  %793 = vmatprep.subr.bf16.mxu0 0
  %794 = vmatpush1.bf16.msra.mxu0 0
  %795 = vmatprep.subr.bf16.mxu0 0
  %796 = vmatpush1.bf16.msra.mxu0 0
  %797 = vmatprep.mubr.bf16.mxu0 0
  %798 = vmatmul.mubr.bf16.gmra.mrb[0].mxu0 %v760
  %v799 = vpop.f32.mrb[0].mxu0
  %v800 = vadd.f32 0.0, %v799
  %v801 = vpop.f32.mrb[0].mxu0
  %v802 = vpop.f32.mrb[0].mxu0
  %v803 = vadd.f32 0.0, %v802
  %v804 = vpop.f32.mrb[0].mxu0
  %805 = vmatprep.mubr.bf16.mxu0 0
  %806 = vmatmul.mubr.bf16.gmra.mrb[0].mxu0 %v763
  %v807 = vpop.f32.mrb[0].mxu0
  %v808 = vadd.f32 0.0, %v807
  %v809 = vpop.f32.mrb[0].mxu0
  %v810 = vpop.f32.mrb[0].mxu0
  %v811 = vadd.f32 0.0, %v810
  %v812 = vpop.f32.mrb[0].mxu0
  %813 = vdwg.mxu0
  %v814 = vadd.f32 %v648, %v800
  %v815 = vadd.f32 %v651, %v803
  %v816 = vadd.f32 %v656, %v808
  %v817 = vadd.f32 %v659, %v811
  %s818 = scalar_lea.vmem %s3, 48
  %v819 = vld [vmem:[%s818] sm:$0xf]
  %v820 = vld [vmem:[%s818 + $0x4] sm:$0xf]
  %v821 = vld [vmem:[%s818 + $0x8] sm:$0xf]
  %v822 = vld [vmem:[%s818 + $0xc] sm:$0xf]
  %v827 = vunpack.c.l.b16 %v819
  %v828 = vunpack.c.l.b16 %v820
  %v829 = vunpack.c.l.b16 %v821
  %v830 = vunpack.c.l.b16 %v822
  %v831 = vpack.c.b16 %v828, %v827
  %v832 = vpack.c.b16 %v830, %v829
  %v834 = vsel %vm373, %v831, 0
  %v837 = vsel %vm373, %v832, 0
  %839 = vmatprep.subr.bf16.mxu0 0
  %840 = vmatpush1.bf16.msra.mxu0 %v361
  %841 = vmatprep.subr.bf16.mxu0 0
  %842 = vmatpush1.bf16.msra.mxu0 %v362
  %843 = vmatprep.subr.bf16.mxu0 0
  %844 = vmatpush1.bf16.msra.mxu0 0
  %845 = vmatprep.subr.bf16.mxu0 0
  %846 = vmatpush1.bf16.msra.mxu0 0
  %847 = vmatprep.subr.bf16.mxu0 0
  %848 = vmatpush1.bf16.msra.mxu0 0
  %849 = vmatprep.subr.bf16.mxu0 0
  %850 = vmatpush1.bf16.msra.mxu0 0
  %851 = vmatprep.subr.bf16.mxu0 0
  %852 = vmatpush1.bf16.msra.mxu0 0
  %853 = vmatprep.subr.bf16.mxu0 0
  %854 = vmatpush1.bf16.msra.mxu0 0
  %855 = vmatprep.subr.bf16.mxu0 0
  %856 = vmatpush1.bf16.msra.mxu0 0
  %857 = vmatprep.subr.bf16.mxu0 0
  %858 = vmatpush1.bf16.msra.mxu0 0
  %859 = vmatprep.subr.bf16.mxu0 0
  %860 = vmatpush1.bf16.msra.mxu0 0
  %861 = vmatprep.subr.bf16.mxu0 0
  %862 = vmatpush1.bf16.msra.mxu0 0
  %863 = vmatprep.subr.bf16.mxu0 0
  %864 = vmatpush1.bf16.msra.mxu0 0
  %865 = vmatprep.subr.bf16.mxu0 0
  %866 = vmatpush1.bf16.msra.mxu0 0
  %867 = vmatprep.subr.bf16.mxu0 0
  %868 = vmatpush1.bf16.msra.mxu0 0
  %869 = vmatprep.subr.bf16.mxu0 0
  %870 = vmatpush1.bf16.msra.mxu0 0
  %871 = vmatprep.mubr.bf16.mxu0 0
  %872 = vmatmul.mubr.bf16.gmra.mrb[0].mxu0 %v834
  %v873 = vpop.f32.mrb[0].mxu0
  %v874 = vadd.f32 0.0, %v873
  %v875 = vpop.f32.mrb[0].mxu0
  %v876 = vpop.f32.mrb[0].mxu0
  %v877 = vadd.f32 0.0, %v876
  %v878 = vpop.f32.mrb[0].mxu0
  %879 = vmatprep.mubr.bf16.mxu0 0
  %880 = vmatmul.mubr.bf16.gmra.mrb[0].mxu0 %v837
  %v881 = vpop.f32.mrb[0].mxu0
  %v882 = vadd.f32 0.0, %v881
  %v883 = vpop.f32.mrb[0].mxu0
  %v884 = vpop.f32.mrb[0].mxu0
  %v885 = vadd.f32 0.0, %v884
  %v886 = vpop.f32.mrb[0].mxu0
  %887 = vdwg.mxu0
  %s888 = scalar_lea.vmem %s15, 72
  %v889 = vld [vmem:[%s888] sm:$0xf]
  %v890 = vld [vmem:[%s888 + $0x4] sm:$0xf]
  %v891 = vld [vmem:[%s888 + $0x8] sm:$0xf]
  %v892 = vld [vmem:[%s888 + $0xc] sm:$0xf]
  %v893 = vld [vmem:[%s888 + $0x10] sm:$0xf]
  %v894 = vld [vmem:[%s888 + $0x14] sm:$0xf]
  %v895 = vpack.c.bf16 %v877, %v874
  %v896 = vpack.c.bf16 %v885, %v882
  %v903 = vunpack.c.l.b16 %v889
  %v904 = vunpack.c.l.b16 %v890
  %v905 = vunpack.c.l.b16 %v891
  %v906 = vunpack.c.l.b16 %v892
  %v907 = vunpack.c.l.b16 %v893
  %v908 = vunpack.c.l.b16 %v894
  %v909 = vpack.c.b16 %v904, %v903
  %v910 = vpack.c.b16 %v906, %v905
  %v911 = vpack.c.b16 %v908, %v907
  %v916 = vsel %vm293, %v895, 0
  %v919 = vsel %vm293, %v896, 0
  %921 = vmatprep.subr.bf16.mxu0 0
  %922 = vmatpush1.bf16.msra.mxu0 %v909
  %923 = vmatprep.subr.bf16.mxu0 0
  %924 = vmatpush1.bf16.msra.mxu0 %v910
  %925 = vmatprep.subr.bf16.mxu0 0
  %926 = vmatpush1.bf16.msra.mxu0 %v911
  %927 = vmatprep.subr.bf16.mxu0 0
  %928 = vmatpush1.bf16.msra.mxu0 0
  %929 = vmatprep.subr.bf16.mxu0 0
  %930 = vmatpush1.bf16.msra.mxu0 0
  %931 = vmatprep.subr.bf16.mxu0 0
  %932 = vmatpush1.bf16.msra.mxu0 0
  %933 = vmatprep.subr.bf16.mxu0 0
  %934 = vmatpush1.bf16.msra.mxu0 0
  %935 = vmatprep.subr.bf16.mxu0 0
  %936 = vmatpush1.bf16.msra.mxu0 0
  %937 = vmatprep.subr.bf16.mxu0 0
  %938 = vmatpush1.bf16.msra.mxu0 0
  %939 = vmatprep.subr.bf16.mxu0 0
  %940 = vmatpush1.bf16.msra.mxu0 0
  %941 = vmatprep.subr.bf16.mxu0 0
  %942 = vmatpush1.bf16.msra.mxu0 0
  %943 = vmatprep.subr.bf16.mxu0 0
  %944 = vmatpush1.bf16.msra.mxu0 0
  %945 = vmatprep.subr.bf16.mxu0 0
  %946 = vmatpush1.bf16.msra.mxu0 0
  %947 = vmatprep.subr.bf16.mxu0 0
  %948 = vmatpush1.bf16.msra.mxu0 0
  %949 = vmatprep.subr.bf16.mxu0 0
  %950 = vmatpush1.bf16.msra.mxu0 0
  %951 = vmatprep.subr.bf16.mxu0 0
  %952 = vmatpush1.bf16.msra.mxu0 0
  %953 = vmatprep.mubr.bf16.mxu0 0
  %954 = vmatmul.mubr.bf16.gmra.mrb[0].mxu0 %v916
  %v955 = vpop.f32.mrb[0].mxu0
  %v956 = vadd.f32 0.0, %v955
  %v957 = vpop.f32.mrb[0].mxu0
  %v958 = vpop.f32.mrb[0].mxu0
  %v959 = vadd.f32 0.0, %v958
  %v960 = vpop.f32.mrb[0].mxu0
  %961 = vmatprep.mubr.bf16.mxu0 0
  %962 = vmatmul.mubr.bf16.gmra.mrb[0].mxu0 %v919
  %v963 = vpop.f32.mrb[0].mxu0
  %v964 = vadd.f32 0.0, %v963
  %v965 = vpop.f32.mrb[0].mxu0
  %v966 = vpop.f32.mrb[0].mxu0
  %v967 = vadd.f32 0.0, %v966
  %v968 = vpop.f32.mrb[0].mxu0
  %969 = vdwg.mxu0
  %v970 = vadd.f32 %v814, %v956
  %v971 = vadd.f32 %v815, %v959
  %v972 = vadd.f32 %v816, %v964
  %v973 = vadd.f32 %v817, %v967
  %s974 = scalar_lea.vmem %s3, 64
  %v975 = vld [vmem:[%s974] sm:$0xf]
  %v976 = vld [vmem:[%s974 + $0x4] sm:$0xf]
  %v977 = vld [vmem:[%s974 + $0x8] sm:$0xf]
  %v978 = vld [vmem:[%s974 + $0xc] sm:$0xf]
  %v983 = vunpack.c.l.b16 %v975
  %v984 = vunpack.c.l.b16 %v976
  %v985 = vunpack.c.l.b16 %v977
  %v986 = vunpack.c.l.b16 %v978
  %v987 = vpack.c.b16 %v984, %v983
  %v988 = vpack.c.b16 %v986, %v985
  %v990 = vsel %vm373, %v987, 0
  %v993 = vsel %vm373, %v988, 0
  %995 = vmatprep.subr.bf16.mxu0 0
  %996 = vmatpush1.bf16.msra.mxu0 %v361
  %997 = vmatprep.subr.bf16.mxu0 0
  %998 = vmatpush1.bf16.msra.mxu0 %v362
  %999 = vmatprep.subr.bf16.mxu0 0
  %1000 = vmatpush1.bf16.msra.mxu0 0
  %1001 = vmatprep.subr.bf16.mxu0 0
  %1002 = vmatpush1.bf16.msra.mxu0 0
  %1003 = vmatprep.subr.bf16.mxu0 0
  %1004 = vmatpush1.bf16.msra.mxu0 0
  %1005 = vmatprep.subr.bf16.mxu0 0
  %1006 = vmatpush1.bf16.msra.mxu0 0
  %1007 = vmatprep.subr.bf16.mxu0 0
  %1008 = vmatpush1.bf16.msra.mxu0 0
  %1009 = vmatprep.subr.bf16.mxu0 0
  %1010 = vmatpush1.bf16.msra.mxu0 0
  %1011 = vmatprep.subr.bf16.mxu0 0
  %1012 = vmatpush1.bf16.msra.mxu0 0
  %1013 = vmatprep.subr.bf16.mxu0 0
  %1014 = vmatpush1.bf16.msra.mxu0 0
  %1015 = vmatprep.subr.bf16.mxu0 0
  %1016 = vmatpush1.bf16.msra.mxu0 0
  %1017 = vmatprep.subr.bf16.mxu0 0
  %1018 = vmatpush1.bf16.msra.mxu0 0
  %1019 = vmatprep.subr.bf16.mxu0 0
  %1020 = vmatpush1.bf16.msra.mxu0 0
  %1021 = vmatprep.subr.bf16.mxu0 0
  %1022 = vmatpush1.bf16.msra.mxu0 0
  %1023 = vmatprep.subr.bf16.mxu0 0
  %1024 = vmatpush1.bf16.msra.mxu0 0
  %1025 = vmatprep.subr.bf16.mxu0 0
  %1026 = vmatpush1.bf16.msra.mxu0 0
  %1027 = vmatprep.mubr.bf16.mxu0 0
  %1028 = vmatmul.mubr.bf16.gmra.mrb[0].mxu0 %v990
  %v1029 = vpop.f32.mrb[0].mxu0
  %v1030 = vadd.f32 0.0, %v1029
  %v1031 = vpop.f32.mrb[0].mxu0
  %v1032 = vpop.f32.mrb[0].mxu0
  %v1033 = vadd.f32 0.0, %v1032
  %v1034 = vpop.f32.mrb[0].mxu0
  %1035 = vmatprep.mubr.bf16.mxu0 0
  %1036 = vmatmul.mubr.bf16.gmra.mrb[0].mxu0 %v993
  %v1037 = vpop.f32.mrb[0].mxu0
  %v1038 = vadd.f32 0.0, %v1037
  %v1039 = vpop.f32.mrb[0].mxu0
  %v1040 = vpop.f32.mrb[0].mxu0
  %v1041 = vadd.f32 0.0, %v1040
  %v1042 = vpop.f32.mrb[0].mxu0
  %1043 = vdwg.mxu0
  %s1044 = scalar_lea.vmem %s15, 96
  %v1045 = vld [vmem:[%s1044] sm:$0xf]
  %v1046 = vld [vmem:[%s1044 + $0x4] sm:$0xf]
  %v1047 = vld [vmem:[%s1044 + $0x8] sm:$0xf]
  %v1048 = vld [vmem:[%s1044 + $0xc] sm:$0xf]
  %v1049 = vld [vmem:[%s1044 + $0x10] sm:$0xf]
  %v1050 = vld [vmem:[%s1044 + $0x14] sm:$0xf]
  %v1051 = vpack.c.bf16 %v1033, %v1030
  %v1052 = vpack.c.bf16 %v1041, %v1038
  %v1059 = vunpack.c.l.b16 %v1045
  %v1060 = vunpack.c.l.b16 %v1046
  %v1061 = vunpack.c.l.b16 %v1047
  %v1062 = vunpack.c.l.b16 %v1048
  %v1063 = vunpack.c.l.b16 %v1049
  %v1064 = vunpack.c.l.b16 %v1050
  %v1065 = vpack.c.b16 %v1060, %v1059
  %v1066 = vpack.c.b16 %v1062, %v1061
  %v1067 = vpack.c.b16 %v1064, %v1063
  %v1072 = vsel %vm293, %v1051, 0
  %v1075 = vsel %vm293, %v1052, 0
  %1077 = vmatprep.subr.bf16.mxu0 0
  %1078 = vmatpush1.bf16.msra.mxu0 %v1065
  %1079 = vmatprep.subr.bf16.mxu0 0
  %1080 = vmatpush1.bf16.msra.mxu0 %v1066
  %1081 = vmatprep.subr.bf16.mxu0 0
  %1082 = vmatpush1.bf16.msra.mxu0 %v1067
  %1083 = vmatprep.subr.bf16.mxu0 0
  %1084 = vmatpush1.bf16.msra.mxu0 0
  %1085 = vmatprep.subr.bf16.mxu0 0
  %1086 = vmatpush1.bf16.msra.mxu0 0
  %1087 = vmatprep.subr.bf16.mxu0 0
  %1088 = vmatpush1.bf16.msra.mxu0 0
  %1089 = vmatprep.subr.bf16.mxu0 0
  %1090 = vmatpush1.bf16.msra.mxu0 0
  %1091 = vmatprep.subr.bf16.mxu0 0
  %1092 = vmatpush1.bf16.msra.mxu0 0
  %1093 = vmatprep.subr.bf16.mxu0 0
  %1094 = vmatpush1.bf16.msra.mxu0 0
  %1095 = vmatprep.subr.bf16.mxu0 0
  %1096 = vmatpush1.bf16.msra.mxu0 0
  %1097 = vmatprep.subr.bf16.mxu0 0
  %1098 = vmatpush1.bf16.msra.mxu0 0
  %1099 = vmatprep.subr.bf16.mxu0 0
  %1100 = vmatpush1.bf16.msra.mxu0 0
  %1101 = vmatprep.subr.bf16.mxu0 0
  %1102 = vmatpush1.bf16.msra.mxu0 0
  %1103 = vmatprep.subr.bf16.mxu0 0
  %1104 = vmatpush1.bf16.msra.mxu0 0
  %1105 = vmatprep.subr.bf16.mxu0 0
  %1106 = vmatpush1.bf16.msra.mxu0 0
  %1107 = vmatprep.subr.bf16.mxu0 0
  %1108 = vmatpush1.bf16.msra.mxu0 0
  %1109 = vmatprep.mubr.bf16.mxu0 0
  %1110 = vmatmul.mubr.bf16.gmra.mrb[0].mxu0 %v1072
  %v1111 = vpop.f32.mrb[0].mxu0
  %v1112 = vadd.f32 0.0, %v1111
  %v1113 = vpop.f32.mrb[0].mxu0
  %v1114 = vpop.f32.mrb[0].mxu0
  %v1115 = vadd.f32 0.0, %v1114
  %v1116 = vpop.f32.mrb[0].mxu0
  %1117 = vmatprep.mubr.bf16.mxu0 0
  %1118 = vmatmul.mubr.bf16.gmra.mrb[0].mxu0 %v1075
  %v1119 = vpop.f32.mrb[0].mxu0
  %v1120 = vadd.f32 0.0, %v1119
  %v1121 = vpop.f32.mrb[0].mxu0
  %v1122 = vpop.f32.mrb[0].mxu0
  %v1123 = vadd.f32 0.0, %v1122
  %v1124 = vpop.f32.mrb[0].mxu0
  %1125 = vdwg.mxu0
  %v1126 = vadd.f32 %v970, %v1112
  %v1127 = vadd.f32 %v971, %v1115
  %v1128 = vadd.f32 %v972, %v1120
  %v1129 = vadd.f32 %v973, %v1123
  %s1130 = scalar_lea.vmem %s3, 80
  %v1131 = vld [vmem:[%s1130] sm:$0xf]
  %v1132 = vld [vmem:[%s1130 + $0x4] sm:$0xf]
  %v1133 = vld [vmem:[%s1130 + $0x8] sm:$0xf]
  %v1134 = vld [vmem:[%s1130 + $0xc] sm:$0xf]
  %v1139 = vunpack.c.l.b16 %v1131
  %v1140 = vunpack.c.l.b16 %v1132
  %v1141 = vunpack.c.l.b16 %v1133
  %v1142 = vunpack.c.l.b16 %v1134
  %v1143 = vpack.c.b16 %v1140, %v1139
  %v1144 = vpack.c.b16 %v1142, %v1141
  %v1146 = vsel %vm373, %v1143, 0
  %v1149 = vsel %vm373, %v1144, 0
  %1151 = vmatprep.subr.bf16.mxu0 0
  %1152 = vmatpush1.bf16.msra.mxu0 %v361
  %1153 = vmatprep.subr.bf16.mxu0 0
  %1154 = vmatpush1.bf16.msra.mxu0 %v362
  %1155 = vmatprep.subr.bf16.mxu0 0
  %1156 = vmatpush1.bf16.msra.mxu0 0
  %1157 = vmatprep.subr.bf16.mxu0 0
  %1158 = vmatpush1.bf16.msra.mxu0 0
  %1159 = vmatprep.subr.bf16.mxu0 0
  %1160 = vmatpush1.bf16.msra.mxu0 0
  %1161 = vmatprep.subr.bf16.mxu0 0
  %1162 = vmatpush1.bf16.msra.mxu0 0
  %1163 = vmatprep.subr.bf16.mxu0 0
  %1164 = vmatpush1.bf16.msra.mxu0 0
  %1165 = vmatprep.subr.bf16.mxu0 0
  %1166 = vmatpush1.bf16.msra.mxu0 0
  %1167 = vmatprep.subr.bf16.mxu0 0
  %1168 = vmatpush1.bf16.msra.mxu0 0
  %1169 = vmatprep.subr.bf16.mxu0 0
  %1170 = vmatpush1.bf16.msra.mxu0 0
  %1171 = vmatprep.subr.bf16.mxu0 0
  %1172 = vmatpush1.bf16.msra.mxu0 0
  %1173 = vmatprep.subr.bf16.mxu0 0
  %1174 = vmatpush1.bf16.msra.mxu0 0
  %1175 = vmatprep.subr.bf16.mxu0 0
  %1176 = vmatpush1.bf16.msra.mxu0 0
  %1177 = vmatprep.subr.bf16.mxu0 0
  %1178 = vmatpush1.bf16.msra.mxu0 0
  %1179 = vmatprep.subr.bf16.mxu0 0
  %1180 = vmatpush1.bf16.msra.mxu0 0
  %1181 = vmatprep.subr.bf16.mxu0 0
  %1182 = vmatpush1.bf16.msra.mxu0 0
  %1183 = vmatprep.mubr.bf16.mxu0 0
  %1184 = vmatmul.mubr.bf16.gmra.mrb[0].mxu0 %v1146
  %v1185 = vpop.f32.mrb[0].mxu0
  %v1186 = vadd.f32 0.0, %v1185
  %v1187 = vpop.f32.mrb[0].mxu0
  %v1188 = vpop.f32.mrb[0].mxu0
  %v1189 = vadd.f32 0.0, %v1188
  %v1190 = vpop.f32.mrb[0].mxu0
  %1191 = vmatprep.mubr.bf16.mxu0 0
  %1192 = vmatmul.mubr.bf16.gmra.mrb[0].mxu0 %v1149
  %v1193 = vpop.f32.mrb[0].mxu0
  %v1194 = vadd.f32 0.0, %v1193
  %v1195 = vpop.f32.mrb[0].mxu0
  %v1196 = vpop.f32.mrb[0].mxu0
  %v1197 = vadd.f32 0.0, %v1196
  %v1198 = vpop.f32.mrb[0].mxu0
  %1199 = vdwg.mxu0
  %s1200 = scalar_lea.vmem %s15, 120
  %v1201 = vld [vmem:[%s1200] sm:$0xf]
  %v1202 = vld [vmem:[%s1200 + $0x4] sm:$0xf]
  %v1203 = vld [vmem:[%s1200 + $0x8] sm:$0xf]
  %v1204 = vld [vmem:[%s1200 + $0xc] sm:$0xf]
  %v1205 = vld [vmem:[%s1200 + $0x10] sm:$0xf]
  %v1206 = vld [vmem:[%s1200 + $0x14] sm:$0xf]
  %v1207 = vpack.c.bf16 %v1189, %v1186
  %v1208 = vpack.c.bf16 %v1197, %v1194
  %v1215 = vunpack.c.l.b16 %v1201
  %v1216 = vunpack.c.l.b16 %v1202
  %v1217 = vunpack.c.l.b16 %v1203
  %v1218 = vunpack.c.l.b16 %v1204
  %v1219 = vunpack.c.l.b16 %v1205
  %v1220 = vunpack.c.l.b16 %v1206
  %v1221 = vpack.c.b16 %v1216, %v1215
  %v1222 = vpack.c.b16 %v1218, %v1217
  %v1223 = vpack.c.b16 %v1220, %v1219
  %v1228 = vsel %vm293, %v1207, 0
  %v1231 = vsel %vm293, %v1208, 0
  %1233 = vmatprep.subr.bf16.mxu0 0
  %1234 = vmatpush1.bf16.msra.mxu0 %v1221
  %1235 = vmatprep.subr.bf16.mxu0 0
  %1236 = vmatpush1.bf16.msra.mxu0 %v1222
  %1237 = vmatprep.subr.bf16.mxu0 0
  %1238 = vmatpush1.bf16.msra.mxu0 %v1223
  %1239 = vmatprep.subr.bf16.mxu0 0
  %1240 = vmatpush1.bf16.msra.mxu0 0
  %1241 = vmatprep.subr.bf16.mxu0 0
  %1242 = vmatpush1.bf16.msra.mxu0 0
  %1243 = vmatprep.subr.bf16.mxu0 0
  %1244 = vmatpush1.bf16.msra.mxu0 0
  %1245 = vmatprep.subr.bf16.mxu0 0
  %1246 = vmatpush1.bf16.msra.mxu0 0
  %1247 = vmatprep.subr.bf16.mxu0 0
  %1248 = vmatpush1.bf16.msra.mxu0 0
  %1249 = vmatprep.subr.bf16.mxu0 0
  %1250 = vmatpush1.bf16.msra.mxu0 0
  %1251 = vmatprep.subr.bf16.mxu0 0
  %1252 = vmatpush1.bf16.msra.mxu0 0
  %1253 = vmatprep.subr.bf16.mxu0 0
  %1254 = vmatpush1.bf16.msra.mxu0 0
  %1255 = vmatprep.subr.bf16.mxu0 0
  %1256 = vmatpush1.bf16.msra.mxu0 0
  %1257 = vmatprep.subr.bf16.mxu0 0
  %1258 = vmatpush1.bf16.msra.mxu0 0
  %1259 = vmatprep.subr.bf16.mxu0 0
  %1260 = vmatpush1.bf16.msra.mxu0 0
  %1261 = vmatprep.subr.bf16.mxu0 0
  %1262 = vmatpush1.bf16.msra.mxu0 0
  %1263 = vmatprep.subr.bf16.mxu0 0
  %1264 = vmatpush1.bf16.msra.mxu0 0
  %1265 = vmatprep.mubr.bf16.mxu0 0
  %1266 = vmatmul.mubr.bf16.gmra.mrb[0].mxu0 %v1228
  %v1267 = vpop.f32.mrb[0].mxu0
  %v1268 = vadd.f32 0.0, %v1267
  %v1269 = vpop.f32.mrb[0].mxu0
  %v1270 = vpop.f32.mrb[0].mxu0
  %v1271 = vadd.f32 0.0, %v1270
  %v1272 = vpop.f32.mrb[0].mxu0
  %1273 = vmatprep.mubr.bf16.mxu0 0
  %1274 = vmatmul.mubr.bf16.gmra.mrb[0].mxu0 %v1231
  %v1275 = vpop.f32.mrb[0].mxu0
  %v1276 = vadd.f32 0.0, %v1275
  %v1277 = vpop.f32.mrb[0].mxu0
  %v1278 = vpop.f32.mrb[0].mxu0
  %v1279 = vadd.f32 0.0, %v1278
  %v1280 = vpop.f32.mrb[0].mxu0
  %1281 = vdwg.mxu0
  %v1282 = vadd.f32 %v1126, %v1268
  %v1283 = vadd.f32 %v1127, %v1271
  %v1284 = vadd.f32 %v1128, %v1276
  %v1285 = vadd.f32 %v1129, %v1279
  %s1286 = scalar_lea.vmem %s3, 96
  %v1287 = vld [vmem:[%s1286] sm:$0xf]
  %v1288 = vld [vmem:[%s1286 + $0x4] sm:$0xf]
  %v1289 = vld [vmem:[%s1286 + $0x8] sm:$0xf]
  %v1290 = vld [vmem:[%s1286 + $0xc] sm:$0xf]
  %v1295 = vunpack.c.l.b16 %v1287
  %v1296 = vunpack.c.l.b16 %v1288
  %v1297 = vunpack.c.l.b16 %v1289
  %v1298 = vunpack.c.l.b16 %v1290
  %v1299 = vpack.c.b16 %v1296, %v1295
  %v1300 = vpack.c.b16 %v1298, %v1297
  %v1302 = vsel %vm373, %v1299, 0
  %v1305 = vsel %vm373, %v1300, 0
  %1307 = vmatprep.subr.bf16.mxu0 0
  %1308 = vmatpush1.bf16.msra.mxu0 %v361
  %1309 = vmatprep.subr.bf16.mxu0 0
  %1310 = vmatpush1.bf16.msra.mxu0 %v362
  %1311 = vmatprep.subr.bf16.mxu0 0
  %1312 = vmatpush1.bf16.msra.mxu0 0
  %1313 = vmatprep.subr.bf16.mxu0 0
  %1314 = vmatpush1.bf16.msra.mxu0 0
  %1315 = vmatprep.subr.bf16.mxu0 0
  %1316 = vmatpush1.bf16.msra.mxu0 0
  %1317 = vmatprep.subr.bf16.mxu0 0
  %1318 = vmatpush1.bf16.msra.mxu0 0
  %1319 = vmatprep.subr.bf16.mxu0 0
  %1320 = vmatpush1.bf16.msra.mxu0 0
  %1321 = vmatprep.subr.bf16.mxu0 0
  %1322 = vmatpush1.bf16.msra.mxu0 0
  %1323 = vmatprep.subr.bf16.mxu0 0
  %1324 = vmatpush1.bf16.msra.mxu0 0
  %1325 = vmatprep.subr.bf16.mxu0 0
  %1326 = vmatpush1.bf16.msra.mxu0 0
  %1327 = vmatprep.subr.bf16.mxu0 0
  %1328 = vmatpush1.bf16.msra.mxu0 0
  %1329 = vmatprep.subr.bf16.mxu0 0
  %1330 = vmatpush1.bf16.msra.mxu0 0
  %1331 = vmatprep.subr.bf16.mxu0 0
  %1332 = vmatpush1.bf16.msra.mxu0 0
  %1333 = vmatprep.subr.bf16.mxu0 0
  %1334 = vmatpush1.bf16.msra.mxu0 0
  %1335 = vmatprep.subr.bf16.mxu0 0
  %1336 = vmatpush1.bf16.msra.mxu0 0
  %1337 = vmatprep.subr.bf16.mxu0 0
  %1338 = vmatpush1.bf16.msra.mxu0 0
  %1339 = vmatprep.mubr.bf16.mxu0 0
  %1340 = vmatmul.mubr.bf16.gmra.mrb[0].mxu0 %v1302
  %v1341 = vpop.f32.mrb[0].mxu0
  %v1342 = vadd.f32 0.0, %v1341
  %v1343 = vpop.f32.mrb[0].mxu0
  %v1344 = vpop.f32.mrb[0].mxu0
  %v1345 = vadd.f32 0.0, %v1344
  %v1346 = vpop.f32.mrb[0].mxu0
  %1347 = vmatprep.mubr.bf16.mxu0 0
  %1348 = vmatmul.mubr.bf16.gmra.mrb[0].mxu0 %v1305
  %v1349 = vpop.f32.mrb[0].mxu0
  %v1350 = vadd.f32 0.0, %v1349
  %v1351 = vpop.f32.mrb[0].mxu0
  %v1352 = vpop.f32.mrb[0].mxu0
  %v1353 = vadd.f32 0.0, %v1352
  %v1354 = vpop.f32.mrb[0].mxu0
  %1355 = vdwg.mxu0
  %s1356 = scalar_lea.vmem %s15, 144
  %v1357 = vld [vmem:[%s1356] sm:$0xf]
  %v1358 = vld [vmem:[%s1356 + $0x4] sm:$0xf]
  %v1359 = vld [vmem:[%s1356 + $0x8] sm:$0xf]
  %v1360 = vld [vmem:[%s1356 + $0xc] sm:$0xf]
  %v1361 = vld [vmem:[%s1356 + $0x10] sm:$0xf]
  %v1362 = vld [vmem:[%s1356 + $0x14] sm:$0xf]
  %v1363 = vpack.c.bf16 %v1345, %v1342
  %v1364 = vpack.c.bf16 %v1353, %v1350
  %v1371 = vunpack.c.l.b16 %v1357
  %v1372 = vunpack.c.l.b16 %v1358
  %v1373 = vunpack.c.l.b16 %v1359
  %v1374 = vunpack.c.l.b16 %v1360
  %v1375 = vunpack.c.l.b16 %v1361
  %v1376 = vunpack.c.l.b16 %v1362
  %v1377 = vpack.c.b16 %v1372, %v1371
  %v1378 = vpack.c.b16 %v1374, %v1373
  %v1379 = vpack.c.b16 %v1376, %v1375
  %v1384 = vsel %vm293, %v1363, 0
  %v1387 = vsel %vm293, %v1364, 0
  %1389 = vmatprep.subr.bf16.mxu0 0
  %1390 = vmatpush1.bf16.msra.mxu0 %v1377
  %1391 = vmatprep.subr.bf16.mxu0 0
  %1392 = vmatpush1.bf16.msra.mxu0 %v1378
  %1393 = vmatprep.subr.bf16.mxu0 0
  %1394 = vmatpush1.bf16.msra.mxu0 %v1379
  %1395 = vmatprep.subr.bf16.mxu0 0
  %1396 = vmatpush1.bf16.msra.mxu0 0
  %1397 = vmatprep.subr.bf16.mxu0 0
  %1398 = vmatpush1.bf16.msra.mxu0 0
  %1399 = vmatprep.subr.bf16.mxu0 0
  %1400 = vmatpush1.bf16.msra.mxu0 0
  %1401 = vmatprep.subr.bf16.mxu0 0
  %1402 = vmatpush1.bf16.msra.mxu0 0
  %1403 = vmatprep.subr.bf16.mxu0 0
  %1404 = vmatpush1.bf16.msra.mxu0 0
  %1405 = vmatprep.subr.bf16.mxu0 0
  %1406 = vmatpush1.bf16.msra.mxu0 0
  %1407 = vmatprep.subr.bf16.mxu0 0
  %1408 = vmatpush1.bf16.msra.mxu0 0
  %1409 = vmatprep.subr.bf16.mxu0 0
  %1410 = vmatpush1.bf16.msra.mxu0 0
  %1411 = vmatprep.subr.bf16.mxu0 0
  %1412 = vmatpush1.bf16.msra.mxu0 0
  %1413 = vmatprep.subr.bf16.mxu0 0
  %1414 = vmatpush1.bf16.msra.mxu0 0
  %1415 = vmatprep.subr.bf16.mxu0 0
  %1416 = vmatpush1.bf16.msra.mxu0 0
  %1417 = vmatprep.subr.bf16.mxu0 0
  %1418 = vmatpush1.bf16.msra.mxu0 0
  %1419 = vmatprep.subr.bf16.mxu0 0
  %1420 = vmatpush1.bf16.msra.mxu0 0
  %1421 = vmatprep.mubr.bf16.mxu0 0
  %1422 = vmatmul.mubr.bf16.gmra.mrb[0].mxu0 %v1384
  %v1423 = vpop.f32.mrb[0].mxu0
  %v1424 = vadd.f32 0.0, %v1423
  %v1425 = vpop.f32.mrb[0].mxu0
  %v1426 = vpop.f32.mrb[0].mxu0
  %v1427 = vadd.f32 0.0, %v1426
  %v1428 = vpop.f32.mrb[0].mxu0
  %1429 = vmatprep.mubr.bf16.mxu0 0
  %1430 = vmatmul.mubr.bf16.gmra.mrb[0].mxu0 %v1387
  %v1431 = vpop.f32.mrb[0].mxu0
  %v1432 = vadd.f32 0.0, %v1431
  %v1433 = vpop.f32.mrb[0].mxu0
  %v1434 = vpop.f32.mrb[0].mxu0
  %v1435 = vadd.f32 0.0, %v1434
  %v1436 = vpop.f32.mrb[0].mxu0
  %1437 = vdwg.mxu0
  %v1438 = vadd.f32 %v1282, %v1424
  %v1439 = vadd.f32 %v1283, %v1427
  %v1440 = vadd.f32 %v1284, %v1432
  %v1441 = vadd.f32 %v1285, %v1435
  %s1442 = scalar_lea.vmem %s3, 112
  %v1443 = vld [vmem:[%s1442] sm:$0xf]
  %v1444 = vld [vmem:[%s1442 + $0x4] sm:$0xf]
  %v1445 = vld [vmem:[%s1442 + $0x8] sm:$0xf]
  %v1446 = vld [vmem:[%s1442 + $0xc] sm:$0xf]
  %v1451 = vunpack.c.l.b16 %v1443
  %v1452 = vunpack.c.l.b16 %v1444
  %v1453 = vunpack.c.l.b16 %v1445
  %v1454 = vunpack.c.l.b16 %v1446
  %v1455 = vpack.c.b16 %v1452, %v1451
  %v1456 = vpack.c.b16 %v1454, %v1453
  %v1458 = vsel %vm373, %v1455, 0
  %v1461 = vsel %vm373, %v1456, 0
  %1463 = vmatprep.subr.bf16.mxu0 0
  %1464 = vmatpush1.bf16.msra.mxu0 %v361
  %1465 = vmatprep.subr.bf16.mxu0 0
  %1466 = vmatpush1.bf16.msra.mxu0 %v362
  %1467 = vmatprep.subr.bf16.mxu0 0
  %1468 = vmatpush1.bf16.msra.mxu0 0
  %1469 = vmatprep.subr.bf16.mxu0 0
  %1470 = vmatpush1.bf16.msra.mxu0 0
  %1471 = vmatprep.subr.bf16.mxu0 0
  %1472 = vmatpush1.bf16.msra.mxu0 0
  %1473 = vmatprep.subr.bf16.mxu0 0
  %1474 = vmatpush1.bf16.msra.mxu0 0
  %1475 = vmatprep.subr.bf16.mxu0 0
  %1476 = vmatpush1.bf16.msra.mxu0 0
  %1477 = vmatprep.subr.bf16.mxu0 0
  %1478 = vmatpush1.bf16.msra.mxu0 0
  %1479 = vmatprep.subr.bf16.mxu0 0
  %1480 = vmatpush1.bf16.msra.mxu0 0
  %1481 = vmatprep.subr.bf16.mxu0 0
  %1482 = vmatpush1.bf16.msra.mxu0 0
  %1483 = vmatprep.subr.bf16.mxu0 0
  %1484 = vmatpush1.bf16.msra.mxu0 0
  %1485 = vmatprep.subr.bf16.mxu0 0
  %1486 = vmatpush1.bf16.msra.mxu0 0
  %1487 = vmatprep.subr.bf16.mxu0 0
  %1488 = vmatpush1.bf16.msra.mxu0 0
  %1489 = vmatprep.subr.bf16.mxu0 0
  %1490 = vmatpush1.bf16.msra.mxu0 0
  %1491 = vmatprep.subr.bf16.mxu0 0
  %1492 = vmatpush1.bf16.msra.mxu0 0
  %1493 = vmatprep.subr.bf16.mxu0 0
  %1494 = vmatpush1.bf16.msra.mxu0 0
  %1495 = vmatprep.mubr.bf16.mxu0 0
  %1496 = vmatmul.mubr.bf16.gmra.mrb[0].mxu0 %v1458
  %v1497 = vpop.f32.mrb[0].mxu0
  %v1498 = vadd.f32 0.0, %v1497
  %v1499 = vpop.f32.mrb[0].mxu0
  %v1500 = vpop.f32.mrb[0].mxu0
  %v1501 = vadd.f32 0.0, %v1500
  %v1502 = vpop.f32.mrb[0].mxu0
  %1503 = vmatprep.mubr.bf16.mxu0 0
  %1504 = vmatmul.mubr.bf16.gmra.mrb[0].mxu0 %v1461
  %v1505 = vpop.f32.mrb[0].mxu0
  %v1506 = vadd.f32 0.0, %v1505
  %v1507 = vpop.f32.mrb[0].mxu0
  %v1508 = vpop.f32.mrb[0].mxu0
  %v1509 = vadd.f32 0.0, %v1508
  %v1510 = vpop.f32.mrb[0].mxu0
  %1511 = vdwg.mxu0
  %s1512 = scalar_lea.vmem %s15, 168
  %v1513 = vld [vmem:[%s1512] sm:$0xf]
  %v1514 = vld [vmem:[%s1512 + $0x4] sm:$0xf]
  %v1515 = vld [vmem:[%s1512 + $0x8] sm:$0xf]
  %v1516 = vld [vmem:[%s1512 + $0xc] sm:$0xf]
  %v1517 = vld [vmem:[%s1512 + $0x10] sm:$0xf]
  %v1518 = vld [vmem:[%s1512 + $0x14] sm:$0xf]
  %v1519 = vpack.c.bf16 %v1501, %v1498
  %v1520 = vpack.c.bf16 %v1509, %v1506
  %v1527 = vunpack.c.l.b16 %v1513
  %v1528 = vunpack.c.l.b16 %v1514
  %v1529 = vunpack.c.l.b16 %v1515
  %v1530 = vunpack.c.l.b16 %v1516
  %v1531 = vunpack.c.l.b16 %v1517
  %v1532 = vunpack.c.l.b16 %v1518
  %v1533 = vpack.c.b16 %v1528, %v1527
  %v1534 = vpack.c.b16 %v1530, %v1529
  %v1535 = vpack.c.b16 %v1532, %v1531
  %v1540 = vsel %vm293, %v1519, 0
  %v1543 = vsel %vm293, %v1520, 0
  %1545 = vmatprep.subr.bf16.mxu0 0
  %1546 = vmatpush1.bf16.msra.mxu0 %v1533
  %1547 = vmatprep.subr.bf16.mxu0 0
  %1548 = vmatpush1.bf16.msra.mxu0 %v1534
  %1549 = vmatprep.subr.bf16.mxu0 0
  %1550 = vmatpush1.bf16.msra.mxu0 %v1535
  %1551 = vmatprep.subr.bf16.mxu0 0
  %1552 = vmatpush1.bf16.msra.mxu0 0
  %1553 = vmatprep.subr.bf16.mxu0 0
  %1554 = vmatpush1.bf16.msra.mxu0 0
  %1555 = vmatprep.subr.bf16.mxu0 0
  %1556 = vmatpush1.bf16.msra.mxu0 0
  %1557 = vmatprep.subr.bf16.mxu0 0
  %1558 = vmatpush1.bf16.msra.mxu0 0
  %1559 = vmatprep.subr.bf16.mxu0 0
  %1560 = vmatpush1.bf16.msra.mxu0 0
  %1561 = vmatprep.subr.bf16.mxu0 0
  %1562 = vmatpush1.bf16.msra.mxu0 0
  %1563 = vmatprep.subr.bf16.mxu0 0
  %1564 = vmatpush1.bf16.msra.mxu0 0
  %1565 = vmatprep.subr.bf16.mxu0 0
  %1566 = vmatpush1.bf16.msra.mxu0 0
  %1567 = vmatprep.subr.bf16.mxu0 0
  %1568 = vmatpush1.bf16.msra.mxu0 0
  %1569 = vmatprep.subr.bf16.mxu0 0
  %1570 = vmatpush1.bf16.msra.mxu0 0
  %1571 = vmatprep.subr.bf16.mxu0 0
  %1572 = vmatpush1.bf16.msra.mxu0 0
  %1573 = vmatprep.subr.bf16.mxu0 0
  %1574 = vmatpush1.bf16.msra.mxu0 0
  %1575 = vmatprep.subr.bf16.mxu0 0
  %1576 = vmatpush1.bf16.msra.mxu0 0
  %1577 = vmatprep.mubr.bf16.mxu0 0
  %1578 = vmatmul.mubr.bf16.gmra.mrb[0].mxu0 %v1540
  %v1579 = vpop.f32.mrb[0].mxu0
  %v1580 = vadd.f32 0.0, %v1579
  %v1581 = vpop.f32.mrb[0].mxu0
  %v1582 = vpop.f32.mrb[0].mxu0
  %v1583 = vadd.f32 0.0, %v1582
  %v1584 = vpop.f32.mrb[0].mxu0
  %1585 = vmatprep.mubr.bf16.mxu0 0
  %1586 = vmatmul.mubr.bf16.gmra.mrb[0].mxu0 %v1543
  %v1587 = vpop.f32.mrb[0].mxu0
  %v1588 = vadd.f32 0.0, %v1587
  %v1589 = vpop.f32.mrb[0].mxu0
  %v1590 = vpop.f32.mrb[0].mxu0
  %v1591 = vadd.f32 0.0, %v1590
  %v1592 = vpop.f32.mrb[0].mxu0
  %1593 = vdwg.mxu0
  %v1594 = vadd.f32 %v1438, %v1580
  %v1595 = vadd.f32 %v1439, %v1583
  %v1596 = vadd.f32 %v1440, %v1588
  %v1597 = vadd.f32 %v1441, %v1591
  %s1598 = scalar_lea.vmem %s3, 128
  %v1599 = vld [vmem:[%s1598] sm:$0xf]
  %v1600 = vld [vmem:[%s1598 + $0x4] sm:$0xf]
  %v1601 = vld [vmem:[%s1598 + $0x8] sm:$0xf]
  %v1602 = vld [vmem:[%s1598 + $0xc] sm:$0xf]
  %v1607 = vunpack.c.l.b16 %v1599
  %v1608 = vunpack.c.l.b16 %v1600
  %v1609 = vunpack.c.l.b16 %v1601
  %v1610 = vunpack.c.l.b16 %v1602
  %v1611 = vpack.c.b16 %v1608, %v1607
  %v1612 = vpack.c.b16 %v1610, %v1609
  %v1614 = vsel %vm373, %v1611, 0
  %v1617 = vsel %vm373, %v1612, 0
  %1619 = vmatprep.subr.bf16.mxu0 0
  %1620 = vmatpush1.bf16.msra.mxu0 %v361
  %1621 = vmatprep.subr.bf16.mxu0 0
  %1622 = vmatpush1.bf16.msra.mxu0 %v362
  %1623 = vmatprep.subr.bf16.mxu0 0
  %1624 = vmatpush1.bf16.msra.mxu0 0
  %1625 = vmatprep.subr.bf16.mxu0 0
  %1626 = vmatpush1.bf16.msra.mxu0 0
  %1627 = vmatprep.subr.bf16.mxu0 0
  %1628 = vmatpush1.bf16.msra.mxu0 0
  %1629 = vmatprep.subr.bf16.mxu0 0
  %1630 = vmatpush1.bf16.msra.mxu0 0
  %1631 = vmatprep.subr.bf16.mxu0 0
  %1632 = vmatpush1.bf16.msra.mxu0 0
  %1633 = vmatprep.subr.bf16.mxu0 0
  %1634 = vmatpush1.bf16.msra.mxu0 0
  %1635 = vmatprep.subr.bf16.mxu0 0
  %1636 = vmatpush1.bf16.msra.mxu0 0
  %1637 = vmatprep.subr.bf16.mxu0 0
  %1638 = vmatpush1.bf16.msra.mxu0 0
  %1639 = vmatprep.subr.bf16.mxu0 0
  %1640 = vmatpush1.bf16.msra.mxu0 0
  %1641 = vmatprep.subr.bf16.mxu0 0
  %1642 = vmatpush1.bf16.msra.mxu0 0
  %1643 = vmatprep.subr.bf16.mxu0 0
  %1644 = vmatpush1.bf16.msra.mxu0 0
  %1645 = vmatprep.subr.bf16.mxu0 0
  %1646 = vmatpush1.bf16.msra.mxu0 0
  %1647 = vmatprep.subr.bf16.mxu0 0
  %1648 = vmatpush1.bf16.msra.mxu0 0
  %1649 = vmatprep.subr.bf16.mxu0 0
  %1650 = vmatpush1.bf16.msra.mxu0 0
  %1651 = vmatprep.mubr.bf16.mxu0 0
  %1652 = vmatmul.mubr.bf16.gmra.mrb[0].mxu0 %v1614
  %v1653 = vpop.f32.mrb[0].mxu0
  %v1654 = vadd.f32 0.0, %v1653
  %v1655 = vpop.f32.mrb[0].mxu0
  %v1656 = vpop.f32.mrb[0].mxu0
  %v1657 = vadd.f32 0.0, %v1656
  %v1658 = vpop.f32.mrb[0].mxu0
  %1659 = vmatprep.mubr.bf16.mxu0 0
  %1660 = vmatmul.mubr.bf16.gmra.mrb[0].mxu0 %v1617
  %v1661 = vpop.f32.mrb[0].mxu0
  %v1662 = vadd.f32 0.0, %v1661
  %v1663 = vpop.f32.mrb[0].mxu0
  %v1664 = vpop.f32.mrb[0].mxu0
  %v1665 = vadd.f32 0.0, %v1664
  %v1666 = vpop.f32.mrb[0].mxu0
  %1667 = vdwg.mxu0
  %s1668 = scalar_lea.vmem %s15, 192
  %v1669 = vld [vmem:[%s1668] sm:$0xf]
  %v1670 = vld [vmem:[%s1668 + $0x4] sm:$0xf]
  %v1671 = vld [vmem:[%s1668 + $0x8] sm:$0xf]
  %v1672 = vld [vmem:[%s1668 + $0xc] sm:$0xf]
  %v1673 = vld [vmem:[%s1668 + $0x10] sm:$0xf]
  %v1674 = vld [vmem:[%s1668 + $0x14] sm:$0xf]
  %v1675 = vpack.c.bf16 %v1657, %v1654
  %v1676 = vpack.c.bf16 %v1665, %v1662
  %v1683 = vunpack.c.l.b16 %v1669
  %v1684 = vunpack.c.l.b16 %v1670
  %v1685 = vunpack.c.l.b16 %v1671
  %v1686 = vunpack.c.l.b16 %v1672
  %v1687 = vunpack.c.l.b16 %v1673
  %v1688 = vunpack.c.l.b16 %v1674
  %v1689 = vpack.c.b16 %v1684, %v1683
  %v1690 = vpack.c.b16 %v1686, %v1685
  %v1691 = vpack.c.b16 %v1688, %v1687
  %v1696 = vsel %vm293, %v1675, 0
  %v1699 = vsel %vm293, %v1676, 0
  %1701 = vmatprep.subr.bf16.mxu0 0
  %1702 = vmatpush1.bf16.msra.mxu0 %v1689
  %1703 = vmatprep.subr.bf16.mxu0 0
  %1704 = vmatpush1.bf16.msra.mxu0 %v1690
  %1705 = vmatprep.subr.bf16.mxu0 0
  %1706 = vmatpush1.bf16.msra.mxu0 %v1691
  %1707 = vmatprep.subr.bf16.mxu0 0
  %1708 = vmatpush1.bf16.msra.mxu0 0
  %1709 = vmatprep.subr.bf16.mxu0 0
  %1710 = vmatpush1.bf16.msra.mxu0 0
  %1711 = vmatprep.subr.bf16.mxu0 0
  %1712 = vmatpush1.bf16.msra.mxu0 0
  %1713 = vmatprep.subr.bf16.mxu0 0
  %1714 = vmatpush1.bf16.msra.mxu0 0
  %1715 = vmatprep.subr.bf16.mxu0 0
  %1716 = vmatpush1.bf16.msra.mxu0 0
  %1717 = vmatprep.subr.bf16.mxu0 0
  %1718 = vmatpush1.bf16.msra.mxu0 0
  %1719 = vmatprep.subr.bf16.mxu0 0
  %1720 = vmatpush1.bf16.msra.mxu0 0
  %1721 = vmatprep.subr.bf16.mxu0 0
  %1722 = vmatpush1.bf16.msra.mxu0 0
  %1723 = vmatprep.subr.bf16.mxu0 0
  %1724 = vmatpush1.bf16.msra.mxu0 0
  %1725 = vmatprep.subr.bf16.mxu0 0
  %1726 = vmatpush1.bf16.msra.mxu0 0
  %1727 = vmatprep.subr.bf16.mxu0 0
  %1728 = vmatpush1.bf16.msra.mxu0 0
  %1729 = vmatprep.subr.bf16.mxu0 0
  %1730 = vmatpush1.bf16.msra.mxu0 0
  %1731 = vmatprep.subr.bf16.mxu0 0
  %1732 = vmatpush1.bf16.msra.mxu0 0
  %1733 = vmatprep.mubr.bf16.mxu0 0
  %1734 = vmatmul.mubr.bf16.gmra.mrb[0].mxu0 %v1696
  %v1735 = vpop.f32.mrb[0].mxu0
  %v1736 = vadd.f32 0.0, %v1735
  %v1737 = vpop.f32.mrb[0].mxu0
  %v1738 = vpop.f32.mrb[0].mxu0
  %v1739 = vadd.f32 0.0, %v1738
  %v1740 = vpop.f32.mrb[0].mxu0
  %1741 = vmatprep.mubr.bf16.mxu0 0
  %1742 = vmatmul.mubr.bf16.gmra.mrb[0].mxu0 %v1699
  %v1743 = vpop.f32.mrb[0].mxu0
  %v1744 = vadd.f32 0.0, %v1743
  %v1745 = vpop.f32.mrb[0].mxu0
  %v1746 = vpop.f32.mrb[0].mxu0
  %v1747 = vadd.f32 0.0, %v1746
  %v1748 = vpop.f32.mrb[0].mxu0
  %1749 = vdwg.mxu0
  %v1750 = vadd.f32 %v1594, %v1736
  %v1751 = vadd.f32 %v1595, %v1739
  %v1752 = vadd.f32 %v1596, %v1744
  %v1753 = vadd.f32 %v1597, %v1747
  %v1754 = vld [vmem:[%s17] sm:$0x1]
  %v1755 = vld [vmem:[%s19] sm:$0x1]
  %v1756 = vmul.f32 %v1754, %v176
  %v1758 = vlaneseq
  %v1759 = vshrl.u32 %v1758, 7
  %v1760 = vsub.s32 0, %v1759
  %v1761 = vrot.slane %v1756, %v1760
  %v1763 = vmul.f32 %v153, %v1761
  %v1764 = vmul.f32 %v154, %v1761
  %v1765 = vmul.f32 %v155, %v1761
  %v1766 = vmul.f32 %v156, %v1761
  %v1768 = vlaneseq
  %v1769 = vshrl.u32 %v1768, 7
  %v1770 = vsub.s32 0, %v1769
  %v1771 = vrot.slane %v1755, %v1770
  %v1773 = vadd.f32 %v1763, %v1771
  %v1774 = vadd.f32 %v1764, %v1771
  %v1775 = vadd.f32 %v1765, %v1771
  %v1776 = vadd.f32 %v1766, %v1771
  %v1777 = vmax.f32 %v1773, 0.0
  %v1778 = vmax.f32 %v1774, 0.0
  %v1779 = vmax.f32 %v1775, 0.0
  %v1780 = vmax.f32 %v1776, 0.0
  %v1781 = vld [vmem:[%s21] sm:$0xf]
  %v1782 = vld [vmem:[%s21 + $0x4] sm:$0xf]
  %v1783 = vld [vmem:[%s21 + $0x8] sm:$0xf]
  %v1784 = vld [vmem:[%s21 + $0xc] sm:$0xf]
  %v1785 = vld [vmem:[%s21 + $0x10] sm:$0xf]
  %v1786 = vld [vmem:[%s21 + $0x14] sm:$0xf]
  %v1787 = vld [vmem:[%s21 + $0x18] sm:$0xf]
  %v1788 = vld [vmem:[%s21 + $0x1c] sm:$0xf]
  %v1789 = vpack.c.bf16 %v1778, %v1777
  %v1790 = vpack.c.bf16 %v1780, %v1779
  %v1791 = vld [vmem:[%s23] sm:$0x1]
  %v1792 = vld [vmem:[%s25] sm:$0x1]
  %vm1793 = vcmask 97280
  %v1794 = vsel %vm1793, %v1750, 0.0
  %v1795 = vsel %vm1793, %v1751, 0.0
  %v1796 = vadd.f32 %v1794, %v1795
  %v1797 = vsel %vm1793, %v1752, 0.0
  %v1798 = vadd.f32 %v1796, %v1797
  %v1799 = vsel %vm1793, %v1753, 0.0
  %v1800 = vadd.f32 %v1798, %v1799
  %v1801 = vrot.slane %v1800, 4
  %v1802 = vadd.f32 %v1800, %v1801
  %v1803 = vrot.slane %v1802, 2
  %v1804 = vadd.f32 %v1802, %v1803
  %v1805 = vrot.slane %v1804, 1
  %v1806 = vadd.f32 %v1804, %v1805
  %v1807 = vmul.f32 %v1806, %v151
  %v1808 = vsub.f32 %v1750, %v1807
  %v1809 = vsub.f32 %v1751, %v1807
  %v1810 = vsub.f32 %v1752, %v1807
  %v1811 = vsub.f32 %v1753, %v1807
  %v1812 = vmul.f32 %v1808, %v1808
  %v1813 = vmul.f32 %v1809, %v1809
  %v1814 = vmul.f32 %v1810, %v1810
  %v1815 = vmul.f32 %v1811, %v1811
  %v1816 = vsel %vm1793, %v1812, 0.0
  %v1817 = vsel %vm1793, %v1813, 0.0
  %v1818 = vadd.f32 %v1816, %v1817
  %v1819 = vsel %vm1793, %v1814, 0.0
  %v1820 = vadd.f32 %v1818, %v1819
  %v1821 = vsel %vm1793, %v1815, 0.0
  %v1822 = vadd.f32 %v1820, %v1821
  %v1823 = vrot.slane %v1822, 4
  %v1824 = vadd.f32 %v1822, %v1823
  %v1825 = vrot.slane %v1824, 2
  %v1826 = vadd.f32 %v1824, %v1825
  %v1827 = vrot.slane %v1826, 1
  %v1828 = vadd.f32 %v1826, %v1827
  %v1829 = vmul.f32 %v1828, %v151
  %v1830 = vadd.f32 %v1829, 1e-05
  %v1831 = vrsqrt.pop %v1830
  %v1832 = vmul.f32 %v1791, %v1831
  %v1834 = vlaneseq
  %v1835 = vshrl.u32 %v1834, 7
  %v1836 = vsub.s32 0, %v1835
  %v1837 = vrot.slane %v1832, %v1836
  %v1839 = vmul.f32 %v1808, %v1837
  %v1840 = vmul.f32 %v1809, %v1837
  %v1841 = vmul.f32 %v1810, %v1837
  %v1842 = vmul.f32 %v1811, %v1837
  %v1844 = vlaneseq
  %v1845 = vshrl.u32 %v1844, 7
  %v1846 = vsub.s32 0, %v1845
  %v1847 = vrot.slane %v1792, %v1846
  %v1849 = vadd.f32 %v1839, %v1847
  %v1850 = vadd.f32 %v1840, %v1847
  %v1851 = vadd.f32 %v1841, %v1847
  %v1852 = vadd.f32 %v1842, %v1847
  %v1853 = vmax.f32 %v1849, 0.0
  %v1854 = vmax.f32 %v1850, 0.0
  %v1855 = vmax.f32 %v1851, 0.0
  %v1856 = vmax.f32 %v1852, 0.0
  %v1857 = vld [vmem:[%s27] sm:$0xf]
  %v1858 = vld [vmem:[%s27 + $0x4] sm:$0x3]
  %v1859 = vpack.c.bf16 %v1854, %v1853
  %v1860 = vpack.c.bf16 %v1856, %v1855
  %v1863 = vunpack.c.l.b16 %v1857
  %v1864 = vunpack.c.l.b16 %v1858
  %v1865 = vpack.c.b16 %v1864, %v1863
  %v1867 = vsel %vm1793, %v1859, 0
  %v1870 = vsel %vm1793, %v1860, 0
  %vm1872 = vcmask 1045504
  %v1874 = vsel %vm1872, %v1865, 0
  %1876 = vmatprep.subr.bf16.mxu0 0
  %1877 = vmatpush1.bf16.msra.mxu0 %v1874
  %1878 = vmatprep.subr.bf16.mxu0 0
  %1879 = vmatpush1.bf16.msra.mxu0 0
  %1880 = vmatprep.subr.bf16.mxu0 0
  %1881 = vmatpush1.bf16.msra.mxu0 0
  %1882 = vmatprep.subr.bf16.mxu0 0
  %1883 = vmatpush1.bf16.msra.mxu0 0
  %1884 = vmatprep.subr.bf16.mxu0 0
  %1885 = vmatpush1.bf16.msra.mxu0 0
  %1886 = vmatprep.subr.bf16.mxu0 0
  %1887 = vmatpush1.bf16.msra.mxu0 0
  %1888 = vmatprep.subr.bf16.mxu0 0
  %1889 = vmatpush1.bf16.msra.mxu0 0
  %1890 = vmatprep.subr.bf16.mxu0 0
  %1891 = vmatpush1.bf16.msra.mxu0 0
  %1892 = vmatprep.subr.bf16.mxu0 0
  %1893 = vmatpush1.bf16.msra.mxu0 0
  %1894 = vmatprep.subr.bf16.mxu0 0
  %1895 = vmatpush1.bf16.msra.mxu0 0
  %1896 = vmatprep.subr.bf16.mxu0 0
  %1897 = vmatpush1.bf16.msra.mxu0 0
  %1898 = vmatprep.subr.bf16.mxu0 0
  %1899 = vmatpush1.bf16.msra.mxu0 0
  %1900 = vmatprep.subr.bf16.mxu0 0
  %1901 = vmatpush1.bf16.msra.mxu0 0
  %1902 = vmatprep.subr.bf16.mxu0 0
  %1903 = vmatpush1.bf16.msra.mxu0 0
  %1904 = vmatprep.subr.bf16.mxu0 0
  %1905 = vmatpush1.bf16.msra.mxu0 0
  %1906 = vmatprep.subr.bf16.mxu0 0
  %1907 = vmatpush1.bf16.msra.mxu0 0
  %1908 = vmatprep.mubr.bf16.mxu0 0
  %1909 = vmatmul.mubr.bf16.gmra.mrb[0].mxu0 %v1867
  %v1910 = vpop.f32.mrb[0].mxu0
  %v1911 = vadd.f32 0.0, %v1910
  %v1912 = vpop.f32.mrb[0].mxu0
  %v1913 = vpop.f32.mrb[0].mxu0
  %v1914 = vadd.f32 0.0, %v1913
  %v1915 = vpop.f32.mrb[0].mxu0
  %1916 = vmatprep.mubr.bf16.mxu0 0
  %1917 = vmatmul.mubr.bf16.gmra.mrb[0].mxu0 %v1870
  %v1918 = vpop.f32.mrb[0].mxu0
  %v1919 = vadd.f32 0.0, %v1918
  %v1920 = vpop.f32.mrb[0].mxu0
  %v1921 = vpop.f32.mrb[0].mxu0
  %v1922 = vadd.f32 0.0, %v1921
  %v1923 = vpop.f32.mrb[0].mxu0
  %1924 = vdwg.mxu0
  %v1933 = vunpack.c.l.b16 %v1781
  %v1934 = vunpack.c.l.b16 %v1782
  %v1935 = vunpack.c.l.b16 %v1783
  %v1936 = vunpack.c.l.b16 %v1784
  %v1937 = vunpack.c.l.b16 %v1785
  %v1938 = vunpack.c.l.b16 %v1786
  %v1939 = vunpack.c.l.b16 %v1787
  %v1940 = vunpack.c.l.b16 %v1788
  %v1941 = vpack.c.b16 %v1934, %v1933
  %v1942 = vpack.c.b16 %v1936, %v1935
  %v1943 = vpack.c.b16 %v1938, %v1937
  %v1944 = vpack.c.b16 %v1940, %v1939
  %v1950 = vsel %vm137, %v1789, 0
  %v1953 = vsel %vm137, %v1790, 0
  %1955 = vmatprep.subr.bf16.mxu0 0
  %1956 = vmatpush1.bf16.msra.mxu0 %v1941
  %1957 = vmatprep.subr.bf16.mxu0 0
  %1958 = vmatpush1.bf16.msra.mxu0 %v1942
  %1959 = vmatprep.subr.bf16.mxu0 0
  %1960 = vmatpush1.bf16.msra.mxu0 %v1943
  %1961 = vmatprep.subr.bf16.mxu0 0
  %1962 = vmatpush1.bf16.msra.mxu0 %v1944
  %1963 = vmatprep.subr.bf16.mxu0 0
  %1964 = vmatpush1.bf16.msra.mxu0 0
  %1965 = vmatprep.subr.bf16.mxu0 0
  %1966 = vmatpush1.bf16.msra.mxu0 0
  %1967 = vmatprep.subr.bf16.mxu0 0
  %1968 = vmatpush1.bf16.msra.mxu0 0
  %1969 = vmatprep.subr.bf16.mxu0 0
  %1970 = vmatpush1.bf16.msra.mxu0 0
  %1971 = vmatprep.subr.bf16.mxu0 0
  %1972 = vmatpush1.bf16.msra.mxu0 0
  %1973 = vmatprep.subr.bf16.mxu0 0
  %1974 = vmatpush1.bf16.msra.mxu0 0
  %1975 = vmatprep.subr.bf16.mxu0 0
  %1976 = vmatpush1.bf16.msra.mxu0 0
  %1977 = vmatprep.subr.bf16.mxu0 0
  %1978 = vmatpush1.bf16.msra.mxu0 0
  %1979 = vmatprep.subr.bf16.mxu0 0
  %1980 = vmatpush1.bf16.msra.mxu0 0
  %1981 = vmatprep.subr.bf16.mxu0 0
  %1982 = vmatpush1.bf16.msra.mxu0 0
  %1983 = vmatprep.subr.bf16.mxu0 0
  %1984 = vmatpush1.bf16.msra.mxu0 0
  %1985 = vmatprep.subr.bf16.mxu0 0
  %1986 = vmatpush1.bf16.msra.mxu0 0
  %1987 = vmatprep.mubr.bf16.mxu0 0
  %1988 = vmatmul.mubr.bf16.gmra.mrb[0].mxu0 %v1950
  %v1989 = vpop.f32.mrb[0].mxu0
  %v1990 = vadd.f32 %v1911, %v1989
  %v1991 = vpop.f32.mrb[0].mxu0
  %v1992 = vpop.f32.mrb[0].mxu0
  %v1993 = vadd.f32 %v1914, %v1992
  %v1994 = vpop.f32.mrb[0].mxu0
  %1995 = vmatprep.mubr.bf16.mxu0 0
  %1996 = vmatmul.mubr.bf16.gmra.mrb[0].mxu0 %v1953
  %v1997 = vpop.f32.mrb[0].mxu0
  %v1998 = vadd.f32 %v1919, %v1997
  %v1999 = vpop.f32.mrb[0].mxu0
  %v2000 = vpop.f32.mrb[0].mxu0
  %v2001 = vadd.f32 %v1922, %v2000
  %v2002 = vpop.f32.mrb[0].mxu0
  %2003 = vdwg.mxu0
  %v2004 = vld [vmem:[%s29] sm:$0xf]
  %v2005 = vpack.c.bf16 %v1993, %v1990
  %v2006 = vpack.c.bf16 %v2001, %v1998
  %v2008 = vsel %vm373, %v2004, 0
  %2010 = vmatprep.subr.bf16.mxu0 0
  %2011 = vmatpush1.bf16.msra.mxu0 %v2005
  %2012 = vmatprep.subr.bf16.mxu0 0
  %2013 = vmatpush1.bf16.msra.mxu0 %v2006
  %2014 = vmatprep.subr.bf16.mxu0 0
  %2015 = vmatpush1.bf16.msra.mxu0 0
  %2016 = vmatprep.subr.bf16.mxu0 0
  %2017 = vmatpush1.bf16.msra.mxu0 0
  %2018 = vmatprep.subr.bf16.mxu0 0
  %2019 = vmatpush1.bf16.msra.mxu0 0
  %2020 = vmatprep.subr.bf16.mxu0 0
  %2021 = vmatpush1.bf16.msra.mxu0 0
  %2022 = vmatprep.subr.bf16.mxu0 0
  %2023 = vmatpush1.bf16.msra.mxu0 0
  %2024 = vmatprep.subr.bf16.mxu0 0
  %2025 = vmatpush1.bf16.msra.mxu0 0
  %2026 = vmatprep.subr.bf16.mxu0 0
  %2027 = vmatpush1.bf16.msra.mxu0 0
  %2028 = vmatprep.subr.bf16.mxu0 0
  %2029 = vmatpush1.bf16.msra.mxu0 0
  %2030 = vmatprep.subr.bf16.mxu0 0
  %2031 = vmatpush1.bf16.msra.mxu0 0
  %2032 = vmatprep.subr.bf16.mxu0 0
  %2033 = vmatpush1.bf16.msra.mxu0 0
  %2034 = vmatprep.subr.bf16.mxu0 0
  %2035 = vmatpush1.bf16.msra.mxu0 0
  %2036 = vmatprep.subr.bf16.mxu0 0
  %2037 = vmatpush1.bf16.msra.mxu0 0
  %2038 = vmatprep.subr.bf16.mxu0 0
  %2039 = vmatpush1.bf16.msra.mxu0 0
  %2040 = vmatprep.subr.bf16.mxu0 0
  %2041 = vmatpush1.bf16.msra.mxu0 0
  %2042 = vmatprep.mubr.bf16.mxu0 0
  %2043 = vmatmul.mubr.bf16.gmra.mrb[0].mxu0 %v2008
  %v2044 = vpop.f32.mrb[0].mxu0
  %v2045 = vadd.f32 0.0, %v2044
  %v2046 = vpop.f32.mrb[0].mxu0
  %v2047 = vpop.f32.mrb[0].mxu0
  %v2048 = vpop.f32.mrb[0].mxu0
  %2049 = vdwg.mxu0
  %v2050 = vld [vmem:[%s33] sm:$0x1]
  %v2051 = vld [vmem:[%s35] sm:$0x1]
  %vm2052 = vcmask 310272
  %v2053 = vsel %vm2052, %v2045, 0.0
  %v2054 = vrot.slane %v2053, 4
  %v2055 = vadd.f32 %v2053, %v2054
  %v2056 = vrot.slane %v2055, 2
  %v2057 = vadd.f32 %v2055, %v2056
  %v2058 = vrot.slane %v2057, 1
  %v2059 = vadd.f32 %v2057, %v2058
  %v2060 = vrcp.pop 8.0
  %v2061 = vmul.f32 %v2059, %v2060
  %v2062 = vsub.f32 %v2045, %v2061
  %v2063 = vmul.f32 %v2062, %v2062
  %v2064 = vsel %vm2052, %v2063, 0.0
  %v2065 = vrot.slane %v2064, 4
  %v2066 = vadd.f32 %v2064, %v2065
  %v2067 = vrot.slane %v2066, 2
  %v2068 = vadd.f32 %v2066, %v2067
  %v2069 = vrot.slane %v2068, 1
  %v2070 = vadd.f32 %v2068, %v2069
  %v2071 = vmul.f32 %v2070, %v2060
  %v2072 = vadd.f32 %v2071, 1e-05
  %v2073 = vrsqrt.pop %v2072
  %v2074 = vmul.f32 %v2050, %v2073
  %v2076 = vlaneseq
  %v2077 = vshrl.u32 %v2076, 7
  %v2078 = vsub.s32 0, %v2077
  %v2079 = vrot.slane %v2074, %v2078
  %v2081 = vmul.f32 %v2062, %v2079
  %v2083 = vlaneseq
  %v2084 = vshrl.u32 %v2083, 7
  %v2085 = vsub.s32 0, %v2084
  %v2086 = vrot.slane %v2051, %v2085
  %v2088 = vadd.f32 %v2081, %v2086
  %v2089 = vmax.f32 %v2088, 0.0
  %v2090 = vld [vmem:[%s37] sm:$0xf]
  %v2091 = vld [vmem:[%s37 + $0x4] sm:$0xf]
  %v2092 = vld [vmem:[%s37 + $0x8] sm:$0xf]
  %v2093 = vld [vmem:[%s37 + $0xc] sm:$0xf]
  %v2094 = vld [vmem:[%s37 + $0x10] sm:$0x7]
  %v2095 = vpack.c.bf16 %v2089, %v2089
  %v2101 = vunpack.c.l.b16 %v2090
  %v2102 = vunpack.c.l.b16 %v2091
  %v2103 = vunpack.c.l.b16 %v2092
  %v2104 = vunpack.c.l.b16 %v2093
  %v2105 = vunpack.c.l.b16 %v2094
  %v2106 = vpack.c.b16 %v2102, %v2101
  %v2107 = vpack.c.b16 %v2104, %v2103
  %v2108 = vpack.c.b16 %v2105, %v2105
  %v2112 = vsel %vm2052, %v2095, 0
  %vm2114 = vcmask 1042432
  %v2116 = vsel %vm2114, %v2108, 0
  %2118 = vmatprep.subr.bf16.mxu0 0
  %2119 = vmatpush1.bf16.msra.mxu0 %v2106
  %2120 = vmatprep.subr.bf16.mxu0 0
  %2121 = vmatpush1.bf16.msra.mxu0 %v2107
  %2122 = vmatprep.subr.bf16.mxu0 0
  %2123 = vmatpush1.bf16.msra.mxu0 %v2116
  %2124 = vmatprep.subr.bf16.mxu0 0
  %2125 = vmatpush1.bf16.msra.mxu0 0
  %2126 = vmatprep.subr.bf16.mxu0 0
  %2127 = vmatpush1.bf16.msra.mxu0 0
  %2128 = vmatprep.subr.bf16.mxu0 0
  %2129 = vmatpush1.bf16.msra.mxu0 0
  %2130 = vmatprep.subr.bf16.mxu0 0
  %2131 = vmatpush1.bf16.msra.mxu0 0
  %2132 = vmatprep.subr.bf16.mxu0 0
  %2133 = vmatpush1.bf16.msra.mxu0 0
  %2134 = vmatprep.subr.bf16.mxu0 0
  %2135 = vmatpush1.bf16.msra.mxu0 0
  %2136 = vmatprep.subr.bf16.mxu0 0
  %2137 = vmatpush1.bf16.msra.mxu0 0
  %2138 = vmatprep.subr.bf16.mxu0 0
  %2139 = vmatpush1.bf16.msra.mxu0 0
  %2140 = vmatprep.subr.bf16.mxu0 0
  %2141 = vmatpush1.bf16.msra.mxu0 0
  %2142 = vmatprep.subr.bf16.mxu0 0
  %2143 = vmatpush1.bf16.msra.mxu0 0
  %2144 = vmatprep.subr.bf16.mxu0 0
  %2145 = vmatpush1.bf16.msra.mxu0 0
  %2146 = vmatprep.subr.bf16.mxu0 0
  %2147 = vmatpush1.bf16.msra.mxu0 0
  %2148 = vmatprep.subr.bf16.mxu0 0
  %2149 = vmatpush1.bf16.msra.mxu0 0
  %2150 = vmatprep.mubr.bf16.mxu0 0
  %2151 = vmatmul.mubr.bf16.gmra.mrb[0].mxu0 %v2112
  %v2152 = vpop.f32.mrb[0].mxu0
  %v2153 = vadd.f32 0.0, %v2152
  %v2154 = vpop.f32.mrb[0].mxu0
  %v2155 = vpop.f32.mrb[0].mxu0
  %v2156 = vpop.f32.mrb[0].mxu0
  %2157 = vdwg.mxu0
  %v2158 = vld [vmem:[%s39] sm:$0x1]
  %v2159 = vld [vmem:[%s41] sm:$0x1]
  %v2160 = vsel %vm293, %v2153, 0.0
  %v2161 = vrot.slane %v2160, 4
  %v2162 = vadd.f32 %v2160, %v2161
  %v2163 = vrot.slane %v2162, 2
  %v2164 = vadd.f32 %v2162, %v2163
  %v2165 = vrot.slane %v2164, 1
  %v2166 = vadd.f32 %v2164, %v2165
  %v2167 = vmul.f32 %v2166, %v2060
  %v2168 = vsub.f32 %v2153, %v2167
  %v2169 = vmul.f32 %v2168, %v2168
  %v2170 = vsel %vm293, %v2169, 0.0
  %v2171 = vrot.slane %v2170, 4
  %v2172 = vadd.f32 %v2170, %v2171
  %v2173 = vrot.slane %v2172, 2
  %v2174 = vadd.f32 %v2172, %v2173
  %v2175 = vrot.slane %v2174, 1
  %v2176 = vadd.f32 %v2174, %v2175
  %v2177 = vmul.f32 %v2176, %v2060
  %v2178 = vadd.f32 %v2177, 1e-05
  %v2179 = vrsqrt.pop %v2178
  %v2180 = vmul.f32 %v2158, %v2179
  %v2182 = vlaneseq
  %v2183 = vshrl.u32 %v2182, 7
  %v2184 = vsub.s32 0, %v2183
  %v2185 = vrot.slane %v2180, %v2184
  %v2187 = vmul.f32 %v2168, %v2185
  %v2189 = vlaneseq
  %v2190 = vshrl.u32 %v2189, 7
  %v2191 = vsub.s32 0, %v2190
  %v2192 = vrot.slane %v2159, %v2191
  %v2194 = vadd.f32 %v2187, %v2192
  %v2195 = vmax.f32 %v2194, 0.0
  %v2196 = vld [vmem:[%s31] sm:$0xf]
  %v2197 = vpack.c.bf16 %v2195, %v2195
  %vm2198 = vcmask 64512
  %v2200 = vsel %vm2198, %v2196, 0
  %vm2202 = vcmask 1043456
  %v2204 = vsel %vm2202, %v2197, 0
  %2206 = vmatprep.subr.bf16.mxu0 0
  %2207 = vmatpush1.bf16.msra.mxu0 %v2204
  %2208 = vmatprep.subr.bf16.mxu0 0
  %2209 = vmatpush1.bf16.msra.mxu0 0
  %2210 = vmatprep.subr.bf16.mxu0 0
  %2211 = vmatpush1.bf16.msra.mxu0 0
  %2212 = vmatprep.subr.bf16.mxu0 0
  %2213 = vmatpush1.bf16.msra.mxu0 0
  %2214 = vmatprep.subr.bf16.mxu0 0
  %2215 = vmatpush1.bf16.msra.mxu0 0
  %2216 = vmatprep.subr.bf16.mxu0 0
  %2217 = vmatpush1.bf16.msra.mxu0 0
  %2218 = vmatprep.subr.bf16.mxu0 0
  %2219 = vmatpush1.bf16.msra.mxu0 0
  %2220 = vmatprep.subr.bf16.mxu0 0
  %2221 = vmatpush1.bf16.msra.mxu0 0
  %2222 = vmatprep.subr.bf16.mxu0 0
  %2223 = vmatpush1.bf16.msra.mxu0 0
  %2224 = vmatprep.subr.bf16.mxu0 0
  %2225 = vmatpush1.bf16.msra.mxu0 0
  %2226 = vmatprep.subr.bf16.mxu0 0
  %2227 = vmatpush1.bf16.msra.mxu0 0
  %2228 = vmatprep.subr.bf16.mxu0 0
  %2229 = vmatpush1.bf16.msra.mxu0 0
  %2230 = vmatprep.subr.bf16.mxu0 0
  %2231 = vmatpush1.bf16.msra.mxu0 0
  %2232 = vmatprep.subr.bf16.mxu0 0
  %2233 = vmatpush1.bf16.msra.mxu0 0
  %2234 = vmatprep.subr.bf16.mxu0 0
  %2235 = vmatpush1.bf16.msra.mxu0 0
  %2236 = vmatprep.subr.bf16.mxu0 0
  %2237 = vmatpush1.bf16.msra.mxu0 0
  %2238 = vmatprep.mubr.bf16.mxu0 0
  %2239 = vmatmul.mubr.bf16.gmra.mrb[0].mxu0 %v2200
  %v2240 = vpop.f32.mrb[0].mxu0
  %v2241 = vadd.f32 0.0, %v2240
  %v2242 = vpop.f32.mrb[0].mxu0
  %v2243 = vpop.f32.mrb[0].mxu0
  %v2244 = vpop.f32.mrb[0].mxu0
  %2245 = vdwg.mxu0
  %v2246 = vld [vmem:[%s43] sm:$0xf]
  %v2247 = vld [vmem:[%s43 + $0x4] sm:$0xf]
  %v2248 = vld [vmem:[%s43 + $0x8] sm:$0xf]
  %v2249 = vld [vmem:[%s43 + $0xc] sm:$0xf]
  %v2250 = vld [vmem:[%s43 + $0x10] sm:$0xf]
  %v2251 = vld [vmem:[%s43 + $0x14] sm:$0xf]
  %v2252 = vpack.c.bf16 %v2241, %v2241
  %s2253 = scalar_lea.vmem %s31, 4
  %v2254 = vld [vmem:[%s2253] sm:$0xf]
  %v2256 = vsel %vm2198, %v2254, 0
  %2258 = vmatprep.subr.bf16.mxu0 0
  %2259 = vmatpush1.bf16.msra.mxu0 %v2204
  %2260 = vmatprep.subr.bf16.mxu0 0
  %2261 = vmatpush1.bf16.msra.mxu0 0
  %2262 = vmatprep.subr.bf16.mxu0 0
  %2263 = vmatpush1.bf16.msra.mxu0 0
  %2264 = vmatprep.subr.bf16.mxu0 0
  %2265 = vmatpush1.bf16.msra.mxu0 0
  %2266 = vmatprep.subr.bf16.mxu0 0
  %2267 = vmatpush1.bf16.msra.mxu0 0
  %2268 = vmatprep.subr.bf16.mxu0 0
  %2269 = vmatpush1.bf16.msra.mxu0 0
  %2270 = vmatprep.subr.bf16.mxu0 0
  %2271 = vmatpush1.bf16.msra.mxu0 0
  %2272 = vmatprep.subr.bf16.mxu0 0
  %2273 = vmatpush1.bf16.msra.mxu0 0
  %2274 = vmatprep.subr.bf16.mxu0 0
  %2275 = vmatpush1.bf16.msra.mxu0 0
  %2276 = vmatprep.subr.bf16.mxu0 0
  %2277 = vmatpush1.bf16.msra.mxu0 0
  %2278 = vmatprep.subr.bf16.mxu0 0
  %2279 = vmatpush1.bf16.msra.mxu0 0
  %2280 = vmatprep.subr.bf16.mxu0 0
  %2281 = vmatpush1.bf16.msra.mxu0 0
  %2282 = vmatprep.subr.bf16.mxu0 0
  %2283 = vmatpush1.bf16.msra.mxu0 0
  %2284 = vmatprep.subr.bf16.mxu0 0
  %2285 = vmatpush1.bf16.msra.mxu0 0
  %2286 = vmatprep.subr.bf16.mxu0 0
  %2287 = vmatpush1.bf16.msra.mxu0 0
  %2288 = vmatprep.subr.bf16.mxu0 0
  %2289 = vmatpush1.bf16.msra.mxu0 0
  %2290 = vmatprep.mubr.bf16.mxu0 0
  %2291 = vmatmul.mubr.bf16.gmra.mrb[0].mxu0 %v2256
  %v2292 = vpop.f32.mrb[0].mxu0
  %v2293 = vadd.f32 0.0, %v2292
  %v2294 = vpop.f32.mrb[0].mxu0
  %v2295 = vpop.f32.mrb[0].mxu0
  %v2296 = vpop.f32.mrb[0].mxu0
  %2297 = vdwg.mxu0
  %s2298 = scalar_lea.vmem %s43, 24
  %v2299 = vld [vmem:[%s2298] sm:$0xf]
  %v2300 = vld [vmem:[%s2298 + $0x4] sm:$0xf]
  %v2301 = vld [vmem:[%s2298 + $0x8] sm:$0xf]
  %v2302 = vld [vmem:[%s2298 + $0xc] sm:$0xf]
  %v2303 = vld [vmem:[%s2298 + $0x10] sm:$0xf]
  %v2304 = vld [vmem:[%s2298 + $0x14] sm:$0xf]
  %v2305 = vpack.c.bf16 %v2293, %v2293
  %v2312 = vunpack.c.l.b16 %v2299
  %v2313 = vunpack.c.l.b16 %v2300
  %v2314 = vunpack.c.l.b16 %v2301
  %v2315 = vunpack.c.l.b16 %v2302
  %v2316 = vunpack.c.l.b16 %v2303
  %v2317 = vunpack.c.l.b16 %v2304
  %v2318 = vpack.c.b16 %v2313, %v2312
  %v2319 = vpack.c.b16 %v2315, %v2314
  %v2320 = vpack.c.b16 %v2317, %v2316
  %v2325 = vsel %vm293, %v2305, 0
  %2327 = vmatprep.subr.bf16.mxu0 0
  %2328 = vmatpush1.bf16.msra.mxu0 %v2318
  %2329 = vmatprep.subr.bf16.mxu0 0
  %2330 = vmatpush1.bf16.msra.mxu0 %v2319
  %2331 = vmatprep.subr.bf16.mxu0 0
  %2332 = vmatpush1.bf16.msra.mxu0 %v2320
  %2333 = vmatprep.subr.bf16.mxu0 0
  %2334 = vmatpush1.bf16.msra.mxu0 0
  %2335 = vmatprep.subr.bf16.mxu0 0
  %2336 = vmatpush1.bf16.msra.mxu0 0
  %2337 = vmatprep.subr.bf16.mxu0 0
  %2338 = vmatpush1.bf16.msra.mxu0 0
  %2339 = vmatprep.subr.bf16.mxu0 0
  %2340 = vmatpush1.bf16.msra.mxu0 0
  %2341 = vmatprep.subr.bf16.mxu0 0
  %2342 = vmatpush1.bf16.msra.mxu0 0
  %2343 = vmatprep.subr.bf16.mxu0 0
  %2344 = vmatpush1.bf16.msra.mxu0 0
  %2345 = vmatprep.subr.bf16.mxu0 0
  %2346 = vmatpush1.bf16.msra.mxu0 0
  %2347 = vmatprep.subr.bf16.mxu0 0
  %2348 = vmatpush1.bf16.msra.mxu0 0
  %2349 = vmatprep.subr.bf16.mxu0 0
  %2350 = vmatpush1.bf16.msra.mxu0 0
  %2351 = vmatprep.subr.bf16.mxu0 0
  %2352 = vmatpush1.bf16.msra.mxu0 0
  %2353 = vmatprep.subr.bf16.mxu0 0
  %2354 = vmatpush1.bf16.msra.mxu0 0
  %2355 = vmatprep.subr.bf16.mxu0 0
  %2356 = vmatpush1.bf16.msra.mxu0 0
  %2357 = vmatprep.subr.bf16.mxu0 0
  %2358 = vmatpush1.bf16.msra.mxu0 0
  %2359 = vmatprep.mubr.bf16.mxu0 0
  %2360 = vmatmul.mubr.bf16.gmra.mrb[0].mxu0 %v2325
  %v2361 = vpop.f32.mrb[0].mxu0
  %v2362 = vadd.f32 0.0, %v2361
  %v2363 = vpop.f32.mrb[0].mxu0
  %v2364 = vpop.f32.mrb[0].mxu0
  %v2365 = vpop.f32.mrb[0].mxu0
  %2366 = vdwg.mxu0
  %v2373 = vunpack.c.l.b16 %v2246
  %v2374 = vunpack.c.l.b16 %v2247
  %v2375 = vunpack.c.l.b16 %v2248
  %v2376 = vunpack.c.l.b16 %v2249
  %v2377 = vunpack.c.l.b16 %v2250
  %v2378 = vunpack.c.l.b16 %v2251
  %v2379 = vpack.c.b16 %v2374, %v2373
  %v2380 = vpack.c.b16 %v2376, %v2375
  %v2381 = vpack.c.b16 %v2378, %v2377
  %v2386 = vsel %vm293, %v2252, 0
  %2388 = vmatprep.subr.bf16.mxu0 0
  %2389 = vmatpush1.bf16.msra.mxu0 %v2379
  %2390 = vmatprep.subr.bf16.mxu0 0
  %2391 = vmatpush1.bf16.msra.mxu0 %v2380
  %2392 = vmatprep.subr.bf16.mxu0 0
  %2393 = vmatpush1.bf16.msra.mxu0 %v2381
  %2394 = vmatprep.subr.bf16.mxu0 0
  %2395 = vmatpush1.bf16.msra.mxu0 0
  %2396 = vmatprep.subr.bf16.mxu0 0
  %2397 = vmatpush1.bf16.msra.mxu0 0
  %2398 = vmatprep.subr.bf16.mxu0 0
  %2399 = vmatpush1.bf16.msra.mxu0 0
  %2400 = vmatprep.subr.bf16.mxu0 0
  %2401 = vmatpush1.bf16.msra.mxu0 0
  %2402 = vmatprep.subr.bf16.mxu0 0
  %2403 = vmatpush1.bf16.msra.mxu0 0
  %2404 = vmatprep.subr.bf16.mxu0 0
  %2405 = vmatpush1.bf16.msra.mxu0 0
  %2406 = vmatprep.subr.bf16.mxu0 0
  %2407 = vmatpush1.bf16.msra.mxu0 0
  %2408 = vmatprep.subr.bf16.mxu0 0
  %2409 = vmatpush1.bf16.msra.mxu0 0
  %2410 = vmatprep.subr.bf16.mxu0 0
  %2411 = vmatpush1.bf16.msra.mxu0 0
  %2412 = vmatprep.subr.bf16.mxu0 0
  %2413 = vmatpush1.bf16.msra.mxu0 0
  %2414 = vmatprep.subr.bf16.mxu0 0
  %2415 = vmatpush1.bf16.msra.mxu0 0
  %2416 = vmatprep.subr.bf16.mxu0 0
  %2417 = vmatpush1.bf16.msra.mxu0 0
  %2418 = vmatprep.subr.bf16.mxu0 0
  %2419 = vmatpush1.bf16.msra.mxu0 0
  %2420 = vmatprep.mubr.bf16.mxu0 0
  %2421 = vmatmul.mubr.bf16.gmra.mrb[0].mxu0 %v2386
  %v2422 = vpop.f32.mrb[0].mxu0
  %v2423 = vadd.f32 %v2362, %v2422
  %v2424 = vpop.f32.mrb[0].mxu0
  %v2425 = vpop.f32.mrb[0].mxu0
  %v2426 = vpop.f32.mrb[0].mxu0
  %2427 = vdwg.mxu0
  %s2428 = scalar_lea.vmem %s31, 8
  %v2429 = vld [vmem:[%s2428] sm:$0xf]
  %v2431 = vsel %vm2198, %v2429, 0
  %2433 = vmatprep.subr.bf16.mxu0 0
  %2434 = vmatpush1.bf16.msra.mxu0 %v2204
  %2435 = vmatprep.subr.bf16.mxu0 0
  %2436 = vmatpush1.bf16.msra.mxu0 0
  %2437 = vmatprep.subr.bf16.mxu0 0
  %2438 = vmatpush1.bf16.msra.mxu0 0
  %2439 = vmatprep.subr.bf16.mxu0 0
  %2440 = vmatpush1.bf16.msra.mxu0 0
  %2441 = vmatprep.subr.bf16.mxu0 0
  %2442 = vmatpush1.bf16.msra.mxu0 0
  %2443 = vmatprep.subr.bf16.mxu0 0
  %2444 = vmatpush1.bf16.msra.mxu0 0
  %2445 = vmatprep.subr.bf16.mxu0 0
  %2446 = vmatpush1.bf16.msra.mxu0 0
  %2447 = vmatprep.subr.bf16.mxu0 0
  %2448 = vmatpush1.bf16.msra.mxu0 0
  %2449 = vmatprep.subr.bf16.mxu0 0
  %2450 = vmatpush1.bf16.msra.mxu0 0
  %2451 = vmatprep.subr.bf16.mxu0 0
  %2452 = vmatpush1.bf16.msra.mxu0 0
  %2453 = vmatprep.subr.bf16.mxu0 0
  %2454 = vmatpush1.bf16.msra.mxu0 0
  %2455 = vmatprep.subr.bf16.mxu0 0
  %2456 = vmatpush1.bf16.msra.mxu0 0
  %2457 = vmatprep.subr.bf16.mxu0 0
  %2458 = vmatpush1.bf16.msra.mxu0 0
  %2459 = vmatprep.subr.bf16.mxu0 0
  %2460 = vmatpush1.bf16.msra.mxu0 0
  %2461 = vmatprep.subr.bf16.mxu0 0
  %2462 = vmatpush1.bf16.msra.mxu0 0
  %2463 = vmatprep.subr.bf16.mxu0 0
  %2464 = vmatpush1.bf16.msra.mxu0 0
  %2465 = vmatprep.mubr.bf16.mxu0 0
  %2466 = vmatmul.mubr.bf16.gmra.mrb[0].mxu0 %v2431
  %v2467 = vpop.f32.mrb[0].mxu0
  %v2468 = vadd.f32 0.0, %v2467
  %v2469 = vpop.f32.mrb[0].mxu0
  %v2470 = vpop.f32.mrb[0].mxu0
  %v2471 = vpop.f32.mrb[0].mxu0
  %2472 = vdwg.mxu0
  %s2473 = scalar_lea.vmem %s43, 48
  %v2474 = vld [vmem:[%s2473] sm:$0xf]
  %v2475 = vld [vmem:[%s2473 + $0x4] sm:$0xf]
  %v2476 = vld [vmem:[%s2473 + $0x8] sm:$0xf]
  %v2477 = vld [vmem:[%s2473 + $0xc] sm:$0xf]
  %v2478 = vld [vmem:[%s2473 + $0x10] sm:$0xf]
  %v2479 = vld [vmem:[%s2473 + $0x14] sm:$0xf]
  %v2480 = vpack.c.bf16 %v2468, %v2468
  %v2487 = vunpack.c.l.b16 %v2474
  %v2488 = vunpack.c.l.b16 %v2475
  %v2489 = vunpack.c.l.b16 %v2476
  %v2490 = vunpack.c.l.b16 %v2477
  %v2491 = vunpack.c.l.b16 %v2478
  %v2492 = vunpack.c.l.b16 %v2479
  %v2493 = vpack.c.b16 %v2488, %v2487
  %v2494 = vpack.c.b16 %v2490, %v2489
  %v2495 = vpack.c.b16 %v2492, %v2491
  %v2500 = vsel %vm293, %v2480, 0
  %2502 = vmatprep.subr.bf16.mxu0 0
  %2503 = vmatpush1.bf16.msra.mxu0 %v2493
  %2504 = vmatprep.subr.bf16.mxu0 0
  %2505 = vmatpush1.bf16.msra.mxu0 %v2494
  %2506 = vmatprep.subr.bf16.mxu0 0
  %2507 = vmatpush1.bf16.msra.mxu0 %v2495
  %2508 = vmatprep.subr.bf16.mxu0 0
  %2509 = vmatpush1.bf16.msra.mxu0 0
  %2510 = vmatprep.subr.bf16.mxu0 0
  %2511 = vmatpush1.bf16.msra.mxu0 0
  %2512 = vmatprep.subr.bf16.mxu0 0
  %2513 = vmatpush1.bf16.msra.mxu0 0
  %2514 = vmatprep.subr.bf16.mxu0 0
  %2515 = vmatpush1.bf16.msra.mxu0 0
  %2516 = vmatprep.subr.bf16.mxu0 0
  %2517 = vmatpush1.bf16.msra.mxu0 0
  %2518 = vmatprep.subr.bf16.mxu0 0
  %2519 = vmatpush1.bf16.msra.mxu0 0
  %2520 = vmatprep.subr.bf16.mxu0 0
  %2521 = vmatpush1.bf16.msra.mxu0 0
  %2522 = vmatprep.subr.bf16.mxu0 0
  %2523 = vmatpush1.bf16.msra.mxu0 0
  %2524 = vmatprep.subr.bf16.mxu0 0
  %2525 = vmatpush1.bf16.msra.mxu0 0
  %2526 = vmatprep.subr.bf16.mxu0 0
  %2527 = vmatpush1.bf16.msra.mxu0 0
  %2528 = vmatprep.subr.bf16.mxu0 0
  %2529 = vmatpush1.bf16.msra.mxu0 0
  %2530 = vmatprep.subr.bf16.mxu0 0
  %2531 = vmatpush1.bf16.msra.mxu0 0
  %2532 = vmatprep.subr.bf16.mxu0 0
  %2533 = vmatpush1.bf16.msra.mxu0 0
  %2534 = vmatprep.mubr.bf16.mxu0 0
  %2535 = vmatmul.mubr.bf16.gmra.mrb[0].mxu0 %v2500
  %v2536 = vpop.f32.mrb[0].mxu0
  %v2537 = vadd.f32 0.0, %v2536
  %v2538 = vpop.f32.mrb[0].mxu0
  %v2539 = vpop.f32.mrb[0].mxu0
  %v2540 = vpop.f32.mrb[0].mxu0
  %2541 = vdwg.mxu0
  %v2542 = vadd.f32 %v2423, %v2537
  %s2543 = scalar_lea.vmem %s31, 12
  %v2544 = vld [vmem:[%s2543] sm:$0xf]
  %v2546 = vsel %vm2198, %v2544, 0
  %2548 = vmatprep.subr.bf16.mxu0 0
  %2549 = vmatpush1.bf16.msra.mxu0 %v2204
  %2550 = vmatprep.subr.bf16.mxu0 0
  %2551 = vmatpush1.bf16.msra.mxu0 0
  %2552 = vmatprep.subr.bf16.mxu0 0
  %2553 = vmatpush1.bf16.msra.mxu0 0
  %2554 = vmatprep.subr.bf16.mxu0 0
  %2555 = vmatpush1.bf16.msra.mxu0 0
  %2556 = vmatprep.subr.bf16.mxu0 0
  %2557 = vmatpush1.bf16.msra.mxu0 0
  %2558 = vmatprep.subr.bf16.mxu0 0
  %2559 = vmatpush1.bf16.msra.mxu0 0
  %2560 = vmatprep.subr.bf16.mxu0 0
  %2561 = vmatpush1.bf16.msra.mxu0 0
  %2562 = vmatprep.subr.bf16.mxu0 0
  %2563 = vmatpush1.bf16.msra.mxu0 0
  %2564 = vmatprep.subr.bf16.mxu0 0
  %2565 = vmatpush1.bf16.msra.mxu0 0
  %2566 = vmatprep.subr.bf16.mxu0 0
  %2567 = vmatpush1.bf16.msra.mxu0 0
  %2568 = vmatprep.subr.bf16.mxu0 0
  %2569 = vmatpush1.bf16.msra.mxu0 0
  %2570 = vmatprep.subr.bf16.mxu0 0
  %2571 = vmatpush1.bf16.msra.mxu0 0
  %2572 = vmatprep.subr.bf16.mxu0 0
  %2573 = vmatpush1.bf16.msra.mxu0 0
  %2574 = vmatprep.subr.bf16.mxu0 0
  %2575 = vmatpush1.bf16.msra.mxu0 0
  %2576 = vmatprep.subr.bf16.mxu0 0
  %2577 = vmatpush1.bf16.msra.mxu0 0
  %2578 = vmatprep.subr.bf16.mxu0 0
  %2579 = vmatpush1.bf16.msra.mxu0 0
  %2580 = vmatprep.mubr.bf16.mxu0 0
  %2581 = vmatmul.mubr.bf16.gmra.mrb[0].mxu0 %v2546
  %v2582 = vpop.f32.mrb[0].mxu0
  %v2583 = vadd.f32 0.0, %v2582
  %v2584 = vpop.f32.mrb[0].mxu0
  %v2585 = vpop.f32.mrb[0].mxu0
  %v2586 = vpop.f32.mrb[0].mxu0
  %2587 = vdwg.mxu0
  %s2588 = scalar_lea.vmem %s43, 72
  %v2589 = vld [vmem:[%s2588] sm:$0xf]
  %v2590 = vld [vmem:[%s2588 + $0x4] sm:$0xf]
  %v2591 = vld [vmem:[%s2588 + $0x8] sm:$0xf]
  %v2592 = vld [vmem:[%s2588 + $0xc] sm:$0xf]
  %v2593 = vld [vmem:[%s2588 + $0x10] sm:$0xf]
  %v2594 = vld [vmem:[%s2588 + $0x14] sm:$0xf]
  %v2595 = vpack.c.bf16 %v2583, %v2583
  %v2602 = vunpack.c.l.b16 %v2589
  %v2603 = vunpack.c.l.b16 %v2590
  %v2604 = vunpack.c.l.b16 %v2591
  %v2605 = vunpack.c.l.b16 %v2592
  %v2606 = vunpack.c.l.b16 %v2593
  %v2607 = vunpack.c.l.b16 %v2594
  %v2608 = vpack.c.b16 %v2603, %v2602
  %v2609 = vpack.c.b16 %v2605, %v2604
  %v2610 = vpack.c.b16 %v2607, %v2606
  %v2615 = vsel %vm293, %v2595, 0
  %2617 = vmatprep.subr.bf16.mxu0 0
  %2618 = vmatpush1.bf16.msra.mxu0 %v2608
  %2619 = vmatprep.subr.bf16.mxu0 0
  %2620 = vmatpush1.bf16.msra.mxu0 %v2609
  %2621 = vmatprep.subr.bf16.mxu0 0
  %2622 = vmatpush1.bf16.msra.mxu0 %v2610
  %2623 = vmatprep.subr.bf16.mxu0 0
  %2624 = vmatpush1.bf16.msra.mxu0 0
  %2625 = vmatprep.subr.bf16.mxu0 0
  %2626 = vmatpush1.bf16.msra.mxu0 0
  %2627 = vmatprep.subr.bf16.mxu0 0
  %2628 = vmatpush1.bf16.msra.mxu0 0
  %2629 = vmatprep.subr.bf16.mxu0 0
  %2630 = vmatpush1.bf16.msra.mxu0 0
  %2631 = vmatprep.subr.bf16.mxu0 0
  %2632 = vmatpush1.bf16.msra.mxu0 0
  %2633 = vmatprep.subr.bf16.mxu0 0
  %2634 = vmatpush1.bf16.msra.mxu0 0
  %2635 = vmatprep.subr.bf16.mxu0 0
  %2636 = vmatpush1.bf16.msra.mxu0 0
  %2637 = vmatprep.subr.bf16.mxu0 0
  %2638 = vmatpush1.bf16.msra.mxu0 0
  %2639 = vmatprep.subr.bf16.mxu0 0
  %2640 = vmatpush1.bf16.msra.mxu0 0
  %2641 = vmatprep.subr.bf16.mxu0 0
  %2642 = vmatpush1.bf16.msra.mxu0 0
  %2643 = vmatprep.subr.bf16.mxu0 0
  %2644 = vmatpush1.bf16.msra.mxu0 0
  %2645 = vmatprep.subr.bf16.mxu0 0
  %2646 = vmatpush1.bf16.msra.mxu0 0
  %2647 = vmatprep.subr.bf16.mxu0 0
  %2648 = vmatpush1.bf16.msra.mxu0 0
  %2649 = vmatprep.mubr.bf16.mxu0 0
  %2650 = vmatmul.mubr.bf16.gmra.mrb[0].mxu0 %v2615
  %v2651 = vpop.f32.mrb[0].mxu0
  %v2652 = vadd.f32 0.0, %v2651
  %v2653 = vpop.f32.mrb[0].mxu0
  %v2654 = vpop.f32.mrb[0].mxu0
  %v2655 = vpop.f32.mrb[0].mxu0
  %2656 = vdwg.mxu0
  %v2657 = vadd.f32 %v2542, %v2652
  %s2658 = scalar_lea.vmem %s31, 16
  %v2659 = vld [vmem:[%s2658] sm:$0xf]
  %v2661 = vsel %vm2198, %v2659, 0
  %2663 = vmatprep.subr.bf16.mxu0 0
  %2664 = vmatpush1.bf16.msra.mxu0 %v2204
  %2665 = vmatprep.subr.bf16.mxu0 0
  %2666 = vmatpush1.bf16.msra.mxu0 0
  %2667 = vmatprep.subr.bf16.mxu0 0
  %2668 = vmatpush1.bf16.msra.mxu0 0
  %2669 = vmatprep.subr.bf16.mxu0 0
  %2670 = vmatpush1.bf16.msra.mxu0 0
  %2671 = vmatprep.subr.bf16.mxu0 0
  %2672 = vmatpush1.bf16.msra.mxu0 0
  %2673 = vmatprep.subr.bf16.mxu0 0
  %2674 = vmatpush1.bf16.msra.mxu0 0
  %2675 = vmatprep.subr.bf16.mxu0 0
  %2676 = vmatpush1.bf16.msra.mxu0 0
  %2677 = vmatprep.subr.bf16.mxu0 0
  %2678 = vmatpush1.bf16.msra.mxu0 0
  %2679 = vmatprep.subr.bf16.mxu0 0
  %2680 = vmatpush1.bf16.msra.mxu0 0
  %2681 = vmatprep.subr.bf16.mxu0 0
  %2682 = vmatpush1.bf16.msra.mxu0 0
  %2683 = vmatprep.subr.bf16.mxu0 0
  %2684 = vmatpush1.bf16.msra.mxu0 0
  %2685 = vmatprep.subr.bf16.mxu0 0
  %2686 = vmatpush1.bf16.msra.mxu0 0
  %2687 = vmatprep.subr.bf16.mxu0 0
  %2688 = vmatpush1.bf16.msra.mxu0 0
  %2689 = vmatprep.subr.bf16.mxu0 0
  %2690 = vmatpush1.bf16.msra.mxu0 0
  %2691 = vmatprep.subr.bf16.mxu0 0
  %2692 = vmatpush1.bf16.msra.mxu0 0
  %2693 = vmatprep.subr.bf16.mxu0 0
  %2694 = vmatpush1.bf16.msra.mxu0 0
  %2695 = vmatprep.mubr.bf16.mxu0 0
  %2696 = vmatmul.mubr.bf16.gmra.mrb[0].mxu0 %v2661
  %v2697 = vpop.f32.mrb[0].mxu0
  %v2698 = vadd.f32 0.0, %v2697
  %v2699 = vpop.f32.mrb[0].mxu0
  %v2700 = vpop.f32.mrb[0].mxu0
  %v2701 = vpop.f32.mrb[0].mxu0
  %2702 = vdwg.mxu0
  %s2703 = scalar_lea.vmem %s43, 96
  %v2704 = vld [vmem:[%s2703] sm:$0xf]
  %v2705 = vld [vmem:[%s2703 + $0x4] sm:$0xf]
  %v2706 = vld [vmem:[%s2703 + $0x8] sm:$0xf]
  %v2707 = vld [vmem:[%s2703 + $0xc] sm:$0xf]
  %v2708 = vld [vmem:[%s2703 + $0x10] sm:$0xf]
  %v2709 = vld [vmem:[%s2703 + $0x14] sm:$0xf]
  %v2710 = vpack.c.bf16 %v2698, %v2698
  %v2717 = vunpack.c.l.b16 %v2704
  %v2718 = vunpack.c.l.b16 %v2705
  %v2719 = vunpack.c.l.b16 %v2706
  %v2720 = vunpack.c.l.b16 %v2707
  %v2721 = vunpack.c.l.b16 %v2708
  %v2722 = vunpack.c.l.b16 %v2709
  %v2723 = vpack.c.b16 %v2718, %v2717
  %v2724 = vpack.c.b16 %v2720, %v2719
  %v2725 = vpack.c.b16 %v2722, %v2721
  %v2730 = vsel %vm293, %v2710, 0
  %2732 = vmatprep.subr.bf16.mxu0 0
  %2733 = vmatpush1.bf16.msra.mxu0 %v2723
  %2734 = vmatprep.subr.bf16.mxu0 0
  %2735 = vmatpush1.bf16.msra.mxu0 %v2724
  %2736 = vmatprep.subr.bf16.mxu0 0
  %2737 = vmatpush1.bf16.msra.mxu0 %v2725
  %2738 = vmatprep.subr.bf16.mxu0 0
  %2739 = vmatpush1.bf16.msra.mxu0 0
  %2740 = vmatprep.subr.bf16.mxu0 0
  %2741 = vmatpush1.bf16.msra.mxu0 0
  %2742 = vmatprep.subr.bf16.mxu0 0
  %2743 = vmatpush1.bf16.msra.mxu0 0
  %2744 = vmatprep.subr.bf16.mxu0 0
  %2745 = vmatpush1.bf16.msra.mxu0 0
  %2746 = vmatprep.subr.bf16.mxu0 0
  %2747 = vmatpush1.bf16.msra.mxu0 0
  %2748 = vmatprep.subr.bf16.mxu0 0
  %2749 = vmatpush1.bf16.msra.mxu0 0
  %2750 = vmatprep.subr.bf16.mxu0 0
  %2751 = vmatpush1.bf16.msra.mxu0 0
  %2752 = vmatprep.subr.bf16.mxu0 0
  %2753 = vmatpush1.bf16.msra.mxu0 0
  %2754 = vmatprep.subr.bf16.mxu0 0
  %2755 = vmatpush1.bf16.msra.mxu0 0
  %2756 = vmatprep.subr.bf16.mxu0 0
  %2757 = vmatpush1.bf16.msra.mxu0 0
  %2758 = vmatprep.subr.bf16.mxu0 0
  %2759 = vmatpush1.bf16.msra.mxu0 0
  %2760 = vmatprep.subr.bf16.mxu0 0
  %2761 = vmatpush1.bf16.msra.mxu0 0
  %2762 = vmatprep.subr.bf16.mxu0 0
  %2763 = vmatpush1.bf16.msra.mxu0 0
  %2764 = vmatprep.mubr.bf16.mxu0 0
  %2765 = vmatmul.mubr.bf16.gmra.mrb[0].mxu0 %v2730
  %v2766 = vpop.f32.mrb[0].mxu0
  %v2767 = vadd.f32 0.0, %v2766
  %v2768 = vpop.f32.mrb[0].mxu0
  %v2769 = vpop.f32.mrb[0].mxu0
  %v2770 = vpop.f32.mrb[0].mxu0
  %2771 = vdwg.mxu0
  %v2772 = vadd.f32 %v2657, %v2767
  %s2773 = scalar_lea.vmem %s31, 20
  %v2774 = vld [vmem:[%s2773] sm:$0xf]
  %v2776 = vsel %vm2198, %v2774, 0
  %2778 = vmatprep.subr.bf16.mxu0 0
  %2779 = vmatpush1.bf16.msra.mxu0 %v2204
  %2780 = vmatprep.subr.bf16.mxu0 0
  %2781 = vmatpush1.bf16.msra.mxu0 0
  %2782 = vmatprep.subr.bf16.mxu0 0
  %2783 = vmatpush1.bf16.msra.mxu0 0
  %2784 = vmatprep.subr.bf16.mxu0 0
  %2785 = vmatpush1.bf16.msra.mxu0 0
  %2786 = vmatprep.subr.bf16.mxu0 0
  %2787 = vmatpush1.bf16.msra.mxu0 0
  %2788 = vmatprep.subr.bf16.mxu0 0
  %2789 = vmatpush1.bf16.msra.mxu0 0
  %2790 = vmatprep.subr.bf16.mxu0 0
  %2791 = vmatpush1.bf16.msra.mxu0 0
  %2792 = vmatprep.subr.bf16.mxu0 0
  %2793 = vmatpush1.bf16.msra.mxu0 0
  %2794 = vmatprep.subr.bf16.mxu0 0
  %2795 = vmatpush1.bf16.msra.mxu0 0
  %2796 = vmatprep.subr.bf16.mxu0 0
  %2797 = vmatpush1.bf16.msra.mxu0 0
  %2798 = vmatprep.subr.bf16.mxu0 0
  %2799 = vmatpush1.bf16.msra.mxu0 0
  %2800 = vmatprep.subr.bf16.mxu0 0
  %2801 = vmatpush1.bf16.msra.mxu0 0
  %2802 = vmatprep.subr.bf16.mxu0 0
  %2803 = vmatpush1.bf16.msra.mxu0 0
  %2804 = vmatprep.subr.bf16.mxu0 0
  %2805 = vmatpush1.bf16.msra.mxu0 0
  %2806 = vmatprep.subr.bf16.mxu0 0
  %2807 = vmatpush1.bf16.msra.mxu0 0
  %2808 = vmatprep.subr.bf16.mxu0 0
  %2809 = vmatpush1.bf16.msra.mxu0 0
  %2810 = vmatprep.mubr.bf16.mxu0 0
  %2811 = vmatmul.mubr.bf16.gmra.mrb[0].mxu0 %v2776
  %v2812 = vpop.f32.mrb[0].mxu0
  %v2813 = vadd.f32 0.0, %v2812
  %v2814 = vpop.f32.mrb[0].mxu0
  %v2815 = vpop.f32.mrb[0].mxu0
  %v2816 = vpop.f32.mrb[0].mxu0
  %2817 = vdwg.mxu0
  %s2818 = scalar_lea.vmem %s43, 120
  %v2819 = vld [vmem:[%s2818] sm:$0xf]
  %v2820 = vld [vmem:[%s2818 + $0x4] sm:$0xf]
  %v2821 = vld [vmem:[%s2818 + $0x8] sm:$0xf]
  %v2822 = vld [vmem:[%s2818 + $0xc] sm:$0xf]
  %v2823 = vld [vmem:[%s2818 + $0x10] sm:$0xf]
  %v2824 = vld [vmem:[%s2818 + $0x14] sm:$0xf]
  %v2825 = vpack.c.bf16 %v2813, %v2813
  %v2832 = vunpack.c.l.b16 %v2819
  %v2833 = vunpack.c.l.b16 %v2820
  %v2834 = vunpack.c.l.b16 %v2821
  %v2835 = vunpack.c.l.b16 %v2822
  %v2836 = vunpack.c.l.b16 %v2823
  %v2837 = vunpack.c.l.b16 %v2824
  %v2838 = vpack.c.b16 %v2833, %v2832
  %v2839 = vpack.c.b16 %v2835, %v2834
  %v2840 = vpack.c.b16 %v2837, %v2836
  %v2845 = vsel %vm293, %v2825, 0
  %2847 = vmatprep.subr.bf16.mxu0 0
  %2848 = vmatpush1.bf16.msra.mxu0 %v2838
  %2849 = vmatprep.subr.bf16.mxu0 0
  %2850 = vmatpush1.bf16.msra.mxu0 %v2839
  %2851 = vmatprep.subr.bf16.mxu0 0
  %2852 = vmatpush1.bf16.msra.mxu0 %v2840
  %2853 = vmatprep.subr.bf16.mxu0 0
  %2854 = vmatpush1.bf16.msra.mxu0 0
  %2855 = vmatprep.subr.bf16.mxu0 0
  %2856 = vmatpush1.bf16.msra.mxu0 0
  %2857 = vmatprep.subr.bf16.mxu0 0
  %2858 = vmatpush1.bf16.msra.mxu0 0
  %2859 = vmatprep.subr.bf16.mxu0 0
  %2860 = vmatpush1.bf16.msra.mxu0 0
  %2861 = vmatprep.subr.bf16.mxu0 0
  %2862 = vmatpush1.bf16.msra.mxu0 0
  %2863 = vmatprep.subr.bf16.mxu0 0
  %2864 = vmatpush1.bf16.msra.mxu0 0
  %2865 = vmatprep.subr.bf16.mxu0 0
  %2866 = vmatpush1.bf16.msra.mxu0 0
  %2867 = vmatprep.subr.bf16.mxu0 0
  %2868 = vmatpush1.bf16.msra.mxu0 0
  %2869 = vmatprep.subr.bf16.mxu0 0
  %2870 = vmatpush1.bf16.msra.mxu0 0
  %2871 = vmatprep.subr.bf16.mxu0 0
  %2872 = vmatpush1.bf16.msra.mxu0 0
  %2873 = vmatprep.subr.bf16.mxu0 0
  %2874 = vmatpush1.bf16.msra.mxu0 0
  %2875 = vmatprep.subr.bf16.mxu0 0
  %2876 = vmatpush1.bf16.msra.mxu0 0
  %2877 = vmatprep.subr.bf16.mxu0 0
  %2878 = vmatpush1.bf16.msra.mxu0 0
  %2879 = vmatprep.mubr.bf16.mxu0 0
  %2880 = vmatmul.mubr.bf16.gmra.mrb[0].mxu0 %v2845
  %v2881 = vpop.f32.mrb[0].mxu0
  %v2882 = vadd.f32 0.0, %v2881
  %v2883 = vpop.f32.mrb[0].mxu0
  %v2884 = vpop.f32.mrb[0].mxu0
  %v2885 = vpop.f32.mrb[0].mxu0
  %2886 = vdwg.mxu0
  %v2887 = vadd.f32 %v2772, %v2882
  %s2888 = scalar_lea.vmem %s31, 24
  %v2889 = vld [vmem:[%s2888] sm:$0xf]
  %v2891 = vsel %vm2198, %v2889, 0
  %2893 = vmatprep.subr.bf16.mxu0 0
  %2894 = vmatpush1.bf16.msra.mxu0 %v2204
  %2895 = vmatprep.subr.bf16.mxu0 0
  %2896 = vmatpush1.bf16.msra.mxu0 0
  %2897 = vmatprep.subr.bf16.mxu0 0
  %2898 = vmatpush1.bf16.msra.mxu0 0
  %2899 = vmatprep.subr.bf16.mxu0 0
  %2900 = vmatpush1.bf16.msra.mxu0 0
  %2901 = vmatprep.subr.bf16.mxu0 0
  %2902 = vmatpush1.bf16.msra.mxu0 0
  %2903 = vmatprep.subr.bf16.mxu0 0
  %2904 = vmatpush1.bf16.msra.mxu0 0
  %2905 = vmatprep.subr.bf16.mxu0 0
  %2906 = vmatpush1.bf16.msra.mxu0 0
  %2907 = vmatprep.subr.bf16.mxu0 0
  %2908 = vmatpush1.bf16.msra.mxu0 0
  %2909 = vmatprep.subr.bf16.mxu0 0
  %2910 = vmatpush1.bf16.msra.mxu0 0
  %2911 = vmatprep.subr.bf16.mxu0 0
  %2912 = vmatpush1.bf16.msra.mxu0 0
  %2913 = vmatprep.subr.bf16.mxu0 0
  %2914 = vmatpush1.bf16.msra.mxu0 0
  %2915 = vmatprep.subr.bf16.mxu0 0
  %2916 = vmatpush1.bf16.msra.mxu0 0
  %2917 = vmatprep.subr.bf16.mxu0 0
  %2918 = vmatpush1.bf16.msra.mxu0 0
  %2919 = vmatprep.subr.bf16.mxu0 0
  %2920 = vmatpush1.bf16.msra.mxu0 0
  %2921 = vmatprep.subr.bf16.mxu0 0
  %2922 = vmatpush1.bf16.msra.mxu0 0
  %2923 = vmatprep.subr.bf16.mxu0 0
  %2924 = vmatpush1.bf16.msra.mxu0 0
  %2925 = vmatprep.mubr.bf16.mxu0 0
  %2926 = vmatmul.mubr.bf16.gmra.mrb[0].mxu0 %v2891
  %v2927 = vpop.f32.mrb[0].mxu0
  %v2928 = vadd.f32 0.0, %v2927
  %v2929 = vpop.f32.mrb[0].mxu0
  %v2930 = vpop.f32.mrb[0].mxu0
  %v2931 = vpop.f32.mrb[0].mxu0
  %2932 = vdwg.mxu0
  %s2933 = scalar_lea.vmem %s43, 144
  %v2934 = vld [vmem:[%s2933] sm:$0xf]
  %v2935 = vld [vmem:[%s2933 + $0x4] sm:$0xf]
  %v2936 = vld [vmem:[%s2933 + $0x8] sm:$0xf]
  %v2937 = vld [vmem:[%s2933 + $0xc] sm:$0xf]
  %v2938 = vld [vmem:[%s2933 + $0x10] sm:$0xf]
  %v2939 = vld [vmem:[%s2933 + $0x14] sm:$0xf]
  %v2940 = vpack.c.bf16 %v2928, %v2928
  %v2947 = vunpack.c.l.b16 %v2934
  %v2948 = vunpack.c.l.b16 %v2935
  %v2949 = vunpack.c.l.b16 %v2936
  %v2950 = vunpack.c.l.b16 %v2937
  %v2951 = vunpack.c.l.b16 %v2938
  %v2952 = vunpack.c.l.b16 %v2939
  %v2953 = vpack.c.b16 %v2948, %v2947
  %v2954 = vpack.c.b16 %v2950, %v2949
  %v2955 = vpack.c.b16 %v2952, %v2951
  %v2960 = vsel %vm293, %v2940, 0
  %2962 = vmatprep.subr.bf16.mxu0 0
  %2963 = vmatpush1.bf16.msra.mxu0 %v2953
  %2964 = vmatprep.subr.bf16.mxu0 0
  %2965 = vmatpush1.bf16.msra.mxu0 %v2954
  %2966 = vmatprep.subr.bf16.mxu0 0
  %2967 = vmatpush1.bf16.msra.mxu0 %v2955
  %2968 = vmatprep.subr.bf16.mxu0 0
  %2969 = vmatpush1.bf16.msra.mxu0 0
  %2970 = vmatprep.subr.bf16.mxu0 0
  %2971 = vmatpush1.bf16.msra.mxu0 0
  %2972 = vmatprep.subr.bf16.mxu0 0
  %2973 = vmatpush1.bf16.msra.mxu0 0
  %2974 = vmatprep.subr.bf16.mxu0 0
  %2975 = vmatpush1.bf16.msra.mxu0 0
  %2976 = vmatprep.subr.bf16.mxu0 0
  %2977 = vmatpush1.bf16.msra.mxu0 0
  %2978 = vmatprep.subr.bf16.mxu0 0
  %2979 = vmatpush1.bf16.msra.mxu0 0
  %2980 = vmatprep.subr.bf16.mxu0 0
  %2981 = vmatpush1.bf16.msra.mxu0 0
  %2982 = vmatprep.subr.bf16.mxu0 0
  %2983 = vmatpush1.bf16.msra.mxu0 0
  %2984 = vmatprep.subr.bf16.mxu0 0
  %2985 = vmatpush1.bf16.msra.mxu0 0
  %2986 = vmatprep.subr.bf16.mxu0 0
  %2987 = vmatpush1.bf16.msra.mxu0 0
  %2988 = vmatprep.subr.bf16.mxu0 0
  %2989 = vmatpush1.bf16.msra.mxu0 0
  %2990 = vmatprep.subr.bf16.mxu0 0
  %2991 = vmatpush1.bf16.msra.mxu0 0
  %2992 = vmatprep.subr.bf16.mxu0 0
  %2993 = vmatpush1.bf16.msra.mxu0 0
  %2994 = vmatprep.mubr.bf16.mxu0 0
  %2995 = vmatmul.mubr.bf16.gmra.mrb[0].mxu0 %v2960
  %v2996 = vpop.f32.mrb[0].mxu0
  %v2997 = vadd.f32 0.0, %v2996
  %v2998 = vpop.f32.mrb[0].mxu0
  %v2999 = vpop.f32.mrb[0].mxu0
  %v3000 = vpop.f32.mrb[0].mxu0
  %3001 = vdwg.mxu0
  %v3002 = vadd.f32 %v2887, %v2997
  %s3003 = scalar_lea.vmem %s31, 28
  %v3004 = vld [vmem:[%s3003] sm:$0xf]
  %v3006 = vsel %vm2198, %v3004, 0
  %3008 = vmatprep.subr.bf16.mxu0 0
  %3009 = vmatpush1.bf16.msra.mxu0 %v2204
  %3010 = vmatprep.subr.bf16.mxu0 0
  %3011 = vmatpush1.bf16.msra.mxu0 0
  %3012 = vmatprep.subr.bf16.mxu0 0
  %3013 = vmatpush1.bf16.msra.mxu0 0
  %3014 = vmatprep.subr.bf16.mxu0 0
  %3015 = vmatpush1.bf16.msra.mxu0 0
  %3016 = vmatprep.subr.bf16.mxu0 0
  %3017 = vmatpush1.bf16.msra.mxu0 0
  %3018 = vmatprep.subr.bf16.mxu0 0
  %3019 = vmatpush1.bf16.msra.mxu0 0
  %3020 = vmatprep.subr.bf16.mxu0 0
  %3021 = vmatpush1.bf16.msra.mxu0 0
  %3022 = vmatprep.subr.bf16.mxu0 0
  %3023 = vmatpush1.bf16.msra.mxu0 0
  %3024 = vmatprep.subr.bf16.mxu0 0
  %3025 = vmatpush1.bf16.msra.mxu0 0
  %3026 = vmatprep.subr.bf16.mxu0 0
  %3027 = vmatpush1.bf16.msra.mxu0 0
  %3028 = vmatprep.subr.bf16.mxu0 0
  %3029 = vmatpush1.bf16.msra.mxu0 0
  %3030 = vmatprep.subr.bf16.mxu0 0
  %3031 = vmatpush1.bf16.msra.mxu0 0
  %3032 = vmatprep.subr.bf16.mxu0 0
  %3033 = vmatpush1.bf16.msra.mxu0 0
  %3034 = vmatprep.subr.bf16.mxu0 0
  %3035 = vmatpush1.bf16.msra.mxu0 0
  %3036 = vmatprep.subr.bf16.mxu0 0
  %3037 = vmatpush1.bf16.msra.mxu0 0
  %3038 = vmatprep.subr.bf16.mxu0 0
  %3039 = vmatpush1.bf16.msra.mxu0 0
  %3040 = vmatprep.mubr.bf16.mxu0 0
  %3041 = vmatmul.mubr.bf16.gmra.mrb[0].mxu0 %v3006
  %v3042 = vpop.f32.mrb[0].mxu0
  %v3043 = vadd.f32 0.0, %v3042
  %v3044 = vpop.f32.mrb[0].mxu0
  %v3045 = vpop.f32.mrb[0].mxu0
  %v3046 = vpop.f32.mrb[0].mxu0
  %3047 = vdwg.mxu0
  %s3048 = scalar_lea.vmem %s43, 168
  %v3049 = vld [vmem:[%s3048] sm:$0xf]
  %v3050 = vld [vmem:[%s3048 + $0x4] sm:$0xf]
  %v3051 = vld [vmem:[%s3048 + $0x8] sm:$0xf]
  %v3052 = vld [vmem:[%s3048 + $0xc] sm:$0xf]
  %v3053 = vld [vmem:[%s3048 + $0x10] sm:$0xf]
  %v3054 = vld [vmem:[%s3048 + $0x14] sm:$0xf]
  %v3055 = vpack.c.bf16 %v3043, %v3043
  %v3062 = vunpack.c.l.b16 %v3049
  %v3063 = vunpack.c.l.b16 %v3050
  %v3064 = vunpack.c.l.b16 %v3051
  %v3065 = vunpack.c.l.b16 %v3052
  %v3066 = vunpack.c.l.b16 %v3053
  %v3067 = vunpack.c.l.b16 %v3054
  %v3068 = vpack.c.b16 %v3063, %v3062
  %v3069 = vpack.c.b16 %v3065, %v3064
  %v3070 = vpack.c.b16 %v3067, %v3066
  %v3075 = vsel %vm293, %v3055, 0
  %3077 = vmatprep.subr.bf16.mxu0 0
  %3078 = vmatpush1.bf16.msra.mxu0 %v3068
  %3079 = vmatprep.subr.bf16.mxu0 0
  %3080 = vmatpush1.bf16.msra.mxu0 %v3069
  %3081 = vmatprep.subr.bf16.mxu0 0
  %3082 = vmatpush1.bf16.msra.mxu0 %v3070
  %3083 = vmatprep.subr.bf16.mxu0 0
  %3084 = vmatpush1.bf16.msra.mxu0 0
  %3085 = vmatprep.subr.bf16.mxu0 0
  %3086 = vmatpush1.bf16.msra.mxu0 0
  %3087 = vmatprep.subr.bf16.mxu0 0
  %3088 = vmatpush1.bf16.msra.mxu0 0
  %3089 = vmatprep.subr.bf16.mxu0 0
  %3090 = vmatpush1.bf16.msra.mxu0 0
  %3091 = vmatprep.subr.bf16.mxu0 0
  %3092 = vmatpush1.bf16.msra.mxu0 0
  %3093 = vmatprep.subr.bf16.mxu0 0
  %3094 = vmatpush1.bf16.msra.mxu0 0
  %3095 = vmatprep.subr.bf16.mxu0 0
  %3096 = vmatpush1.bf16.msra.mxu0 0
  %3097 = vmatprep.subr.bf16.mxu0 0
  %3098 = vmatpush1.bf16.msra.mxu0 0
  %3099 = vmatprep.subr.bf16.mxu0 0
  %3100 = vmatpush1.bf16.msra.mxu0 0
  %3101 = vmatprep.subr.bf16.mxu0 0
  %3102 = vmatpush1.bf16.msra.mxu0 0
  %3103 = vmatprep.subr.bf16.mxu0 0
  %3104 = vmatpush1.bf16.msra.mxu0 0
  %3105 = vmatprep.subr.bf16.mxu0 0
  %3106 = vmatpush1.bf16.msra.mxu0 0
  %3107 = vmatprep.subr.bf16.mxu0 0
  %3108 = vmatpush1.bf16.msra.mxu0 0
  %3109 = vmatprep.mubr.bf16.mxu0 0
  %3110 = vmatmul.mubr.bf16.gmra.mrb[0].mxu0 %v3075
  %v3111 = vpop.f32.mrb[0].mxu0
  %v3112 = vadd.f32 0.0, %v3111
  %v3113 = vpop.f32.mrb[0].mxu0
  %v3114 = vpop.f32.mrb[0].mxu0
  %v3115 = vpop.f32.mrb[0].mxu0
  %3116 = vdwg.mxu0
  %v3117 = vadd.f32 %v3002, %v3112
  %s3118 = scalar_lea.vmem %s31, 32
  %v3119 = vld [vmem:[%s3118] sm:$0xf]
  %v3121 = vsel %vm2198, %v3119, 0
  %3123 = vmatprep.subr.bf16.mxu0 0
  %3124 = vmatpush1.bf16.msra.mxu0 %v2204
  %3125 = vmatprep.subr.bf16.mxu0 0
  %3126 = vmatpush1.bf16.msra.mxu0 0
  %3127 = vmatprep.subr.bf16.mxu0 0
  %3128 = vmatpush1.bf16.msra.mxu0 0
  %3129 = vmatprep.subr.bf16.mxu0 0
  %3130 = vmatpush1.bf16.msra.mxu0 0
  %3131 = vmatprep.subr.bf16.mxu0 0
  %3132 = vmatpush1.bf16.msra.mxu0 0
  %3133 = vmatprep.subr.bf16.mxu0 0
  %3134 = vmatpush1.bf16.msra.mxu0 0
  %3135 = vmatprep.subr.bf16.mxu0 0
  %3136 = vmatpush1.bf16.msra.mxu0 0
  %3137 = vmatprep.subr.bf16.mxu0 0
  %3138 = vmatpush1.bf16.msra.mxu0 0
  %3139 = vmatprep.subr.bf16.mxu0 0
  %3140 = vmatpush1.bf16.msra.mxu0 0
  %3141 = vmatprep.subr.bf16.mxu0 0
  %3142 = vmatpush1.bf16.msra.mxu0 0
  %3143 = vmatprep.subr.bf16.mxu0 0
  %3144 = vmatpush1.bf16.msra.mxu0 0
  %3145 = vmatprep.subr.bf16.mxu0 0
  %3146 = vmatpush1.bf16.msra.mxu0 0
  %3147 = vmatprep.subr.bf16.mxu0 0
  %3148 = vmatpush1.bf16.msra.mxu0 0
  %3149 = vmatprep.subr.bf16.mxu0 0
  %3150 = vmatpush1.bf16.msra.mxu0 0
  %3151 = vmatprep.subr.bf16.mxu0 0
  %3152 = vmatpush1.bf16.msra.mxu0 0
  %3153 = vmatprep.subr.bf16.mxu0 0
  %3154 = vmatpush1.bf16.msra.mxu0 0
  %3155 = vmatprep.mubr.bf16.mxu0 0
  %3156 = vmatmul.mubr.bf16.gmra.mrb[0].mxu0 %v3121
  %v3157 = vpop.f32.mrb[0].mxu0
  %v3158 = vadd.f32 0.0, %v3157
  %v3159 = vpop.f32.mrb[0].mxu0
  %v3160 = vpop.f32.mrb[0].mxu0
  %v3161 = vpop.f32.mrb[0].mxu0
  %3162 = vdwg.mxu0
  %s3163 = scalar_lea.vmem %s43, 192
  %v3164 = vld [vmem:[%s3163] sm:$0xf]
  %v3165 = vld [vmem:[%s3163 + $0x4] sm:$0xf]
  %v3166 = vld [vmem:[%s3163 + $0x8] sm:$0xf]
  %v3167 = vld [vmem:[%s3163 + $0xc] sm:$0xf]
  %v3168 = vld [vmem:[%s3163 + $0x10] sm:$0xf]
  %v3169 = vld [vmem:[%s3163 + $0x14] sm:$0xf]
  %v3170 = vpack.c.bf16 %v3158, %v3158
  %v3177 = vunpack.c.l.b16 %v3164
  %v3178 = vunpack.c.l.b16 %v3165
  %v3179 = vunpack.c.l.b16 %v3166
  %v3180 = vunpack.c.l.b16 %v3167
  %v3181 = vunpack.c.l.b16 %v3168
  %v3182 = vunpack.c.l.b16 %v3169
  %v3183 = vpack.c.b16 %v3178, %v3177
  %v3184 = vpack.c.b16 %v3180, %v3179
  %v3185 = vpack.c.b16 %v3182, %v3181
  %v3190 = vsel %vm293, %v3170, 0
  %3192 = vmatprep.subr.bf16.mxu0 0
  %3193 = vmatpush1.bf16.msra.mxu0 %v3183
  %3194 = vmatprep.subr.bf16.mxu0 0
  %3195 = vmatpush1.bf16.msra.mxu0 %v3184
  %3196 = vmatprep.subr.bf16.mxu0 0
  %3197 = vmatpush1.bf16.msra.mxu0 %v3185
  %3198 = vmatprep.subr.bf16.mxu0 0
  %3199 = vmatpush1.bf16.msra.mxu0 0
  %3200 = vmatprep.subr.bf16.mxu0 0
  %3201 = vmatpush1.bf16.msra.mxu0 0
  %3202 = vmatprep.subr.bf16.mxu0 0
  %3203 = vmatpush1.bf16.msra.mxu0 0
  %3204 = vmatprep.subr.bf16.mxu0 0
  %3205 = vmatpush1.bf16.msra.mxu0 0
  %3206 = vmatprep.subr.bf16.mxu0 0
  %3207 = vmatpush1.bf16.msra.mxu0 0
  %3208 = vmatprep.subr.bf16.mxu0 0
  %3209 = vmatpush1.bf16.msra.mxu0 0
  %3210 = vmatprep.subr.bf16.mxu0 0
  %3211 = vmatpush1.bf16.msra.mxu0 0
  %3212 = vmatprep.subr.bf16.mxu0 0
  %3213 = vmatpush1.bf16.msra.mxu0 0
  %3214 = vmatprep.subr.bf16.mxu0 0
  %3215 = vmatpush1.bf16.msra.mxu0 0
  %3216 = vmatprep.subr.bf16.mxu0 0
  %3217 = vmatpush1.bf16.msra.mxu0 0
  %3218 = vmatprep.subr.bf16.mxu0 0
  %3219 = vmatpush1.bf16.msra.mxu0 0
  %3220 = vmatprep.subr.bf16.mxu0 0
  %3221 = vmatpush1.bf16.msra.mxu0 0
  %3222 = vmatprep.subr.bf16.mxu0 0
  %3223 = vmatpush1.bf16.msra.mxu0 0
  %3224 = vmatprep.mubr.bf16.mxu0 0
  %3225 = vmatmul.mubr.bf16.gmra.mrb[0].mxu0 %v3190
  %v3226 = vpop.f32.mrb[0].mxu0
  %v3227 = vadd.f32 0.0, %v3226
  %v3228 = vpop.f32.mrb[0].mxu0
  %v3229 = vpop.f32.mrb[0].mxu0
  %v3230 = vpop.f32.mrb[0].mxu0
  %3231 = vdwg.mxu0
  %v3232 = vadd.f32 %v3117, %v3227
  %v3233 = vld [vmem:[%s57] sm:$0xf]
  %v3234 = vld [vmem:[%s45] sm:$0x1]
  %v3235 = vld [vmem:[%s47] sm:$0x1]
  %v3236 = vmul.f32 %v3234, %v2073
  %v3238 = vlaneseq
  %v3239 = vshrl.u32 %v3238, 7
  %v3240 = vsub.s32 0, %v3239
  %v3241 = vrot.slane %v3236, %v3240
  %v3243 = vmul.f32 %v2062, %v3241
  %v3245 = vlaneseq
  %v3246 = vshrl.u32 %v3245, 7
  %v3247 = vsub.s32 0, %v3246
  %v3248 = vrot.slane %v3235, %v3247
  %v3250 = vadd.f32 %v3243, %v3248
  %v3251 = vmax.f32 %v3250, 0.0
  %v3252 = vpack.c.bf16 %v3251, %v3251
  %v3254 = vsel %vm2198, %v3233, 0
  %v3257 = vsel %vm2202, %v3252, 0
  %3259 = vmatprep.subr.bf16.mxu0 0
  %3260 = vmatpush1.bf16.msra.mxu0 %v3257
  %3261 = vmatprep.subr.bf16.mxu0 0
  %3262 = vmatpush1.bf16.msra.mxu0 0
  %3263 = vmatprep.subr.bf16.mxu0 0
  %3264 = vmatpush1.bf16.msra.mxu0 0
  %3265 = vmatprep.subr.bf16.mxu0 0
  %3266 = vmatpush1.bf16.msra.mxu0 0
  %3267 = vmatprep.subr.bf16.mxu0 0
  %3268 = vmatpush1.bf16.msra.mxu0 0
  %3269 = vmatprep.subr.bf16.mxu0 0
  %3270 = vmatpush1.bf16.msra.mxu0 0
  %3271 = vmatprep.subr.bf16.mxu0 0
  %3272 = vmatpush1.bf16.msra.mxu0 0
  %3273 = vmatprep.subr.bf16.mxu0 0
  %3274 = vmatpush1.bf16.msra.mxu0 0
  %3275 = vmatprep.subr.bf16.mxu0 0
  %3276 = vmatpush1.bf16.msra.mxu0 0
  %3277 = vmatprep.subr.bf16.mxu0 0
  %3278 = vmatpush1.bf16.msra.mxu0 0
  %3279 = vmatprep.subr.bf16.mxu0 0
  %3280 = vmatpush1.bf16.msra.mxu0 0
  %3281 = vmatprep.subr.bf16.mxu0 0
  %3282 = vmatpush1.bf16.msra.mxu0 0
  %3283 = vmatprep.subr.bf16.mxu0 0
  %3284 = vmatpush1.bf16.msra.mxu0 0
  %3285 = vmatprep.subr.bf16.mxu0 0
  %3286 = vmatpush1.bf16.msra.mxu0 0
  %3287 = vmatprep.subr.bf16.mxu0 0
  %3288 = vmatpush1.bf16.msra.mxu0 0
  %3289 = vmatprep.subr.bf16.mxu0 0
  %3290 = vmatpush1.bf16.msra.mxu0 0
  %3291 = vmatprep.mubr.bf16.mxu0 0
  %3292 = vmatmul.mubr.bf16.gmra.mrb[0].mxu0 %v3254
  %v3293 = vpop.f32.mrb[0].mxu0
  %v3294 = vadd.f32 0.0, %v3293
  %v3295 = vpop.f32.mrb[0].mxu0
  %v3296 = vpop.f32.mrb[0].mxu0
  %v3297 = vpop.f32.mrb[0].mxu0
  %3298 = vdwg.mxu0
  %v3299 = vld [vmem:[%s49] sm:$0xf]
  %v3300 = vld [vmem:[%s49 + $0x4] sm:$0xf]
  %v3301 = vld [vmem:[%s49 + $0x8] sm:$0xf]
  %v3302 = vld [vmem:[%s49 + $0xc] sm:$0xf]
  %v3303 = vld [vmem:[%s49 + $0x10] sm:$0x7]
  %v3304 = vpack.c.bf16 %v3294, %v3294
  %v3305 = vld [vmem:[%s51] sm:$0x1]
  %v3306 = vld [vmem:[%s53] sm:$0x1]
  %v3307 = vsel %vm1793, %v3232, 0.0
  %v3308 = vrot.slane %v3307, 4
  %v3309 = vadd.f32 %v3307, %v3308
  %v3310 = vrot.slane %v3309, 2
  %v3311 = vadd.f32 %v3309, %v3310
  %v3312 = vrot.slane %v3311, 1
  %v3313 = vadd.f32 %v3311, %v3312
  %v3314 = vmul.f32 %v3313, %v2060
  %v3315 = vsub.f32 %v3232, %v3314
  %v3316 = vmul.f32 %v3315, %v3315
  %v3317 = vsel %vm1793, %v3316, 0.0
  %v3318 = vrot.slane %v3317, 4
  %v3319 = vadd.f32 %v3317, %v3318
  %v3320 = vrot.slane %v3319, 2
  %v3321 = vadd.f32 %v3319, %v3320
  %v3322 = vrot.slane %v3321, 1
  %v3323 = vadd.f32 %v3321, %v3322
  %v3324 = vmul.f32 %v3323, %v2060
  %v3325 = vadd.f32 %v3324, 1e-05
  %v3326 = vrsqrt.pop %v3325
  %v3327 = vmul.f32 %v3305, %v3326
  %v3329 = vlaneseq
  %v3330 = vshrl.u32 %v3329, 7
  %v3331 = vsub.s32 0, %v3330
  %v3332 = vrot.slane %v3327, %v3331
  %v3334 = vmul.f32 %v3315, %v3332
  %v3336 = vlaneseq
  %v3337 = vshrl.u32 %v3336, 7
  %v3338 = vsub.s32 0, %v3337
  %v3339 = vrot.slane %v3306, %v3338
  %v3341 = vadd.f32 %v3334, %v3339
  %v3342 = vmax.f32 %v3341, 0.0
  %v3343 = vpack.c.bf16 %v3342, %v3342
  %v3345 = vsel %vm2202, %v3343, 0
  %3347 = vmatprep.subr.bf16.mxu0 0
  %3348 = vmatpush1.bf16.msra.mxu0 %v3345
  %3349 = vmatprep.subr.bf16.mxu0 0
  %3350 = vmatpush1.bf16.msra.mxu0 0
  %3351 = vmatprep.subr.bf16.mxu0 0
  %3352 = vmatpush1.bf16.msra.mxu0 0
  %3353 = vmatprep.subr.bf16.mxu0 0
  %3354 = vmatpush1.bf16.msra.mxu0 0
  %3355 = vmatprep.subr.bf16.mxu0 0
  %3356 = vmatpush1.bf16.msra.mxu0 0
  %3357 = vmatprep.subr.bf16.mxu0 0
  %3358 = vmatpush1.bf16.msra.mxu0 0
  %3359 = vmatprep.subr.bf16.mxu0 0
  %3360 = vmatpush1.bf16.msra.mxu0 0
  %3361 = vmatprep.subr.bf16.mxu0 0
  %3362 = vmatpush1.bf16.msra.mxu0 0
  %3363 = vmatprep.subr.bf16.mxu0 0
  %3364 = vmatpush1.bf16.msra.mxu0 0
  %3365 = vmatprep.subr.bf16.mxu0 0
  %3366 = vmatpush1.bf16.msra.mxu0 0
  %3367 = vmatprep.subr.bf16.mxu0 0
  %3368 = vmatpush1.bf16.msra.mxu0 0
  %3369 = vmatprep.subr.bf16.mxu0 0
  %3370 = vmatpush1.bf16.msra.mxu0 0
  %3371 = vmatprep.subr.bf16.mxu0 0
  %3372 = vmatpush1.bf16.msra.mxu0 0
  %3373 = vmatprep.subr.bf16.mxu0 0
  %3374 = vmatpush1.bf16.msra.mxu0 0
  %3375 = vmatprep.subr.bf16.mxu0 0
  %3376 = vmatpush1.bf16.msra.mxu0 0
  %3377 = vmatprep.subr.bf16.mxu0 0
  %3378 = vmatpush1.bf16.msra.mxu0 0
  %3379 = vmatprep.mubr.bf16.mxu0 0
  %3380 = vmatmul.mubr.bf16.gmra.mrb[0].mxu0 %v3254
  %v3381 = vpop.f32.mrb[0].mxu0
  %v3382 = vadd.f32 0.0, %v3381
  %v3383 = vpop.f32.mrb[0].mxu0
  %v3384 = vpop.f32.mrb[0].mxu0
  %v3385 = vpop.f32.mrb[0].mxu0
  %3386 = vdwg.mxu0
  %v3387 = vld [vmem:[%s55] sm:$0xf]
  %v3388 = vld [vmem:[%s55 + $0x4] sm:$0x3]
  %v3389 = vpack.c.bf16 %v3382, %v3382
  %v3392 = vunpack.c.l.b16 %v3387
  %v3393 = vunpack.c.l.b16 %v3388
  %v3394 = vpack.c.b16 %v3393, %v3392
  %v3396 = vsel %vm1793, %v3389, 0
  %v3399 = vsel %vm1872, %v3394, 0
  %3401 = vmatprep.subr.bf16.mxu0 0
  %3402 = vmatpush1.bf16.msra.mxu0 %v3399
  %3403 = vmatprep.subr.bf16.mxu0 0
  %3404 = vmatpush1.bf16.msra.mxu0 0
  %3405 = vmatprep.subr.bf16.mxu0 0
  %3406 = vmatpush1.bf16.msra.mxu0 0
  %3407 = vmatprep.subr.bf16.mxu0 0
  %3408 = vmatpush1.bf16.msra.mxu0 0
  %3409 = vmatprep.subr.bf16.mxu0 0
  %3410 = vmatpush1.bf16.msra.mxu0 0
  %3411 = vmatprep.subr.bf16.mxu0 0
  %3412 = vmatpush1.bf16.msra.mxu0 0
  %3413 = vmatprep.subr.bf16.mxu0 0
  %3414 = vmatpush1.bf16.msra.mxu0 0
  %3415 = vmatprep.subr.bf16.mxu0 0
  %3416 = vmatpush1.bf16.msra.mxu0 0
  %3417 = vmatprep.subr.bf16.mxu0 0
  %3418 = vmatpush1.bf16.msra.mxu0 0
  %3419 = vmatprep.subr.bf16.mxu0 0
  %3420 = vmatpush1.bf16.msra.mxu0 0
  %3421 = vmatprep.subr.bf16.mxu0 0
  %3422 = vmatpush1.bf16.msra.mxu0 0
  %3423 = vmatprep.subr.bf16.mxu0 0
  %3424 = vmatpush1.bf16.msra.mxu0 0
  %3425 = vmatprep.subr.bf16.mxu0 0
  %3426 = vmatpush1.bf16.msra.mxu0 0
  %3427 = vmatprep.subr.bf16.mxu0 0
  %3428 = vmatpush1.bf16.msra.mxu0 0
  %3429 = vmatprep.subr.bf16.mxu0 0
  %3430 = vmatpush1.bf16.msra.mxu0 0
  %3431 = vmatprep.subr.bf16.mxu0 0
  %3432 = vmatpush1.bf16.msra.mxu0 0
  %3433 = vmatprep.mubr.bf16.mxu0 0
  %3434 = vmatmul.mubr.bf16.gmra.mrb[0].mxu0 %v3396
  %v3435 = vpop.f32.mrb[0].mxu0
  %v3436 = vadd.f32 0.0, %v3435
  %v3437 = vpop.f32.mrb[0].mxu0
  %v3438 = vpop.f32.mrb[0].mxu0
  %v3439 = vpop.f32.mrb[0].mxu0
  %3440 = vdwg.mxu0
  %v3446 = vunpack.c.l.b16 %v3299
  %v3447 = vunpack.c.l.b16 %v3300
  %v3448 = vunpack.c.l.b16 %v3301
  %v3449 = vunpack.c.l.b16 %v3302
  %v3450 = vunpack.c.l.b16 %v3303
  %v3451 = vpack.c.b16 %v3447, %v3446
  %v3452 = vpack.c.b16 %v3449, %v3448
  %v3453 = vpack.c.b16 %v3450, %v3450
  %v3457 = vsel %vm2052, %v3304, 0
  %v3460 = vsel %vm2114, %v3453, 0
  %3462 = vmatprep.subr.bf16.mxu0 0
  %3463 = vmatpush1.bf16.msra.mxu0 %v3451
  %3464 = vmatprep.subr.bf16.mxu0 0
  %3465 = vmatpush1.bf16.msra.mxu0 %v3452
  %3466 = vmatprep.subr.bf16.mxu0 0
  %3467 = vmatpush1.bf16.msra.mxu0 %v3460
  %3468 = vmatprep.subr.bf16.mxu0 0
  %3469 = vmatpush1.bf16.msra.mxu0 0
  %3470 = vmatprep.subr.bf16.mxu0 0
  %3471 = vmatpush1.bf16.msra.mxu0 0
  %3472 = vmatprep.subr.bf16.mxu0 0
  %3473 = vmatpush1.bf16.msra.mxu0 0
  %3474 = vmatprep.subr.bf16.mxu0 0
  %3475 = vmatpush1.bf16.msra.mxu0 0
  %3476 = vmatprep.subr.bf16.mxu0 0
  %3477 = vmatpush1.bf16.msra.mxu0 0
  %3478 = vmatprep.subr.bf16.mxu0 0
  %3479 = vmatpush1.bf16.msra.mxu0 0
  %3480 = vmatprep.subr.bf16.mxu0 0
  %3481 = vmatpush1.bf16.msra.mxu0 0
  %3482 = vmatprep.subr.bf16.mxu0 0
  %3483 = vmatpush1.bf16.msra.mxu0 0
  %3484 = vmatprep.subr.bf16.mxu0 0
  %3485 = vmatpush1.bf16.msra.mxu0 0
  %3486 = vmatprep.subr.bf16.mxu0 0
  %3487 = vmatpush1.bf16.msra.mxu0 0
  %3488 = vmatprep.subr.bf16.mxu0 0
  %3489 = vmatpush1.bf16.msra.mxu0 0
  %3490 = vmatprep.subr.bf16.mxu0 0
  %3491 = vmatpush1.bf16.msra.mxu0 0
  %3492 = vmatprep.subr.bf16.mxu0 0
  %3493 = vmatpush1.bf16.msra.mxu0 0
  %3494 = vmatprep.mubr.bf16.mxu0 0
  %3495 = vmatmul.mubr.bf16.gmra.mrb[0].mxu0 %v3457
  %v3496 = vpop.f32.mrb[0].mxu0
  %v3497 = vadd.f32 %v3436, %v3496
  %v3498 = vpop.f32.mrb[0].mxu0
  %v3499 = vpop.f32.mrb[0].mxu0
  %v3500 = vpop.f32.mrb[0].mxu0
  %3501 = vdwg.mxu0
  %v3502 = vld [vmem:[%s59] sm:$0x1]
  %v3504 = vlaneseq
  %v3505 = vshrl.u32 %v3504, 7
  %v3506 = vsub.s32 0, %v3505
  %v3507 = vrot.slane %v3502, %v3506
  %v3509 = vadd.f32 %v3497, %v3507
  %3510 = vst [vmem:[%s61] sm:$0xff] %v3509
  // Predicated region
  $region122: #{ensemble_fwd.4} parent=0 // pred_check
    _
  $region123: #{ensemble_fwd.4} parent=0 // pred_check_branch
    %3512 = sbr.rel (0) target = $region125
  $region124: #{ensemble_fwd.4} parent=0 // pred_region
    _
  $region125: #{ensemble_fwd.4} parent=0 // pred_fallthru
    _
  // Predicated region
  $region126: #{ensemble_fwd.4} parent=0 // pred_check
    _
  $region127: #{ensemble_fwd.4} parent=0 // pred_check_branch
    %3514 = sbr.rel (0) target = $region129
  $region128: #{ensemble_fwd.4} parent=0 // pred_region
    _
  $region129: #{ensemble_fwd.4} parent=0 // pred_fallthru
    _

// kernel: ensemble_fwd.5
$region0: #{ensemble_fwd.5}
  #allocation0 [shape = 'u32[]', space=smem, size = 0x4, offset = 0x4, fixed_abs, tag = 'smem constant byte address 0x4 - core index']
  #allocation1 [shape = 'u32[144,128]{1,0:T(1,128)}', space=vmem, size = 0x12000, scoped, tag = 'internal scratch']
  %s0 = inlined_call_operand.smem [shape: u32[43], index: -1, kind: input, shape index: {}]
  %s1 = sld [smem:[%s0]]
  %s2 = scalar_lea.smem %s0, 1
  %s3 = sld [smem:[%s2]]
  %s4 = scalar_lea.smem %s0, 2
  %s5 = sld [smem:[%s4]]
  %s6 = scalar_lea.smem %s0, 3
  %s7 = sld [smem:[%s6]]
  %s8 = scalar_lea.smem %s0, 4
  %s9 = sld [smem:[%s8]]
  %s10 = scalar_lea.smem %s0, 5
  %s11 = sld [smem:[%s10]]
  %s12 = scalar_lea.smem %s0, 6
  %s13 = sld [smem:[%s12]]
  %s14 = scalar_lea.smem %s0, 7
  %s15 = sld [smem:[%s14]]
  %s16 = scalar_lea.smem %s0, 8
  %s17 = sld [smem:[%s16]]
  %s18 = scalar_lea.smem %s0, 9
  %s19 = sld [smem:[%s18]]
  %s20 = scalar_lea.smem %s0, 10
  %s21 = sld [smem:[%s20]]
  %s22 = scalar_lea.smem %s0, 11
  %s23 = sld [smem:[%s22]]
  %s24 = scalar_lea.smem %s0, 12
  %s25 = sld [smem:[%s24]]
  %s26 = scalar_lea.smem %s0, 13
  %s27 = sld [smem:[%s26]]
  %s28 = scalar_lea.smem %s0, 14
  %s29 = sld [smem:[%s28]]
  %s30 = scalar_lea.smem %s0, 15
  %s31 = sld [smem:[%s30]]
  %s32 = scalar_lea.smem %s0, 16
  %s33 = sld [smem:[%s32]]
  %s34 = scalar_lea.smem %s0, 17
  %s35 = sld [smem:[%s34]]
  %s36 = scalar_lea.smem %s0, 18
  %s37 = sld [smem:[%s36]]
  %s38 = scalar_lea.smem %s0, 19
  %s39 = sld [smem:[%s38]]
  %s40 = scalar_lea.smem %s0, 20
  %s41 = sld [smem:[%s40]]
  %s42 = scalar_lea.smem %s0, 21
  %s43 = sld [smem:[%s42]]
  %s44 = scalar_lea.smem %s0, 22
  %s45 = sld [smem:[%s44]]
  %s46 = scalar_lea.smem %s0, 23
  %s47 = sld [smem:[%s46]]
  %s48 = scalar_lea.smem %s0, 24
  %s49 = sld [smem:[%s48]]
  %s50 = scalar_lea.smem %s0, 25
  %s51 = sld [smem:[%s50]]
  %s52 = scalar_lea.smem %s0, 26
  %s53 = sld [smem:[%s52]]
  %s54 = scalar_lea.smem %s0, 27
  %s55 = sld [smem:[%s54]]
  %s56 = scalar_lea.smem %s0, 28
  %s57 = sld [smem:[%s56]]
  %s58 = scalar_lea.smem %s0, 29
  %s59 = sld [smem:[%s58]]
  %s60 = scalar_lea.smem %s0, 30
  %s61 = sld [smem:[%s60]]
  %s62 = scalar_lea.smem %s0, 31
  %s63 = sld [smem:[%s62]]
  %s64 = scalar_lea.smem %s0, 32
  %s65 = sld [smem:[%s64]]
  %s66 = scalar_lea.smem %s0, 33
  %s67 = sld [smem:[%s66]]
  %s68 = scalar_lea.smem %s0, 34
  %s69 = sld [smem:[%s68]]
  %s70 = scalar_lea.smem %s0, 35
  %s71 = sld [smem:[%s70]]
  %s72 = scalar_lea.smem %s0, 36
  %s73 = sld [smem:[%s72]]
  %s74 = scalar_lea.smem %s0, 37
  %s75 = sld [smem:[%s74]]
  %s76 = scalar_lea.smem %s0, 38
  %s77 = sld [smem:[%s76]]
  %s78 = scalar_lea.smem %s0, 39
  %s79 = sld [smem:[%s78]]
  %s80 = scalar_lea.smem %s0, 40
  %s81 = sld [smem:[%s80]]
  %s82 = scalar_lea.smem %s0, 41
  %s83 = sld [smem:[%s82]]
  %s84 = scalar_lea.smem %s0, 42
  %s85 = sld [smem:[%s84]]
  %s86 = sld [smem:[#allocation0]]
  $region178: #{ensemble_fwd.5} parent=0
    _
  %s88 = ssub.s32 1, %s86
  %s89 = scalar_select 0, %s88, %s86
  // Predicated region
  $region2: #{ensemble_fwd.5} parent=0 // pred_check
    _
  $region3: #{ensemble_fwd.5} parent=0 // pred_check_branch
    %91 = sbr.rel (0) target = $region5
  $region4: #{ensemble_fwd.5} parent=0 // pred_region
    _
  $region5: #{ensemble_fwd.5} parent=0 // pred_fallthru
    _
  // Predicated region
  $region6: #{ensemble_fwd.5} parent=0 // pred_check
    _
  $region7: #{ensemble_fwd.5} parent=0 // pred_check_branch
    %93 = sbr.rel (0) target = $region9
  $region8: #{ensemble_fwd.5} parent=0 // pred_region
    _
  $region9: #{ensemble_fwd.5} parent=0 // pred_fallthru
    _
  // Predicated region
  $region10: #{ensemble_fwd.5} parent=0 // pred_check
    _
  $region11: #{ensemble_fwd.5} parent=0 // pred_check_branch
    %95 = sbr.rel (0) target = $region13
  $region12: #{ensemble_fwd.5} parent=0 // pred_region
    _
  $region13: #{ensemble_fwd.5} parent=0 // pred_fallthru
    _
  // Predicated region
  $region14: #{ensemble_fwd.5} parent=0 // pred_check
    _
  $region15: #{ensemble_fwd.5} parent=0 // pred_check_branch
    %97 = sbr.rel (0) target = $region17
  $region16: #{ensemble_fwd.5} parent=0 // pred_region
    _
  $region17: #{ensemble_fwd.5} parent=0 // pred_fallthru
    _
  // Predicated region
  $region18: #{ensemble_fwd.5} parent=0 // pred_check
    _
  $region19: #{ensemble_fwd.5} parent=0 // pred_check_branch
    %99 = sbr.rel (0) target = $region21
  $region20: #{ensemble_fwd.5} parent=0 // pred_region
    _
  $region21: #{ensemble_fwd.5} parent=0 // pred_fallthru
    _
  // Predicated region
  $region22: #{ensemble_fwd.5} parent=0 // pred_check
    _
  $region23: #{ensemble_fwd.5} parent=0 // pred_check_branch
    %101 = sbr.rel (0) target = $region25
  $region24: #{ensemble_fwd.5} parent=0 // pred_region
    _
  $region25: #{ensemble_fwd.5} parent=0 // pred_fallthru
    _
  // Predicated region
  $region26: #{ensemble_fwd.5} parent=0 // pred_check
    _
  $region27: #{ensemble_fwd.5} parent=0 // pred_check_branch
    %103 = sbr.rel (0) target = $region29
  $region28: #{ensemble_fwd.5} parent=0 // pred_region
    _
  $region29: #{ensemble_fwd.5} parent=0 // pred_fallthru
    _
  // Predicated region
  $region30: #{ensemble_fwd.5} parent=0 // pred_check
    _
  $region31: #{ensemble_fwd.5} parent=0 // pred_check_branch
    %105 = sbr.rel (0) target = $region33
  $region32: #{ensemble_fwd.5} parent=0 // pred_region
    _
  $region33: #{ensemble_fwd.5} parent=0 // pred_fallthru
    _
  // Predicated region
  $region34: #{ensemble_fwd.5} parent=0 // pred_check
    _
  $region35: #{ensemble_fwd.5} parent=0 // pred_check_branch
    %107 = sbr.rel (0) target = $region37
  $region36: #{ensemble_fwd.5} parent=0 // pred_region
    _
  $region37: #{ensemble_fwd.5} parent=0 // pred_fallthru
    _
  // Predicated region
  $region38: #{ensemble_fwd.5} parent=0 // pred_check
    _
  $region39: #{ensemble_fwd.5} parent=0 // pred_check_branch
    %109 = sbr.rel (0) target = $region41
  $region40: #{ensemble_fwd.5} parent=0 // pred_region
    _
  $region41: #{ensemble_fwd.5} parent=0 // pred_fallthru
    _
  // Predicated region
  $region42: #{ensemble_fwd.5} parent=0 // pred_check
    _
  $region43: #{ensemble_fwd.5} parent=0 // pred_check_branch
    %111 = sbr.rel (0) target = $region45
  $region44: #{ensemble_fwd.5} parent=0 // pred_region
    _
  $region45: #{ensemble_fwd.5} parent=0 // pred_fallthru
    _
  // Predicated region
  $region46: #{ensemble_fwd.5} parent=0 // pred_check
    _
  $region47: #{ensemble_fwd.5} parent=0 // pred_check_branch
    %113 = sbr.rel (0) target = $region49
  $region48: #{ensemble_fwd.5} parent=0 // pred_region
    _
  $region49: #{ensemble_fwd.5} parent=0 // pred_fallthru
    _
  // Predicated region
  $region50: #{ensemble_fwd.5} parent=0 // pred_check
    _
  $region51: #{ensemble_fwd.5} parent=0 // pred_check_branch
    %115 = sbr.rel (0) target = $region53
  $region52: #{ensemble_fwd.5} parent=0 // pred_region
    _
  $region53: #{ensemble_fwd.5} parent=0 // pred_fallthru
    _
  // Predicated region
  $region54: #{ensemble_fwd.5} parent=0 // pred_check
    _
  $region55: #{ensemble_fwd.5} parent=0 // pred_check_branch
    %117 = sbr.rel (0) target = $region57
  $region56: #{ensemble_fwd.5} parent=0 // pred_region
    _
  $region57: #{ensemble_fwd.5} parent=0 // pred_fallthru
    _
  // Predicated region
  $region58: #{ensemble_fwd.5} parent=0 // pred_check
    _
  $region59: #{ensemble_fwd.5} parent=0 // pred_check_branch
    %119 = sbr.rel (0) target = $region61
  $region60: #{ensemble_fwd.5} parent=0 // pred_region
    _
  $region61: #{ensemble_fwd.5} parent=0 // pred_fallthru
    _
  // Predicated region
  $region62: #{ensemble_fwd.5} parent=0 // pred_check
    _
  $region63: #{ensemble_fwd.5} parent=0 // pred_check_branch
    %121 = sbr.rel (0) target = $region65
  $region64: #{ensemble_fwd.5} parent=0 // pred_region
    _
  $region65: #{ensemble_fwd.5} parent=0 // pred_fallthru
    _
  // Predicated region
  $region66: #{ensemble_fwd.5} parent=0 // pred_check
    _
  $region67: #{ensemble_fwd.5} parent=0 // pred_check_branch
    %123 = sbr.rel (0) target = $region69
  $region68: #{ensemble_fwd.5} parent=0 // pred_region
    _
  $region69: #{ensemble_fwd.5} parent=0 // pred_fallthru
    _
  // Predicated region
  $region70: #{ensemble_fwd.5} parent=0 // pred_check
    _
  $region71: #{ensemble_fwd.5} parent=0 // pred_check_branch
    %125 = sbr.rel (0) target = $region73
  $region72: #{ensemble_fwd.5} parent=0 // pred_region
    _
  $region73: #{ensemble_fwd.5} parent=0 // pred_fallthru
    _
  // Predicated region
  $region74: #{ensemble_fwd.5} parent=0 // pred_check
    _
  $region75: #{ensemble_fwd.5} parent=0 // pred_check_branch
    %127 = sbr.rel (0) target = $region77
  $region76: #{ensemble_fwd.5} parent=0 // pred_region
    _
  $region77: #{ensemble_fwd.5} parent=0 // pred_fallthru
    _
  // Predicated region
  $region78: #{ensemble_fwd.5} parent=0 // pred_check
    _
  $region79: #{ensemble_fwd.5} parent=0 // pred_check_branch
    %129 = sbr.rel (0) target = $region81
  $region80: #{ensemble_fwd.5} parent=0 // pred_region
    _
  $region81: #{ensemble_fwd.5} parent=0 // pred_fallthru
    _
  // Predicated region
  $region82: #{ensemble_fwd.5} parent=0 // pred_check
    _
  $region83: #{ensemble_fwd.5} parent=0 // pred_check_branch
    %131 = sbr.rel (0) target = $region85
  $region84: #{ensemble_fwd.5} parent=0 // pred_region
    _
  $region85: #{ensemble_fwd.5} parent=0 // pred_fallthru
    _
  // Predicated region
  $region86: #{ensemble_fwd.5} parent=0 // pred_check
    _
  $region87: #{ensemble_fwd.5} parent=0 // pred_check_branch
    %133 = sbr.rel (0) target = $region89
  $region88: #{ensemble_fwd.5} parent=0 // pred_region
    _
  $region89: #{ensemble_fwd.5} parent=0 // pred_fallthru
    _
  // Predicated region
  $region90: #{ensemble_fwd.5} parent=0 // pred_check
    _
  $region91: #{ensemble_fwd.5} parent=0 // pred_check_branch
    %135 = sbr.rel (0) target = $region93
  $region92: #{ensemble_fwd.5} parent=0 // pred_region
    _
  $region93: #{ensemble_fwd.5} parent=0 // pred_fallthru
    _
  // Predicated region
  $region94: #{ensemble_fwd.5} parent=0 // pred_check
    _
  $region95: #{ensemble_fwd.5} parent=0 // pred_check_branch
    %137 = sbr.rel (0) target = $region97
  $region96: #{ensemble_fwd.5} parent=0 // pred_region
    _
  $region97: #{ensemble_fwd.5} parent=0 // pred_fallthru
    _
  // Predicated region
  $region98: #{ensemble_fwd.5} parent=0 // pred_check
    _
  $region99: #{ensemble_fwd.5} parent=0 // pred_check_branch
    %139 = sbr.rel (0) target = $region101
  $region100: #{ensemble_fwd.5} parent=0 // pred_region
    _
  $region101: #{ensemble_fwd.5} parent=0 // pred_fallthru
    _
  // Predicated region
  $region102: #{ensemble_fwd.5} parent=0 // pred_check
    _
  $region103: #{ensemble_fwd.5} parent=0 // pred_check_branch
    %141 = sbr.rel (0) target = $region105
  $region104: #{ensemble_fwd.5} parent=0 // pred_region
    _
  $region105: #{ensemble_fwd.5} parent=0 // pred_fallthru
    _
  // Predicated region
  $region106: #{ensemble_fwd.5} parent=0 // pred_check
    _
  $region107: #{ensemble_fwd.5} parent=0 // pred_check_branch
    %143 = sbr.rel (0) target = $region109
  $region108: #{ensemble_fwd.5} parent=0 // pred_region
    _
  $region109: #{ensemble_fwd.5} parent=0 // pred_fallthru
    _
  // Predicated region
  $region110: #{ensemble_fwd.5} parent=0 // pred_check
    _
  $region111: #{ensemble_fwd.5} parent=0 // pred_check_branch
    %145 = sbr.rel (0) target = $region113
  $region112: #{ensemble_fwd.5} parent=0 // pred_region
    _
  $region113: #{ensemble_fwd.5} parent=0 // pred_fallthru
    _
  // Predicated region
  $region114: #{ensemble_fwd.5} parent=0 // pred_check
    _
  $region115: #{ensemble_fwd.5} parent=0 // pred_check_branch
    %147 = sbr.rel (0) target = $region117
  $region116: #{ensemble_fwd.5} parent=0 // pred_region
    _
  $region117: #{ensemble_fwd.5} parent=0 // pred_fallthru
    _
  // Predicated region
  $region118: #{ensemble_fwd.5} parent=0 // pred_check
    _
  $region119: #{ensemble_fwd.5} parent=0 // pred_check_branch
    %149 = sbr.rel (0) target = $region121
  $region120: #{ensemble_fwd.5} parent=0 // pred_region
    _
  $region121: #{ensemble_fwd.5} parent=0 // pred_fallthru
    _
  // Predicated region
  $region122: #{ensemble_fwd.5} parent=0 // pred_check
    _
  $region123: #{ensemble_fwd.5} parent=0 // pred_check_branch
    %151 = sbr.rel (0) target = $region125
  $region124: #{ensemble_fwd.5} parent=0 // pred_region
    _
  $region125: #{ensemble_fwd.5} parent=0 // pred_fallthru
    _
  // Predicated region
  $region126: #{ensemble_fwd.5} parent=0 // pred_check
    _
  $region127: #{ensemble_fwd.5} parent=0 // pred_check_branch
    %153 = sbr.rel (0) target = $region129
  $region128: #{ensemble_fwd.5} parent=0 // pred_region
    _
  $region129: #{ensemble_fwd.5} parent=0 // pred_fallthru
    _
  // Predicated region
  $region130: #{ensemble_fwd.5} parent=0 // pred_check
    _
  $region131: #{ensemble_fwd.5} parent=0 // pred_check_branch
    %155 = sbr.rel (0) target = $region133
  $region132: #{ensemble_fwd.5} parent=0 // pred_region
    _
  $region133: #{ensemble_fwd.5} parent=0 // pred_fallthru
    _
  // Predicated region
  $region134: #{ensemble_fwd.5} parent=0 // pred_check
    _
  $region135: #{ensemble_fwd.5} parent=0 // pred_check_branch
    %157 = sbr.rel (0) target = $region137
  $region136: #{ensemble_fwd.5} parent=0 // pred_region
    _
  $region137: #{ensemble_fwd.5} parent=0 // pred_fallthru
    _
  // Predicated region
  $region138: #{ensemble_fwd.5} parent=0 // pred_check
    _
  $region139: #{ensemble_fwd.5} parent=0 // pred_check_branch
    %159 = sbr.rel (0) target = $region141
  $region140: #{ensemble_fwd.5} parent=0 // pred_region
    _
  $region141: #{ensemble_fwd.5} parent=0 // pred_fallthru
    _
  // Predicated region
  $region142: #{ensemble_fwd.5} parent=0 // pred_check
    _
  $region143: #{ensemble_fwd.5} parent=0 // pred_check_branch
    %161 = sbr.rel (0) target = $region145
  $region144: #{ensemble_fwd.5} parent=0 // pred_region
    _
  $region145: #{ensemble_fwd.5} parent=0 // pred_fallthru
    _
  // Predicated region
  $region146: #{ensemble_fwd.5} parent=0 // pred_check
    _
  $region147: #{ensemble_fwd.5} parent=0 // pred_check_branch
    %163 = sbr.rel (0) target = $region149
  $region148: #{ensemble_fwd.5} parent=0 // pred_region
    _
  $region149: #{ensemble_fwd.5} parent=0 // pred_fallthru
    _
  // Predicated region
  $region150: #{ensemble_fwd.5} parent=0 // pred_check
    _
  $region151: #{ensemble_fwd.5} parent=0 // pred_check_branch
    %165 = sbr.rel (0) target = $region153
  $region152: #{ensemble_fwd.5} parent=0 // pred_region
    _
  $region153: #{ensemble_fwd.5} parent=0 // pred_fallthru
    _
  // Predicated region
  $region154: #{ensemble_fwd.5} parent=0 // pred_check
    _
  $region155: #{ensemble_fwd.5} parent=0 // pred_check_branch
    %167 = sbr.rel (0) target = $region157
  $region156: #{ensemble_fwd.5} parent=0 // pred_region
    _
  $region157: #{ensemble_fwd.5} parent=0 // pred_fallthru
    _
  // Predicated region
  $region158: #{ensemble_fwd.5} parent=0 // pred_check
    _
  $region159: #{ensemble_fwd.5} parent=0 // pred_check_branch
    %169 = sbr.rel (0) target = $region161
  $region160: #{ensemble_fwd.5} parent=0 // pred_region
    _
  $region161: #{ensemble_fwd.5} parent=0 // pred_fallthru
    _
  // Predicated region
  $region162: #{ensemble_fwd.5} parent=0 // pred_check
    _
  $region163: #{ensemble_fwd.5} parent=0 // pred_check_branch
    %171 = sbr.rel (0) target = $region165
  $region164: #{ensemble_fwd.5} parent=0 // pred_region
    _
  $region165: #{ensemble_fwd.5} parent=0 // pred_fallthru
    _
  // Predicated region
  $region166: #{ensemble_fwd.5} parent=0 // pred_check
    _
  $region167: #{ensemble_fwd.5} parent=0 // pred_check_branch
    %173 = sbr.rel (0) target = $region169
  $region168: #{ensemble_fwd.5} parent=0 // pred_region
    _
  $region169: #{ensemble_fwd.5} parent=0 // pred_fallthru
    _
  %v175 = vld [vmem:[%s1] sm:$0xf]
  %v176 = vld [vmem:[%s1 + $0x4] sm:$0xf]
  %v177 = vld [vmem:[%s1 + $0x8] sm:$0xf]
  %v178 = vld [vmem:[%s1 + $0xc] sm:$0xf]
  %v179 = vunpack.c.l.bf16 %v175
  %v180 = vunpack.c.l.bf16 %v176
  %v181 = vunpack.c.l.bf16 %v177
  %v182 = vunpack.c.l.bf16 %v178
  %v183 = vld [vmem:[%s5] sm:$0x1]
  %v184 = vld [vmem:[%s7] sm:$0x1]
  %vm185 = vcmask 523264
  %v186 = vsel %vm185, %v179, 0.0
  %v187 = vsel %vm185, %v180, 0.0
  %v188 = vadd.f32 %v186, %v187
  %v189 = vsel %vm185, %v181, 0.0
  %v190 = vadd.f32 %v188, %v189
  %v191 = vsel %vm185, %v182, 0.0
  %v192 = vadd.f32 %v190, %v191
  %v193 = vrot.slane %v192, 4
  %v194 = vadd.f32 %v192, %v193
  %v195 = vrot.slane %v194, 2
  %v196 = vadd.f32 %v194, %v195
  %v197 = vrot.slane %v196, 1
  %v198 = vadd.f32 %v196, %v197
  %v199 = vrcp.pop 32.0
  %v200 = vmul.f32 %v198, %v199
  %v201 = vsub.f32 %v179, %v200
  %v202 = vsub.f32 %v180, %v200
  %v203 = vsub.f32 %v181, %v200
  %v204 = vsub.f32 %v182, %v200
  %v205 = vmul.f32 %v201, %v201
  %v206 = vmul.f32 %v202, %v202
  %v207 = vmul.f32 %v203, %v203
  %v208 = vmul.f32 %v204, %v204
  %v209 = vsel %vm185, %v205, 0.0
  %v210 = vsel %vm185, %v206, 0.0
  %v211 = vadd.f32 %v209, %v210
  %v212 = vsel %vm185, %v207, 0.0
  %v213 = vadd.f32 %v211, %v212
  %v214 = vsel %vm185, %v208, 0.0
  %v215 = vadd.f32 %v213, %v214
  %v216 = vrot.slane %v215, 4
  %v217 = vadd.f32 %v215, %v216
  %v218 = vrot.slane %v217, 2
  %v219 = vadd.f32 %v217, %v218
  %v220 = vrot.slane %v219, 1
  %v221 = vadd.f32 %v219, %v220
  %v222 = vmul.f32 %v221, %v199
  %v223 = vadd.f32 %v222, 1e-05
  %v224 = vrsqrt.pop %v223
  %v225 = vmul.f32 %v183, %v224
  %v227 = vlaneseq
  %v228 = vshrl.u32 %v227, 7
  %v229 = vsub.s32 0, %v228
  %v230 = vrot.slane %v225, %v229
  %v232 = vmul.f32 %v201, %v230
  %v233 = vmul.f32 %v202, %v230
  %v234 = vmul.f32 %v203, %v230
  %v235 = vmul.f32 %v204, %v230
  %v237 = vlaneseq
  %v238 = vshrl.u32 %v237, 7
  %v239 = vsub.s32 0, %v238
  %v240 = vrot.slane %v184, %v239
  %v242 = vadd.f32 %v232, %v240
  %v243 = vadd.f32 %v233, %v240
  %v244 = vadd.f32 %v234, %v240
  %v245 = vadd.f32 %v235, %v240
  %v246 = vmax.f32 %v242, 0.0
  %v247 = vmax.f32 %v243, 0.0
  %v248 = vmax.f32 %v244, 0.0
  %v249 = vmax.f32 %v245, 0.0
  %v250 = vld [vmem:[%s9] sm:$0xf]
  %v251 = vld [vmem:[%s9 + $0x4] sm:$0xf]
  %v252 = vld [vmem:[%s9 + $0x8] sm:$0xf]
  %v253 = vld [vmem:[%s9 + $0xc] sm:$0xf]
  %v254 = vld [vmem:[%s9 + $0x10] sm:$0xf]
  %v255 = vld [vmem:[%s9 + $0x14] sm:$0xf]
  %v256 = vld [vmem:[%s9 + $0x18] sm:$0xf]
  %v257 = vld [vmem:[%s9 + $0x1c] sm:$0xf]
  %v258 = vpack.c.bf16 %v247, %v246
  %v259 = vpack.c.bf16 %v249, %v248
  %v268 = vunpack.c.l.b16 %v250
  %v269 = vunpack.c.l.b16 %v251
  %v270 = vunpack.c.l.b16 %v252
  %v271 = vunpack.c.l.b16 %v253
  %v272 = vunpack.c.l.b16 %v254
  %v273 = vunpack.c.l.b16 %v255
  %v274 = vunpack.c.l.b16 %v256
  %v275 = vunpack.c.l.b16 %v257
  %v276 = vpack.c.b16 %v269, %v268
  %v277 = vpack.c.b16 %v271, %v270
  %v278 = vpack.c.b16 %v273, %v272
  %v279 = vpack.c.b16 %v275, %v274
  %v285 = vsel %vm185, %v258, 0
  %v288 = vsel %vm185, %v259, 0
  %290 = vmatprep.subr.bf16.mxu0 0
  %291 = vmatpush1.bf16.msra.mxu0 %v276
  %292 = vmatprep.subr.bf16.mxu0 0
  %293 = vmatpush1.bf16.msra.mxu0 %v277
  %294 = vmatprep.subr.bf16.mxu0 0
  %295 = vmatpush1.bf16.msra.mxu0 %v278
  %296 = vmatprep.subr.bf16.mxu0 0
  %297 = vmatpush1.bf16.msra.mxu0 %v279
  %298 = vmatprep.subr.bf16.mxu0 0
  %299 = vmatpush1.bf16.msra.mxu0 0
  %300 = vmatprep.subr.bf16.mxu0 0
  %301 = vmatpush1.bf16.msra.mxu0 0
  %302 = vmatprep.subr.bf16.mxu0 0
  %303 = vmatpush1.bf16.msra.mxu0 0
  %304 = vmatprep.subr.bf16.mxu0 0
  %305 = vmatpush1.bf16.msra.mxu0 0
  %306 = vmatprep.subr.bf16.mxu0 0
  %307 = vmatpush1.bf16.msra.mxu0 0
  %308 = vmatprep.subr.bf16.mxu0 0
  %309 = vmatpush1.bf16.msra.mxu0 0
  %310 = vmatprep.subr.bf16.mxu0 0
  %311 = vmatpush1.bf16.msra.mxu0 0
  %312 = vmatprep.subr.bf16.mxu0 0
  %313 = vmatpush1.bf16.msra.mxu0 0
  %314 = vmatprep.subr.bf16.mxu0 0
  %315 = vmatpush1.bf16.msra.mxu0 0
  %316 = vmatprep.subr.bf16.mxu0 0
  %317 = vmatpush1.bf16.msra.mxu0 0
  %318 = vmatprep.subr.bf16.mxu0 0
  %319 = vmatpush1.bf16.msra.mxu0 0
  %320 = vmatprep.subr.bf16.mxu0 0
  %321 = vmatpush1.bf16.msra.mxu0 0
  %322 = vmatprep.mubr.bf16.mxu0 0
  %323 = vmatmul.mubr.bf16.gmra.mrb[0].mxu0 %v285
  %v324 = vpop.f32.mrb[0].mxu0
  %v325 = vadd.f32 0.0, %v324
  %v326 = vpop.f32.mrb[0].mxu0
  %v327 = vpop.f32.mrb[0].mxu0
  %v328 = vadd.f32 0.0, %v327
  %v329 = vpop.f32.mrb[0].mxu0
  %330 = vmatprep.mubr.bf16.mxu0 0
  %331 = vmatmul.mubr.bf16.gmra.mrb[0].mxu0 %v288
  %v332 = vpop.f32.mrb[0].mxu0
  %v333 = vadd.f32 0.0, %v332
  %v334 = vpop.f32.mrb[0].mxu0
  %v335 = vpop.f32.mrb[0].mxu0
  %v336 = vadd.f32 0.0, %v335
  %v337 = vpop.f32.mrb[0].mxu0
  %338 = vdwg.mxu0
  %v339 = vld [vmem:[%s11] sm:$0x1]
  %v340 = vld [vmem:[%s13] sm:$0x1]
  %vm341 = vcmask 392192
  %v342 = vsel %vm341, %v325, 0.0
  %v343 = vsel %vm341, %v328, 0.0
  %v344 = vadd.f32 %v342, %v343
  %v345 = vsel %vm341, %v333, 0.0
  %v346 = vadd.f32 %v344, %v345
  %v347 = vsel %vm341, %v336, 0.0
  %v348 = vadd.f32 %v346, %v347
  %v349 = vrot.slane %v348, 4
  %v350 = vadd.f32 %v348, %v349
  %v351 = vrot.slane %v350, 2
  %v352 = vadd.f32 %v350, %v351
  %v353 = vrot.slane %v352, 1
  %v354 = vadd.f32 %v352, %v353
  %v355 = vmul.f32 %v354, %v199
  %v356 = vsub.f32 %v325, %v355
  %v357 = vsub.f32 %v328, %v355
  %v358 = vsub.f32 %v333, %v355
  %v359 = vsub.f32 %v336, %v355
  %v360 = vmul.f32 %v356, %v356
  %v361 = vmul.f32 %v357, %v357
  %v362 = vmul.f32 %v358, %v358
  %v363 = vmul.f32 %v359, %v359
  %v364 = vsel %vm341, %v360, 0.0
  %v365 = vsel %vm341, %v361, 0.0
  %v366 = vadd.f32 %v364, %v365
  %v367 = vsel %vm341, %v362, 0.0
  %v368 = vadd.f32 %v366, %v367
  %v369 = vsel %vm341, %v363, 0.0
  %v370 = vadd.f32 %v368, %v369
  %v371 = vrot.slane %v370, 4
  %v372 = vadd.f32 %v370, %v371
  %v373 = vrot.slane %v372, 2
  %v374 = vadd.f32 %v372, %v373
  %v375 = vrot.slane %v374, 1
  %v376 = vadd.f32 %v374, %v375
  %v377 = vmul.f32 %v376, %v199
  %v378 = vadd.f32 %v377, 1e-05
  %v379 = vrsqrt.pop %v378
  %v380 = vmul.f32 %v339, %v379
  %v382 = vlaneseq
  %v383 = vshrl.u32 %v382, 7
  %v384 = vsub.s32 0, %v383
  %v385 = vrot.slane %v380, %v384
  %v387 = vmul.f32 %v356, %v385
  %v388 = vmul.f32 %v357, %v385
  %v389 = vmul.f32 %v358, %v385
  %v390 = vmul.f32 %v359, %v385
  %v392 = vlaneseq
  %v393 = vshrl.u32 %v392, 7
  %v394 = vsub.s32 0, %v393
  %v395 = vrot.slane %v340, %v394
  %v397 = vadd.f32 %v387, %v395
  %v398 = vadd.f32 %v388, %v395
  %v399 = vadd.f32 %v389, %v395
  %v400 = vadd.f32 %v390, %v395
  %v401 = vmax.f32 %v397, 0.0
  %v402 = vmax.f32 %v398, 0.0
  %v403 = vmax.f32 %v399, 0.0
  %v404 = vmax.f32 %v400, 0.0
  %v405 = vld [vmem:[%s3] sm:$0xf]
  %v406 = vld [vmem:[%s3 + $0x4] sm:$0xf]
  %v407 = vld [vmem:[%s3 + $0x8] sm:$0xf]
  %v408 = vld [vmem:[%s3 + $0xc] sm:$0xf]
  %v409 = vpack.c.bf16 %v402, %v401
  %v410 = vpack.c.bf16 %v404, %v403
  %v415 = vunpack.c.l.b16 %v405
  %v416 = vunpack.c.l.b16 %v406
  %v417 = vunpack.c.l.b16 %v407
  %v418 = vunpack.c.l.b16 %v408
  %v419 = vpack.c.b16 %v416, %v415
  %v420 = vpack.c.b16 %v418, %v417
  %vm421 = vcmask 261120
  %v423 = vsel %vm421, %v419, 0
  %v426 = vsel %vm421, %v420, 0
  %428 = vmatprep.subr.bf16.mxu0 0
  %429 = vmatpush1.bf16.msra.mxu0 %v409
  %430 = vmatprep.subr.bf16.mxu0 0
  %431 = vmatpush1.bf16.msra.mxu0 %v410
  %432 = vmatprep.subr.bf16.mxu0 0
  %433 = vmatpush1.bf16.msra.mxu0 0
  %434 = vmatprep.subr.bf16.mxu0 0
  %435 = vmatpush1.bf16.msra.mxu0 0
  %436 = vmatprep.subr.bf16.mxu0 0
  %437 = vmatpush1.bf16.msra.mxu0 0
  %438 = vmatprep.subr.bf16.mxu0 0
  %439 = vmatpush1.bf16.msra.mxu0 0
  %440 = vmatprep.subr.bf16.mxu0 0
  %441 = vmatpush1.bf16.msra.mxu0 0
  %442 = vmatprep.subr.bf16.mxu0 0
  %443 = vmatpush1.bf16.msra.mxu0 0
  %444 = vmatprep.subr.bf16.mxu0 0
  %445 = vmatpush1.bf16.msra.mxu0 0
  %446 = vmatprep.subr.bf16.mxu0 0
  %447 = vmatpush1.bf16.msra.mxu0 0
  %448 = vmatprep.subr.bf16.mxu0 0
  %449 = vmatpush1.bf16.msra.mxu0 0
  %450 = vmatprep.subr.bf16.mxu0 0
  %451 = vmatpush1.bf16.msra.mxu0 0
  %452 = vmatprep.subr.bf16.mxu0 0
  %453 = vmatpush1.bf16.msra.mxu0 0
  %454 = vmatprep.subr.bf16.mxu0 0
  %455 = vmatpush1.bf16.msra.mxu0 0
  %456 = vmatprep.subr.bf16.mxu0 0
  %457 = vmatpush1.bf16.msra.mxu0 0
  %458 = vmatprep.subr.bf16.mxu0 0
  %459 = vmatpush1.bf16.msra.mxu0 0
  %460 = vmatprep.mubr.bf16.mxu0 0
  %461 = vmatmul.mubr.bf16.gmra.mrb[0].mxu0 %v423
  %v462 = vpop.f32.mrb[0].mxu0
  %v463 = vadd.f32 0.0, %v462
  %v464 = vpop.f32.mrb[0].mxu0
  %v465 = vpop.f32.mrb[0].mxu0
  %v466 = vadd.f32 0.0, %v465
  %v467 = vpop.f32.mrb[0].mxu0
  %468 = vmatprep.mubr.bf16.mxu0 0
  %469 = vmatmul.mubr.bf16.gmra.mrb[0].mxu0 %v426
  %v470 = vpop.f32.mrb[0].mxu0
  %v471 = vadd.f32 0.0, %v470
  %v472 = vpop.f32.mrb[0].mxu0
  %v473 = vpop.f32.mrb[0].mxu0
  %v474 = vadd.f32 0.0, %v473
  %v475 = vpop.f32.mrb[0].mxu0
  %476 = vdwg.mxu0
  %v477 = vld [vmem:[%s15] sm:$0xf]
  %v478 = vld [vmem:[%s15 + $0x4] sm:$0xf]
  %v479 = vld [vmem:[%s15 + $0x8] sm:$0xf]
  %v480 = vld [vmem:[%s15 + $0xc] sm:$0xf]
  %v481 = vld [vmem:[%s15 + $0x10] sm:$0xf]
  %v482 = vld [vmem:[%s15 + $0x14] sm:$0xf]
  %v483 = vpack.c.bf16 %v466, %v463
  %v484 = vpack.c.bf16 %v474, %v471
  %s485 = scalar_lea.vmem %s3, 16
  %v486 = vld [vmem:[%s485] sm:$0xf]
  %v487 = vld [vmem:[%s485 + $0x4] sm:$0xf]
  %v488 = vld [vmem:[%s485 + $0x8] sm:$0xf]
  %v489 = vld [vmem:[%s485 + $0xc] sm:$0xf]
  %v494 = vunpack.c.l.b16 %v486
  %v495 = vunpack.c.l.b16 %v487
  %v496 = vunpack.c.l.b16 %v488
  %v497 = vunpack.c.l.b16 %v489
  %v498 = vpack.c.b16 %v495, %v494
  %v499 = vpack.c.b16 %v497, %v496
  %v501 = vsel %vm421, %v498, 0
  %v504 = vsel %vm421, %v499, 0
  %506 = vmatprep.subr.bf16.mxu0 0
  %507 = vmatpush1.bf16.msra.mxu0 %v409
  %508 = vmatprep.subr.bf16.mxu0 0
  %509 = vmatpush1.bf16.msra.mxu0 %v410
  %510 = vmatprep.subr.bf16.mxu0 0
  %511 = vmatpush1.bf16.msra.mxu0 0
  %512 = vmatprep.subr.bf16.mxu0 0
  %513 = vmatpush1.bf16.msra.mxu0 0
  %514 = vmatprep.subr.bf16.mxu0 0
  %515 = vmatpush1.bf16.msra.mxu0 0
  %516 = vmatprep.subr.bf16.mxu0 0
  %517 = vmatpush1.bf16.msra.mxu0 0
  %518 = vmatprep.subr.bf16.mxu0 0
  %519 = vmatpush1.bf16.msra.mxu0 0
  %520 = vmatprep.subr.bf16.mxu0 0
  %521 = vmatpush1.bf16.msra.mxu0 0
  %522 = vmatprep.subr.bf16.mxu0 0
  %523 = vmatpush1.bf16.msra.mxu0 0
  %524 = vmatprep.subr.bf16.mxu0 0
  %525 = vmatpush1.bf16.msra.mxu0 0
  %526 = vmatprep.subr.bf16.mxu0 0
  %527 = vmatpush1.bf16.msra.mxu0 0
  %528 = vmatprep.subr.bf16.mxu0 0
  %529 = vmatpush1.bf16.msra.mxu0 0
  %530 = vmatprep.subr.bf16.mxu0 0
  %531 = vmatpush1.bf16.msra.mxu0 0
  %532 = vmatprep.subr.bf16.mxu0 0
  %533 = vmatpush1.bf16.msra.mxu0 0
  %534 = vmatprep.subr.bf16.mxu0 0
  %535 = vmatpush1.bf16.msra.mxu0 0
  %536 = vmatprep.subr.bf16.mxu0 0
  %537 = vmatpush1.bf16.msra.mxu0 0
  %538 = vmatprep.mubr.bf16.mxu0 0
  %539 = vmatmul.mubr.bf16.gmra.mrb[0].mxu0 %v501
  %v540 = vpop.f32.mrb[0].mxu0
  %v541 = vadd.f32 0.0, %v540
  %v542 = vpop.f32.mrb[0].mxu0
  %v543 = vpop.f32.mrb[0].mxu0
  %v544 = vadd.f32 0.0, %v543
  %v545 = vpop.f32.mrb[0].mxu0
  %546 = vmatprep.mubr.bf16.mxu0 0
  %547 = vmatmul.mubr.bf16.gmra.mrb[0].mxu0 %v504
  %v548 = vpop.f32.mrb[0].mxu0
  %v549 = vadd.f32 0.0, %v548
  %v550 = vpop.f32.mrb[0].mxu0
  %v551 = vpop.f32.mrb[0].mxu0
  %v552 = vadd.f32 0.0, %v551
  %v553 = vpop.f32.mrb[0].mxu0
  %554 = vdwg.mxu0
  %s555 = scalar_lea.vmem %s15, 24
  %v556 = vld [vmem:[%s555] sm:$0xf]
  %v557 = vld [vmem:[%s555 + $0x4] sm:$0xf]
  %v558 = vld [vmem:[%s555 + $0x8] sm:$0xf]
  %v559 = vld [vmem:[%s555 + $0xc] sm:$0xf]
  %v560 = vld [vmem:[%s555 + $0x10] sm:$0xf]
  %v561 = vld [vmem:[%s555 + $0x14] sm:$0xf]
  %v562 = vpack.c.bf16 %v544, %v541
  %v563 = vpack.c.bf16 %v552, %v549
  %v570 = vunpack.c.l.b16 %v556
  %v571 = vunpack.c.l.b16 %v557
  %v572 = vunpack.c.l.b16 %v558
  %v573 = vunpack.c.l.b16 %v559
  %v574 = vunpack.c.l.b16 %v560
  %v575 = vunpack.c.l.b16 %v561
  %v576 = vpack.c.b16 %v571, %v570
  %v577 = vpack.c.b16 %v573, %v572
  %v578 = vpack.c.b16 %v575, %v574
  %v583 = vsel %vm341, %v562, 0
  %v586 = vsel %vm341, %v563, 0
  %588 = vmatprep.subr.bf16.mxu0 0
  %589 = vmatpush1.bf16.msra.mxu0 %v576
  %590 = vmatprep.subr.bf16.mxu0 0
  %591 = vmatpush1.bf16.msra.mxu0 %v577
  %592 = vmatprep.subr.bf16.mxu0 0
  %593 = vmatpush1.bf16.msra.mxu0 %v578
  %594 = vmatprep.subr.bf16.mxu0 0
  %595 = vmatpush1.bf16.msra.mxu0 0
  %596 = vmatprep.subr.bf16.mxu0 0
  %597 = vmatpush1.bf16.msra.mxu0 0
  %598 = vmatprep.subr.bf16.mxu0 0
  %599 = vmatpush1.bf16.msra.mxu0 0
  %600 = vmatprep.subr.bf16.mxu0 0
  %601 = vmatpush1.bf16.msra.mxu0 0
  %602 = vmatprep.subr.bf16.mxu0 0
  %603 = vmatpush1.bf16.msra.mxu0 0
  %604 = vmatprep.subr.bf16.mxu0 0
  %605 = vmatpush1.bf16.msra.mxu0 0
  %606 = vmatprep.subr.bf16.mxu0 0
  %607 = vmatpush1.bf16.msra.mxu0 0
  %608 = vmatprep.subr.bf16.mxu0 0
  %609 = vmatpush1.bf16.msra.mxu0 0
  %610 = vmatprep.subr.bf16.mxu0 0
  %611 = vmatpush1.bf16.msra.mxu0 0
  %612 = vmatprep.subr.bf16.mxu0 0
  %613 = vmatpush1.bf16.msra.mxu0 0
  %614 = vmatprep.subr.bf16.mxu0 0
  %615 = vmatpush1.bf16.msra.mxu0 0
  %616 = vmatprep.subr.bf16.mxu0 0
  %617 = vmatpush1.bf16.msra.mxu0 0
  %618 = vmatprep.subr.bf16.mxu0 0
  %619 = vmatpush1.bf16.msra.mxu0 0
  %620 = vmatprep.mubr.bf16.mxu0 0
  %621 = vmatmul.mubr.bf16.gmra.mrb[0].mxu0 %v583
  %v622 = vpop.f32.mrb[0].mxu0
  %v623 = vadd.f32 0.0, %v622
  %v624 = vpop.f32.mrb[0].mxu0
  %v625 = vpop.f32.mrb[0].mxu0
  %v626 = vadd.f32 0.0, %v625
  %v627 = vpop.f32.mrb[0].mxu0
  %628 = vmatprep.mubr.bf16.mxu0 0
  %629 = vmatmul.mubr.bf16.gmra.mrb[0].mxu0 %v586
  %v630 = vpop.f32.mrb[0].mxu0
  %v631 = vadd.f32 0.0, %v630
  %v632 = vpop.f32.mrb[0].mxu0
  %v633 = vpop.f32.mrb[0].mxu0
  %v634 = vadd.f32 0.0, %v633
  %v635 = vpop.f32.mrb[0].mxu0
  %636 = vdwg.mxu0
  %v643 = vunpack.c.l.b16 %v477
  %v644 = vunpack.c.l.b16 %v478
  %v645 = vunpack.c.l.b16 %v479
  %v646 = vunpack.c.l.b16 %v480
  %v647 = vunpack.c.l.b16 %v481
  %v648 = vunpack.c.l.b16 %v482
  %v649 = vpack.c.b16 %v644, %v643
  %v650 = vpack.c.b16 %v646, %v645
  %v651 = vpack.c.b16 %v648, %v647
  %v656 = vsel %vm341, %v483, 0
  %v659 = vsel %vm341, %v484, 0
  %661 = vmatprep.subr.bf16.mxu0 0
  %662 = vmatpush1.bf16.msra.mxu0 %v649
  %663 = vmatprep.subr.bf16.mxu0 0
  %664 = vmatpush1.bf16.msra.mxu0 %v650
  %665 = vmatprep.subr.bf16.mxu0 0
  %666 = vmatpush1.bf16.msra.mxu0 %v651
  %667 = vmatprep.subr.bf16.mxu0 0
  %668 = vmatpush1.bf16.msra.mxu0 0
  %669 = vmatprep.subr.bf16.mxu0 0
  %670 = vmatpush1.bf16.msra.mxu0 0
  %671 = vmatprep.subr.bf16.mxu0 0
  %672 = vmatpush1.bf16.msra.mxu0 0
  %673 = vmatprep.subr.bf16.mxu0 0
  %674 = vmatpush1.bf16.msra.mxu0 0
  %675 = vmatprep.subr.bf16.mxu0 0
  %676 = vmatpush1.bf16.msra.mxu0 0
  %677 = vmatprep.subr.bf16.mxu0 0
  %678 = vmatpush1.bf16.msra.mxu0 0
  %679 = vmatprep.subr.bf16.mxu0 0
  %680 = vmatpush1.bf16.msra.mxu0 0
  %681 = vmatprep.subr.bf16.mxu0 0
  %682 = vmatpush1.bf16.msra.mxu0 0
  %683 = vmatprep.subr.bf16.mxu0 0
  %684 = vmatpush1.bf16.msra.mxu0 0
  %685 = vmatprep.subr.bf16.mxu0 0
  %686 = vmatpush1.bf16.msra.mxu0 0
  %687 = vmatprep.subr.bf16.mxu0 0
  %688 = vmatpush1.bf16.msra.mxu0 0
  %689 = vmatprep.subr.bf16.mxu0 0
  %690 = vmatpush1.bf16.msra.mxu0 0
  %691 = vmatprep.subr.bf16.mxu0 0
  %692 = vmatpush1.bf16.msra.mxu0 0
  %693 = vmatprep.mubr.bf16.mxu0 0
  %694 = vmatmul.mubr.bf16.gmra.mrb[0].mxu0 %v656
  %v695 = vpop.f32.mrb[0].mxu0
  %v696 = vadd.f32 %v623, %v695
  %v697 = vpop.f32.mrb[0].mxu0
  %v698 = vpop.f32.mrb[0].mxu0
  %v699 = vadd.f32 %v626, %v698
  %v700 = vpop.f32.mrb[0].mxu0
  %701 = vmatprep.mubr.bf16.mxu0 0
  %702 = vmatmul.mubr.bf16.gmra.mrb[0].mxu0 %v659
  %v703 = vpop.f32.mrb[0].mxu0
  %v704 = vadd.f32 %v631, %v703
  %v705 = vpop.f32.mrb[0].mxu0
  %v706 = vpop.f32.mrb[0].mxu0
  %v707 = vadd.f32 %v634, %v706
  %v708 = vpop.f32.mrb[0].mxu0
  %709 = vdwg.mxu0
  %s710 = scalar_lea.vmem %s3, 32
  %v711 = vld [vmem:[%s710] sm:$0xf]
  %v712 = vld [vmem:[%s710 + $0x4] sm:$0xf]
  %v713 = vld [vmem:[%s710 + $0x8] sm:$0xf]
  %v714 = vld [vmem:[%s710 + $0xc] sm:$0xf]
  %v719 = vunpack.c.l.b16 %v711
  %v720 = vunpack.c.l.b16 %v712
  %v721 = vunpack.c.l.b16 %v713
  %v722 = vunpack.c.l.b16 %v714
  %v723 = vpack.c.b16 %v720, %v719
  %v724 = vpack.c.b16 %v722, %v721
  %v726 = vsel %vm421, %v723, 0
  %v729 = vsel %vm421, %v724, 0
  %731 = vmatprep.subr.bf16.mxu0 0
  %732 = vmatpush1.bf16.msra.mxu0 %v409
  %733 = vmatprep.subr.bf16.mxu0 0
  %734 = vmatpush1.bf16.msra.mxu0 %v410
  %735 = vmatprep.subr.bf16.mxu0 0
  %736 = vmatpush1.bf16.msra.mxu0 0
  %737 = vmatprep.subr.bf16.mxu0 0
  %738 = vmatpush1.bf16.msra.mxu0 0
  %739 = vmatprep.subr.bf16.mxu0 0
  %740 = vmatpush1.bf16.msra.mxu0 0
  %741 = vmatprep.subr.bf16.mxu0 0
  %742 = vmatpush1.bf16.msra.mxu0 0
  %743 = vmatprep.subr.bf16.mxu0 0
  %744 = vmatpush1.bf16.msra.mxu0 0
  %745 = vmatprep.subr.bf16.mxu0 0
  %746 = vmatpush1.bf16.msra.mxu0 0
  %747 = vmatprep.subr.bf16.mxu0 0
  %748 = vmatpush1.bf16.msra.mxu0 0
  %749 = vmatprep.subr.bf16.mxu0 0
  %750 = vmatpush1.bf16.msra.mxu0 0
  %751 = vmatprep.subr.bf16.mxu0 0
  %752 = vmatpush1.bf16.msra.mxu0 0
  %753 = vmatprep.subr.bf16.mxu0 0
  %754 = vmatpush1.bf16.msra.mxu0 0
  %755 = vmatprep.subr.bf16.mxu0 0
  %756 = vmatpush1.bf16.msra.mxu0 0
  %757 = vmatprep.subr.bf16.mxu0 0
  %758 = vmatpush1.bf16.msra.mxu0 0
  %759 = vmatprep.subr.bf16.mxu0 0
  %760 = vmatpush1.bf16.msra.mxu0 0
  %761 = vmatprep.subr.bf16.mxu0 0
  %762 = vmatpush1.bf16.msra.mxu0 0
  %763 = vmatprep.mubr.bf16.mxu0 0
  %764 = vmatmul.mubr.bf16.gmra.mrb[0].mxu0 %v726
  %v765 = vpop.f32.mrb[0].mxu0
  %v766 = vadd.f32 0.0, %v765
  %v767 = vpop.f32.mrb[0].mxu0
  %v768 = vpop.f32.mrb[0].mxu0
  %v769 = vadd.f32 0.0, %v768
  %v770 = vpop.f32.mrb[0].mxu0
  %771 = vmatprep.mubr.bf16.mxu0 0
  %772 = vmatmul.mubr.bf16.gmra.mrb[0].mxu0 %v729
  %v773 = vpop.f32.mrb[0].mxu0
  %v774 = vadd.f32 0.0, %v773
  %v775 = vpop.f32.mrb[0].mxu0
  %v776 = vpop.f32.mrb[0].mxu0
  %v777 = vadd.f32 0.0, %v776
  %v778 = vpop.f32.mrb[0].mxu0
  %779 = vdwg.mxu0
  %s780 = scalar_lea.vmem %s15, 48
  %v781 = vld [vmem:[%s780] sm:$0xf]
  %v782 = vld [vmem:[%s780 + $0x4] sm:$0xf]
  %v783 = vld [vmem:[%s780 + $0x8] sm:$0xf]
  %v784 = vld [vmem:[%s780 + $0xc] sm:$0xf]
  %v785 = vld [vmem:[%s780 + $0x10] sm:$0xf]
  %v786 = vld [vmem:[%s780 + $0x14] sm:$0xf]
  %v787 = vpack.c.bf16 %v769, %v766
  %v788 = vpack.c.bf16 %v777, %v774
  %v795 = vunpack.c.l.b16 %v781
  %v796 = vunpack.c.l.b16 %v782
  %v797 = vunpack.c.l.b16 %v783
  %v798 = vunpack.c.l.b16 %v784
  %v799 = vunpack.c.l.b16 %v785
  %v800 = vunpack.c.l.b16 %v786
  %v801 = vpack.c.b16 %v796, %v795
  %v802 = vpack.c.b16 %v798, %v797
  %v803 = vpack.c.b16 %v800, %v799
  %v808 = vsel %vm341, %v787, 0
  %v811 = vsel %vm341, %v788, 0
  %813 = vmatprep.subr.bf16.mxu0 0
  %814 = vmatpush1.bf16.msra.mxu0 %v801
  %815 = vmatprep.subr.bf16.mxu0 0
  %816 = vmatpush1.bf16.msra.mxu0 %v802
  %817 = vmatprep.subr.bf16.mxu0 0
  %818 = vmatpush1.bf16.msra.mxu0 %v803
  %819 = vmatprep.subr.bf16.mxu0 0
  %820 = vmatpush1.bf16.msra.mxu0 0
  %821 = vmatprep.subr.bf16.mxu0 0
  %822 = vmatpush1.bf16.msra.mxu0 0
  %823 = vmatprep.subr.bf16.mxu0 0
  %824 = vmatpush1.bf16.msra.mxu0 0
  %825 = vmatprep.subr.bf16.mxu0 0
  %826 = vmatpush1.bf16.msra.mxu0 0
  %827 = vmatprep.subr.bf16.mxu0 0
  %828 = vmatpush1.bf16.msra.mxu0 0
  %829 = vmatprep.subr.bf16.mxu0 0
  %830 = vmatpush1.bf16.msra.mxu0 0
  %831 = vmatprep.subr.bf16.mxu0 0
  %832 = vmatpush1.bf16.msra.mxu0 0
  %833 = vmatprep.subr.bf16.mxu0 0
  %834 = vmatpush1.bf16.msra.mxu0 0
  %835 = vmatprep.subr.bf16.mxu0 0
  %836 = vmatpush1.bf16.msra.mxu0 0
  %837 = vmatprep.subr.bf16.mxu0 0
  %838 = vmatpush1.bf16.msra.mxu0 0
  %839 = vmatprep.subr.bf16.mxu0 0
  %840 = vmatpush1.bf16.msra.mxu0 0
  %841 = vmatprep.subr.bf16.mxu0 0
  %842 = vmatpush1.bf16.msra.mxu0 0
  %843 = vmatprep.subr.bf16.mxu0 0
  %844 = vmatpush1.bf16.msra.mxu0 0
  %845 = vmatprep.mubr.bf16.mxu0 0
  %846 = vmatmul.mubr.bf16.gmra.mrb[0].mxu0 %v808
  %v847 = vpop.f32.mrb[0].mxu0
  %v848 = vadd.f32 0.0, %v847
  %v849 = vpop.f32.mrb[0].mxu0
  %v850 = vpop.f32.mrb[0].mxu0
  %v851 = vadd.f32 0.0, %v850
  %v852 = vpop.f32.mrb[0].mxu0
  %853 = vmatprep.mubr.bf16.mxu0 0
  %854 = vmatmul.mubr.bf16.gmra.mrb[0].mxu0 %v811
  %v855 = vpop.f32.mrb[0].mxu0
  %v856 = vadd.f32 0.0, %v855
  %v857 = vpop.f32.mrb[0].mxu0
  %v858 = vpop.f32.mrb[0].mxu0
  %v859 = vadd.f32 0.0, %v858
  %v860 = vpop.f32.mrb[0].mxu0
  %861 = vdwg.mxu0
  %v862 = vadd.f32 %v696, %v848
  %v863 = vadd.f32 %v699, %v851
  %v864 = vadd.f32 %v704, %v856
  %v865 = vadd.f32 %v707, %v859
  %s866 = scalar_lea.vmem %s3, 48
  %v867 = vld [vmem:[%s866] sm:$0xf]
  %v868 = vld [vmem:[%s866 + $0x4] sm:$0xf]
  %v869 = vld [vmem:[%s866 + $0x8] sm:$0xf]
  %v870 = vld [vmem:[%s866 + $0xc] sm:$0xf]
  %v875 = vunpack.c.l.b16 %v867
  %v876 = vunpack.c.l.b16 %v868
  %v877 = vunpack.c.l.b16 %v869
  %v878 = vunpack.c.l.b16 %v870
  %v879 = vpack.c.b16 %v876, %v875
  %v880 = vpack.c.b16 %v878, %v877
  %v882 = vsel %vm421, %v879, 0
  %v885 = vsel %vm421, %v880, 0
  %887 = vmatprep.subr.bf16.mxu0 0
  %888 = vmatpush1.bf16.msra.mxu0 %v409
  %889 = vmatprep.subr.bf16.mxu0 0
  %890 = vmatpush1.bf16.msra.mxu0 %v410
  %891 = vmatprep.subr.bf16.mxu0 0
  %892 = vmatpush1.bf16.msra.mxu0 0
  %893 = vmatprep.subr.bf16.mxu0 0
  %894 = vmatpush1.bf16.msra.mxu0 0
  %895 = vmatprep.subr.bf16.mxu0 0
  %896 = vmatpush1.bf16.msra.mxu0 0
  %897 = vmatprep.subr.bf16.mxu0 0
  %898 = vmatpush1.bf16.msra.mxu0 0
  %899 = vmatprep.subr.bf16.mxu0 0
  %900 = vmatpush1.bf16.msra.mxu0 0
  %901 = vmatprep.subr.bf16.mxu0 0
  %902 = vmatpush1.bf16.msra.mxu0 0
  %903 = vmatprep.subr.bf16.mxu0 0
  %904 = vmatpush1.bf16.msra.mxu0 0
  %905 = vmatprep.subr.bf16.mxu0 0
  %906 = vmatpush1.bf16.msra.mxu0 0
  %907 = vmatprep.subr.bf16.mxu0 0
  %908 = vmatpush1.bf16.msra.mxu0 0
  %909 = vmatprep.subr.bf16.mxu0 0
  %910 = vmatpush1.bf16.msra.mxu0 0
  %911 = vmatprep.subr.bf16.mxu0 0
  %912 = vmatpush1.bf16.msra.mxu0 0
  %913 = vmatprep.subr.bf16.mxu0 0
  %914 = vmatpush1.bf16.msra.mxu0 0
  %915 = vmatprep.subr.bf16.mxu0 0
  %916 = vmatpush1.bf16.msra.mxu0 0
  %917 = vmatprep.subr.bf16.mxu0 0
  %918 = vmatpush1.bf16.msra.mxu0 0
  %919 = vmatprep.mubr.bf16.mxu0 0
  %920 = vmatmul.mubr.bf16.gmra.mrb[0].mxu0 %v882
  %v921 = vpop.f32.mrb[0].mxu0
  %v922 = vadd.f32 0.0, %v921
  %v923 = vpop.f32.mrb[0].mxu0
  %v924 = vpop.f32.mrb[0].mxu0
  %v925 = vadd.f32 0.0, %v924
  %v926 = vpop.f32.mrb[0].mxu0
  %927 = vmatprep.mubr.bf16.mxu0 0
  %928 = vmatmul.mubr.bf16.gmra.mrb[0].mxu0 %v885
  %v929 = vpop.f32.mrb[0].mxu0
  %v930 = vadd.f32 0.0, %v929
  %v931 = vpop.f32.mrb[0].mxu0
  %v932 = vpop.f32.mrb[0].mxu0
  %v933 = vadd.f32 0.0, %v932
  %v934 = vpop.f32.mrb[0].mxu0
  %935 = vdwg.mxu0
  %s936 = scalar_lea.vmem %s15, 72
  %v937 = vld [vmem:[%s936] sm:$0xf]
  %v938 = vld [vmem:[%s936 + $0x4] sm:$0xf]
  %v939 = vld [vmem:[%s936 + $0x8] sm:$0xf]
  %v940 = vld [vmem:[%s936 + $0xc] sm:$0xf]
  %v941 = vld [vmem:[%s936 + $0x10] sm:$0xf]
  %v942 = vld [vmem:[%s936 + $0x14] sm:$0xf]
  %v943 = vpack.c.bf16 %v925, %v922
  %v944 = vpack.c.bf16 %v933, %v930
  %v951 = vunpack.c.l.b16 %v937
  %v952 = vunpack.c.l.b16 %v938
  %v953 = vunpack.c.l.b16 %v939
  %v954 = vunpack.c.l.b16 %v940
  %v955 = vunpack.c.l.b16 %v941
  %v956 = vunpack.c.l.b16 %v942
  %v957 = vpack.c.b16 %v952, %v951
  %v958 = vpack.c.b16 %v954, %v953
  %v959 = vpack.c.b16 %v956, %v955
  %v964 = vsel %vm341, %v943, 0
  %v967 = vsel %vm341, %v944, 0
  %969 = vmatprep.subr.bf16.mxu0 0
  %970 = vmatpush1.bf16.msra.mxu0 %v957
  %971 = vmatprep.subr.bf16.mxu0 0
  %972 = vmatpush1.bf16.msra.mxu0 %v958
  %973 = vmatprep.subr.bf16.mxu0 0
  %974 = vmatpush1.bf16.msra.mxu0 %v959
  %975 = vmatprep.subr.bf16.mxu0 0
  %976 = vmatpush1.bf16.msra.mxu0 0
  %977 = vmatprep.subr.bf16.mxu0 0
  %978 = vmatpush1.bf16.msra.mxu0 0
  %979 = vmatprep.subr.bf16.mxu0 0
  %980 = vmatpush1.bf16.msra.mxu0 0
  %981 = vmatprep.subr.bf16.mxu0 0
  %982 = vmatpush1.bf16.msra.mxu0 0
  %983 = vmatprep.subr.bf16.mxu0 0
  %984 = vmatpush1.bf16.msra.mxu0 0
  %985 = vmatprep.subr.bf16.mxu0 0
  %986 = vmatpush1.bf16.msra.mxu0 0
  %987 = vmatprep.subr.bf16.mxu0 0
  %988 = vmatpush1.bf16.msra.mxu0 0
  %989 = vmatprep.subr.bf16.mxu0 0
  %990 = vmatpush1.bf16.msra.mxu0 0
  %991 = vmatprep.subr.bf16.mxu0 0
  %992 = vmatpush1.bf16.msra.mxu0 0
  %993 = vmatprep.subr.bf16.mxu0 0
  %994 = vmatpush1.bf16.msra.mxu0 0
  %995 = vmatprep.subr.bf16.mxu0 0
  %996 = vmatpush1.bf16.msra.mxu0 0
  %997 = vmatprep.subr.bf16.mxu0 0
  %998 = vmatpush1.bf16.msra.mxu0 0
  %999 = vmatprep.subr.bf16.mxu0 0
  %1000 = vmatpush1.bf16.msra.mxu0 0
  %1001 = vmatprep.mubr.bf16.mxu0 0
  %1002 = vmatmul.mubr.bf16.gmra.mrb[0].mxu0 %v964
  %v1003 = vpop.f32.mrb[0].mxu0
  %v1004 = vadd.f32 0.0, %v1003
  %v1005 = vpop.f32.mrb[0].mxu0
  %v1006 = vpop.f32.mrb[0].mxu0
  %v1007 = vadd.f32 0.0, %v1006
  %v1008 = vpop.f32.mrb[0].mxu0
  %1009 = vmatprep.mubr.bf16.mxu0 0
  %1010 = vmatmul.mubr.bf16.gmra.mrb[0].mxu0 %v967
  %v1011 = vpop.f32.mrb[0].mxu0
  %v1012 = vadd.f32 0.0, %v1011
  %v1013 = vpop.f32.mrb[0].mxu0
  %v1014 = vpop.f32.mrb[0].mxu0
  %v1015 = vadd.f32 0.0, %v1014
  %v1016 = vpop.f32.mrb[0].mxu0
  %1017 = vdwg.mxu0
  %v1018 = vadd.f32 %v862, %v1004
  %v1019 = vadd.f32 %v863, %v1007
  %v1020 = vadd.f32 %v864, %v1012
  %v1021 = vadd.f32 %v865, %v1015
  %s1022 = scalar_lea.vmem %s3, 64
  %v1023 = vld [vmem:[%s1022] sm:$0xf]
  %v1024 = vld [vmem:[%s1022 + $0x4] sm:$0xf]
  %v1025 = vld [vmem:[%s1022 + $0x8] sm:$0xf]
  %v1026 = vld [vmem:[%s1022 + $0xc] sm:$0xf]
  %v1031 = vunpack.c.l.b16 %v1023
  %v1032 = vunpack.c.l.b16 %v1024
  %v1033 = vunpack.c.l.b16 %v1025
  %v1034 = vunpack.c.l.b16 %v1026
  %v1035 = vpack.c.b16 %v1032, %v1031
  %v1036 = vpack.c.b16 %v1034, %v1033
  %v1038 = vsel %vm421, %v1035, 0
  %v1041 = vsel %vm421, %v1036, 0
  %1043 = vmatprep.subr.bf16.mxu0 0
  %1044 = vmatpush1.bf16.msra.mxu0 %v409
  %1045 = vmatprep.subr.bf16.mxu0 0
  %1046 = vmatpush1.bf16.msra.mxu0 %v410
  %1047 = vmatprep.subr.bf16.mxu0 0
  %1048 = vmatpush1.bf16.msra.mxu0 0
  %1049 = vmatprep.subr.bf16.mxu0 0
  %1050 = vmatpush1.bf16.msra.mxu0 0
  %1051 = vmatprep.subr.bf16.mxu0 0
  %1052 = vmatpush1.bf16.msra.mxu0 0
  %1053 = vmatprep.subr.bf16.mxu0 0
  %1054 = vmatpush1.bf16.msra.mxu0 0
  %1055 = vmatprep.subr.bf16.mxu0 0
  %1056 = vmatpush1.bf16.msra.mxu0 0
  %1057 = vmatprep.subr.bf16.mxu0 0
  %1058 = vmatpush1.bf16.msra.mxu0 0
  %1059 = vmatprep.subr.bf16.mxu0 0
  %1060 = vmatpush1.bf16.msra.mxu0 0
  %1061 = vmatprep.subr.bf16.mxu0 0
  %1062 = vmatpush1.bf16.msra.mxu0 0
  %1063 = vmatprep.subr.bf16.mxu0 0
  %1064 = vmatpush1.bf16.msra.mxu0 0
  %1065 = vmatprep.subr.bf16.mxu0 0
  %1066 = vmatpush1.bf16.msra.mxu0 0
  %1067 = vmatprep.subr.bf16.mxu0 0
  %1068 = vmatpush1.bf16.msra.mxu0 0
  %1069 = vmatprep.subr.bf16.mxu0 0
  %1070 = vmatpush1.bf16.msra.mxu0 0
  %1071 = vmatprep.subr.bf16.mxu0 0
  %1072 = vmatpush1.bf16.msra.mxu0 0
  %1073 = vmatprep.subr.bf16.mxu0 0
  %1074 = vmatpush1.bf16.msra.mxu0 0
  %1075 = vmatprep.mubr.bf16.mxu0 0
  %1076 = vmatmul.mubr.bf16.gmra.mrb[0].mxu0 %v1038
  %v1077 = vpop.f32.mrb[0].mxu0
  %v1078 = vadd.f32 0.0, %v1077
  %v1079 = vpop.f32.mrb[0].mxu0
  %v1080 = vpop.f32.mrb[0].mxu0
  %v1081 = vadd.f32 0.0, %v1080
  %v1082 = vpop.f32.mrb[0].mxu0
  %1083 = vmatprep.mubr.bf16.mxu0 0
  %1084 = vmatmul.mubr.bf16.gmra.mrb[0].mxu0 %v1041
  %v1085 = vpop.f32.mrb[0].mxu0
  %v1086 = vadd.f32 0.0, %v1085
  %v1087 = vpop.f32.mrb[0].mxu0
  %v1088 = vpop.f32.mrb[0].mxu0
  %v1089 = vadd.f32 0.0, %v1088
  %v1090 = vpop.f32.mrb[0].mxu0
  %1091 = vdwg.mxu0
  %s1092 = scalar_lea.vmem %s15, 96
  %v1093 = vld [vmem:[%s1092] sm:$0xf]
  %v1094 = vld [vmem:[%s1092 + $0x4] sm:$0xf]
  %v1095 = vld [vmem:[%s1092 + $0x8] sm:$0xf]
  %v1096 = vld [vmem:[%s1092 + $0xc] sm:$0xf]
  %v1097 = vld [vmem:[%s1092 + $0x10] sm:$0xf]
  %v1098 = vld [vmem:[%s1092 + $0x14] sm:$0xf]
  %v1099 = vpack.c.bf16 %v1081, %v1078
  %v1100 = vpack.c.bf16 %v1089, %v1086
  %v1107 = vunpack.c.l.b16 %v1093
  %v1108 = vunpack.c.l.b16 %v1094
  %v1109 = vunpack.c.l.b16 %v1095
  %v1110 = vunpack.c.l.b16 %v1096
  %v1111 = vunpack.c.l.b16 %v1097
  %v1112 = vunpack.c.l.b16 %v1098
  %v1113 = vpack.c.b16 %v1108, %v1107
  %v1114 = vpack.c.b16 %v1110, %v1109
  %v1115 = vpack.c.b16 %v1112, %v1111
  %v1120 = vsel %vm341, %v1099, 0
  %v1123 = vsel %vm341, %v1100, 0
  %1125 = vmatprep.subr.bf16.mxu0 0
  %1126 = vmatpush1.bf16.msra.mxu0 %v1113
  %1127 = vmatprep.subr.bf16.mxu0 0
  %1128 = vmatpush1.bf16.msra.mxu0 %v1114
  %1129 = vmatprep.subr.bf16.mxu0 0
  %1130 = vmatpush1.bf16.msra.mxu0 %v1115
  %1131 = vmatprep.subr.bf16.mxu0 0
  %1132 = vmatpush1.bf16.msra.mxu0 0
  %1133 = vmatprep.subr.bf16.mxu0 0
  %1134 = vmatpush1.bf16.msra.mxu0 0
  %1135 = vmatprep.subr.bf16.mxu0 0
  %1136 = vmatpush1.bf16.msra.mxu0 0
  %1137 = vmatprep.subr.bf16.mxu0 0
  %1138 = vmatpush1.bf16.msra.mxu0 0
  %1139 = vmatprep.subr.bf16.mxu0 0
  %1140 = vmatpush1.bf16.msra.mxu0 0
  %1141 = vmatprep.subr.bf16.mxu0 0
  %1142 = vmatpush1.bf16.msra.mxu0 0
  %1143 = vmatprep.subr.bf16.mxu0 0
  %1144 = vmatpush1.bf16.msra.mxu0 0
  %1145 = vmatprep.subr.bf16.mxu0 0
  %1146 = vmatpush1.bf16.msra.mxu0 0
  %1147 = vmatprep.subr.bf16.mxu0 0
  %1148 = vmatpush1.bf16.msra.mxu0 0
  %1149 = vmatprep.subr.bf16.mxu0 0
  %1150 = vmatpush1.bf16.msra.mxu0 0
  %1151 = vmatprep.subr.bf16.mxu0 0
  %1152 = vmatpush1.bf16.msra.mxu0 0
  %1153 = vmatprep.subr.bf16.mxu0 0
  %1154 = vmatpush1.bf16.msra.mxu0 0
  %1155 = vmatprep.subr.bf16.mxu0 0
  %1156 = vmatpush1.bf16.msra.mxu0 0
  %1157 = vmatprep.mubr.bf16.mxu0 0
  %1158 = vmatmul.mubr.bf16.gmra.mrb[0].mxu0 %v1120
  %v1159 = vpop.f32.mrb[0].mxu0
  %v1160 = vadd.f32 0.0, %v1159
  %v1161 = vpop.f32.mrb[0].mxu0
  %v1162 = vpop.f32.mrb[0].mxu0
  %v1163 = vadd.f32 0.0, %v1162
  %v1164 = vpop.f32.mrb[0].mxu0
  %1165 = vmatprep.mubr.bf16.mxu0 0
  %1166 = vmatmul.mubr.bf16.gmra.mrb[0].mxu0 %v1123
  %v1167 = vpop.f32.mrb[0].mxu0
  %v1168 = vadd.f32 0.0, %v1167
  %v1169 = vpop.f32.mrb[0].mxu0
  %v1170 = vpop.f32.mrb[0].mxu0
  %v1171 = vadd.f32 0.0, %v1170
  %v1172 = vpop.f32.mrb[0].mxu0
  %1173 = vdwg.mxu0
  %v1174 = vadd.f32 %v1018, %v1160
  %v1175 = vadd.f32 %v1019, %v1163
  %v1176 = vadd.f32 %v1020, %v1168
  %v1177 = vadd.f32 %v1021, %v1171
  %s1178 = scalar_lea.vmem %s3, 80
  %v1179 = vld [vmem:[%s1178] sm:$0xf]
  %v1180 = vld [vmem:[%s1178 + $0x4] sm:$0xf]
  %v1181 = vld [vmem:[%s1178 + $0x8] sm:$0xf]
  %v1182 = vld [vmem:[%s1178 + $0xc] sm:$0xf]
  %v1187 = vunpack.c.l.b16 %v1179
  %v1188 = vunpack.c.l.b16 %v1180
  %v1189 = vunpack.c.l.b16 %v1181
  %v1190 = vunpack.c.l.b16 %v1182
  %v1191 = vpack.c.b16 %v1188, %v1187
  %v1192 = vpack.c.b16 %v1190, %v1189
  %v1194 = vsel %vm421, %v1191, 0
  %v1197 = vsel %vm421, %v1192, 0
  %1199 = vmatprep.subr.bf16.mxu0 0
  %1200 = vmatpush1.bf16.msra.mxu0 %v409
  %1201 = vmatprep.subr.bf16.mxu0 0
  %1202 = vmatpush1.bf16.msra.mxu0 %v410
  %1203 = vmatprep.subr.bf16.mxu0 0
  %1204 = vmatpush1.bf16.msra.mxu0 0
  %1205 = vmatprep.subr.bf16.mxu0 0
  %1206 = vmatpush1.bf16.msra.mxu0 0
  %1207 = vmatprep.subr.bf16.mxu0 0
  %1208 = vmatpush1.bf16.msra.mxu0 0
  %1209 = vmatprep.subr.bf16.mxu0 0
  %1210 = vmatpush1.bf16.msra.mxu0 0
  %1211 = vmatprep.subr.bf16.mxu0 0
  %1212 = vmatpush1.bf16.msra.mxu0 0
  %1213 = vmatprep.subr.bf16.mxu0 0
  %1214 = vmatpush1.bf16.msra.mxu0 0
  %1215 = vmatprep.subr.bf16.mxu0 0
  %1216 = vmatpush1.bf16.msra.mxu0 0
  %1217 = vmatprep.subr.bf16.mxu0 0
  %1218 = vmatpush1.bf16.msra.mxu0 0
  %1219 = vmatprep.subr.bf16.mxu0 0
  %1220 = vmatpush1.bf16.msra.mxu0 0
  %1221 = vmatprep.subr.bf16.mxu0 0
  %1222 = vmatpush1.bf16.msra.mxu0 0
  %1223 = vmatprep.subr.bf16.mxu0 0
  %1224 = vmatpush1.bf16.msra.mxu0 0
  %1225 = vmatprep.subr.bf16.mxu0 0
  %1226 = vmatpush1.bf16.msra.mxu0 0
  %1227 = vmatprep.subr.bf16.mxu0 0
  %1228 = vmatpush1.bf16.msra.mxu0 0
  %1229 = vmatprep.subr.bf16.mxu0 0
  %1230 = vmatpush1.bf16.msra.mxu0 0
  %1231 = vmatprep.mubr.bf16.mxu0 0
  %1232 = vmatmul.mubr.bf16.gmra.mrb[0].mxu0 %v1194
  %v1233 = vpop.f32.mrb[0].mxu0
  %v1234 = vadd.f32 0.0, %v1233
  %v1235 = vpop.f32.mrb[0].mxu0
  %v1236 = vpop.f32.mrb[0].mxu0
  %v1237 = vadd.f32 0.0, %v1236
  %v1238 = vpop.f32.mrb[0].mxu0
  %1239 = vmatprep.mubr.bf16.mxu0 0
  %1240 = vmatmul.mubr.bf16.gmra.mrb[0].mxu0 %v1197
  %v1241 = vpop.f32.mrb[0].mxu0
  %v1242 = vadd.f32 0.0, %v1241
  %v1243 = vpop.f32.mrb[0].mxu0
  %v1244 = vpop.f32.mrb[0].mxu0
  %v1245 = vadd.f32 0.0, %v1244
  %v1246 = vpop.f32.mrb[0].mxu0
  %1247 = vdwg.mxu0
  %s1248 = scalar_lea.vmem %s15, 120
  %v1249 = vld [vmem:[%s1248] sm:$0xf]
  %v1250 = vld [vmem:[%s1248 + $0x4] sm:$0xf]
  %v1251 = vld [vmem:[%s1248 + $0x8] sm:$0xf]
  %v1252 = vld [vmem:[%s1248 + $0xc] sm:$0xf]
  %v1253 = vld [vmem:[%s1248 + $0x10] sm:$0xf]
  %v1254 = vld [vmem:[%s1248 + $0x14] sm:$0xf]
  %v1255 = vpack.c.bf16 %v1237, %v1234
  %v1256 = vpack.c.bf16 %v1245, %v1242
  %v1263 = vunpack.c.l.b16 %v1249
  %v1264 = vunpack.c.l.b16 %v1250
  %v1265 = vunpack.c.l.b16 %v1251
  %v1266 = vunpack.c.l.b16 %v1252
  %v1267 = vunpack.c.l.b16 %v1253
  %v1268 = vunpack.c.l.b16 %v1254
  %v1269 = vpack.c.b16 %v1264, %v1263
  %v1270 = vpack.c.b16 %v1266, %v1265
  %v1271 = vpack.c.b16 %v1268, %v1267
  %v1276 = vsel %vm341, %v1255, 0
  %v1279 = vsel %vm341, %v1256, 0
  %1281 = vmatprep.subr.bf16.mxu0 0
  %1282 = vmatpush1.bf16.msra.mxu0 %v1269
  %1283 = vmatprep.subr.bf16.mxu0 0
  %1284 = vmatpush1.bf16.msra.mxu0 %v1270
  %1285 = vmatprep.subr.bf16.mxu0 0
  %1286 = vmatpush1.bf16.msra.mxu0 %v1271
  %1287 = vmatprep.subr.bf16.mxu0 0
  %1288 = vmatpush1.bf16.msra.mxu0 0
  %1289 = vmatprep.subr.bf16.mxu0 0
  %1290 = vmatpush1.bf16.msra.mxu0 0
  %1291 = vmatprep.subr.bf16.mxu0 0
  %1292 = vmatpush1.bf16.msra.mxu0 0
  %1293 = vmatprep.subr.bf16.mxu0 0
  %1294 = vmatpush1.bf16.msra.mxu0 0
  %1295 = vmatprep.subr.bf16.mxu0 0
  %1296 = vmatpush1.bf16.msra.mxu0 0
  %1297 = vmatprep.subr.bf16.mxu0 0
  %1298 = vmatpush1.bf16.msra.mxu0 0
  %1299 = vmatprep.subr.bf16.mxu0 0
  %1300 = vmatpush1.bf16.msra.mxu0 0
  %1301 = vmatprep.subr.bf16.mxu0 0
  %1302 = vmatpush1.bf16.msra.mxu0 0
  %1303 = vmatprep.subr.bf16.mxu0 0
  %1304 = vmatpush1.bf16.msra.mxu0 0
  %1305 = vmatprep.subr.bf16.mxu0 0
  %1306 = vmatpush1.bf16.msra.mxu0 0
  %1307 = vmatprep.subr.bf16.mxu0 0
  %1308 = vmatpush1.bf16.msra.mxu0 0
  %1309 = vmatprep.subr.bf16.mxu0 0
  %1310 = vmatpush1.bf16.msra.mxu0 0
  %1311 = vmatprep.subr.bf16.mxu0 0
  %1312 = vmatpush1.bf16.msra.mxu0 0
  %1313 = vmatprep.mubr.bf16.mxu0 0
  %1314 = vmatmul.mubr.bf16.gmra.mrb[0].mxu0 %v1276
  %v1315 = vpop.f32.mrb[0].mxu0
  %v1316 = vadd.f32 0.0, %v1315
  %v1317 = vpop.f32.mrb[0].mxu0
  %v1318 = vpop.f32.mrb[0].mxu0
  %v1319 = vadd.f32 0.0, %v1318
  %v1320 = vpop.f32.mrb[0].mxu0
  %1321 = vmatprep.mubr.bf16.mxu0 0
  %1322 = vmatmul.mubr.bf16.gmra.mrb[0].mxu0 %v1279
  %v1323 = vpop.f32.mrb[0].mxu0
  %v1324 = vadd.f32 0.0, %v1323
  %v1325 = vpop.f32.mrb[0].mxu0
  %v1326 = vpop.f32.mrb[0].mxu0
  %v1327 = vadd.f32 0.0, %v1326
  %v1328 = vpop.f32.mrb[0].mxu0
  %1329 = vdwg.mxu0
  %v1330 = vadd.f32 %v1174, %v1316
  %v1331 = vadd.f32 %v1175, %v1319
  %v1332 = vadd.f32 %v1176, %v1324
  %v1333 = vadd.f32 %v1177, %v1327
  %s1334 = scalar_lea.vmem %s3, 96
  %v1335 = vld [vmem:[%s1334] sm:$0xf]
  %v1336 = vld [vmem:[%s1334 + $0x4] sm:$0xf]
  %v1337 = vld [vmem:[%s1334 + $0x8] sm:$0xf]
  %v1338 = vld [vmem:[%s1334 + $0xc] sm:$0xf]
  %v1343 = vunpack.c.l.b16 %v1335
  %v1344 = vunpack.c.l.b16 %v1336
  %v1345 = vunpack.c.l.b16 %v1337
  %v1346 = vunpack.c.l.b16 %v1338
  %v1347 = vpack.c.b16 %v1344, %v1343
  %v1348 = vpack.c.b16 %v1346, %v1345
  %v1350 = vsel %vm421, %v1347, 0
  %v1353 = vsel %vm421, %v1348, 0
  %1355 = vmatprep.subr.bf16.mxu0 0
  %1356 = vmatpush1.bf16.msra.mxu0 %v409
  %1357 = vmatprep.subr.bf16.mxu0 0
  %1358 = vmatpush1.bf16.msra.mxu0 %v410
  %1359 = vmatprep.subr.bf16.mxu0 0
  %1360 = vmatpush1.bf16.msra.mxu0 0
  %1361 = vmatprep.subr.bf16.mxu0 0
  %1362 = vmatpush1.bf16.msra.mxu0 0
  %1363 = vmatprep.subr.bf16.mxu0 0
  %1364 = vmatpush1.bf16.msra.mxu0 0
  %1365 = vmatprep.subr.bf16.mxu0 0
  %1366 = vmatpush1.bf16.msra.mxu0 0
  %1367 = vmatprep.subr.bf16.mxu0 0
  %1368 = vmatpush1.bf16.msra.mxu0 0
  %1369 = vmatprep.subr.bf16.mxu0 0
  %1370 = vmatpush1.bf16.msra.mxu0 0
  %1371 = vmatprep.subr.bf16.mxu0 0
  %1372 = vmatpush1.bf16.msra.mxu0 0
  %1373 = vmatprep.subr.bf16.mxu0 0
  %1374 = vmatpush1.bf16.msra.mxu0 0
  %1375 = vmatprep.subr.bf16.mxu0 0
  %1376 = vmatpush1.bf16.msra.mxu0 0
  %1377 = vmatprep.subr.bf16.mxu0 0
  %1378 = vmatpush1.bf16.msra.mxu0 0
  %1379 = vmatprep.subr.bf16.mxu0 0
  %1380 = vmatpush1.bf16.msra.mxu0 0
  %1381 = vmatprep.subr.bf16.mxu0 0
  %1382 = vmatpush1.bf16.msra.mxu0 0
  %1383 = vmatprep.subr.bf16.mxu0 0
  %1384 = vmatpush1.bf16.msra.mxu0 0
  %1385 = vmatprep.subr.bf16.mxu0 0
  %1386 = vmatpush1.bf16.msra.mxu0 0
  %1387 = vmatprep.mubr.bf16.mxu0 0
  %1388 = vmatmul.mubr.bf16.gmra.mrb[0].mxu0 %v1350
  %v1389 = vpop.f32.mrb[0].mxu0
  %v1390 = vadd.f32 0.0, %v1389
  %v1391 = vpop.f32.mrb[0].mxu0
  %v1392 = vpop.f32.mrb[0].mxu0
  %v1393 = vadd.f32 0.0, %v1392
  %v1394 = vpop.f32.mrb[0].mxu0
  %1395 = vmatprep.mubr.bf16.mxu0 0
  %1396 = vmatmul.mubr.bf16.gmra.mrb[0].mxu0 %v1353
  %v1397 = vpop.f32.mrb[0].mxu0
  %v1398 = vadd.f32 0.0, %v1397
  %v1399 = vpop.f32.mrb[0].mxu0
  %v1400 = vpop.f32.mrb[0].mxu0
  %v1401 = vadd.f32 0.0, %v1400
  %v1402 = vpop.f32.mrb[0].mxu0
  %1403 = vdwg.mxu0
  %s1404 = scalar_lea.vmem %s15, 144
  %v1405 = vld [vmem:[%s1404] sm:$0xf]
  %v1406 = vld [vmem:[%s1404 + $0x4] sm:$0xf]
  %v1407 = vld [vmem:[%s1404 + $0x8] sm:$0xf]
  %v1408 = vld [vmem:[%s1404 + $0xc] sm:$0xf]
  %v1409 = vld [vmem:[%s1404 + $0x10] sm:$0xf]
  %v1410 = vld [vmem:[%s1404 + $0x14] sm:$0xf]
  %v1411 = vpack.c.bf16 %v1393, %v1390
  %v1412 = vpack.c.bf16 %v1401, %v1398
  %v1419 = vunpack.c.l.b16 %v1405
  %v1420 = vunpack.c.l.b16 %v1406
  %v1421 = vunpack.c.l.b16 %v1407
  %v1422 = vunpack.c.l.b16 %v1408
  %v1423 = vunpack.c.l.b16 %v1409
  %v1424 = vunpack.c.l.b16 %v1410
  %v1425 = vpack.c.b16 %v1420, %v1419
  %v1426 = vpack.c.b16 %v1422, %v1421
  %v1427 = vpack.c.b16 %v1424, %v1423
  %v1432 = vsel %vm341, %v1411, 0
  %v1435 = vsel %vm341, %v1412, 0
  %1437 = vmatprep.subr.bf16.mxu0 0
  %1438 = vmatpush1.bf16.msra.mxu0 %v1425
  %1439 = vmatprep.subr.bf16.mxu0 0
  %1440 = vmatpush1.bf16.msra.mxu0 %v1426
  %1441 = vmatprep.subr.bf16.mxu0 0
  %1442 = vmatpush1.bf16.msra.mxu0 %v1427
  %1443 = vmatprep.subr.bf16.mxu0 0
  %1444 = vmatpush1.bf16.msra.mxu0 0
  %1445 = vmatprep.subr.bf16.mxu0 0
  %1446 = vmatpush1.bf16.msra.mxu0 0
  %1447 = vmatprep.subr.bf16.mxu0 0
  %1448 = vmatpush1.bf16.msra.mxu0 0
  %1449 = vmatprep.subr.bf16.mxu0 0
  %1450 = vmatpush1.bf16.msra.mxu0 0
  %1451 = vmatprep.subr.bf16.mxu0 0
  %1452 = vmatpush1.bf16.msra.mxu0 0
  %1453 = vmatprep.subr.bf16.mxu0 0
  %1454 = vmatpush1.bf16.msra.mxu0 0
  %1455 = vmatprep.subr.bf16.mxu0 0
  %1456 = vmatpush1.bf16.msra.mxu0 0
  %1457 = vmatprep.subr.bf16.mxu0 0
  %1458 = vmatpush1.bf16.msra.mxu0 0
  %1459 = vmatprep.subr.bf16.mxu0 0
  %1460 = vmatpush1.bf16.msra.mxu0 0
  %1461 = vmatprep.subr.bf16.mxu0 0
  %1462 = vmatpush1.bf16.msra.mxu0 0
  %1463 = vmatprep.subr.bf16.mxu0 0
  %1464 = vmatpush1.bf16.msra.mxu0 0
  %1465 = vmatprep.subr.bf16.mxu0 0
  %1466 = vmatpush1.bf16.msra.mxu0 0
  %1467 = vmatprep.subr.bf16.mxu0 0
  %1468 = vmatpush1.bf16.msra.mxu0 0
  %1469 = vmatprep.mubr.bf16.mxu0 0
  %1470 = vmatmul.mubr.bf16.gmra.mrb[0].mxu0 %v1432
  %v1471 = vpop.f32.mrb[0].mxu0
  %v1472 = vadd.f32 0.0, %v1471
  %v1473 = vpop.f32.mrb[0].mxu0
  %v1474 = vpop.f32.mrb[0].mxu0
  %v1475 = vadd.f32 0.0, %v1474
  %v1476 = vpop.f32.mrb[0].mxu0
  %1477 = vmatprep.mubr.bf16.mxu0 0
  %1478 = vmatmul.mubr.bf16.gmra.mrb[0].mxu0 %v1435
  %v1479 = vpop.f32.mrb[0].mxu0
  %v1480 = vadd.f32 0.0, %v1479
  %v1481 = vpop.f32.mrb[0].mxu0
  %v1482 = vpop.f32.mrb[0].mxu0
  %v1483 = vadd.f32 0.0, %v1482
  %v1484 = vpop.f32.mrb[0].mxu0
  %1485 = vdwg.mxu0
  %v1486 = vadd.f32 %v1330, %v1472
  %v1487 = vadd.f32 %v1331, %v1475
  %v1488 = vadd.f32 %v1332, %v1480
  %v1489 = vadd.f32 %v1333, %v1483
  %s1490 = scalar_lea.vmem %s3, 112
  %v1491 = vld [vmem:[%s1490] sm:$0xf]
  %v1492 = vld [vmem:[%s1490 + $0x4] sm:$0xf]
  %v1493 = vld [vmem:[%s1490 + $0x8] sm:$0xf]
  %v1494 = vld [vmem:[%s1490 + $0xc] sm:$0xf]
  %v1499 = vunpack.c.l.b16 %v1491
  %v1500 = vunpack.c.l.b16 %v1492
  %v1501 = vunpack.c.l.b16 %v1493
  %v1502 = vunpack.c.l.b16 %v1494
  %v1503 = vpack.c.b16 %v1500, %v1499
  %v1504 = vpack.c.b16 %v1502, %v1501
  %v1506 = vsel %vm421, %v1503, 0
  %v1509 = vsel %vm421, %v1504, 0
  %1511 = vmatprep.subr.bf16.mxu0 0
  %1512 = vmatpush1.bf16.msra.mxu0 %v409
  %1513 = vmatprep.subr.bf16.mxu0 0
  %1514 = vmatpush1.bf16.msra.mxu0 %v410
  %1515 = vmatprep.subr.bf16.mxu0 0
  %1516 = vmatpush1.bf16.msra.mxu0 0
  %1517 = vmatprep.subr.bf16.mxu0 0
  %1518 = vmatpush1.bf16.msra.mxu0 0
  %1519 = vmatprep.subr.bf16.mxu0 0
  %1520 = vmatpush1.bf16.msra.mxu0 0
  %1521 = vmatprep.subr.bf16.mxu0 0
  %1522 = vmatpush1.bf16.msra.mxu0 0
  %1523 = vmatprep.subr.bf16.mxu0 0
  %1524 = vmatpush1.bf16.msra.mxu0 0
  %1525 = vmatprep.subr.bf16.mxu0 0
  %1526 = vmatpush1.bf16.msra.mxu0 0
  %1527 = vmatprep.subr.bf16.mxu0 0
  %1528 = vmatpush1.bf16.msra.mxu0 0
  %1529 = vmatprep.subr.bf16.mxu0 0
  %1530 = vmatpush1.bf16.msra.mxu0 0
  %1531 = vmatprep.subr.bf16.mxu0 0
  %1532 = vmatpush1.bf16.msra.mxu0 0
  %1533 = vmatprep.subr.bf16.mxu0 0
  %1534 = vmatpush1.bf16.msra.mxu0 0
  %1535 = vmatprep.subr.bf16.mxu0 0
  %1536 = vmatpush1.bf16.msra.mxu0 0
  %1537 = vmatprep.subr.bf16.mxu0 0
  %1538 = vmatpush1.bf16.msra.mxu0 0
  %1539 = vmatprep.subr.bf16.mxu0 0
  %1540 = vmatpush1.bf16.msra.mxu0 0
  %1541 = vmatprep.subr.bf16.mxu0 0
  %1542 = vmatpush1.bf16.msra.mxu0 0
  %1543 = vmatprep.mubr.bf16.mxu0 0
  %1544 = vmatmul.mubr.bf16.gmra.mrb[0].mxu0 %v1506
  %v1545 = vpop.f32.mrb[0].mxu0
  %v1546 = vadd.f32 0.0, %v1545
  %v1547 = vpop.f32.mrb[0].mxu0
  %v1548 = vpop.f32.mrb[0].mxu0
  %v1549 = vadd.f32 0.0, %v1548
  %v1550 = vpop.f32.mrb[0].mxu0
  %1551 = vmatprep.mubr.bf16.mxu0 0
  %1552 = vmatmul.mubr.bf16.gmra.mrb[0].mxu0 %v1509
  %v1553 = vpop.f32.mrb[0].mxu0
  %v1554 = vadd.f32 0.0, %v1553
  %v1555 = vpop.f32.mrb[0].mxu0
  %v1556 = vpop.f32.mrb[0].mxu0
  %v1557 = vadd.f32 0.0, %v1556
  %v1558 = vpop.f32.mrb[0].mxu0
  %1559 = vdwg.mxu0
  %s1560 = scalar_lea.vmem %s15, 168
  %v1561 = vld [vmem:[%s1560] sm:$0xf]
  %v1562 = vld [vmem:[%s1560 + $0x4] sm:$0xf]
  %v1563 = vld [vmem:[%s1560 + $0x8] sm:$0xf]
  %v1564 = vld [vmem:[%s1560 + $0xc] sm:$0xf]
  %v1565 = vld [vmem:[%s1560 + $0x10] sm:$0xf]
  %v1566 = vld [vmem:[%s1560 + $0x14] sm:$0xf]
  %v1567 = vpack.c.bf16 %v1549, %v1546
  %v1568 = vpack.c.bf16 %v1557, %v1554
  %v1575 = vunpack.c.l.b16 %v1561
  %v1576 = vunpack.c.l.b16 %v1562
  %v1577 = vunpack.c.l.b16 %v1563
  %v1578 = vunpack.c.l.b16 %v1564
  %v1579 = vunpack.c.l.b16 %v1565
  %v1580 = vunpack.c.l.b16 %v1566
  %v1581 = vpack.c.b16 %v1576, %v1575
  %v1582 = vpack.c.b16 %v1578, %v1577
  %v1583 = vpack.c.b16 %v1580, %v1579
  %v1588 = vsel %vm341, %v1567, 0
  %v1591 = vsel %vm341, %v1568, 0
  %1593 = vmatprep.subr.bf16.mxu0 0
  %1594 = vmatpush1.bf16.msra.mxu0 %v1581
  %1595 = vmatprep.subr.bf16.mxu0 0
  %1596 = vmatpush1.bf16.msra.mxu0 %v1582
  %1597 = vmatprep.subr.bf16.mxu0 0
  %1598 = vmatpush1.bf16.msra.mxu0 %v1583
  %1599 = vmatprep.subr.bf16.mxu0 0
  %1600 = vmatpush1.bf16.msra.mxu0 0
  %1601 = vmatprep.subr.bf16.mxu0 0
  %1602 = vmatpush1.bf16.msra.mxu0 0
  %1603 = vmatprep.subr.bf16.mxu0 0
  %1604 = vmatpush1.bf16.msra.mxu0 0
  %1605 = vmatprep.subr.bf16.mxu0 0
  %1606 = vmatpush1.bf16.msra.mxu0 0
  %1607 = vmatprep.subr.bf16.mxu0 0
  %1608 = vmatpush1.bf16.msra.mxu0 0
  %1609 = vmatprep.subr.bf16.mxu0 0
  %1610 = vmatpush1.bf16.msra.mxu0 0
  %1611 = vmatprep.subr.bf16.mxu0 0
  %1612 = vmatpush1.bf16.msra.mxu0 0
  %1613 = vmatprep.subr.bf16.mxu0 0
  %1614 = vmatpush1.bf16.msra.mxu0 0
  %1615 = vmatprep.subr.bf16.mxu0 0
  %1616 = vmatpush1.bf16.msra.mxu0 0
  %1617 = vmatprep.subr.bf16.mxu0 0
  %1618 = vmatpush1.bf16.msra.mxu0 0
  %1619 = vmatprep.subr.bf16.mxu0 0
  %1620 = vmatpush1.bf16.msra.mxu0 0
  %1621 = vmatprep.subr.bf16.mxu0 0
  %1622 = vmatpush1.bf16.msra.mxu0 0
  %1623 = vmatprep.subr.bf16.mxu0 0
  %1624 = vmatpush1.bf16.msra.mxu0 0
  %1625 = vmatprep.mubr.bf16.mxu0 0
  %1626 = vmatmul.mubr.bf16.gmra.mrb[0].mxu0 %v1588
  %v1627 = vpop.f32.mrb[0].mxu0
  %v1628 = vadd.f32 0.0, %v1627
  %v1629 = vpop.f32.mrb[0].mxu0
  %v1630 = vpop.f32.mrb[0].mxu0
  %v1631 = vadd.f32 0.0, %v1630
  %v1632 = vpop.f32.mrb[0].mxu0
  %1633 = vmatprep.mubr.bf16.mxu0 0
  %1634 = vmatmul.mubr.bf16.gmra.mrb[0].mxu0 %v1591
  %v1635 = vpop.f32.mrb[0].mxu0
  %v1636 = vadd.f32 0.0, %v1635
  %v1637 = vpop.f32.mrb[0].mxu0
  %v1638 = vpop.f32.mrb[0].mxu0
  %v1639 = vadd.f32 0.0, %v1638
  %v1640 = vpop.f32.mrb[0].mxu0
  %1641 = vdwg.mxu0
  %v1642 = vadd.f32 %v1486, %v1628
  %v1643 = vadd.f32 %v1487, %v1631
  %v1644 = vadd.f32 %v1488, %v1636
  %v1645 = vadd.f32 %v1489, %v1639
  %s1646 = scalar_lea.vmem %s3, 128
  %v1647 = vld [vmem:[%s1646] sm:$0xf]
  %v1648 = vld [vmem:[%s1646 + $0x4] sm:$0xf]
  %v1649 = vld [vmem:[%s1646 + $0x8] sm:$0xf]
  %v1650 = vld [vmem:[%s1646 + $0xc] sm:$0xf]
  %v1655 = vunpack.c.l.b16 %v1647
  %v1656 = vunpack.c.l.b16 %v1648
  %v1657 = vunpack.c.l.b16 %v1649
  %v1658 = vunpack.c.l.b16 %v1650
  %v1659 = vpack.c.b16 %v1656, %v1655
  %v1660 = vpack.c.b16 %v1658, %v1657
  %v1662 = vsel %vm421, %v1659, 0
  %v1665 = vsel %vm421, %v1660, 0
  %1667 = vmatprep.subr.bf16.mxu0 0
  %1668 = vmatpush1.bf16.msra.mxu0 %v409
  %1669 = vmatprep.subr.bf16.mxu0 0
  %1670 = vmatpush1.bf16.msra.mxu0 %v410
  %1671 = vmatprep.subr.bf16.mxu0 0
  %1672 = vmatpush1.bf16.msra.mxu0 0
  %1673 = vmatprep.subr.bf16.mxu0 0
  %1674 = vmatpush1.bf16.msra.mxu0 0
  %1675 = vmatprep.subr.bf16.mxu0 0
  %1676 = vmatpush1.bf16.msra.mxu0 0
  %1677 = vmatprep.subr.bf16.mxu0 0
  %1678 = vmatpush1.bf16.msra.mxu0 0
  %1679 = vmatprep.subr.bf16.mxu0 0
  %1680 = vmatpush1.bf16.msra.mxu0 0
  %1681 = vmatprep.subr.bf16.mxu0 0
  %1682 = vmatpush1.bf16.msra.mxu0 0
  %1683 = vmatprep.subr.bf16.mxu0 0
  %1684 = vmatpush1.bf16.msra.mxu0 0
  %1685 = vmatprep.subr.bf16.mxu0 0
  %1686 = vmatpush1.bf16.msra.mxu0 0
  %1687 = vmatprep.subr.bf16.mxu0 0
  %1688 = vmatpush1.bf16.msra.mxu0 0
  %1689 = vmatprep.subr.bf16.mxu0 0
  %1690 = vmatpush1.bf16.msra.mxu0 0
  %1691 = vmatprep.subr.bf16.mxu0 0
  %1692 = vmatpush1.bf16.msra.mxu0 0
  %1693 = vmatprep.subr.bf16.mxu0 0
  %1694 = vmatpush1.bf16.msra.mxu0 0
  %1695 = vmatprep.subr.bf16.mxu0 0
  %1696 = vmatpush1.bf16.msra.mxu0 0
  %1697 = vmatprep.subr.bf16.mxu0 0
  %1698 = vmatpush1.bf16.msra.mxu0 0
  %1699 = vmatprep.mubr.bf16.mxu0 0
  %1700 = vmatmul.mubr.bf16.gmra.mrb[0].mxu0 %v1662
  %v1701 = vpop.f32.mrb[0].mxu0
  %v1702 = vadd.f32 0.0, %v1701
  %v1703 = vpop.f32.mrb[0].mxu0
  %v1704 = vpop.f32.mrb[0].mxu0
  %v1705 = vadd.f32 0.0, %v1704
  %v1706 = vpop.f32.mrb[0].mxu0
  %1707 = vmatprep.mubr.bf16.mxu0 0
  %1708 = vmatmul.mubr.bf16.gmra.mrb[0].mxu0 %v1665
  %v1709 = vpop.f32.mrb[0].mxu0
  %v1710 = vadd.f32 0.0, %v1709
  %v1711 = vpop.f32.mrb[0].mxu0
  %v1712 = vpop.f32.mrb[0].mxu0
  %v1713 = vadd.f32 0.0, %v1712
  %v1714 = vpop.f32.mrb[0].mxu0
  %1715 = vdwg.mxu0
  %s1716 = scalar_lea.vmem %s15, 192
  %v1717 = vld [vmem:[%s1716] sm:$0xf]
  %v1718 = vld [vmem:[%s1716 + $0x4] sm:$0xf]
  %v1719 = vld [vmem:[%s1716 + $0x8] sm:$0xf]
  %v1720 = vld [vmem:[%s1716 + $0xc] sm:$0xf]
  %v1721 = vld [vmem:[%s1716 + $0x10] sm:$0xf]
  %v1722 = vld [vmem:[%s1716 + $0x14] sm:$0xf]
  %v1723 = vpack.c.bf16 %v1705, %v1702
  %v1724 = vpack.c.bf16 %v1713, %v1710
  %v1731 = vunpack.c.l.b16 %v1717
  %v1732 = vunpack.c.l.b16 %v1718
  %v1733 = vunpack.c.l.b16 %v1719
  %v1734 = vunpack.c.l.b16 %v1720
  %v1735 = vunpack.c.l.b16 %v1721
  %v1736 = vunpack.c.l.b16 %v1722
  %v1737 = vpack.c.b16 %v1732, %v1731
  %v1738 = vpack.c.b16 %v1734, %v1733
  %v1739 = vpack.c.b16 %v1736, %v1735
  %v1744 = vsel %vm341, %v1723, 0
  %v1747 = vsel %vm341, %v1724, 0
  %1749 = vmatprep.subr.bf16.mxu0 0
  %1750 = vmatpush1.bf16.msra.mxu0 %v1737
  %1751 = vmatprep.subr.bf16.mxu0 0
  %1752 = vmatpush1.bf16.msra.mxu0 %v1738
  %1753 = vmatprep.subr.bf16.mxu0 0
  %1754 = vmatpush1.bf16.msra.mxu0 %v1739
  %1755 = vmatprep.subr.bf16.mxu0 0
  %1756 = vmatpush1.bf16.msra.mxu0 0
  %1757 = vmatprep.subr.bf16.mxu0 0
  %1758 = vmatpush1.bf16.msra.mxu0 0
  %1759 = vmatprep.subr.bf16.mxu0 0
  %1760 = vmatpush1.bf16.msra.mxu0 0
  %1761 = vmatprep.subr.bf16.mxu0 0
  %1762 = vmatpush1.bf16.msra.mxu0 0
  %1763 = vmatprep.subr.bf16.mxu0 0
  %1764 = vmatpush1.bf16.msra.mxu0 0
  %1765 = vmatprep.subr.bf16.mxu0 0
  %1766 = vmatpush1.bf16.msra.mxu0 0
  %1767 = vmatprep.subr.bf16.mxu0 0
  %1768 = vmatpush1.bf16.msra.mxu0 0
  %1769 = vmatprep.subr.bf16.mxu0 0
  %1770 = vmatpush1.bf16.msra.mxu0 0
  %1771 = vmatprep.subr.bf16.mxu0 0
  %1772 = vmatpush1.bf16.msra.mxu0 0
  %1773 = vmatprep.subr.bf16.mxu0 0
  %1774 = vmatpush1.bf16.msra.mxu0 0
  %1775 = vmatprep.subr.bf16.mxu0 0
  %1776 = vmatpush1.bf16.msra.mxu0 0
  %1777 = vmatprep.subr.bf16.mxu0 0
  %1778 = vmatpush1.bf16.msra.mxu0 0
  %1779 = vmatprep.subr.bf16.mxu0 0
  %1780 = vmatpush1.bf16.msra.mxu0 0
  %1781 = vmatprep.mubr.bf16.mxu0 0
  %1782 = vmatmul.mubr.bf16.gmra.mrb[0].mxu0 %v1744
  %v1783 = vpop.f32.mrb[0].mxu0
  %v1784 = vadd.f32 0.0, %v1783
  %v1785 = vpop.f32.mrb[0].mxu0
  %v1786 = vpop.f32.mrb[0].mxu0
  %v1787 = vadd.f32 0.0, %v1786
  %v1788 = vpop.f32.mrb[0].mxu0
  %1789 = vmatprep.mubr.bf16.mxu0 0
  %1790 = vmatmul.mubr.bf16.gmra.mrb[0].mxu0 %v1747
  %v1791 = vpop.f32.mrb[0].mxu0
  %v1792 = vadd.f32 0.0, %v1791
  %v1793 = vpop.f32.mrb[0].mxu0
  %v1794 = vpop.f32.mrb[0].mxu0
  %v1795 = vadd.f32 0.0, %v1794
  %v1796 = vpop.f32.mrb[0].mxu0
  %1797 = vdwg.mxu0
  %v1798 = vadd.f32 %v1642, %v1784
  %v1799 = vadd.f32 %v1643, %v1787
  %v1800 = vadd.f32 %v1644, %v1792
  %v1801 = vadd.f32 %v1645, %v1795
  %v1802 = vld [vmem:[%s17] sm:$0x1]
  %v1803 = vld [vmem:[%s19] sm:$0x1]
  %v1804 = vmul.f32 %v1802, %v224
  %v1806 = vlaneseq
  %v1807 = vshrl.u32 %v1806, 7
  %v1808 = vsub.s32 0, %v1807
  %v1809 = vrot.slane %v1804, %v1808
  %v1811 = vmul.f32 %v201, %v1809
  %v1812 = vmul.f32 %v202, %v1809
  %v1813 = vmul.f32 %v203, %v1809
  %v1814 = vmul.f32 %v204, %v1809
  %v1816 = vlaneseq
  %v1817 = vshrl.u32 %v1816, 7
  %v1818 = vsub.s32 0, %v1817
  %v1819 = vrot.slane %v1803, %v1818
  %v1821 = vadd.f32 %v1811, %v1819
  %v1822 = vadd.f32 %v1812, %v1819
  %v1823 = vadd.f32 %v1813, %v1819
  %v1824 = vadd.f32 %v1814, %v1819
  %v1825 = vmax.f32 %v1821, 0.0
  %v1826 = vmax.f32 %v1822, 0.0
  %v1827 = vmax.f32 %v1823, 0.0
  %v1828 = vmax.f32 %v1824, 0.0
  %v1829 = vld [vmem:[%s21] sm:$0xf]
  %v1830 = vld [vmem:[%s21 + $0x4] sm:$0xf]
  %v1831 = vld [vmem:[%s21 + $0x8] sm:$0xf]
  %v1832 = vld [vmem:[%s21 + $0xc] sm:$0xf]
  %v1833 = vld [vmem:[%s21 + $0x10] sm:$0xf]
  %v1834 = vld [vmem:[%s21 + $0x14] sm:$0xf]
  %v1835 = vld [vmem:[%s21 + $0x18] sm:$0xf]
  %v1836 = vld [vmem:[%s21 + $0x1c] sm:$0xf]
  %v1837 = vpack.c.bf16 %v1826, %v1825
  %v1838 = vpack.c.bf16 %v1828, %v1827
  %v1839 = vld [vmem:[%s23] sm:$0x1]
  %v1840 = vld [vmem:[%s25] sm:$0x1]
  %vm1841 = vcmask 97280
  %v1842 = vsel %vm1841, %v1798, 0.0
  %v1843 = vsel %vm1841, %v1799, 0.0
  %v1844 = vadd.f32 %v1842, %v1843
  %v1845 = vsel %vm1841, %v1800, 0.0
  %v1846 = vadd.f32 %v1844, %v1845
  %v1847 = vsel %vm1841, %v1801, 0.0
  %v1848 = vadd.f32 %v1846, %v1847
  %v1849 = vrot.slane %v1848, 4
  %v1850 = vadd.f32 %v1848, %v1849
  %v1851 = vrot.slane %v1850, 2
  %v1852 = vadd.f32 %v1850, %v1851
  %v1853 = vrot.slane %v1852, 1
  %v1854 = vadd.f32 %v1852, %v1853
  %v1855 = vmul.f32 %v1854, %v199
  %v1856 = vsub.f32 %v1798, %v1855
  %v1857 = vsub.f32 %v1799, %v1855
  %v1858 = vsub.f32 %v1800, %v1855
  %v1859 = vsub.f32 %v1801, %v1855
  %v1860 = vmul.f32 %v1856, %v1856
  %v1861 = vmul.f32 %v1857, %v1857
  %v1862 = vmul.f32 %v1858, %v1858
  %v1863 = vmul.f32 %v1859, %v1859
  %v1864 = vsel %vm1841, %v1860, 0.0
  %v1865 = vsel %vm1841, %v1861, 0.0
  %v1866 = vadd.f32 %v1864, %v1865
  %v1867 = vsel %vm1841, %v1862, 0.0
  %v1868 = vadd.f32 %v1866, %v1867
  %v1869 = vsel %vm1841, %v1863, 0.0
  %v1870 = vadd.f32 %v1868, %v1869
  %v1871 = vrot.slane %v1870, 4
  %v1872 = vadd.f32 %v1870, %v1871
  %v1873 = vrot.slane %v1872, 2
  %v1874 = vadd.f32 %v1872, %v1873
  %v1875 = vrot.slane %v1874, 1
  %v1876 = vadd.f32 %v1874, %v1875
  %v1877 = vmul.f32 %v1876, %v199
  %v1878 = vadd.f32 %v1877, 1e-05
  %v1879 = vrsqrt.pop %v1878
  %v1880 = vmul.f32 %v1839, %v1879
  %v1882 = vlaneseq
  %v1883 = vshrl.u32 %v1882, 7
  %v1884 = vsub.s32 0, %v1883
  %v1885 = vrot.slane %v1880, %v1884
  %v1887 = vmul.f32 %v1856, %v1885
  %v1888 = vmul.f32 %v1857, %v1885
  %v1889 = vmul.f32 %v1858, %v1885
  %v1890 = vmul.f32 %v1859, %v1885
  %v1892 = vlaneseq
  %v1893 = vshrl.u32 %v1892, 7
  %v1894 = vsub.s32 0, %v1893
  %v1895 = vrot.slane %v1840, %v1894
  %v1897 = vadd.f32 %v1887, %v1895
  %v1898 = vadd.f32 %v1888, %v1895
  %v1899 = vadd.f32 %v1889, %v1895
  %v1900 = vadd.f32 %v1890, %v1895
  %v1901 = vmax.f32 %v1897, 0.0
  %v1902 = vmax.f32 %v1898, 0.0
  %v1903 = vmax.f32 %v1899, 0.0
  %v1904 = vmax.f32 %v1900, 0.0
  %v1905 = vld [vmem:[%s27] sm:$0xf]
  %v1906 = vld [vmem:[%s27 + $0x4] sm:$0x3]
  %v1907 = vpack.c.bf16 %v1902, %v1901
  %v1908 = vpack.c.bf16 %v1904, %v1903
  %v1911 = vunpack.c.l.b16 %v1905
  %v1912 = vunpack.c.l.b16 %v1906
  %v1913 = vpack.c.b16 %v1912, %v1911
  %v1915 = vsel %vm1841, %v1907, 0
  %v1918 = vsel %vm1841, %v1908, 0
  %vm1920 = vcmask 1045504
  %v1922 = vsel %vm1920, %v1913, 0
  %1924 = vmatprep.subr.bf16.mxu0 0
  %1925 = vmatpush1.bf16.msra.mxu0 %v1922
  %1926 = vmatprep.subr.bf16.mxu0 0
  %1927 = vmatpush1.bf16.msra.mxu0 0
  %1928 = vmatprep.subr.bf16.mxu0 0
  %1929 = vmatpush1.bf16.msra.mxu0 0
  %1930 = vmatprep.subr.bf16.mxu0 0
  %1931 = vmatpush1.bf16.msra.mxu0 0
  %1932 = vmatprep.subr.bf16.mxu0 0
  %1933 = vmatpush1.bf16.msra.mxu0 0
  %1934 = vmatprep.subr.bf16.mxu0 0
  %1935 = vmatpush1.bf16.msra.mxu0 0
  %1936 = vmatprep.subr.bf16.mxu0 0
  %1937 = vmatpush1.bf16.msra.mxu0 0
  %1938 = vmatprep.subr.bf16.mxu0 0
  %1939 = vmatpush1.bf16.msra.mxu0 0
  %1940 = vmatprep.subr.bf16.mxu0 0
  %1941 = vmatpush1.bf16.msra.mxu0 0
  %1942 = vmatprep.subr.bf16.mxu0 0
  %1943 = vmatpush1.bf16.msra.mxu0 0
  %1944 = vmatprep.subr.bf16.mxu0 0
  %1945 = vmatpush1.bf16.msra.mxu0 0
  %1946 = vmatprep.subr.bf16.mxu0 0
  %1947 = vmatpush1.bf16.msra.mxu0 0
  %1948 = vmatprep.subr.bf16.mxu0 0
  %1949 = vmatpush1.bf16.msra.mxu0 0
  %1950 = vmatprep.subr.bf16.mxu0 0
  %1951 = vmatpush1.bf16.msra.mxu0 0
  %1952 = vmatprep.subr.bf16.mxu0 0
  %1953 = vmatpush1.bf16.msra.mxu0 0
  %1954 = vmatprep.subr.bf16.mxu0 0
  %1955 = vmatpush1.bf16.msra.mxu0 0
  %1956 = vmatprep.mubr.bf16.mxu0 0
  %1957 = vmatmul.mubr.bf16.gmra.mrb[0].mxu0 %v1915
  %v1958 = vpop.f32.mrb[0].mxu0
  %v1959 = vadd.f32 0.0, %v1958
  %v1960 = vpop.f32.mrb[0].mxu0
  %v1961 = vpop.f32.mrb[0].mxu0
  %v1962 = vadd.f32 0.0, %v1961
  %v1963 = vpop.f32.mrb[0].mxu0
  %1964 = vmatprep.mubr.bf16.mxu0 0
  %1965 = vmatmul.mubr.bf16.gmra.mrb[0].mxu0 %v1918
  %v1966 = vpop.f32.mrb[0].mxu0
  %v1967 = vadd.f32 0.0, %v1966
  %v1968 = vpop.f32.mrb[0].mxu0
  %v1969 = vpop.f32.mrb[0].mxu0
  %v1970 = vadd.f32 0.0, %v1969
  %v1971 = vpop.f32.mrb[0].mxu0
  %1972 = vdwg.mxu0
  %v1981 = vunpack.c.l.b16 %v1829
  %v1982 = vunpack.c.l.b16 %v1830
  %v1983 = vunpack.c.l.b16 %v1831
  %v1984 = vunpack.c.l.b16 %v1832
  %v1985 = vunpack.c.l.b16 %v1833
  %v1986 = vunpack.c.l.b16 %v1834
  %v1987 = vunpack.c.l.b16 %v1835
  %v1988 = vunpack.c.l.b16 %v1836
  %v1989 = vpack.c.b16 %v1982, %v1981
  %v1990 = vpack.c.b16 %v1984, %v1983
  %v1991 = vpack.c.b16 %v1986, %v1985
  %v1992 = vpack.c.b16 %v1988, %v1987
  %v1998 = vsel %vm185, %v1837, 0
  %v2001 = vsel %vm185, %v1838, 0
  %2003 = vmatprep.subr.bf16.mxu0 0
  %2004 = vmatpush1.bf16.msra.mxu0 %v1989
  %2005 = vmatprep.subr.bf16.mxu0 0
  %2006 = vmatpush1.bf16.msra.mxu0 %v1990
  %2007 = vmatprep.subr.bf16.mxu0 0
  %2008 = vmatpush1.bf16.msra.mxu0 %v1991
  %2009 = vmatprep.subr.bf16.mxu0 0
  %2010 = vmatpush1.bf16.msra.mxu0 %v1992
  %2011 = vmatprep.subr.bf16.mxu0 0
  %2012 = vmatpush1.bf16.msra.mxu0 0
  %2013 = vmatprep.subr.bf16.mxu0 0
  %2014 = vmatpush1.bf16.msra.mxu0 0
  %2015 = vmatprep.subr.bf16.mxu0 0
  %2016 = vmatpush1.bf16.msra.mxu0 0
  %2017 = vmatprep.subr.bf16.mxu0 0
  %2018 = vmatpush1.bf16.msra.mxu0 0
  %2019 = vmatprep.subr.bf16.mxu0 0
  %2020 = vmatpush1.bf16.msra.mxu0 0
  %2021 = vmatprep.subr.bf16.mxu0 0
  %2022 = vmatpush1.bf16.msra.mxu0 0
  %2023 = vmatprep.subr.bf16.mxu0 0
  %2024 = vmatpush1.bf16.msra.mxu0 0
  %2025 = vmatprep.subr.bf16.mxu0 0
  %2026 = vmatpush1.bf16.msra.mxu0 0
  %2027 = vmatprep.subr.bf16.mxu0 0
  %2028 = vmatpush1.bf16.msra.mxu0 0
  %2029 = vmatprep.subr.bf16.mxu0 0
  %2030 = vmatpush1.bf16.msra.mxu0 0
  %2031 = vmatprep.subr.bf16.mxu0 0
  %2032 = vmatpush1.bf16.msra.mxu0 0
  %2033 = vmatprep.subr.bf16.mxu0 0
  %2034 = vmatpush1.bf16.msra.mxu0 0
  %2035 = vmatprep.mubr.bf16.mxu0 0
  %2036 = vmatmul.mubr.bf16.gmra.mrb[0].mxu0 %v1998
  %v2037 = vpop.f32.mrb[0].mxu0
  %v2038 = vadd.f32 %v1959, %v2037
  %v2039 = vpop.f32.mrb[0].mxu0
  %v2040 = vpop.f32.mrb[0].mxu0
  %v2041 = vadd.f32 %v1962, %v2040
  %v2042 = vpop.f32.mrb[0].mxu0
  %2043 = vmatprep.mubr.bf16.mxu0 0
  %2044 = vmatmul.mubr.bf16.gmra.mrb[0].mxu0 %v2001
  %v2045 = vpop.f32.mrb[0].mxu0
  %v2046 = vadd.f32 %v1967, %v2045
  %v2047 = vpop.f32.mrb[0].mxu0
  %v2048 = vpop.f32.mrb[0].mxu0
  %v2049 = vadd.f32 %v1970, %v2048
  %v2050 = vpop.f32.mrb[0].mxu0
  %2051 = vdwg.mxu0
  %v2052 = vld [vmem:[%s29] sm:$0x1]
  %v2053 = vld [vmem:[%s31] sm:$0x1]
  %v2054 = vsel %vm341, %v2038, 0.0
  %v2055 = vsel %vm341, %v2041, 0.0
  %v2056 = vadd.f32 %v2054, %v2055
  %v2057 = vsel %vm341, %v2046, 0.0
  %v2058 = vadd.f32 %v2056, %v2057
  %v2059 = vsel %vm341, %v2049, 0.0
  %v2060 = vadd.f32 %v2058, %v2059
  %v2061 = vrot.slane %v2060, 4
  %v2062 = vadd.f32 %v2060, %v2061
  %v2063 = vrot.slane %v2062, 2
  %v2064 = vadd.f32 %v2062, %v2063
  %v2065 = vrot.slane %v2064, 1
  %v2066 = vadd.f32 %v2064, %v2065
  %v2067 = vmul.f32 %v2066, %v199
  %v2068 = vsub.f32 %v2038, %v2067
  %v2069 = vsub.f32 %v2041, %v2067
  %v2070 = vsub.f32 %v2046, %v2067
  %v2071 = vsub.f32 %v2049, %v2067
  %v2072 = vmul.f32 %v2068, %v2068
  %v2073 = vmul.f32 %v2069, %v2069
  %v2074 = vmul.f32 %v2070, %v2070
  %v2075 = vmul.f32 %v2071, %v2071
  %v2076 = vsel %vm341, %v2072, 0.0
  %v2077 = vsel %vm341, %v2073, 0.0
  %v2078 = vadd.f32 %v2076, %v2077
  %v2079 = vsel %vm341, %v2074, 0.0
  %v2080 = vadd.f32 %v2078, %v2079
  %v2081 = vsel %vm341, %v2075, 0.0
  %v2082 = vadd.f32 %v2080, %v2081
  %v2083 = vrot.slane %v2082, 4
  %v2084 = vadd.f32 %v2082, %v2083
  %v2085 = vrot.slane %v2084, 2
  %v2086 = vadd.f32 %v2084, %v2085
  %v2087 = vrot.slane %v2086, 1
  %v2088 = vadd.f32 %v2086, %v2087
  %v2089 = vmul.f32 %v2088, %v199
  %v2090 = vadd.f32 %v2089, 1e-05
  %v2091 = vrsqrt.pop %v2090
  %v2092 = vmul.f32 %v2052, %v2091
  %v2094 = vlaneseq
  %v2095 = vshrl.u32 %v2094, 7
  %v2096 = vsub.s32 0, %v2095
  %v2097 = vrot.slane %v2092, %v2096
  %v2099 = vmul.f32 %v2068, %v2097
  %v2100 = vmul.f32 %v2069, %v2097
  %v2101 = vmul.f32 %v2070, %v2097
  %v2102 = vmul.f32 %v2071, %v2097
  %v2104 = vlaneseq
  %v2105 = vshrl.u32 %v2104, 7
  %v2106 = vsub.s32 0, %v2105
  %v2107 = vrot.slane %v2053, %v2106
  %v2109 = vadd.f32 %v2099, %v2107
  %v2110 = vadd.f32 %v2100, %v2107
  %v2111 = vadd.f32 %v2101, %v2107
  %v2112 = vadd.f32 %v2102, %v2107
  %v2113 = vmax.f32 %v2109, 0.0
  %v2114 = vmax.f32 %v2110, 0.0
  %v2115 = vmax.f32 %v2111, 0.0
  %v2116 = vmax.f32 %v2112, 0.0
  %v2117 = vpack.c.bf16 %v2114, %v2113
  %v2118 = vpack.c.bf16 %v2116, %v2115
  %2119 = vmatprep.subr.bf16.mxu0 0
  %2120 = vmatpush1.bf16.msra.mxu0 %v2117
  %2121 = vmatprep.subr.bf16.mxu0 0
  %2122 = vmatpush1.bf16.msra.mxu0 %v2118
  %2123 = vmatprep.subr.bf16.mxu0 0
  %2124 = vmatpush1.bf16.msra.mxu0 0
  %2125 = vmatprep.subr.bf16.mxu0 0
  %2126 = vmatpush1.bf16.msra.mxu0 0
  %2127 = vmatprep.subr.bf16.mxu0 0
  %2128 = vmatpush1.bf16.msra.mxu0 0
  %2129 = vmatprep.subr.bf16.mxu0 0
  %2130 = vmatpush1.bf16.msra.mxu0 0
  %2131 = vmatprep.subr.bf16.mxu0 0
  %2132 = vmatpush1.bf16.msra.mxu0 0
  %2133 = vmatprep.subr.bf16.mxu0 0
  %2134 = vmatpush1.bf16.msra.mxu0 0
  %2135 = vmatprep.subr.bf16.mxu0 0
  %2136 = vmatpush1.bf16.msra.mxu0 0
  %2137 = vmatprep.subr.bf16.mxu0 0
  %2138 = vmatpush1.bf16.msra.mxu0 0
  %2139 = vmatprep.subr.bf16.mxu0 0
  %2140 = vmatpush1.bf16.msra.mxu0 0
  %2141 = vmatprep.subr.bf16.mxu0 0
  %2142 = vmatpush1.bf16.msra.mxu0 0
  %2143 = vmatprep.subr.bf16.mxu0 0
  %2144 = vmatpush1.bf16.msra.mxu0 0
  %2145 = vmatprep.subr.bf16.mxu0 0
  %2146 = vmatpush1.bf16.msra.mxu0 0
  %2147 = vmatprep.subr.bf16.mxu0 0
  %2148 = vmatpush1.bf16.msra.mxu0 0
  %2149 = vmatprep.subr.bf16.mxu0 0
  %2150 = vmatpush1.bf16.msra.mxu0 0
  %2151 = vmatprep.mubr.bf16.mxu0 0
  %2152 = vmatmul.mubr.bf16.gmra.mrb[0].mxu0 %v423
  %v2153 = vpop.f32.mrb[0].mxu0
  %v2154 = vadd.f32 0.0, %v2153
  %v2155 = vpop.f32.mrb[0].mxu0
  %v2156 = vpop.f32.mrb[0].mxu0
  %v2157 = vadd.f32 0.0, %v2156
  %v2158 = vpop.f32.mrb[0].mxu0
  %2159 = vmatprep.mubr.bf16.mxu0 0
  %2160 = vmatmul.mubr.bf16.gmra.mrb[0].mxu0 %v426
  %v2161 = vpop.f32.mrb[0].mxu0
  %v2162 = vadd.f32 0.0, %v2161
  %v2163 = vpop.f32.mrb[0].mxu0
  %v2164 = vpop.f32.mrb[0].mxu0
  %v2165 = vadd.f32 0.0, %v2164
  %v2166 = vpop.f32.mrb[0].mxu0
  %2167 = vdwg.mxu0
  %v2168 = vld [vmem:[%s33] sm:$0xf]
  %v2169 = vld [vmem:[%s33 + $0x4] sm:$0xf]
  %v2170 = vld [vmem:[%s33 + $0x8] sm:$0xf]
  %v2171 = vld [vmem:[%s33 + $0xc] sm:$0xf]
  %v2172 = vld [vmem:[%s33 + $0x10] sm:$0xf]
  %v2173 = vld [vmem:[%s33 + $0x14] sm:$0xf]
  %v2174 = vpack.c.bf16 %v2157, %v2154
  %v2175 = vpack.c.bf16 %v2165, %v2162
  %2176 = vmatprep.subr.bf16.mxu0 0
  %2177 = vmatpush1.bf16.msra.mxu0 %v2117
  %2178 = vmatprep.subr.bf16.mxu0 0
  %2179 = vmatpush1.bf16.msra.mxu0 %v2118
  %2180 = vmatprep.subr.bf16.mxu0 0
  %2181 = vmatpush1.bf16.msra.mxu0 0
  %2182 = vmatprep.subr.bf16.mxu0 0
  %2183 = vmatpush1.bf16.msra.mxu0 0
  %2184 = vmatprep.subr.bf16.mxu0 0
  %2185 = vmatpush1.bf16.msra.mxu0 0
  %2186 = vmatprep.subr.bf16.mxu0 0
  %2187 = vmatpush1.bf16.msra.mxu0 0
  %2188 = vmatprep.subr.bf16.mxu0 0
  %2189 = vmatpush1.bf16.msra.mxu0 0
  %2190 = vmatprep.subr.bf16.mxu0 0
  %2191 = vmatpush1.bf16.msra.mxu0 0
  %2192 = vmatprep.subr.bf16.mxu0 0
  %2193 = vmatpush1.bf16.msra.mxu0 0
  %2194 = vmatprep.subr.bf16.mxu0 0
  %2195 = vmatpush1.bf16.msra.mxu0 0
  %2196 = vmatprep.subr.bf16.mxu0 0
  %2197 = vmatpush1.bf16.msra.mxu0 0
  %2198 = vmatprep.subr.bf16.mxu0 0
  %2199 = vmatpush1.bf16.msra.mxu0 0
  %2200 = vmatprep.subr.bf16.mxu0 0
  %2201 = vmatpush1.bf16.msra.mxu0 0
  %2202 = vmatprep.subr.bf16.mxu0 0
  %2203 = vmatpush1.bf16.msra.mxu0 0
  %2204 = vmatprep.subr.bf16.mxu0 0
  %2205 = vmatpush1.bf16.msra.mxu0 0
  %2206 = vmatprep.subr.bf16.mxu0 0
  %2207 = vmatpush1.bf16.msra.mxu0 0
  %2208 = vmatprep.mubr.bf16.mxu0 0
  %2209 = vmatmul.mubr.bf16.gmra.mrb[0].mxu0 %v501
  %v2210 = vpop.f32.mrb[0].mxu0
  %v2211 = vadd.f32 0.0, %v2210
  %v2212 = vpop.f32.mrb[0].mxu0
  %v2213 = vpop.f32.mrb[0].mxu0
  %v2214 = vadd.f32 0.0, %v2213
  %v2215 = vpop.f32.mrb[0].mxu0
  %2216 = vmatprep.mubr.bf16.mxu0 0
  %2217 = vmatmul.mubr.bf16.gmra.mrb[0].mxu0 %v504
  %v2218 = vpop.f32.mrb[0].mxu0
  %v2219 = vadd.f32 0.0, %v2218
  %v2220 = vpop.f32.mrb[0].mxu0
  %v2221 = vpop.f32.mrb[0].mxu0
  %v2222 = vadd.f32 0.0, %v2221
  %v2223 = vpop.f32.mrb[0].mxu0
  %2224 = vdwg.mxu0
  %s2225 = scalar_lea.vmem %s33, 24
  %v2226 = vld [vmem:[%s2225] sm:$0xf]
  %v2227 = vld [vmem:[%s2225 + $0x4] sm:$0xf]
  %v2228 = vld [vmem:[%s2225 + $0x8] sm:$0xf]
  %v2229 = vld [vmem:[%s2225 + $0xc] sm:$0xf]
  %v2230 = vld [vmem:[%s2225 + $0x10] sm:$0xf]
  %v2231 = vld [vmem:[%s2225 + $0x14] sm:$0xf]
  %v2232 = vpack.c.bf16 %v2214, %v2211
  %v2233 = vpack.c.bf16 %v2222, %v2219
  %v2240 = vunpack.c.l.b16 %v2226
  %v2241 = vunpack.c.l.b16 %v2227
  %v2242 = vunpack.c.l.b16 %v2228
  %v2243 = vunpack.c.l.b16 %v2229
  %v2244 = vunpack.c.l.b16 %v2230
  %v2245 = vunpack.c.l.b16 %v2231
  %v2246 = vpack.c.b16 %v2241, %v2240
  %v2247 = vpack.c.b16 %v2243, %v2242
  %v2248 = vpack.c.b16 %v2245, %v2244
  %v2253 = vsel %vm341, %v2232, 0
  %v2256 = vsel %vm341, %v2233, 0
  %2258 = vmatprep.subr.bf16.mxu0 0
  %2259 = vmatpush1.bf16.msra.mxu0 %v2246
  %2260 = vmatprep.subr.bf16.mxu0 0
  %2261 = vmatpush1.bf16.msra.mxu0 %v2247
  %2262 = vmatprep.subr.bf16.mxu0 0
  %2263 = vmatpush1.bf16.msra.mxu0 %v2248
  %2264 = vmatprep.subr.bf16.mxu0 0
  %2265 = vmatpush1.bf16.msra.mxu0 0
  %2266 = vmatprep.subr.bf16.mxu0 0
  %2267 = vmatpush1.bf16.msra.mxu0 0
  %2268 = vmatprep.subr.bf16.mxu0 0
  %2269 = vmatpush1.bf16.msra.mxu0 0
  %2270 = vmatprep.subr.bf16.mxu0 0
  %2271 = vmatpush1.bf16.msra.mxu0 0
  %2272 = vmatprep.subr.bf16.mxu0 0
  %2273 = vmatpush1.bf16.msra.mxu0 0
  %2274 = vmatprep.subr.bf16.mxu0 0
  %2275 = vmatpush1.bf16.msra.mxu0 0
  %2276 = vmatprep.subr.bf16.mxu0 0
  %2277 = vmatpush1.bf16.msra.mxu0 0
  %2278 = vmatprep.subr.bf16.mxu0 0
  %2279 = vmatpush1.bf16.msra.mxu0 0
  %2280 = vmatprep.subr.bf16.mxu0 0
  %2281 = vmatpush1.bf16.msra.mxu0 0
  %2282 = vmatprep.subr.bf16.mxu0 0
  %2283 = vmatpush1.bf16.msra.mxu0 0
  %2284 = vmatprep.subr.bf16.mxu0 0
  %2285 = vmatpush1.bf16.msra.mxu0 0
  %2286 = vmatprep.subr.bf16.mxu0 0
  %2287 = vmatpush1.bf16.msra.mxu0 0
  %2288 = vmatprep.subr.bf16.mxu0 0
  %2289 = vmatpush1.bf16.msra.mxu0 0
  %2290 = vmatprep.mubr.bf16.mxu0 0
  %2291 = vmatmul.mubr.bf16.gmra.mrb[0].mxu0 %v2253
  %v2292 = vpop.f32.mrb[0].mxu0
  %v2293 = vadd.f32 0.0, %v2292
  %v2294 = vpop.f32.mrb[0].mxu0
  %v2295 = vpop.f32.mrb[0].mxu0
  %v2296 = vadd.f32 0.0, %v2295
  %v2297 = vpop.f32.mrb[0].mxu0
  %2298 = vmatprep.mubr.bf16.mxu0 0
  %2299 = vmatmul.mubr.bf16.gmra.mrb[0].mxu0 %v2256
  %v2300 = vpop.f32.mrb[0].mxu0
  %v2301 = vadd.f32 0.0, %v2300
  %v2302 = vpop.f32.mrb[0].mxu0
  %v2303 = vpop.f32.mrb[0].mxu0
  %v2304 = vadd.f32 0.0, %v2303
  %v2305 = vpop.f32.mrb[0].mxu0
  %2306 = vdwg.mxu0
  %v2313 = vunpack.c.l.b16 %v2168
  %v2314 = vunpack.c.l.b16 %v2169
  %v2315 = vunpack.c.l.b16 %v2170
  %v2316 = vunpack.c.l.b16 %v2171
  %v2317 = vunpack.c.l.b16 %v2172
  %v2318 = vunpack.c.l.b16 %v2173
  %v2319 = vpack.c.b16 %v2314, %v2313
  %v2320 = vpack.c.b16 %v2316, %v2315
  %v2321 = vpack.c.b16 %v2318, %v2317
  %v2326 = vsel %vm341, %v2174, 0
  %v2329 = vsel %vm341, %v2175, 0
  %2331 = vmatprep.subr.bf16.mxu0 0
  %2332 = vmatpush1.bf16.msra.mxu0 %v2319
  %2333 = vmatprep.subr.bf16.mxu0 0
  %2334 = vmatpush1.bf16.msra.mxu0 %v2320
  %2335 = vmatprep.subr.bf16.mxu0 0
  %2336 = vmatpush1.bf16.msra.mxu0 %v2321
  %2337 = vmatprep.subr.bf16.mxu0 0
  %2338 = vmatpush1.bf16.msra.mxu0 0
  %2339 = vmatprep.subr.bf16.mxu0 0
  %2340 = vmatpush1.bf16.msra.mxu0 0
  %2341 = vmatprep.subr.bf16.mxu0 0
  %2342 = vmatpush1.bf16.msra.mxu0 0
  %2343 = vmatprep.subr.bf16.mxu0 0
  %2344 = vmatpush1.bf16.msra.mxu0 0
  %2345 = vmatprep.subr.bf16.mxu0 0
  %2346 = vmatpush1.bf16.msra.mxu0 0
  %2347 = vmatprep.subr.bf16.mxu0 0
  %2348 = vmatpush1.bf16.msra.mxu0 0
  %2349 = vmatprep.subr.bf16.mxu0 0
  %2350 = vmatpush1.bf16.msra.mxu0 0
  %2351 = vmatprep.subr.bf16.mxu0 0
  %2352 = vmatpush1.bf16.msra.mxu0 0
  %2353 = vmatprep.subr.bf16.mxu0 0
  %2354 = vmatpush1.bf16.msra.mxu0 0
  %2355 = vmatprep.subr.bf16.mxu0 0
  %2356 = vmatpush1.bf16.msra.mxu0 0
  %2357 = vmatprep.subr.bf16.mxu0 0
  %2358 = vmatpush1.bf16.msra.mxu0 0
  %2359 = vmatprep.subr.bf16.mxu0 0
  %2360 = vmatpush1.bf16.msra.mxu0 0
  %2361 = vmatprep.subr.bf16.mxu0 0
  %2362 = vmatpush1.bf16.msra.mxu0 0
  %2363 = vmatprep.mubr.bf16.mxu0 0
  %2364 = vmatmul.mubr.bf16.gmra.mrb[0].mxu0 %v2326
  %v2365 = vpop.f32.mrb[0].mxu0
  %v2366 = vadd.f32 %v2293, %v2365
  %v2367 = vpop.f32.mrb[0].mxu0
  %v2368 = vpop.f32.mrb[0].mxu0
  %v2369 = vadd.f32 %v2296, %v2368
  %v2370 = vpop.f32.mrb[0].mxu0
  %2371 = vmatprep.mubr.bf16.mxu0 0
  %2372 = vmatmul.mubr.bf16.gmra.mrb[0].mxu0 %v2329
  %v2373 = vpop.f32.mrb[0].mxu0
  %v2374 = vadd.f32 %v2301, %v2373
  %v2375 = vpop.f32.mrb[0].mxu0
  %v2376 = vpop.f32.mrb[0].mxu0
  %v2377 = vadd.f32 %v2304, %v2376
  %v2378 = vpop.f32.mrb[0].mxu0
  %2379 = vdwg.mxu0
  %2380 = vmatprep.subr.bf16.mxu0 0
  %2381 = vmatpush1.bf16.msra.mxu0 %v2117
  %2382 = vmatprep.subr.bf16.mxu0 0
  %2383 = vmatpush1.bf16.msra.mxu0 %v2118
  %2384 = vmatprep.subr.bf16.mxu0 0
  %2385 = vmatpush1.bf16.msra.mxu0 0
  %2386 = vmatprep.subr.bf16.mxu0 0
  %2387 = vmatpush1.bf16.msra.mxu0 0
  %2388 = vmatprep.subr.bf16.mxu0 0
  %2389 = vmatpush1.bf16.msra.mxu0 0
  %2390 = vmatprep.subr.bf16.mxu0 0
  %2391 = vmatpush1.bf16.msra.mxu0 0
  %2392 = vmatprep.subr.bf16.mxu0 0
  %2393 = vmatpush1.bf16.msra.mxu0 0
  %2394 = vmatprep.subr.bf16.mxu0 0
  %2395 = vmatpush1.bf16.msra.mxu0 0
  %2396 = vmatprep.subr.bf16.mxu0 0
  %2397 = vmatpush1.bf16.msra.mxu0 0
  %2398 = vmatprep.subr.bf16.mxu0 0
  %2399 = vmatpush1.bf16.msra.mxu0 0
  %2400 = vmatprep.subr.bf16.mxu0 0
  %2401 = vmatpush1.bf16.msra.mxu0 0
  %2402 = vmatprep.subr.bf16.mxu0 0
  %2403 = vmatpush1.bf16.msra.mxu0 0
  %2404 = vmatprep.subr.bf16.mxu0 0
  %2405 = vmatpush1.bf16.msra.mxu0 0
  %2406 = vmatprep.subr.bf16.mxu0 0
  %2407 = vmatpush1.bf16.msra.mxu0 0
  %2408 = vmatprep.subr.bf16.mxu0 0
  %2409 = vmatpush1.bf16.msra.mxu0 0
  %2410 = vmatprep.subr.bf16.mxu0 0
  %2411 = vmatpush1.bf16.msra.mxu0 0
  %2412 = vmatprep.mubr.bf16.mxu0 0
  %2413 = vmatmul.mubr.bf16.gmra.mrb[0].mxu0 %v726
  %v2414 = vpop.f32.mrb[0].mxu0
  %v2415 = vadd.f32 0.0, %v2414
  %v2416 = vpop.f32.mrb[0].mxu0
  %v2417 = vpop.f32.mrb[0].mxu0
  %v2418 = vadd.f32 0.0, %v2417
  %v2419 = vpop.f32.mrb[0].mxu0
  %2420 = vmatprep.mubr.bf16.mxu0 0
  %2421 = vmatmul.mubr.bf16.gmra.mrb[0].mxu0 %v729
  %v2422 = vpop.f32.mrb[0].mxu0
  %v2423 = vadd.f32 0.0, %v2422
  %v2424 = vpop.f32.mrb[0].mxu0
  %v2425 = vpop.f32.mrb[0].mxu0
  %v2426 = vadd.f32 0.0, %v2425
  %v2427 = vpop.f32.mrb[0].mxu0
  %2428 = vdwg.mxu0
  %s2429 = scalar_lea.vmem %s33, 48
  %v2430 = vld [vmem:[%s2429] sm:$0xf]
  %v2431 = vld [vmem:[%s2429 + $0x4] sm:$0xf]
  %v2432 = vld [vmem:[%s2429 + $0x8] sm:$0xf]
  %v2433 = vld [vmem:[%s2429 + $0xc] sm:$0xf]
  %v2434 = vld [vmem:[%s2429 + $0x10] sm:$0xf]
  %v2435 = vld [vmem:[%s2429 + $0x14] sm:$0xf]
  %v2436 = vpack.c.bf16 %v2418, %v2415
  %v2437 = vpack.c.bf16 %v2426, %v2423
  %v2444 = vunpack.c.l.b16 %v2430
  %v2445 = vunpack.c.l.b16 %v2431
  %v2446 = vunpack.c.l.b16 %v2432
  %v2447 = vunpack.c.l.b16 %v2433
  %v2448 = vunpack.c.l.b16 %v2434
  %v2449 = vunpack.c.l.b16 %v2435
  %v2450 = vpack.c.b16 %v2445, %v2444
  %v2451 = vpack.c.b16 %v2447, %v2446
  %v2452 = vpack.c.b16 %v2449, %v2448
  %v2457 = vsel %vm341, %v2436, 0
  %v2460 = vsel %vm341, %v2437, 0
  %2462 = vmatprep.subr.bf16.mxu0 0
  %2463 = vmatpush1.bf16.msra.mxu0 %v2450
  %2464 = vmatprep.subr.bf16.mxu0 0
  %2465 = vmatpush1.bf16.msra.mxu0 %v2451
  %2466 = vmatprep.subr.bf16.mxu0 0
  %2467 = vmatpush1.bf16.msra.mxu0 %v2452
  %2468 = vmatprep.subr.bf16.mxu0 0
  %2469 = vmatpush1.bf16.msra.mxu0 0
  %2470 = vmatprep.subr.bf16.mxu0 0
  %2471 = vmatpush1.bf16.msra.mxu0 0
  %2472 = vmatprep.subr.bf16.mxu0 0
  %2473 = vmatpush1.bf16.msra.mxu0 0
  %2474 = vmatprep.subr.bf16.mxu0 0
  %2475 = vmatpush1.bf16.msra.mxu0 0
  %2476 = vmatprep.subr.bf16.mxu0 0
  %2477 = vmatpush1.bf16.msra.mxu0 0
  %2478 = vmatprep.subr.bf16.mxu0 0
  %2479 = vmatpush1.bf16.msra.mxu0 0
  %2480 = vmatprep.subr.bf16.mxu0 0
  %2481 = vmatpush1.bf16.msra.mxu0 0
  %2482 = vmatprep.subr.bf16.mxu0 0
  %2483 = vmatpush1.bf16.msra.mxu0 0
  %2484 = vmatprep.subr.bf16.mxu0 0
  %2485 = vmatpush1.bf16.msra.mxu0 0
  %2486 = vmatprep.subr.bf16.mxu0 0
  %2487 = vmatpush1.bf16.msra.mxu0 0
  %2488 = vmatprep.subr.bf16.mxu0 0
  %2489 = vmatpush1.bf16.msra.mxu0 0
  %2490 = vmatprep.subr.bf16.mxu0 0
  %2491 = vmatpush1.bf16.msra.mxu0 0
  %2492 = vmatprep.subr.bf16.mxu0 0
  %2493 = vmatpush1.bf16.msra.mxu0 0
  %2494 = vmatprep.mubr.bf16.mxu0 0
  %2495 = vmatmul.mubr.bf16.gmra.mrb[0].mxu0 %v2457
  %v2496 = vpop.f32.mrb[0].mxu0
  %v2497 = vadd.f32 0.0, %v2496
  %v2498 = vpop.f32.mrb[0].mxu0
  %v2499 = vpop.f32.mrb[0].mxu0
  %v2500 = vadd.f32 0.0, %v2499
  %v2501 = vpop.f32.mrb[0].mxu0
  %2502 = vmatprep.mubr.bf16.mxu0 0
  %2503 = vmatmul.mubr.bf16.gmra.mrb[0].mxu0 %v2460
  %v2504 = vpop.f32.mrb[0].mxu0
  %v2505 = vadd.f32 0.0, %v2504
  %v2506 = vpop.f32.mrb[0].mxu0
  %v2507 = vpop.f32.mrb[0].mxu0
  %v2508 = vadd.f32 0.0, %v2507
  %v2509 = vpop.f32.mrb[0].mxu0
  %2510 = vdwg.mxu0
  %v2511 = vadd.f32 %v2366, %v2497
  %v2512 = vadd.f32 %v2369, %v2500
  %v2513 = vadd.f32 %v2374, %v2505
  %v2514 = vadd.f32 %v2377, %v2508
  %2515 = vmatprep.subr.bf16.mxu0 0
  %2516 = vmatpush1.bf16.msra.mxu0 %v2117
  %2517 = vmatprep.subr.bf16.mxu0 0
  %2518 = vmatpush1.bf16.msra.mxu0 %v2118
  %2519 = vmatprep.subr.bf16.mxu0 0
  %2520 = vmatpush1.bf16.msra.mxu0 0
  %2521 = vmatprep.subr.bf16.mxu0 0
  %2522 = vmatpush1.bf16.msra.mxu0 0
  %2523 = vmatprep.subr.bf16.mxu0 0
  %2524 = vmatpush1.bf16.msra.mxu0 0
  %2525 = vmatprep.subr.bf16.mxu0 0
  %2526 = vmatpush1.bf16.msra.mxu0 0
  %2527 = vmatprep.subr.bf16.mxu0 0
  %2528 = vmatpush1.bf16.msra.mxu0 0
  %2529 = vmatprep.subr.bf16.mxu0 0
  %2530 = vmatpush1.bf16.msra.mxu0 0
  %2531 = vmatprep.subr.bf16.mxu0 0
  %2532 = vmatpush1.bf16.msra.mxu0 0
  %2533 = vmatprep.subr.bf16.mxu0 0
  %2534 = vmatpush1.bf16.msra.mxu0 0
  %2535 = vmatprep.subr.bf16.mxu0 0
  %2536 = vmatpush1.bf16.msra.mxu0 0
  %2537 = vmatprep.subr.bf16.mxu0 0
  %2538 = vmatpush1.bf16.msra.mxu0 0
  %2539 = vmatprep.subr.bf16.mxu0 0
  %2540 = vmatpush1.bf16.msra.mxu0 0
  %2541 = vmatprep.subr.bf16.mxu0 0
  %2542 = vmatpush1.bf16.msra.mxu0 0
  %2543 = vmatprep.subr.bf16.mxu0 0
  %2544 = vmatpush1.bf16.msra.mxu0 0
  %2545 = vmatprep.subr.bf16.mxu0 0
  %2546 = vmatpush1.bf16.msra.mxu0 0
  %2547 = vmatprep.mubr.bf16.mxu0 0
  %2548 = vmatmul.mubr.bf16.gmra.mrb[0].mxu0 %v882
  %v2549 = vpop.f32.mrb[0].mxu0
  %v2550 = vadd.f32 0.0, %v2549
  %v2551 = vpop.f32.mrb[0].mxu0
  %v2552 = vpop.f32.mrb[0].mxu0
  %v2553 = vadd.f32 0.0, %v2552
  %v2554 = vpop.f32.mrb[0].mxu0
  %2555 = vmatprep.mubr.bf16.mxu0 0
  %2556 = vmatmul.mubr.bf16.gmra.mrb[0].mxu0 %v885
  %v2557 = vpop.f32.mrb[0].mxu0
  %v2558 = vadd.f32 0.0, %v2557
  %v2559 = vpop.f32.mrb[0].mxu0
  %v2560 = vpop.f32.mrb[0].mxu0
  %v2561 = vadd.f32 0.0, %v2560
  %v2562 = vpop.f32.mrb[0].mxu0
  %2563 = vdwg.mxu0
  %s2564 = scalar_lea.vmem %s33, 72
  %v2565 = vld [vmem:[%s2564] sm:$0xf]
  %v2566 = vld [vmem:[%s2564 + $0x4] sm:$0xf]
  %v2567 = vld [vmem:[%s2564 + $0x8] sm:$0xf]
  %v2568 = vld [vmem:[%s2564 + $0xc] sm:$0xf]
  %v2569 = vld [vmem:[%s2564 + $0x10] sm:$0xf]
  %v2570 = vld [vmem:[%s2564 + $0x14] sm:$0xf]
  %v2571 = vpack.c.bf16 %v2553, %v2550
  %v2572 = vpack.c.bf16 %v2561, %v2558
  %v2579 = vunpack.c.l.b16 %v2565
  %v2580 = vunpack.c.l.b16 %v2566
  %v2581 = vunpack.c.l.b16 %v2567
  %v2582 = vunpack.c.l.b16 %v2568
  %v2583 = vunpack.c.l.b16 %v2569
  %v2584 = vunpack.c.l.b16 %v2570
  %v2585 = vpack.c.b16 %v2580, %v2579
  %v2586 = vpack.c.b16 %v2582, %v2581
  %v2587 = vpack.c.b16 %v2584, %v2583
  %v2592 = vsel %vm341, %v2571, 0
  %v2595 = vsel %vm341, %v2572, 0
  %2597 = vmatprep.subr.bf16.mxu0 0
  %2598 = vmatpush1.bf16.msra.mxu0 %v2585
  %2599 = vmatprep.subr.bf16.mxu0 0
  %2600 = vmatpush1.bf16.msra.mxu0 %v2586
  %2601 = vmatprep.subr.bf16.mxu0 0
  %2602 = vmatpush1.bf16.msra.mxu0 %v2587
  %2603 = vmatprep.subr.bf16.mxu0 0
  %2604 = vmatpush1.bf16.msra.mxu0 0
  %2605 = vmatprep.subr.bf16.mxu0 0
  %2606 = vmatpush1.bf16.msra.mxu0 0
  %2607 = vmatprep.subr.bf16.mxu0 0
  %2608 = vmatpush1.bf16.msra.mxu0 0
  %2609 = vmatprep.subr.bf16.mxu0 0
  %2610 = vmatpush1.bf16.msra.mxu0 0
  %2611 = vmatprep.subr.bf16.mxu0 0
  %2612 = vmatpush1.bf16.msra.mxu0 0
  %2613 = vmatprep.subr.bf16.mxu0 0
  %2614 = vmatpush1.bf16.msra.mxu0 0
  %2615 = vmatprep.subr.bf16.mxu0 0
  %2616 = vmatpush1.bf16.msra.mxu0 0
  %2617 = vmatprep.subr.bf16.mxu0 0
  %2618 = vmatpush1.bf16.msra.mxu0 0
  %2619 = vmatprep.subr.bf16.mxu0 0
  %2620 = vmatpush1.bf16.msra.mxu0 0
  %2621 = vmatprep.subr.bf16.mxu0 0
  %2622 = vmatpush1.bf16.msra.mxu0 0
  %2623 = vmatprep.subr.bf16.mxu0 0
  %2624 = vmatpush1.bf16.msra.mxu0 0
  %2625 = vmatprep.subr.bf16.mxu0 0
  %2626 = vmatpush1.bf16.msra.mxu0 0
  %2627 = vmatprep.subr.bf16.mxu0 0
  %2628 = vmatpush1.bf16.msra.mxu0 0
  %2629 = vmatprep.mubr.bf16.mxu0 0
  %2630 = vmatmul.mubr.bf16.gmra.mrb[0].mxu0 %v2592
  %v2631 = vpop.f32.mrb[0].mxu0
  %v2632 = vadd.f32 0.0, %v2631
  %v2633 = vpop.f32.mrb[0].mxu0
  %v2634 = vpop.f32.mrb[0].mxu0
  %v2635 = vadd.f32 0.0, %v2634
  %v2636 = vpop.f32.mrb[0].mxu0
  %2637 = vmatprep.mubr.bf16.mxu0 0
  %2638 = vmatmul.mubr.bf16.gmra.mrb[0].mxu0 %v2595
  %v2639 = vpop.f32.mrb[0].mxu0
  %v2640 = vadd.f32 0.0, %v2639
  %v2641 = vpop.f32.mrb[0].mxu0
  %v2642 = vpop.f32.mrb[0].mxu0
  %v2643 = vadd.f32 0.0, %v2642
  %v2644 = vpop.f32.mrb[0].mxu0
  %2645 = vdwg.mxu0
  %v2646 = vadd.f32 %v2511, %v2632
  %v2647 = vadd.f32 %v2512, %v2635
  %v2648 = vadd.f32 %v2513, %v2640
  %v2649 = vadd.f32 %v2514, %v2643
  %2650 = vmatprep.subr.bf16.mxu0 0
  %2651 = vmatpush1.bf16.msra.mxu0 %v2117
  %2652 = vmatprep.subr.bf16.mxu0 0
  %2653 = vmatpush1.bf16.msra.mxu0 %v2118
  %2654 = vmatprep.subr.bf16.mxu0 0
  %2655 = vmatpush1.bf16.msra.mxu0 0
  %2656 = vmatprep.subr.bf16.mxu0 0
  %2657 = vmatpush1.bf16.msra.mxu0 0
  %2658 = vmatprep.subr.bf16.mxu0 0
  %2659 = vmatpush1.bf16.msra.mxu0 0
  %2660 = vmatprep.subr.bf16.mxu0 0
  %2661 = vmatpush1.bf16.msra.mxu0 0
  %2662 = vmatprep.subr.bf16.mxu0 0
  %2663 = vmatpush1.bf16.msra.mxu0 0
  %2664 = vmatprep.subr.bf16.mxu0 0
  %2665 = vmatpush1.bf16.msra.mxu0 0
  %2666 = vmatprep.subr.bf16.mxu0 0
  %2667 = vmatpush1.bf16.msra.mxu0 0
  %2668 = vmatprep.subr.bf16.mxu0 0
  %2669 = vmatpush1.bf16.msra.mxu0 0
  %2670 = vmatprep.subr.bf16.mxu0 0
  %2671 = vmatpush1.bf16.msra.mxu0 0
  %2672 = vmatprep.subr.bf16.mxu0 0
  %2673 = vmatpush1.bf16.msra.mxu0 0
  %2674 = vmatprep.subr.bf16.mxu0 0
  %2675 = vmatpush1.bf16.msra.mxu0 0
  %2676 = vmatprep.subr.bf16.mxu0 0
  %2677 = vmatpush1.bf16.msra.mxu0 0
  %2678 = vmatprep.subr.bf16.mxu0 0
  %2679 = vmatpush1.bf16.msra.mxu0 0
  %2680 = vmatprep.subr.bf16.mxu0 0
  %2681 = vmatpush1.bf16.msra.mxu0 0
  %2682 = vmatprep.mubr.bf16.mxu0 0
  %2683 = vmatmul.mubr.bf16.gmra.mrb[0].mxu0 %v1038
  %v2684 = vpop.f32.mrb[0].mxu0
  %v2685 = vadd.f32 0.0, %v2684
  %v2686 = vpop.f32.mrb[0].mxu0
  %v2687 = vpop.f32.mrb[0].mxu0
  %v2688 = vadd.f32 0.0, %v2687
  %v2689 = vpop.f32.mrb[0].mxu0
  %2690 = vmatprep.mubr.bf16.mxu0 0
  %2691 = vmatmul.mubr.bf16.gmra.mrb[0].mxu0 %v1041
  %v2692 = vpop.f32.mrb[0].mxu0
  %v2693 = vadd.f32 0.0, %v2692
  %v2694 = vpop.f32.mrb[0].mxu0
  %v2695 = vpop.f32.mrb[0].mxu0
  %v2696 = vadd.f32 0.0, %v2695
  %v2697 = vpop.f32.mrb[0].mxu0
  %2698 = vdwg.mxu0
  %s2699 = scalar_lea.vmem %s33, 96
  %v2700 = vld [vmem:[%s2699] sm:$0xf]
  %v2701 = vld [vmem:[%s2699 + $0x4] sm:$0xf]
  %v2702 = vld [vmem:[%s2699 + $0x8] sm:$0xf]
  %v2703 = vld [vmem:[%s2699 + $0xc] sm:$0xf]
  %v2704 = vld [vmem:[%s2699 + $0x10] sm:$0xf]
  %v2705 = vld [vmem:[%s2699 + $0x14] sm:$0xf]
  %v2706 = vpack.c.bf16 %v2688, %v2685
  %v2707 = vpack.c.bf16 %v2696, %v2693
  %v2714 = vunpack.c.l.b16 %v2700
  %v2715 = vunpack.c.l.b16 %v2701
  %v2716 = vunpack.c.l.b16 %v2702
  %v2717 = vunpack.c.l.b16 %v2703
  %v2718 = vunpack.c.l.b16 %v2704
  %v2719 = vunpack.c.l.b16 %v2705
  %v2720 = vpack.c.b16 %v2715, %v2714
  %v2721 = vpack.c.b16 %v2717, %v2716
  %v2722 = vpack.c.b16 %v2719, %v2718
  %v2727 = vsel %vm341, %v2706, 0
  %v2730 = vsel %vm341, %v2707, 0
  %2732 = vmatprep.subr.bf16.mxu0 0
  %2733 = vmatpush1.bf16.msra.mxu0 %v2720
  %2734 = vmatprep.subr.bf16.mxu0 0
  %2735 = vmatpush1.bf16.msra.mxu0 %v2721
  %2736 = vmatprep.subr.bf16.mxu0 0
  %2737 = vmatpush1.bf16.msra.mxu0 %v2722
  %2738 = vmatprep.subr.bf16.mxu0 0
  %2739 = vmatpush1.bf16.msra.mxu0 0
  %2740 = vmatprep.subr.bf16.mxu0 0
  %2741 = vmatpush1.bf16.msra.mxu0 0
  %2742 = vmatprep.subr.bf16.mxu0 0
  %2743 = vmatpush1.bf16.msra.mxu0 0
  %2744 = vmatprep.subr.bf16.mxu0 0
  %2745 = vmatpush1.bf16.msra.mxu0 0
  %2746 = vmatprep.subr.bf16.mxu0 0
  %2747 = vmatpush1.bf16.msra.mxu0 0
  %2748 = vmatprep.subr.bf16.mxu0 0
  %2749 = vmatpush1.bf16.msra.mxu0 0
  %2750 = vmatprep.subr.bf16.mxu0 0
  %2751 = vmatpush1.bf16.msra.mxu0 0
  %2752 = vmatprep.subr.bf16.mxu0 0
  %2753 = vmatpush1.bf16.msra.mxu0 0
  %2754 = vmatprep.subr.bf16.mxu0 0
  %2755 = vmatpush1.bf16.msra.mxu0 0
  %2756 = vmatprep.subr.bf16.mxu0 0
  %2757 = vmatpush1.bf16.msra.mxu0 0
  %2758 = vmatprep.subr.bf16.mxu0 0
  %2759 = vmatpush1.bf16.msra.mxu0 0
  %2760 = vmatprep.subr.bf16.mxu0 0
  %2761 = vmatpush1.bf16.msra.mxu0 0
  %2762 = vmatprep.subr.bf16.mxu0 0
  %2763 = vmatpush1.bf16.msra.mxu0 0
  %2764 = vmatprep.mubr.bf16.mxu0 0
  %2765 = vmatmul.mubr.bf16.gmra.mrb[0].mxu0 %v2727
  %v2766 = vpop.f32.mrb[0].mxu0
  %v2767 = vadd.f32 0.0, %v2766
  %v2768 = vpop.f32.mrb[0].mxu0
  %v2769 = vpop.f32.mrb[0].mxu0
  %v2770 = vadd.f32 0.0, %v2769
  %v2771 = vpop.f32.mrb[0].mxu0
  %2772 = vmatprep.mubr.bf16.mxu0 0
  %2773 = vmatmul.mubr.bf16.gmra.mrb[0].mxu0 %v2730
  %v2774 = vpop.f32.mrb[0].mxu0
  %v2775 = vadd.f32 0.0, %v2774
  %v2776 = vpop.f32.mrb[0].mxu0
  %v2777 = vpop.f32.mrb[0].mxu0
  %v2778 = vadd.f32 0.0, %v2777
  %v2779 = vpop.f32.mrb[0].mxu0
  %2780 = vdwg.mxu0
  %v2781 = vadd.f32 %v2646, %v2767
  %v2782 = vadd.f32 %v2647, %v2770
  %v2783 = vadd.f32 %v2648, %v2775
  %v2784 = vadd.f32 %v2649, %v2778
  %2785 = vmatprep.subr.bf16.mxu0 0
  %2786 = vmatpush1.bf16.msra.mxu0 %v2117
  %2787 = vmatprep.subr.bf16.mxu0 0
  %2788 = vmatpush1.bf16.msra.mxu0 %v2118
  %2789 = vmatprep.subr.bf16.mxu0 0
  %2790 = vmatpush1.bf16.msra.mxu0 0
  %2791 = vmatprep.subr.bf16.mxu0 0
  %2792 = vmatpush1.bf16.msra.mxu0 0
  %2793 = vmatprep.subr.bf16.mxu0 0
  %2794 = vmatpush1.bf16.msra.mxu0 0
  %2795 = vmatprep.subr.bf16.mxu0 0
  %2796 = vmatpush1.bf16.msra.mxu0 0
  %2797 = vmatprep.subr.bf16.mxu0 0
  %2798 = vmatpush1.bf16.msra.mxu0 0
  %2799 = vmatprep.subr.bf16.mxu0 0
  %2800 = vmatpush1.bf16.msra.mxu0 0
  %2801 = vmatprep.subr.bf16.mxu0 0
  %2802 = vmatpush1.bf16.msra.mxu0 0
  %2803 = vmatprep.subr.bf16.mxu0 0
  %2804 = vmatpush1.bf16.msra.mxu0 0
  %2805 = vmatprep.subr.bf16.mxu0 0
  %2806 = vmatpush1.bf16.msra.mxu0 0
  %2807 = vmatprep.subr.bf16.mxu0 0
  %2808 = vmatpush1.bf16.msra.mxu0 0
  %2809 = vmatprep.subr.bf16.mxu0 0
  %2810 = vmatpush1.bf16.msra.mxu0 0
  %2811 = vmatprep.subr.bf16.mxu0 0
  %2812 = vmatpush1.bf16.msra.mxu0 0
  %2813 = vmatprep.subr.bf16.mxu0 0
  %2814 = vmatpush1.bf16.msra.mxu0 0
  %2815 = vmatprep.subr.bf16.mxu0 0
  %2816 = vmatpush1.bf16.msra.mxu0 0
  %2817 = vmatprep.mubr.bf16.mxu0 0
  %2818 = vmatmul.mubr.bf16.gmra.mrb[0].mxu0 %v1194
  %v2819 = vpop.f32.mrb[0].mxu0
  %v2820 = vadd.f32 0.0, %v2819
  %v2821 = vpop.f32.mrb[0].mxu0
  %v2822 = vpop.f32.mrb[0].mxu0
  %v2823 = vadd.f32 0.0, %v2822
  %v2824 = vpop.f32.mrb[0].mxu0
  %2825 = vmatprep.mubr.bf16.mxu0 0
  %2826 = vmatmul.mubr.bf16.gmra.mrb[0].mxu0 %v1197
  %v2827 = vpop.f32.mrb[0].mxu0
  %v2828 = vadd.f32 0.0, %v2827
  %v2829 = vpop.f32.mrb[0].mxu0
  %v2830 = vpop.f32.mrb[0].mxu0
  %v2831 = vadd.f32 0.0, %v2830
  %v2832 = vpop.f32.mrb[0].mxu0
  %2833 = vdwg.mxu0
  %s2834 = scalar_lea.vmem %s33, 120
  %v2835 = vld [vmem:[%s2834] sm:$0xf]
  %v2836 = vld [vmem:[%s2834 + $0x4] sm:$0xf]
  %v2837 = vld [vmem:[%s2834 + $0x8] sm:$0xf]
  %v2838 = vld [vmem:[%s2834 + $0xc] sm:$0xf]
  %v2839 = vld [vmem:[%s2834 + $0x10] sm:$0xf]
  %v2840 = vld [vmem:[%s2834 + $0x14] sm:$0xf]
  %v2841 = vpack.c.bf16 %v2823, %v2820
  %v2842 = vpack.c.bf16 %v2831, %v2828
  %v2849 = vunpack.c.l.b16 %v2835
  %v2850 = vunpack.c.l.b16 %v2836
  %v2851 = vunpack.c.l.b16 %v2837
  %v2852 = vunpack.c.l.b16 %v2838
  %v2853 = vunpack.c.l.b16 %v2839
  %v2854 = vunpack.c.l.b16 %v2840
  %v2855 = vpack.c.b16 %v2850, %v2849
  %v2856 = vpack.c.b16 %v2852, %v2851
  %v2857 = vpack.c.b16 %v2854, %v2853
  %v2862 = vsel %vm341, %v2841, 0
  %v2865 = vsel %vm341, %v2842, 0
  %2867 = vmatprep.subr.bf16.mxu0 0
  %2868 = vmatpush1.bf16.msra.mxu0 %v2855
  %2869 = vmatprep.subr.bf16.mxu0 0
  %2870 = vmatpush1.bf16.msra.mxu0 %v2856
  %2871 = vmatprep.subr.bf16.mxu0 0
  %2872 = vmatpush1.bf16.msra.mxu0 %v2857
  %2873 = vmatprep.subr.bf16.mxu0 0
  %2874 = vmatpush1.bf16.msra.mxu0 0
  %2875 = vmatprep.subr.bf16.mxu0 0
  %2876 = vmatpush1.bf16.msra.mxu0 0
  %2877 = vmatprep.subr.bf16.mxu0 0
  %2878 = vmatpush1.bf16.msra.mxu0 0
  %2879 = vmatprep.subr.bf16.mxu0 0
  %2880 = vmatpush1.bf16.msra.mxu0 0
  %2881 = vmatprep.subr.bf16.mxu0 0
  %2882 = vmatpush1.bf16.msra.mxu0 0
  %2883 = vmatprep.subr.bf16.mxu0 0
  %2884 = vmatpush1.bf16.msra.mxu0 0
  %2885 = vmatprep.subr.bf16.mxu0 0
  %2886 = vmatpush1.bf16.msra.mxu0 0
  %2887 = vmatprep.subr.bf16.mxu0 0
  %2888 = vmatpush1.bf16.msra.mxu0 0
  %2889 = vmatprep.subr.bf16.mxu0 0
  %2890 = vmatpush1.bf16.msra.mxu0 0
  %2891 = vmatprep.subr.bf16.mxu0 0
  %2892 = vmatpush1.bf16.msra.mxu0 0
  %2893 = vmatprep.subr.bf16.mxu0 0
  %2894 = vmatpush1.bf16.msra.mxu0 0
  %2895 = vmatprep.subr.bf16.mxu0 0
  %2896 = vmatpush1.bf16.msra.mxu0 0
  %2897 = vmatprep.subr.bf16.mxu0 0
  %2898 = vmatpush1.bf16.msra.mxu0 0
  %2899 = vmatprep.mubr.bf16.mxu0 0
  %2900 = vmatmul.mubr.bf16.gmra.mrb[0].mxu0 %v2862
  %v2901 = vpop.f32.mrb[0].mxu0
  %v2902 = vadd.f32 0.0, %v2901
  %v2903 = vpop.f32.mrb[0].mxu0
  %v2904 = vpop.f32.mrb[0].mxu0
  %v2905 = vadd.f32 0.0, %v2904
  %v2906 = vpop.f32.mrb[0].mxu0
  %2907 = vmatprep.mubr.bf16.mxu0 0
  %2908 = vmatmul.mubr.bf16.gmra.mrb[0].mxu0 %v2865
  %v2909 = vpop.f32.mrb[0].mxu0
  %v2910 = vadd.f32 0.0, %v2909
  %v2911 = vpop.f32.mrb[0].mxu0
  %v2912 = vpop.f32.mrb[0].mxu0
  %v2913 = vadd.f32 0.0, %v2912
  %v2914 = vpop.f32.mrb[0].mxu0
  %2915 = vdwg.mxu0
  %v2916 = vadd.f32 %v2781, %v2902
  %v2917 = vadd.f32 %v2782, %v2905
  %v2918 = vadd.f32 %v2783, %v2910
  %v2919 = vadd.f32 %v2784, %v2913
  %2920 = vmatprep.subr.bf16.mxu0 0
  %2921 = vmatpush1.bf16.msra.mxu0 %v2117
  %2922 = vmatprep.subr.bf16.mxu0 0
  %2923 = vmatpush1.bf16.msra.mxu0 %v2118
  %2924 = vmatprep.subr.bf16.mxu0 0
  %2925 = vmatpush1.bf16.msra.mxu0 0
  %2926 = vmatprep.subr.bf16.mxu0 0
  %2927 = vmatpush1.bf16.msra.mxu0 0
  %2928 = vmatprep.subr.bf16.mxu0 0
  %2929 = vmatpush1.bf16.msra.mxu0 0
  %2930 = vmatprep.subr.bf16.mxu0 0
  %2931 = vmatpush1.bf16.msra.mxu0 0
  %2932 = vmatprep.subr.bf16.mxu0 0
  %2933 = vmatpush1.bf16.msra.mxu0 0
  %2934 = vmatprep.subr.bf16.mxu0 0
  %2935 = vmatpush1.bf16.msra.mxu0 0
  %2936 = vmatprep.subr.bf16.mxu0 0
  %2937 = vmatpush1.bf16.msra.mxu0 0
  %2938 = vmatprep.subr.bf16.mxu0 0
  %2939 = vmatpush1.bf16.msra.mxu0 0
  %2940 = vmatprep.subr.bf16.mxu0 0
  %2941 = vmatpush1.bf16.msra.mxu0 0
  %2942 = vmatprep.subr.bf16.mxu0 0
  %2943 = vmatpush1.bf16.msra.mxu0 0
  %2944 = vmatprep.subr.bf16.mxu0 0
  %2945 = vmatpush1.bf16.msra.mxu0 0
  %2946 = vmatprep.subr.bf16.mxu0 0
  %2947 = vmatpush1.bf16.msra.mxu0 0
  %2948 = vmatprep.subr.bf16.mxu0 0
  %2949 = vmatpush1.bf16.msra.mxu0 0
  %2950 = vmatprep.subr.bf16.mxu0 0
  %2951 = vmatpush1.bf16.msra.mxu0 0
  %2952 = vmatprep.mubr.bf16.mxu0 0
  %2953 = vmatmul.mubr.bf16.gmra.mrb[0].mxu0 %v1350
  %v2954 = vpop.f32.mrb[0].mxu0
  %v2955 = vadd.f32 0.0, %v2954
  %v2956 = vpop.f32.mrb[0].mxu0
  %v2957 = vpop.f32.mrb[0].mxu0
  %v2958 = vadd.f32 0.0, %v2957
  %v2959 = vpop.f32.mrb[0].mxu0
  %2960 = vmatprep.mubr.bf16.mxu0 0
  %2961 = vmatmul.mubr.bf16.gmra.mrb[0].mxu0 %v1353
  %v2962 = vpop.f32.mrb[0].mxu0
  %v2963 = vadd.f32 0.0, %v2962
  %v2964 = vpop.f32.mrb[0].mxu0
  %v2965 = vpop.f32.mrb[0].mxu0
  %v2966 = vadd.f32 0.0, %v2965
  %v2967 = vpop.f32.mrb[0].mxu0
  %2968 = vdwg.mxu0
  %s2969 = scalar_lea.vmem %s33, 144
  %v2970 = vld [vmem:[%s2969] sm:$0xf]
  %v2971 = vld [vmem:[%s2969 + $0x4] sm:$0xf]
  %v2972 = vld [vmem:[%s2969 + $0x8] sm:$0xf]
  %v2973 = vld [vmem:[%s2969 + $0xc] sm:$0xf]
  %v2974 = vld [vmem:[%s2969 + $0x10] sm:$0xf]
  %v2975 = vld [vmem:[%s2969 + $0x14] sm:$0xf]
  %v2976 = vpack.c.bf16 %v2958, %v2955
  %v2977 = vpack.c.bf16 %v2966, %v2963
  %v2984 = vunpack.c.l.b16 %v2970
  %v2985 = vunpack.c.l.b16 %v2971
  %v2986 = vunpack.c.l.b16 %v2972
  %v2987 = vunpack.c.l.b16 %v2973
  %v2988 = vunpack.c.l.b16 %v2974
  %v2989 = vunpack.c.l.b16 %v2975
  %v2990 = vpack.c.b16 %v2985, %v2984
  %v2991 = vpack.c.b16 %v2987, %v2986
  %v2992 = vpack.c.b16 %v2989, %v2988
  %v2997 = vsel %vm341, %v2976, 0
  %v3000 = vsel %vm341, %v2977, 0
  %3002 = vmatprep.subr.bf16.mxu0 0
  %3003 = vmatpush1.bf16.msra.mxu0 %v2990
  %3004 = vmatprep.subr.bf16.mxu0 0
  %3005 = vmatpush1.bf16.msra.mxu0 %v2991
  %3006 = vmatprep.subr.bf16.mxu0 0
  %3007 = vmatpush1.bf16.msra.mxu0 %v2992
  %3008 = vmatprep.subr.bf16.mxu0 0
  %3009 = vmatpush1.bf16.msra.mxu0 0
  %3010 = vmatprep.subr.bf16.mxu0 0
  %3011 = vmatpush1.bf16.msra.mxu0 0
  %3012 = vmatprep.subr.bf16.mxu0 0
  %3013 = vmatpush1.bf16.msra.mxu0 0
  %3014 = vmatprep.subr.bf16.mxu0 0
  %3015 = vmatpush1.bf16.msra.mxu0 0
  %3016 = vmatprep.subr.bf16.mxu0 0
  %3017 = vmatpush1.bf16.msra.mxu0 0
  %3018 = vmatprep.subr.bf16.mxu0 0
  %3019 = vmatpush1.bf16.msra.mxu0 0
  %3020 = vmatprep.subr.bf16.mxu0 0
  %3021 = vmatpush1.bf16.msra.mxu0 0
  %3022 = vmatprep.subr.bf16.mxu0 0
  %3023 = vmatpush1.bf16.msra.mxu0 0
  %3024 = vmatprep.subr.bf16.mxu0 0
  %3025 = vmatpush1.bf16.msra.mxu0 0
  %3026 = vmatprep.subr.bf16.mxu0 0
  %3027 = vmatpush1.bf16.msra.mxu0 0
  %3028 = vmatprep.subr.bf16.mxu0 0
  %3029 = vmatpush1.bf16.msra.mxu0 0
  %3030 = vmatprep.subr.bf16.mxu0 0
  %3031 = vmatpush1.bf16.msra.mxu0 0
  %3032 = vmatprep.subr.bf16.mxu0 0
  %3033 = vmatpush1.bf16.msra.mxu0 0
  %3034 = vmatprep.mubr.bf16.mxu0 0
  %3035 = vmatmul.mubr.bf16.gmra.mrb[0].mxu0 %v2997
  %v3036 = vpop.f32.mrb[0].mxu0
  %v3037 = vadd.f32 0.0, %v3036
  %v3038 = vpop.f32.mrb[0].mxu0
  %v3039 = vpop.f32.mrb[0].mxu0
  %v3040 = vadd.f32 0.0, %v3039
  %v3041 = vpop.f32.mrb[0].mxu0
  %3042 = vmatprep.mubr.bf16.mxu0 0
  %3043 = vmatmul.mubr.bf16.gmra.mrb[0].mxu0 %v3000
  %v3044 = vpop.f32.mrb[0].mxu0
  %v3045 = vadd.f32 0.0, %v3044
  %v3046 = vpop.f32.mrb[0].mxu0
  %v3047 = vpop.f32.mrb[0].mxu0
  %v3048 = vadd.f32 0.0, %v3047
  %v3049 = vpop.f32.mrb[0].mxu0
  %3050 = vdwg.mxu0
  %v3051 = vadd.f32 %v2916, %v3037
  %v3052 = vadd.f32 %v2917, %v3040
  %v3053 = vadd.f32 %v2918, %v3045
  %v3054 = vadd.f32 %v2919, %v3048
  %3055 = vmatprep.subr.bf16.mxu0 0
  %3056 = vmatpush1.bf16.msra.mxu0 %v2117
  %3057 = vmatprep.subr.bf16.mxu0 0
  %3058 = vmatpush1.bf16.msra.mxu0 %v2118
  %3059 = vmatprep.subr.bf16.mxu0 0
  %3060 = vmatpush1.bf16.msra.mxu0 0
  %3061 = vmatprep.subr.bf16.mxu0 0
  %3062 = vmatpush1.bf16.msra.mxu0 0
  %3063 = vmatprep.subr.bf16.mxu0 0
  %3064 = vmatpush1.bf16.msra.mxu0 0
  %3065 = vmatprep.subr.bf16.mxu0 0
  %3066 = vmatpush1.bf16.msra.mxu0 0
  %3067 = vmatprep.subr.bf16.mxu0 0
  %3068 = vmatpush1.bf16.msra.mxu0 0
  %3069 = vmatprep.subr.bf16.mxu0 0
  %3070 = vmatpush1.bf16.msra.mxu0 0
  %3071 = vmatprep.subr.bf16.mxu0 0
  %3072 = vmatpush1.bf16.msra.mxu0 0
  %3073 = vmatprep.subr.bf16.mxu0 0
  %3074 = vmatpush1.bf16.msra.mxu0 0
  %3075 = vmatprep.subr.bf16.mxu0 0
  %3076 = vmatpush1.bf16.msra.mxu0 0
  %3077 = vmatprep.subr.bf16.mxu0 0
  %3078 = vmatpush1.bf16.msra.mxu0 0
  %3079 = vmatprep.subr.bf16.mxu0 0
  %3080 = vmatpush1.bf16.msra.mxu0 0
  %3081 = vmatprep.subr.bf16.mxu0 0
  %3082 = vmatpush1.bf16.msra.mxu0 0
  %3083 = vmatprep.subr.bf16.mxu0 0
  %3084 = vmatpush1.bf16.msra.mxu0 0
  %3085 = vmatprep.subr.bf16.mxu0 0
  %3086 = vmatpush1.bf16.msra.mxu0 0
  %3087 = vmatprep.mubr.bf16.mxu0 0
  %3088 = vmatmul.mubr.bf16.gmra.mrb[0].mxu0 %v1506
  %v3089 = vpop.f32.mrb[0].mxu0
  %v3090 = vadd.f32 0.0, %v3089
  %v3091 = vpop.f32.mrb[0].mxu0
  %v3092 = vpop.f32.mrb[0].mxu0
  %v3093 = vadd.f32 0.0, %v3092
  %v3094 = vpop.f32.mrb[0].mxu0
  %3095 = vmatprep.mubr.bf16.mxu0 0
  %3096 = vmatmul.mubr.bf16.gmra.mrb[0].mxu0 %v1509
  %v3097 = vpop.f32.mrb[0].mxu0
  %v3098 = vadd.f32 0.0, %v3097
  %v3099 = vpop.f32.mrb[0].mxu0
  %v3100 = vpop.f32.mrb[0].mxu0
  %v3101 = vadd.f32 0.0, %v3100
  %v3102 = vpop.f32.mrb[0].mxu0
  %3103 = vdwg.mxu0
  %s3104 = scalar_lea.vmem %s33, 168
  %v3105 = vld [vmem:[%s3104] sm:$0xf]
  %v3106 = vld [vmem:[%s3104 + $0x4] sm:$0xf]
  %v3107 = vld [vmem:[%s3104 + $0x8] sm:$0xf]
  %v3108 = vld [vmem:[%s3104 + $0xc] sm:$0xf]
  %v3109 = vld [vmem:[%s3104 + $0x10] sm:$0xf]
  %v3110 = vld [vmem:[%s3104 + $0x14] sm:$0xf]
  %v3111 = vpack.c.bf16 %v3093, %v3090
  %v3112 = vpack.c.bf16 %v3101, %v3098
  %v3119 = vunpack.c.l.b16 %v3105
  %v3120 = vunpack.c.l.b16 %v3106
  %v3121 = vunpack.c.l.b16 %v3107
  %v3122 = vunpack.c.l.b16 %v3108
  %v3123 = vunpack.c.l.b16 %v3109
  %v3124 = vunpack.c.l.b16 %v3110
  %v3125 = vpack.c.b16 %v3120, %v3119
  %v3126 = vpack.c.b16 %v3122, %v3121
  %v3127 = vpack.c.b16 %v3124, %v3123
  %v3132 = vsel %vm341, %v3111, 0
  %v3135 = vsel %vm341, %v3112, 0
  %3137 = vmatprep.subr.bf16.mxu0 0
  %3138 = vmatpush1.bf16.msra.mxu0 %v3125
  %3139 = vmatprep.subr.bf16.mxu0 0
  %3140 = vmatpush1.bf16.msra.mxu0 %v3126
  %3141 = vmatprep.subr.bf16.mxu0 0
  %3142 = vmatpush1.bf16.msra.mxu0 %v3127
  %3143 = vmatprep.subr.bf16.mxu0 0
  %3144 = vmatpush1.bf16.msra.mxu0 0
  %3145 = vmatprep.subr.bf16.mxu0 0
  %3146 = vmatpush1.bf16.msra.mxu0 0
  %3147 = vmatprep.subr.bf16.mxu0 0
  %3148 = vmatpush1.bf16.msra.mxu0 0
  %3149 = vmatprep.subr.bf16.mxu0 0
  %3150 = vmatpush1.bf16.msra.mxu0 0
  %3151 = vmatprep.subr.bf16.mxu0 0
  %3152 = vmatpush1.bf16.msra.mxu0 0
  %3153 = vmatprep.subr.bf16.mxu0 0
  %3154 = vmatpush1.bf16.msra.mxu0 0
  %3155 = vmatprep.subr.bf16.mxu0 0
  %3156 = vmatpush1.bf16.msra.mxu0 0
  %3157 = vmatprep.subr.bf16.mxu0 0
  %3158 = vmatpush1.bf16.msra.mxu0 0
  %3159 = vmatprep.subr.bf16.mxu0 0
  %3160 = vmatpush1.bf16.msra.mxu0 0
  %3161 = vmatprep.subr.bf16.mxu0 0
  %3162 = vmatpush1.bf16.msra.mxu0 0
  %3163 = vmatprep.subr.bf16.mxu0 0
  %3164 = vmatpush1.bf16.msra.mxu0 0
  %3165 = vmatprep.subr.bf16.mxu0 0
  %3166 = vmatpush1.bf16.msra.mxu0 0
  %3167 = vmatprep.subr.bf16.mxu0 0
  %3168 = vmatpush1.bf16.msra.mxu0 0
  %3169 = vmatprep.mubr.bf16.mxu0 0
  %3170 = vmatmul.mubr.bf16.gmra.mrb[0].mxu0 %v3132
  %v3171 = vpop.f32.mrb[0].mxu0
  %v3172 = vadd.f32 0.0, %v3171
  %v3173 = vpop.f32.mrb[0].mxu0
  %v3174 = vpop.f32.mrb[0].mxu0
  %v3175 = vadd.f32 0.0, %v3174
  %v3176 = vpop.f32.mrb[0].mxu0
  %3177 = vmatprep.mubr.bf16.mxu0 0
  %3178 = vmatmul.mubr.bf16.gmra.mrb[0].mxu0 %v3135
  %v3179 = vpop.f32.mrb[0].mxu0
  %v3180 = vadd.f32 0.0, %v3179
  %v3181 = vpop.f32.mrb[0].mxu0
  %v3182 = vpop.f32.mrb[0].mxu0
  %v3183 = vadd.f32 0.0, %v3182
  %v3184 = vpop.f32.mrb[0].mxu0
  %3185 = vdwg.mxu0
  %v3186 = vadd.f32 %v3051, %v3172
  %v3187 = vadd.f32 %v3052, %v3175
  %v3188 = vadd.f32 %v3053, %v3180
  %v3189 = vadd.f32 %v3054, %v3183
  %3190 = vmatprep.subr.bf16.mxu0 0
  %3191 = vmatpush1.bf16.msra.mxu0 %v2117
  %3192 = vmatprep.subr.bf16.mxu0 0
  %3193 = vmatpush1.bf16.msra.mxu0 %v2118
  %3194 = vmatprep.subr.bf16.mxu0 0
  %3195 = vmatpush1.bf16.msra.mxu0 0
  %3196 = vmatprep.subr.bf16.mxu0 0
  %3197 = vmatpush1.bf16.msra.mxu0 0
  %3198 = vmatprep.subr.bf16.mxu0 0
  %3199 = vmatpush1.bf16.msra.mxu0 0
  %3200 = vmatprep.subr.bf16.mxu0 0
  %3201 = vmatpush1.bf16.msra.mxu0 0
  %3202 = vmatprep.subr.bf16.mxu0 0
  %3203 = vmatpush1.bf16.msra.mxu0 0
  %3204 = vmatprep.subr.bf16.mxu0 0
  %3205 = vmatpush1.bf16.msra.mxu0 0
  %3206 = vmatprep.subr.bf16.mxu0 0
  %3207 = vmatpush1.bf16.msra.mxu0 0
  %3208 = vmatprep.subr.bf16.mxu0 0
  %3209 = vmatpush1.bf16.msra.mxu0 0
  %3210 = vmatprep.subr.bf16.mxu0 0
  %3211 = vmatpush1.bf16.msra.mxu0 0
  %3212 = vmatprep.subr.bf16.mxu0 0
  %3213 = vmatpush1.bf16.msra.mxu0 0
  %3214 = vmatprep.subr.bf16.mxu0 0
  %3215 = vmatpush1.bf16.msra.mxu0 0
  %3216 = vmatprep.subr.bf16.mxu0 0
  %3217 = vmatpush1.bf16.msra.mxu0 0
  %3218 = vmatprep.subr.bf16.mxu0 0
  %3219 = vmatpush1.bf16.msra.mxu0 0
  %3220 = vmatprep.subr.bf16.mxu0 0
  %3221 = vmatpush1.bf16.msra.mxu0 0
  %3222 = vmatprep.mubr.bf16.mxu0 0
  %3223 = vmatmul.mubr.bf16.gmra.mrb[0].mxu0 %v1662
  %v3224 = vpop.f32.mrb[0].mxu0
  %v3225 = vadd.f32 0.0, %v3224
  %v3226 = vpop.f32.mrb[0].mxu0
  %v3227 = vpop.f32.mrb[0].mxu0
  %v3228 = vadd.f32 0.0, %v3227
  %v3229 = vpop.f32.mrb[0].mxu0
  %3230 = vmatprep.mubr.bf16.mxu0 0
  %3231 = vmatmul.mubr.bf16.gmra.mrb[0].mxu0 %v1665
  %v3232 = vpop.f32.mrb[0].mxu0
  %v3233 = vadd.f32 0.0, %v3232
  %v3234 = vpop.f32.mrb[0].mxu0
  %v3235 = vpop.f32.mrb[0].mxu0
  %v3236 = vadd.f32 0.0, %v3235
  %v3237 = vpop.f32.mrb[0].mxu0
  %3238 = vdwg.mxu0
  %s3239 = scalar_lea.vmem %s33, 192
  %v3240 = vld [vmem:[%s3239] sm:$0xf]
  %v3241 = vld [vmem:[%s3239 + $0x4] sm:$0xf]
  %v3242 = vld [vmem:[%s3239 + $0x8] sm:$0xf]
  %v3243 = vld [vmem:[%s3239 + $0xc] sm:$0xf]
  %v3244 = vld [vmem:[%s3239 + $0x10] sm:$0xf]
  %v3245 = vld [vmem:[%s3239 + $0x14] sm:$0xf]
  %v3246 = vpack.c.bf16 %v3228, %v3225
  %v3247 = vpack.c.bf16 %v3236, %v3233
  %v3254 = vunpack.c.l.b16 %v3240
  %v3255 = vunpack.c.l.b16 %v3241
  %v3256 = vunpack.c.l.b16 %v3242
  %v3257 = vunpack.c.l.b16 %v3243
  %v3258 = vunpack.c.l.b16 %v3244
  %v3259 = vunpack.c.l.b16 %v3245
  %v3260 = vpack.c.b16 %v3255, %v3254
  %v3261 = vpack.c.b16 %v3257, %v3256
  %v3262 = vpack.c.b16 %v3259, %v3258
  %v3267 = vsel %vm341, %v3246, 0
  %v3270 = vsel %vm341, %v3247, 0
  %3272 = vmatprep.subr.bf16.mxu0 0
  %3273 = vmatpush1.bf16.msra.mxu0 %v3260
  %3274 = vmatprep.subr.bf16.mxu0 0
  %3275 = vmatpush1.bf16.msra.mxu0 %v3261
  %3276 = vmatprep.subr.bf16.mxu0 0
  %3277 = vmatpush1.bf16.msra.mxu0 %v3262
  %3278 = vmatprep.subr.bf16.mxu0 0
  %3279 = vmatpush1.bf16.msra.mxu0 0
  %3280 = vmatprep.subr.bf16.mxu0 0
  %3281 = vmatpush1.bf16.msra.mxu0 0
  %3282 = vmatprep.subr.bf16.mxu0 0
  %3283 = vmatpush1.bf16.msra.mxu0 0
  %3284 = vmatprep.subr.bf16.mxu0 0
  %3285 = vmatpush1.bf16.msra.mxu0 0
  %3286 = vmatprep.subr.bf16.mxu0 0
  %3287 = vmatpush1.bf16.msra.mxu0 0
  %3288 = vmatprep.subr.bf16.mxu0 0
  %3289 = vmatpush1.bf16.msra.mxu0 0
  %3290 = vmatprep.subr.bf16.mxu0 0
  %3291 = vmatpush1.bf16.msra.mxu0 0
  %3292 = vmatprep.subr.bf16.mxu0 0
  %3293 = vmatpush1.bf16.msra.mxu0 0
  %3294 = vmatprep.subr.bf16.mxu0 0
  %3295 = vmatpush1.bf16.msra.mxu0 0
  %3296 = vmatprep.subr.bf16.mxu0 0
  %3297 = vmatpush1.bf16.msra.mxu0 0
  %3298 = vmatprep.subr.bf16.mxu0 0
  %3299 = vmatpush1.bf16.msra.mxu0 0
  %3300 = vmatprep.subr.bf16.mxu0 0
  %3301 = vmatpush1.bf16.msra.mxu0 0
  %3302 = vmatprep.subr.bf16.mxu0 0
  %3303 = vmatpush1.bf16.msra.mxu0 0
  %3304 = vmatprep.mubr.bf16.mxu0 0
  %3305 = vmatmul.mubr.bf16.gmra.mrb[0].mxu0 %v3267
  %v3306 = vpop.f32.mrb[0].mxu0
  %v3307 = vadd.f32 0.0, %v3306
  %v3308 = vpop.f32.mrb[0].mxu0
  %v3309 = vpop.f32.mrb[0].mxu0
  %v3310 = vadd.f32 0.0, %v3309
  %v3311 = vpop.f32.mrb[0].mxu0
  %3312 = vmatprep.mubr.bf16.mxu0 0
  %3313 = vmatmul.mubr.bf16.gmra.mrb[0].mxu0 %v3270
  %v3314 = vpop.f32.mrb[0].mxu0
  %v3315 = vadd.f32 0.0, %v3314
  %v3316 = vpop.f32.mrb[0].mxu0
  %v3317 = vpop.f32.mrb[0].mxu0
  %v3318 = vadd.f32 0.0, %v3317
  %v3319 = vpop.f32.mrb[0].mxu0
  %3320 = vdwg.mxu0
  %v3321 = vadd.f32 %v3186, %v3307
  %v3322 = vadd.f32 %v3187, %v3310
  %v3323 = vadd.f32 %v3188, %v3315
  %v3324 = vadd.f32 %v3189, %v3318
  %v3325 = vld [vmem:[%s35] sm:$0x1]
  %v3326 = vld [vmem:[%s37] sm:$0x1]
  %v3327 = vmul.f32 %v3325, %v224
  %v3329 = vlaneseq
  %v3330 = vshrl.u32 %v3329, 7
  %v3331 = vsub.s32 0, %v3330
  %v3332 = vrot.slane %v3327, %v3331
  %v3334 = vmul.f32 %v201, %v3332
  %v3335 = vmul.f32 %v202, %v3332
  %v3336 = vmul.f32 %v203, %v3332
  %v3337 = vmul.f32 %v204, %v3332
  %v3339 = vlaneseq
  %v3340 = vshrl.u32 %v3339, 7
  %v3341 = vsub.s32 0, %v3340
  %v3342 = vrot.slane %v3326, %v3341
  %v3344 = vadd.f32 %v3334, %v3342
  %v3345 = vadd.f32 %v3335, %v3342
  %v3346 = vadd.f32 %v3336, %v3342
  %v3347 = vadd.f32 %v3337, %v3342
  %v3348 = vmax.f32 %v3344, 0.0
  %v3349 = vmax.f32 %v3345, 0.0
  %v3350 = vmax.f32 %v3346, 0.0
  %v3351 = vmax.f32 %v3347, 0.0
  %v3352 = vld [vmem:[%s39] sm:$0xf]
  %v3353 = vld [vmem:[%s39 + $0x4] sm:$0xf]
  %v3354 = vld [vmem:[%s39 + $0x8] sm:$0xf]
  %v3355 = vld [vmem:[%s39 + $0xc] sm:$0xf]
  %v3356 = vld [vmem:[%s39 + $0x10] sm:$0xf]
  %v3357 = vld [vmem:[%s39 + $0x14] sm:$0xf]
  %v3358 = vld [vmem:[%s39 + $0x18] sm:$0xf]
  %v3359 = vld [vmem:[%s39 + $0x1c] sm:$0xf]
  %v3360 = vpack.c.bf16 %v3349, %v3348
  %v3361 = vpack.c.bf16 %v3351, %v3350
  %v3362 = vld [vmem:[%s41] sm:$0x1]
  %v3363 = vld [vmem:[%s43] sm:$0x1]
  %v3364 = vmul.f32 %v3362, %v1879
  %v3366 = vlaneseq
  %v3367 = vshrl.u32 %v3366, 7
  %v3368 = vsub.s32 0, %v3367
  %v3369 = vrot.slane %v3364, %v3368
  %v3371 = vmul.f32 %v1856, %v3369
  %v3372 = vmul.f32 %v1857, %v3369
  %v3373 = vmul.f32 %v1858, %v3369
  %v3374 = vmul.f32 %v1859, %v3369
  %v3376 = vlaneseq
  %v3377 = vshrl.u32 %v3376, 7
  %v3378 = vsub.s32 0, %v3377
  %v3379 = vrot.slane %v3363, %v3378
  %v3381 = vadd.f32 %v3371, %v3379
  %v3382 = vadd.f32 %v3372, %v3379
  %v3383 = vadd.f32 %v3373, %v3379
  %v3384 = vadd.f32 %v3374, %v3379
  %v3385 = vmax.f32 %v3381, 0.0
  %v3386 = vmax.f32 %v3382, 0.0
  %v3387 = vmax.f32 %v3383, 0.0
  %v3388 = vmax.f32 %v3384, 0.0
  %v3389 = vld [vmem:[%s45] sm:$0xf]
  %v3390 = vld [vmem:[%s45 + $0x4] sm:$0x3]
  %v3391 = vpack.c.bf16 %v3386, %v3385
  %v3392 = vpack.c.bf16 %v3388, %v3387
  %v3395 = vunpack.c.l.b16 %v3389
  %v3396 = vunpack.c.l.b16 %v3390
  %v3397 = vpack.c.b16 %v3396, %v3395
  %v3399 = vsel %vm1841, %v3391, 0
  %v3402 = vsel %vm1841, %v3392, 0
  %v3405 = vsel %vm1920, %v3397, 0
  %3407 = vmatprep.subr.bf16.mxu0 0
  %3408 = vmatpush1.bf16.msra.mxu0 %v3405
  %3409 = vmatprep.subr.bf16.mxu0 0
  %3410 = vmatpush1.bf16.msra.mxu0 0
  %3411 = vmatprep.subr.bf16.mxu0 0
  %3412 = vmatpush1.bf16.msra.mxu0 0
  %3413 = vmatprep.subr.bf16.mxu0 0
  %3414 = vmatpush1.bf16.msra.mxu0 0
  %3415 = vmatprep.subr.bf16.mxu0 0
  %3416 = vmatpush1.bf16.msra.mxu0 0
  %3417 = vmatprep.subr.bf16.mxu0 0
  %3418 = vmatpush1.bf16.msra.mxu0 0
  %3419 = vmatprep.subr.bf16.mxu0 0
  %3420 = vmatpush1.bf16.msra.mxu0 0
  %3421 = vmatprep.subr.bf16.mxu0 0
  %3422 = vmatpush1.bf16.msra.mxu0 0
  %3423 = vmatprep.subr.bf16.mxu0 0
  %3424 = vmatpush1.bf16.msra.mxu0 0
  %3425 = vmatprep.subr.bf16.mxu0 0
  %3426 = vmatpush1.bf16.msra.mxu0 0
  %3427 = vmatprep.subr.bf16.mxu0 0
  %3428 = vmatpush1.bf16.msra.mxu0 0
  %3429 = vmatprep.subr.bf16.mxu0 0
  %3430 = vmatpush1.bf16.msra.mxu0 0
  %3431 = vmatprep.subr.bf16.mxu0 0
  %3432 = vmatpush1.bf16.msra.mxu0 0
  %3433 = vmatprep.subr.bf16.mxu0 0
  %3434 = vmatpush1.bf16.msra.mxu0 0
  %3435 = vmatprep.subr.bf16.mxu0 0
  %3436 = vmatpush1.bf16.msra.mxu0 0
  %3437 = vmatprep.subr.bf16.mxu0 0
  %3438 = vmatpush1.bf16.msra.mxu0 0
  %3439 = vmatprep.mubr.bf16.mxu0 0
  %3440 = vmatmul.mubr.bf16.gmra.mrb[0].mxu0 %v3399
  %v3441 = vpop.f32.mrb[0].mxu0
  %v3442 = vadd.f32 0.0, %v3441
  %v3443 = vpop.f32.mrb[0].mxu0
  %v3444 = vpop.f32.mrb[0].mxu0
  %v3445 = vadd.f32 0.0, %v3444
  %v3446 = vpop.f32.mrb[0].mxu0
  %3447 = vmatprep.mubr.bf16.mxu0 0
  %3448 = vmatmul.mubr.bf16.gmra.mrb[0].mxu0 %v3402
  %v3449 = vpop.f32.mrb[0].mxu0
  %v3450 = vadd.f32 0.0, %v3449
  %v3451 = vpop.f32.mrb[0].mxu0
  %v3452 = vpop.f32.mrb[0].mxu0
  %v3453 = vadd.f32 0.0, %v3452
  %v3454 = vpop.f32.mrb[0].mxu0
  %3455 = vdwg.mxu0
  %v3464 = vunpack.c.l.b16 %v3352
  %v3465 = vunpack.c.l.b16 %v3353
  %v3466 = vunpack.c.l.b16 %v3354
  %v3467 = vunpack.c.l.b16 %v3355
  %v3468 = vunpack.c.l.b16 %v3356
  %v3469 = vunpack.c.l.b16 %v3357
  %v3470 = vunpack.c.l.b16 %v3358
  %v3471 = vunpack.c.l.b16 %v3359
  %v3472 = vpack.c.b16 %v3465, %v3464
  %v3473 = vpack.c.b16 %v3467, %v3466
  %v3474 = vpack.c.b16 %v3469, %v3468
  %v3475 = vpack.c.b16 %v3471, %v3470
  %v3481 = vsel %vm185, %v3360, 0
  %v3484 = vsel %vm185, %v3361, 0
  %3486 = vmatprep.subr.bf16.mxu0 0
  %3487 = vmatpush1.bf16.msra.mxu0 %v3472
  %3488 = vmatprep.subr.bf16.mxu0 0
  %3489 = vmatpush1.bf16.msra.mxu0 %v3473
  %3490 = vmatprep.subr.bf16.mxu0 0
  %3491 = vmatpush1.bf16.msra.mxu0 %v3474
  %3492 = vmatprep.subr.bf16.mxu0 0
  %3493 = vmatpush1.bf16.msra.mxu0 %v3475
  %3494 = vmatprep.subr.bf16.mxu0 0
  %3495 = vmatpush1.bf16.msra.mxu0 0
  %3496 = vmatprep.subr.bf16.mxu0 0
  %3497 = vmatpush1.bf16.msra.mxu0 0
  %3498 = vmatprep.subr.bf16.mxu0 0
  %3499 = vmatpush1.bf16.msra.mxu0 0
  %3500 = vmatprep.subr.bf16.mxu0 0
  %3501 = vmatpush1.bf16.msra.mxu0 0
  %3502 = vmatprep.subr.bf16.mxu0 0
  %3503 = vmatpush1.bf16.msra.mxu0 0
  %3504 = vmatprep.subr.bf16.mxu0 0
  %3505 = vmatpush1.bf16.msra.mxu0 0
  %3506 = vmatprep.subr.bf16.mxu0 0
  %3507 = vmatpush1.bf16.msra.mxu0 0
  %3508 = vmatprep.subr.bf16.mxu0 0
  %3509 = vmatpush1.bf16.msra.mxu0 0
  %3510 = vmatprep.subr.bf16.mxu0 0
  %3511 = vmatpush1.bf16.msra.mxu0 0
  %3512 = vmatprep.subr.bf16.mxu0 0
  %3513 = vmatpush1.bf16.msra.mxu0 0
  %3514 = vmatprep.subr.bf16.mxu0 0
  %3515 = vmatpush1.bf16.msra.mxu0 0
  %3516 = vmatprep.subr.bf16.mxu0 0
  %3517 = vmatpush1.bf16.msra.mxu0 0
  %3518 = vmatprep.mubr.bf16.mxu0 0
  %3519 = vmatmul.mubr.bf16.gmra.mrb[0].mxu0 %v3481
  %v3520 = vpop.f32.mrb[0].mxu0
  %v3521 = vadd.f32 %v3442, %v3520
  %v3522 = vpop.f32.mrb[0].mxu0
  %v3523 = vpop.f32.mrb[0].mxu0
  %v3524 = vadd.f32 %v3445, %v3523
  %v3525 = vpop.f32.mrb[0].mxu0
  %3526 = vmatprep.mubr.bf16.mxu0 0
  %3527 = vmatmul.mubr.bf16.gmra.mrb[0].mxu0 %v3484
  %v3528 = vpop.f32.mrb[0].mxu0
  %v3529 = vadd.f32 %v3450, %v3528
  %v3530 = vpop.f32.mrb[0].mxu0
  %v3531 = vpop.f32.mrb[0].mxu0
  %v3532 = vadd.f32 %v3453, %v3531
  %v3533 = vpop.f32.mrb[0].mxu0
  %3534 = vdwg.mxu0
  %v3535 = vld [vmem:[%s47] sm:$0x1]
  %v3536 = vld [vmem:[%s49] sm:$0x1]
  %v3537 = vsel %vm1841, %v3321, 0.0
  %v3538 = vsel %vm1841, %v3322, 0.0
  %v3539 = vadd.f32 %v3537, %v3538
  %v3540 = vsel %vm1841, %v3323, 0.0
  %v3541 = vadd.f32 %v3539, %v3540
  %v3542 = vsel %vm1841, %v3324, 0.0
  %v3543 = vadd.f32 %v3541, %v3542
  %v3544 = vrot.slane %v3543, 4
  %v3545 = vadd.f32 %v3543, %v3544
  %v3546 = vrot.slane %v3545, 2
  %v3547 = vadd.f32 %v3545, %v3546
  %v3548 = vrot.slane %v3547, 1
  %v3549 = vadd.f32 %v3547, %v3548
  %v3550 = vmul.f32 %v3549, %v199
  %v3551 = vsub.f32 %v3321, %v3550
  %v3552 = vsub.f32 %v3322, %v3550
  %v3553 = vsub.f32 %v3323, %v3550
  %v3554 = vsub.f32 %v3324, %v3550
  %v3555 = vmul.f32 %v3551, %v3551
  %v3556 = vmul.f32 %v3552, %v3552
  %v3557 = vmul.f32 %v3553, %v3553
  %v3558 = vmul.f32 %v3554, %v3554
  %v3559 = vsel %vm1841, %v3555, 0.0
  %v3560 = vsel %vm1841, %v3556, 0.0
  %v3561 = vadd.f32 %v3559, %v3560
  %v3562 = vsel %vm1841, %v3557, 0.0
  %v3563 = vadd.f32 %v3561, %v3562
  %v3564 = vsel %vm1841, %v3558, 0.0
  %v3565 = vadd.f32 %v3563, %v3564
  %v3566 = vrot.slane %v3565, 4
  %v3567 = vadd.f32 %v3565, %v3566
  %v3568 = vrot.slane %v3567, 2
  %v3569 = vadd.f32 %v3567, %v3568
  %v3570 = vrot.slane %v3569, 1
  %v3571 = vadd.f32 %v3569, %v3570
  %v3572 = vmul.f32 %v3571, %v199
  %v3573 = vadd.f32 %v3572, 1e-05
  %v3574 = vrsqrt.pop %v3573
  %v3575 = vmul.f32 %v3535, %v3574
  %v3577 = vlaneseq
  %v3578 = vshrl.u32 %v3577, 7
  %v3579 = vsub.s32 0, %v3578
  %v3580 = vrot.slane %v3575, %v3579
  %v3582 = vmul.f32 %v3551, %v3580
  %v3583 = vmul.f32 %v3552, %v3580
  %v3584 = vmul.f32 %v3553, %v3580
  %v3585 = vmul.f32 %v3554, %v3580
  %v3587 = vlaneseq
  %v3588 = vshrl.u32 %v3587, 7
  %v3589 = vsub.s32 0, %v3588
  %v3590 = vrot.slane %v3536, %v3589
  %v3592 = vadd.f32 %v3582, %v3590
  %v3593 = vadd.f32 %v3583, %v3590
  %v3594 = vadd.f32 %v3584, %v3590
  %v3595 = vadd.f32 %v3585, %v3590
  %v3596 = vmax.f32 %v3592, 0.0
  %v3597 = vmax.f32 %v3593, 0.0
  %v3598 = vmax.f32 %v3594, 0.0
  %v3599 = vmax.f32 %v3595, 0.0
  %v3600 = vld [vmem:[%s51] sm:$0xf]
  %v3601 = vld [vmem:[%s51 + $0x4] sm:$0x3]
  %v3602 = vpack.c.bf16 %v3597, %v3596
  %v3603 = vpack.c.bf16 %v3599, %v3598
  %v3606 = vunpack.c.l.b16 %v3600
  %v3607 = vunpack.c.l.b16 %v3601
  %v3608 = vpack.c.b16 %v3607, %v3606
  %v3610 = vsel %vm1841, %v3602, 0
  %v3613 = vsel %vm1841, %v3603, 0
  %v3616 = vsel %vm1920, %v3608, 0
  %3618 = vmatprep.subr.bf16.mxu0 0
  %3619 = vmatpush1.bf16.msra.mxu0 %v3616
  %3620 = vmatprep.subr.bf16.mxu0 0
  %3621 = vmatpush1.bf16.msra.mxu0 0
  %3622 = vmatprep.subr.bf16.mxu0 0
  %3623 = vmatpush1.bf16.msra.mxu0 0
  %3624 = vmatprep.subr.bf16.mxu0 0
  %3625 = vmatpush1.bf16.msra.mxu0 0
  %3626 = vmatprep.subr.bf16.mxu0 0
  %3627 = vmatpush1.bf16.msra.mxu0 0
  %3628 = vmatprep.subr.bf16.mxu0 0
  %3629 = vmatpush1.bf16.msra.mxu0 0
  %3630 = vmatprep.subr.bf16.mxu0 0
  %3631 = vmatpush1.bf16.msra.mxu0 0
  %3632 = vmatprep.subr.bf16.mxu0 0
  %3633 = vmatpush1.bf16.msra.mxu0 0
  %3634 = vmatprep.subr.bf16.mxu0 0
  %3635 = vmatpush1.bf16.msra.mxu0 0
  %3636 = vmatprep.subr.bf16.mxu0 0
  %3637 = vmatpush1.bf16.msra.mxu0 0
  %3638 = vmatprep.subr.bf16.mxu0 0
  %3639 = vmatpush1.bf16.msra.mxu0 0
  %3640 = vmatprep.subr.bf16.mxu0 0
  %3641 = vmatpush1.bf16.msra.mxu0 0
  %3642 = vmatprep.subr.bf16.mxu0 0
  %3643 = vmatpush1.bf16.msra.mxu0 0
  %3644 = vmatprep.subr.bf16.mxu0 0
  %3645 = vmatpush1.bf16.msra.mxu0 0
  %3646 = vmatprep.subr.bf16.mxu0 0
  %3647 = vmatpush1.bf16.msra.mxu0 0
  %3648 = vmatprep.subr.bf16.mxu0 0
  %3649 = vmatpush1.bf16.msra.mxu0 0
  %3650 = vmatprep.mubr.bf16.mxu0 0
  %3651 = vmatmul.mubr.bf16.gmra.mrb[0].mxu0 %v3610
  %v3652 = vpop.f32.mrb[0].mxu0
  %v3653 = vadd.f32 0.0, %v3652
  %v3654 = vpop.f32.mrb[0].mxu0
  %v3655 = vpop.f32.mrb[0].mxu0
  %v3656 = vadd.f32 0.0, %v3655
  %v3657 = vpop.f32.mrb[0].mxu0
  %3658 = vmatprep.mubr.bf16.mxu0 0
  %3659 = vmatmul.mubr.bf16.gmra.mrb[0].mxu0 %v3613
  %v3660 = vpop.f32.mrb[0].mxu0
  %v3661 = vadd.f32 0.0, %v3660
  %v3662 = vpop.f32.mrb[0].mxu0
  %v3663 = vpop.f32.mrb[0].mxu0
  %v3664 = vadd.f32 0.0, %v3663
  %v3665 = vpop.f32.mrb[0].mxu0
  %3666 = vdwg.mxu0
  %v3667 = vadd.f32 %v3521, %v3653
  %v3668 = vadd.f32 %v3524, %v3656
  %v3669 = vadd.f32 %v3529, %v3661
  %v3670 = vadd.f32 %v3532, %v3664
  %v3671 = vld [vmem:[%s53] sm:$0xf]
  %v3672 = vpack.c.bf16 %v3668, %v3667
  %v3673 = vpack.c.bf16 %v3670, %v3669
  %v3675 = vsel %vm421, %v3671, 0
  %3677 = vmatprep.subr.bf16.mxu0 0
  %3678 = vmatpush1.bf16.msra.mxu0 %v3672
  %3679 = vmatprep.subr.bf16.mxu0 0
  %3680 = vmatpush1.bf16.msra.mxu0 %v3673
  %3681 = vmatprep.subr.bf16.mxu0 0
  %3682 = vmatpush1.bf16.msra.mxu0 0
  %3683 = vmatprep.subr.bf16.mxu0 0
  %3684 = vmatpush1.bf16.msra.mxu0 0
  %3685 = vmatprep.subr.bf16.mxu0 0
  %3686 = vmatpush1.bf16.msra.mxu0 0
  %3687 = vmatprep.subr.bf16.mxu0 0
  %3688 = vmatpush1.bf16.msra.mxu0 0
  %3689 = vmatprep.subr.bf16.mxu0 0
  %3690 = vmatpush1.bf16.msra.mxu0 0
  %3691 = vmatprep.subr.bf16.mxu0 0
  %3692 = vmatpush1.bf16.msra.mxu0 0
  %3693 = vmatprep.subr.bf16.mxu0 0
  %3694 = vmatpush1.bf16.msra.mxu0 0
  %3695 = vmatprep.subr.bf16.mxu0 0
  %3696 = vmatpush1.bf16.msra.mxu0 0
  %3697 = vmatprep.subr.bf16.mxu0 0
  %3698 = vmatpush1.bf16.msra.mxu0 0
  %3699 = vmatprep.subr.bf16.mxu0 0
  %3700 = vmatpush1.bf16.msra.mxu0 0
  %3701 = vmatprep.subr.bf16.mxu0 0
  %3702 = vmatpush1.bf16.msra.mxu0 0
  %3703 = vmatprep.subr.bf16.mxu0 0
  %3704 = vmatpush1.bf16.msra.mxu0 0
  %3705 = vmatprep.subr.bf16.mxu0 0
  %3706 = vmatpush1.bf16.msra.mxu0 0
  %3707 = vmatprep.subr.bf16.mxu0 0
  %3708 = vmatpush1.bf16.msra.mxu0 0
  %3709 = vmatprep.mubr.bf16.mxu0 0
  %3710 = vmatmul.mubr.bf16.gmra.mrb[0].mxu0 %v3675
  %v3711 = vpop.f32.mrb[0].mxu0
  %v3712 = vadd.f32 0.0, %v3711
  %v3713 = vpop.f32.mrb[0].mxu0
  %v3714 = vpop.f32.mrb[0].mxu0
  %v3715 = vpop.f32.mrb[0].mxu0
  %3716 = vdwg.mxu0
  %v3717 = vld [vmem:[%s57] sm:$0x1]
  %v3718 = vld [vmem:[%s59] sm:$0x1]
  %vm3719 = vcmask 359424
  %v3720 = vsel %vm3719, %v3712, 0.0
  %v3721 = vrot.slane %v3720, 4
  %v3722 = vadd.f32 %v3720, %v3721
  %v3723 = vrot.slane %v3722, 2
  %v3724 = vadd.f32 %v3722, %v3723
  %v3725 = vrot.slane %v3724, 1
  %v3726 = vadd.f32 %v3724, %v3725
  %v3727 = vrcp.pop 8.0
  %v3728 = vmul.f32 %v3726, %v3727
  %v3729 = vsub.f32 %v3712, %v3728
  %v3730 = vmul.f32 %v3729, %v3729
  %v3731 = vsel %vm3719, %v3730, 0.0
  %v3732 = vrot.slane %v3731, 4
  %v3733 = vadd.f32 %v3731, %v3732
  %v3734 = vrot.slane %v3733, 2
  %v3735 = vadd.f32 %v3733, %v3734
  %v3736 = vrot.slane %v3735, 1
  %v3737 = vadd.f32 %v3735, %v3736
  %v3738 = vmul.f32 %v3737, %v3727
  %v3739 = vadd.f32 %v3738, 1e-05
  %v3740 = vrsqrt.pop %v3739
  %v3741 = vmul.f32 %v3717, %v3740
  %v3743 = vlaneseq
  %v3744 = vshrl.u32 %v3743, 7
  %v3745 = vsub.s32 0, %v3744
  %v3746 = vrot.slane %v3741, %v3745
  %v3748 = vmul.f32 %v3729, %v3746
  %v3750 = vlaneseq
  %v3751 = vshrl.u32 %v3750, 7
  %v3752 = vsub.s32 0, %v3751
  %v3753 = vrot.slane %v3718, %v3752
  %v3755 = vadd.f32 %v3748, %v3753
  %v3756 = vmax.f32 %v3755, 0.0
  %v3757 = vld [vmem:[%s61] sm:$0xf]
  %v3758 = vld [vmem:[%s61 + $0x4] sm:$0xf]
  %v3759 = vld [vmem:[%s61 + $0x8] sm:$0xf]
  %v3760 = vld [vmem:[%s61 + $0xc] sm:$0xf]
  %v3761 = vld [vmem:[%s61 + $0x10] sm:$0xf]
  %v3762 = vld [vmem:[%s61 + $0x14] sm:$0x3]
  %v3763 = vpack.c.bf16 %v3756, %v3756
  %v3770 = vunpack.c.l.b16 %v3757
  %v3771 = vunpack.c.l.b16 %v3758
  %v3772 = vunpack.c.l.b16 %v3759
  %v3773 = vunpack.c.l.b16 %v3760
  %v3774 = vunpack.c.l.b16 %v3761
  %v3775 = vunpack.c.l.b16 %v3762
  %v3776 = vpack.c.b16 %v3771, %v3770
  %v3777 = vpack.c.b16 %v3773, %v3772
  %v3778 = vpack.c.b16 %v3775, %v3774
  %v3782 = vsel %vm3719, %v3763, 0
  %v3785 = vsel %vm1920, %v3778, 0
  %3787 = vmatprep.subr.bf16.mxu0 0
  %3788 = vmatpush1.bf16.msra.mxu0 %v3776
  %3789 = vmatprep.subr.bf16.mxu0 0
  %3790 = vmatpush1.bf16.msra.mxu0 %v3777
  %3791 = vmatprep.subr.bf16.mxu0 0
  %3792 = vmatpush1.bf16.msra.mxu0 %v3785
  %3793 = vmatprep.subr.bf16.mxu0 0
  %3794 = vmatpush1.bf16.msra.mxu0 0
  %3795 = vmatprep.subr.bf16.mxu0 0
  %3796 = vmatpush1.bf16.msra.mxu0 0
  %3797 = vmatprep.subr.bf16.mxu0 0
  %3798 = vmatpush1.bf16.msra.mxu0 0
  %3799 = vmatprep.subr.bf16.mxu0 0
  %3800 = vmatpush1.bf16.msra.mxu0 0
  %3801 = vmatprep.subr.bf16.mxu0 0
  %3802 = vmatpush1.bf16.msra.mxu0 0
  %3803 = vmatprep.subr.bf16.mxu0 0
  %3804 = vmatpush1.bf16.msra.mxu0 0
  %3805 = vmatprep.subr.bf16.mxu0 0
  %3806 = vmatpush1.bf16.msra.mxu0 0
  %3807 = vmatprep.subr.bf16.mxu0 0
  %3808 = vmatpush1.bf16.msra.mxu0 0
  %3809 = vmatprep.subr.bf16.mxu0 0
  %3810 = vmatpush1.bf16.msra.mxu0 0
  %3811 = vmatprep.subr.bf16.mxu0 0
  %3812 = vmatpush1.bf16.msra.mxu0 0
  %3813 = vmatprep.subr.bf16.mxu0 0
  %3814 = vmatpush1.bf16.msra.mxu0 0
  %3815 = vmatprep.subr.bf16.mxu0 0
  %3816 = vmatpush1.bf16.msra.mxu0 0
  %3817 = vmatprep.subr.bf16.mxu0 0
  %3818 = vmatpush1.bf16.msra.mxu0 0
  %3819 = vmatprep.mubr.bf16.mxu0 0
  %3820 = vmatmul.mubr.bf16.gmra.mrb[0].mxu0 %v3782
  %v3821 = vpop.f32.mrb[0].mxu0
  %v3822 = vadd.f32 0.0, %v3821
  %v3823 = vpop.f32.mrb[0].mxu0
  %v3824 = vpop.f32.mrb[0].mxu0
  %v3825 = vpop.f32.mrb[0].mxu0
  %3826 = vdwg.mxu0
  %v3827 = vld [vmem:[%s63] sm:$0x1]
  %v3828 = vld [vmem:[%s65] sm:$0x1]
  %v3829 = vsel %vm341, %v3822, 0.0
  %v3830 = vrot.slane %v3829, 4
  %v3831 = vadd.f32 %v3829, %v3830
  %v3832 = vrot.slane %v3831, 2
  %v3833 = vadd.f32 %v3831, %v3832
  %v3834 = vrot.slane %v3833, 1
  %v3835 = vadd.f32 %v3833, %v3834
  %v3836 = vmul.f32 %v3835, %v3727
  %v3837 = vsub.f32 %v3822, %v3836
  %v3838 = vmul.f32 %v3837, %v3837
  %v3839 = vsel %vm341, %v3838, 0.0
  %v3840 = vrot.slane %v3839, 4
  %v3841 = vadd.f32 %v3839, %v3840
  %v3842 = vrot.slane %v3841, 2
  %v3843 = vadd.f32 %v3841, %v3842
  %v3844 = vrot.slane %v3843, 1
  %v3845 = vadd.f32 %v3843, %v3844
  %v3846 = vmul.f32 %v3845, %v3727
  %v3847 = vadd.f32 %v3846, 1e-05
  %v3848 = vrsqrt.pop %v3847
  %v3849 = vmul.f32 %v3827, %v3848
  %v3851 = vlaneseq
  %v3852 = vshrl.u32 %v3851, 7
  %v3853 = vsub.s32 0, %v3852
  %v3854 = vrot.slane %v3849, %v3853
  %v3856 = vmul.f32 %v3837, %v3854
  %v3858 = vlaneseq
  %v3859 = vshrl.u32 %v3858, 7
  %v3860 = vsub.s32 0, %v3859
  %v3861 = vrot.slane %v3828, %v3860
  %v3863 = vadd.f32 %v3856, %v3861
  %v3864 = vmax.f32 %v3863, 0.0
  %v3865 = vld [vmem:[%s55] sm:$0xf]
  %v3866 = vpack.c.bf16 %v3864, %v3864
  %vm3867 = vcmask 64512
  %v3869 = vsel %vm3867, %v3865, 0
  %vm3871 = vcmask 1043456
  %v3873 = vsel %vm3871, %v3866, 0
  %3875 = vmatprep.subr.bf16.mxu0 0
  %3876 = vmatpush1.bf16.msra.mxu0 %v3873
  %3877 = vmatprep.subr.bf16.mxu0 0
  %3878 = vmatpush1.bf16.msra.mxu0 0
  %3879 = vmatprep.subr.bf16.mxu0 0
  %3880 = vmatpush1.bf16.msra.mxu0 0
  %3881 = vmatprep.subr.bf16.mxu0 0
  %3882 = vmatpush1.bf16.msra.mxu0 0
  %3883 = vmatprep.subr.bf16.mxu0 0
  %3884 = vmatpush1.bf16.msra.mxu0 0
  %3885 = vmatprep.subr.bf16.mxu0 0
  %3886 = vmatpush1.bf16.msra.mxu0 0
  %3887 = vmatprep.subr.bf16.mxu0 0
  %3888 = vmatpush1.bf16.msra.mxu0 0
  %3889 = vmatprep.subr.bf16.mxu0 0
  %3890 = vmatpush1.bf16.msra.mxu0 0
  %3891 = vmatprep.subr.bf16.mxu0 0
  %3892 = vmatpush1.bf16.msra.mxu0 0
  %3893 = vmatprep.subr.bf16.mxu0 0
  %3894 = vmatpush1.bf16.msra.mxu0 0
  %3895 = vmatprep.subr.bf16.mxu0 0
  %3896 = vmatpush1.bf16.msra.mxu0 0
  %3897 = vmatprep.subr.bf16.mxu0 0
  %3898 = vmatpush1.bf16.msra.mxu0 0
  %3899 = vmatprep.subr.bf16.mxu0 0
  %3900 = vmatpush1.bf16.msra.mxu0 0
  %3901 = vmatprep.subr.bf16.mxu0 0
  %3902 = vmatpush1.bf16.msra.mxu0 0
  %3903 = vmatprep.subr.bf16.mxu0 0
  %3904 = vmatpush1.bf16.msra.mxu0 0
  %3905 = vmatprep.subr.bf16.mxu0 0
  %3906 = vmatpush1.bf16.msra.mxu0 0
  %3907 = vmatprep.mubr.bf16.mxu0 0
  %3908 = vmatmul.mubr.bf16.gmra.mrb[0].mxu0 %v3869
  %v3909 = vpop.f32.mrb[0].mxu0
  %v3910 = vadd.f32 0.0, %v3909
  %v3911 = vpop.f32.mrb[0].mxu0
  %v3912 = vpop.f32.mrb[0].mxu0
  %v3913 = vpop.f32.mrb[0].mxu0
  %3914 = vdwg.mxu0
  %v3915 = vld [vmem:[%s67] sm:$0xf]
  %v3916 = vld [vmem:[%s67 + $0x4] sm:$0xf]
  %v3917 = vld [vmem:[%s67 + $0x8] sm:$0xf]
  %v3918 = vld [vmem:[%s67 + $0xc] sm:$0xf]
  %v3919 = vld [vmem:[%s67 + $0x10] sm:$0xf]
  %v3920 = vld [vmem:[%s67 + $0x14] sm:$0xf]
  %v3921 = vpack.c.bf16 %v3910, %v3910
  %s3922 = scalar_lea.vmem %s55, 4
  %v3923 = vld [vmem:[%s3922] sm:$0xf]
  %v3925 = vsel %vm3867, %v3923, 0
  %3927 = vmatprep.subr.bf16.mxu0 0
  %3928 = vmatpush1.bf16.msra.mxu0 %v3873
  %3929 = vmatprep.subr.bf16.mxu0 0
  %3930 = vmatpush1.bf16.msra.mxu0 0
  %3931 = vmatprep.subr.bf16.mxu0 0
  %3932 = vmatpush1.bf16.msra.mxu0 0
  %3933 = vmatprep.subr.bf16.mxu0 0
  %3934 = vmatpush1.bf16.msra.mxu0 0
  %3935 = vmatprep.subr.bf16.mxu0 0
  %3936 = vmatpush1.bf16.msra.mxu0 0
  %3937 = vmatprep.subr.bf16.mxu0 0
  %3938 = vmatpush1.bf16.msra.mxu0 0
  %3939 = vmatprep.subr.bf16.mxu0 0
  %3940 = vmatpush1.bf16.msra.mxu0 0
  %3941 = vmatprep.subr.bf16.mxu0 0
  %3942 = vmatpush1.bf16.msra.mxu0 0
  %3943 = vmatprep.subr.bf16.mxu0 0
  %3944 = vmatpush1.bf16.msra.mxu0 0
  %3945 = vmatprep.subr.bf16.mxu0 0
  %3946 = vmatpush1.bf16.msra.mxu0 0
  %3947 = vmatprep.subr.bf16.mxu0 0
  %3948 = vmatpush1.bf16.msra.mxu0 0
  %3949 = vmatprep.subr.bf16.mxu0 0
  %3950 = vmatpush1.bf16.msra.mxu0 0
  %3951 = vmatprep.subr.bf16.mxu0 0
  %3952 = vmatpush1.bf16.msra.mxu0 0
  %3953 = vmatprep.subr.bf16.mxu0 0
  %3954 = vmatpush1.bf16.msra.mxu0 0
  %3955 = vmatprep.subr.bf16.mxu0 0
  %3956 = vmatpush1.bf16.msra.mxu0 0
  %3957 = vmatprep.subr.bf16.mxu0 0
  %3958 = vmatpush1.bf16.msra.mxu0 0
  %3959 = vmatprep.mubr.bf16.mxu0 0
  %3960 = vmatmul.mubr.bf16.gmra.mrb[0].mxu0 %v3925
  %v3961 = vpop.f32.mrb[0].mxu0
  %v3962 = vadd.f32 0.0, %v3961
  %v3963 = vpop.f32.mrb[0].mxu0
  %v3964 = vpop.f32.mrb[0].mxu0
  %v3965 = vpop.f32.mrb[0].mxu0
  %3966 = vdwg.mxu0
  %s3967 = scalar_lea.vmem %s67, 24
  %v3968 = vld [vmem:[%s3967] sm:$0xf]
  %v3969 = vld [vmem:[%s3967 + $0x4] sm:$0xf]
  %v3970 = vld [vmem:[%s3967 + $0x8] sm:$0xf]
  %v3971 = vld [vmem:[%s3967 + $0xc] sm:$0xf]
  %v3972 = vld [vmem:[%s3967 + $0x10] sm:$0xf]
  %v3973 = vld [vmem:[%s3967 + $0x14] sm:$0xf]
  %v3974 = vpack.c.bf16 %v3962, %v3962
  %v3981 = vunpack.c.l.b16 %v3968
  %v3982 = vunpack.c.l.b16 %v3969
  %v3983 = vunpack.c.l.b16 %v3970
  %v3984 = vunpack.c.l.b16 %v3971
  %v3985 = vunpack.c.l.b16 %v3972
  %v3986 = vunpack.c.l.b16 %v3973
  %v3987 = vpack.c.b16 %v3982, %v3981
  %v3988 = vpack.c.b16 %v3984, %v3983
  %v3989 = vpack.c.b16 %v3986, %v3985
  %v3994 = vsel %vm341, %v3974, 0
  %3996 = vmatprep.subr.bf16.mxu0 0
  %3997 = vmatpush1.bf16.msra.mxu0 %v3987
  %3998 = vmatprep.subr.bf16.mxu0 0
  %3999 = vmatpush1.bf16.msra.mxu0 %v3988
  %4000 = vmatprep.subr.bf16.mxu0 0
  %4001 = vmatpush1.bf16.msra.mxu0 %v3989
  %4002 = vmatprep.subr.bf16.mxu0 0
  %4003 = vmatpush1.bf16.msra.mxu0 0
  %4004 = vmatprep.subr.bf16.mxu0 0
  %4005 = vmatpush1.bf16.msra.mxu0 0
  %4006 = vmatprep.subr.bf16.mxu0 0
  %4007 = vmatpush1.bf16.msra.mxu0 0
  %4008 = vmatprep.subr.bf16.mxu0 0
  %4009 = vmatpush1.bf16.msra.mxu0 0
  %4010 = vmatprep.subr.bf16.mxu0 0
  %4011 = vmatpush1.bf16.msra.mxu0 0
  %4012 = vmatprep.subr.bf16.mxu0 0
  %4013 = vmatpush1.bf16.msra.mxu0 0
  %4014 = vmatprep.subr.bf16.mxu0 0
  %4015 = vmatpush1.bf16.msra.mxu0 0
  %4016 = vmatprep.subr.bf16.mxu0 0
  %4017 = vmatpush1.bf16.msra.mxu0 0
  %4018 = vmatprep.subr.bf16.mxu0 0
  %4019 = vmatpush1.bf16.msra.mxu0 0
  %4020 = vmatprep.subr.bf16.mxu0 0
  %4021 = vmatpush1.bf16.msra.mxu0 0
  %4022 = vmatprep.subr.bf16.mxu0 0
  %4023 = vmatpush1.bf16.msra.mxu0 0
  %4024 = vmatprep.subr.bf16.mxu0 0
  %4025 = vmatpush1.bf16.msra.mxu0 0
  %4026 = vmatprep.subr.bf16.mxu0 0
  %4027 = vmatpush1.bf16.msra.mxu0 0
  %4028 = vmatprep.mubr.bf16.mxu0 0
  %4029 = vmatmul.mubr.bf16.gmra.mrb[0].mxu0 %v3994
  %v4030 = vpop.f32.mrb[0].mxu0
  %v4031 = vadd.f32 0.0, %v4030
  %v4032 = vpop.f32.mrb[0].mxu0
  %v4033 = vpop.f32.mrb[0].mxu0
  %v4034 = vpop.f32.mrb[0].mxu0
  %4035 = vdwg.mxu0
  %v4042 = vunpack.c.l.b16 %v3915
  %v4043 = vunpack.c.l.b16 %v3916
  %v4044 = vunpack.c.l.b16 %v3917
  %v4045 = vunpack.c.l.b16 %v3918
  %v4046 = vunpack.c.l.b16 %v3919
  %v4047 = vunpack.c.l.b16 %v3920
  %v4048 = vpack.c.b16 %v4043, %v4042
  %v4049 = vpack.c.b16 %v4045, %v4044
  %v4050 = vpack.c.b16 %v4047, %v4046
  %v4055 = vsel %vm341, %v3921, 0
  %4057 = vmatprep.subr.bf16.mxu0 0
  %4058 = vmatpush1.bf16.msra.mxu0 %v4048
  %4059 = vmatprep.subr.bf16.mxu0 0
  %4060 = vmatpush1.bf16.msra.mxu0 %v4049
  %4061 = vmatprep.subr.bf16.mxu0 0
  %4062 = vmatpush1.bf16.msra.mxu0 %v4050
  %4063 = vmatprep.subr.bf16.mxu0 0
  %4064 = vmatpush1.bf16.msra.mxu0 0
  %4065 = vmatprep.subr.bf16.mxu0 0
  %4066 = vmatpush1.bf16.msra.mxu0 0
  %4067 = vmatprep.subr.bf16.mxu0 0
  %4068 = vmatpush1.bf16.msra.mxu0 0
  %4069 = vmatprep.subr.bf16.mxu0 0
  %4070 = vmatpush1.bf16.msra.mxu0 0
  %4071 = vmatprep.subr.bf16.mxu0 0
  %4072 = vmatpush1.bf16.msra.mxu0 0
  %4073 = vmatprep.subr.bf16.mxu0 0
  %4074 = vmatpush1.bf16.msra.mxu0 0
  %4075 = vmatprep.subr.bf16.mxu0 0
  %4076 = vmatpush1.bf16.msra.mxu0 0
  %4077 = vmatprep.subr.bf16.mxu0 0
  %4078 = vmatpush1.bf16.msra.mxu0 0
  %4079 = vmatprep.subr.bf16.mxu0 0
  %4080 = vmatpush1.bf16.msra.mxu0 0
  %4081 = vmatprep.subr.bf16.mxu0 0
  %4082 = vmatpush1.bf16.msra.mxu0 0
  %4083 = vmatprep.subr.bf16.mxu0 0
  %4084 = vmatpush1.bf16.msra.mxu0 0
  %4085 = vmatprep.subr.bf16.mxu0 0
  %4086 = vmatpush1.bf16.msra.mxu0 0
  %4087 = vmatprep.subr.bf16.mxu0 0
  %4088 = vmatpush1.bf16.msra.mxu0 0
  %4089 = vmatprep.mubr.bf16.mxu0 0
  %4090 = vmatmul.mubr.bf16.gmra.mrb[0].mxu0 %v4055
  %v4091 = vpop.f32.mrb[0].mxu0
  %v4092 = vadd.f32 %v4031, %v4091
  %v4093 = vpop.f32.mrb[0].mxu0
  %v4094 = vpop.f32.mrb[0].mxu0
  %v4095 = vpop.f32.mrb[0].mxu0
  %4096 = vdwg.mxu0
  %s4097 = scalar_lea.vmem %s55, 8
  %v4098 = vld [vmem:[%s4097] sm:$0xf]
  %v4100 = vsel %vm3867, %v4098, 0
  %4102 = vmatprep.subr.bf16.mxu0 0
  %4103 = vmatpush1.bf16.msra.mxu0 %v3873
  %4104 = vmatprep.subr.bf16.mxu0 0
  %4105 = vmatpush1.bf16.msra.mxu0 0
  %4106 = vmatprep.subr.bf16.mxu0 0
  %4107 = vmatpush1.bf16.msra.mxu0 0
  %4108 = vmatprep.subr.bf16.mxu0 0
  %4109 = vmatpush1.bf16.msra.mxu0 0
  %4110 = vmatprep.subr.bf16.mxu0 0
  %4111 = vmatpush1.bf16.msra.mxu0 0
  %4112 = vmatprep.subr.bf16.mxu0 0
  %4113 = vmatpush1.bf16.msra.mxu0 0
  %4114 = vmatprep.subr.bf16.mxu0 0
  %4115 = vmatpush1.bf16.msra.mxu0 0
  %4116 = vmatprep.subr.bf16.mxu0 0
  %4117 = vmatpush1.bf16.msra.mxu0 0
  %4118 = vmatprep.subr.bf16.mxu0 0
  %4119 = vmatpush1.bf16.msra.mxu0 0
  %4120 = vmatprep.subr.bf16.mxu0 0
  %4121 = vmatpush1.bf16.msra.mxu0 0
  %4122 = vmatprep.subr.bf16.mxu0 0
  %4123 = vmatpush1.bf16.msra.mxu0 0
  %4124 = vmatprep.subr.bf16.mxu0 0
  %4125 = vmatpush1.bf16.msra.mxu0 0
  %4126 = vmatprep.subr.bf16.mxu0 0
  %4127 = vmatpush1.bf16.msra.mxu0 0
  %4128 = vmatprep.subr.bf16.mxu0 0
  %4129 = vmatpush1.bf16.msra.mxu0 0
  %4130 = vmatprep.subr.bf16.mxu0 0
  %4131 = vmatpush1.bf16.msra.mxu0 0
  %4132 = vmatprep.subr.bf16.mxu0 0
  %4133 = vmatpush1.bf16.msra.mxu0 0
  %4134 = vmatprep.mubr.bf16.mxu0 0
  %4135 = vmatmul.mubr.bf16.gmra.mrb[0].mxu0 %v4100
  %v4136 = vpop.f32.mrb[0].mxu0
  %v4137 = vadd.f32 0.0, %v4136
  %v4138 = vpop.f32.mrb[0].mxu0
  %v4139 = vpop.f32.mrb[0].mxu0
  %v4140 = vpop.f32.mrb[0].mxu0
  %4141 = vdwg.mxu0
  %s4142 = scalar_lea.vmem %s67, 48
  %v4143 = vld [vmem:[%s4142] sm:$0xf]
  %v4144 = vld [vmem:[%s4142 + $0x4] sm:$0xf]
  %v4145 = vld [vmem:[%s4142 + $0x8] sm:$0xf]
  %v4146 = vld [vmem:[%s4142 + $0xc] sm:$0xf]
  %v4147 = vld [vmem:[%s4142 + $0x10] sm:$0xf]
  %v4148 = vld [vmem:[%s4142 + $0x14] sm:$0xf]
  %v4149 = vpack.c.bf16 %v4137, %v4137
  %v4156 = vunpack.c.l.b16 %v4143
  %v4157 = vunpack.c.l.b16 %v4144
  %v4158 = vunpack.c.l.b16 %v4145
  %v4159 = vunpack.c.l.b16 %v4146
  %v4160 = vunpack.c.l.b16 %v4147
  %v4161 = vunpack.c.l.b16 %v4148
  %v4162 = vpack.c.b16 %v4157, %v4156
  %v4163 = vpack.c.b16 %v4159, %v4158
  %v4164 = vpack.c.b16 %v4161, %v4160
  %v4169 = vsel %vm341, %v4149, 0
  %4171 = vmatprep.subr.bf16.mxu0 0
  %4172 = vmatpush1.bf16.msra.mxu0 %v4162
  %4173 = vmatprep.subr.bf16.mxu0 0
  %4174 = vmatpush1.bf16.msra.mxu0 %v4163
  %4175 = vmatprep.subr.bf16.mxu0 0
  %4176 = vmatpush1.bf16.msra.mxu0 %v4164
  %4177 = vmatprep.subr.bf16.mxu0 0
  %4178 = vmatpush1.bf16.msra.mxu0 0
  %4179 = vmatprep.subr.bf16.mxu0 0
  %4180 = vmatpush1.bf16.msra.mxu0 0
  %4181 = vmatprep.subr.bf16.mxu0 0
  %4182 = vmatpush1.bf16.msra.mxu0 0
  %4183 = vmatprep.subr.bf16.mxu0 0
  %4184 = vmatpush1.bf16.msra.mxu0 0
  %4185 = vmatprep.subr.bf16.mxu0 0
  %4186 = vmatpush1.bf16.msra.mxu0 0
  %4187 = vmatprep.subr.bf16.mxu0 0
  %4188 = vmatpush1.bf16.msra.mxu0 0
  %4189 = vmatprep.subr.bf16.mxu0 0
  %4190 = vmatpush1.bf16.msra.mxu0 0
  %4191 = vmatprep.subr.bf16.mxu0 0
  %4192 = vmatpush1.bf16.msra.mxu0 0
  %4193 = vmatprep.subr.bf16.mxu0 0
  %4194 = vmatpush1.bf16.msra.mxu0 0
  %4195 = vmatprep.subr.bf16.mxu0 0
  %4196 = vmatpush1.bf16.msra.mxu0 0
  %4197 = vmatprep.subr.bf16.mxu0 0
  %4198 = vmatpush1.bf16.msra.mxu0 0
  %4199 = vmatprep.subr.bf16.mxu0 0
  %4200 = vmatpush1.bf16.msra.mxu0 0
  %4201 = vmatprep.subr.bf16.mxu0 0
  %4202 = vmatpush1.bf16.msra.mxu0 0
  %4203 = vmatprep.mubr.bf16.mxu0 0
  %4204 = vmatmul.mubr.bf16.gmra.mrb[0].mxu0 %v4169
  %v4205 = vpop.f32.mrb[0].mxu0
  %v4206 = vadd.f32 0.0, %v4205
  %v4207 = vpop.f32.mrb[0].mxu0
  %v4208 = vpop.f32.mrb[0].mxu0
  %v4209 = vpop.f32.mrb[0].mxu0
  %4210 = vdwg.mxu0
  %v4211 = vadd.f32 %v4092, %v4206
  %s4212 = scalar_lea.vmem %s55, 12
  %v4213 = vld [vmem:[%s4212] sm:$0xf]
  %v4215 = vsel %vm3867, %v4213, 0
  %4217 = vmatprep.subr.bf16.mxu0 0
  %4218 = vmatpush1.bf16.msra.mxu0 %v3873
  %4219 = vmatprep.subr.bf16.mxu0 0
  %4220 = vmatpush1.bf16.msra.mxu0 0
  %4221 = vmatprep.subr.bf16.mxu0 0
  %4222 = vmatpush1.bf16.msra.mxu0 0
  %4223 = vmatprep.subr.bf16.mxu0 0
  %4224 = vmatpush1.bf16.msra.mxu0 0
  %4225 = vmatprep.subr.bf16.mxu0 0
  %4226 = vmatpush1.bf16.msra.mxu0 0
  %4227 = vmatprep.subr.bf16.mxu0 0
  %4228 = vmatpush1.bf16.msra.mxu0 0
  %4229 = vmatprep.subr.bf16.mxu0 0
  %4230 = vmatpush1.bf16.msra.mxu0 0
  %4231 = vmatprep.subr.bf16.mxu0 0
  %4232 = vmatpush1.bf16.msra.mxu0 0
  %4233 = vmatprep.subr.bf16.mxu0 0
  %4234 = vmatpush1.bf16.msra.mxu0 0
  %4235 = vmatprep.subr.bf16.mxu0 0
  %4236 = vmatpush1.bf16.msra.mxu0 0
  %4237 = vmatprep.subr.bf16.mxu0 0
  %4238 = vmatpush1.bf16.msra.mxu0 0
  %4239 = vmatprep.subr.bf16.mxu0 0
  %4240 = vmatpush1.bf16.msra.mxu0 0
  %4241 = vmatprep.subr.bf16.mxu0 0
  %4242 = vmatpush1.bf16.msra.mxu0 0
  %4243 = vmatprep.subr.bf16.mxu0 0
  %4244 = vmatpush1.bf16.msra.mxu0 0
  %4245 = vmatprep.subr.bf16.mxu0 0
  %4246 = vmatpush1.bf16.msra.mxu0 0
  %4247 = vmatprep.subr.bf16.mxu0 0
  %4248 = vmatpush1.bf16.msra.mxu0 0
  %4249 = vmatprep.mubr.bf16.mxu0 0
  %4250 = vmatmul.mubr.bf16.gmra.mrb[0].mxu0 %v4215
  %v4251 = vpop.f32.mrb[0].mxu0
  %v4252 = vadd.f32 0.0, %v4251
  %v4253 = vpop.f32.mrb[0].mxu0
  %v4254 = vpop.f32.mrb[0].mxu0
  %v4255 = vpop.f32.mrb[0].mxu0
  %4256 = vdwg.mxu0
  %s4257 = scalar_lea.vmem %s67, 72
  %v4258 = vld [vmem:[%s4257] sm:$0xf]
  %v4259 = vld [vmem:[%s4257 + $0x4] sm:$0xf]
  %v4260 = vld [vmem:[%s4257 + $0x8] sm:$0xf]
  %v4261 = vld [vmem:[%s4257 + $0xc] sm:$0xf]
  %v4262 = vld [vmem:[%s4257 + $0x10] sm:$0xf]
  %v4263 = vld [vmem:[%s4257 + $0x14] sm:$0xf]
  %v4264 = vpack.c.bf16 %v4252, %v4252
  %v4271 = vunpack.c.l.b16 %v4258
  %v4272 = vunpack.c.l.b16 %v4259
  %v4273 = vunpack.c.l.b16 %v4260
  %v4274 = vunpack.c.l.b16 %v4261
  %v4275 = vunpack.c.l.b16 %v4262
  %v4276 = vunpack.c.l.b16 %v4263
  %v4277 = vpack.c.b16 %v4272, %v4271
  %v4278 = vpack.c.b16 %v4274, %v4273
  %v4279 = vpack.c.b16 %v4276, %v4275
  %v4284 = vsel %vm341, %v4264, 0
  %4286 = vmatprep.subr.bf16.mxu0 0
  %4287 = vmatpush1.bf16.msra.mxu0 %v4277
  %4288 = vmatprep.subr.bf16.mxu0 0
  %4289 = vmatpush1.bf16.msra.mxu0 %v4278
  %4290 = vmatprep.subr.bf16.mxu0 0
  %4291 = vmatpush1.bf16.msra.mxu0 %v4279
  %4292 = vmatprep.subr.bf16.mxu0 0
  %4293 = vmatpush1.bf16.msra.mxu0 0
  %4294 = vmatprep.subr.bf16.mxu0 0
  %4295 = vmatpush1.bf16.msra.mxu0 0
  %4296 = vmatprep.subr.bf16.mxu0 0
  %4297 = vmatpush1.bf16.msra.mxu0 0
  %4298 = vmatprep.subr.bf16.mxu0 0
  %4299 = vmatpush1.bf16.msra.mxu0 0
  %4300 = vmatprep.subr.bf16.mxu0 0
  %4301 = vmatpush1.bf16.msra.mxu0 0
  %4302 = vmatprep.subr.bf16.mxu0 0
  %4303 = vmatpush1.bf16.msra.mxu0 0
  %4304 = vmatprep.subr.bf16.mxu0 0
  %4305 = vmatpush1.bf16.msra.mxu0 0
  %4306 = vmatprep.subr.bf16.mxu0 0
  %4307 = vmatpush1.bf16.msra.mxu0 0
  %4308 = vmatprep.subr.bf16.mxu0 0
  %4309 = vmatpush1.bf16.msra.mxu0 0
  %4310 = vmatprep.subr.bf16.mxu0 0
  %4311 = vmatpush1.bf16.msra.mxu0 0
  %4312 = vmatprep.subr.bf16.mxu0 0
  %4313 = vmatpush1.bf16.msra.mxu0 0
  %4314 = vmatprep.subr.bf16.mxu0 0
  %4315 = vmatpush1.bf16.msra.mxu0 0
  %4316 = vmatprep.subr.bf16.mxu0 0
  %4317 = vmatpush1.bf16.msra.mxu0 0
  %4318 = vmatprep.mubr.bf16.mxu0 0
  %4319 = vmatmul.mubr.bf16.gmra.mrb[0].mxu0 %v4284
  %v4320 = vpop.f32.mrb[0].mxu0
  %v4321 = vadd.f32 0.0, %v4320
  %v4322 = vpop.f32.mrb[0].mxu0
  %v4323 = vpop.f32.mrb[0].mxu0
  %v4324 = vpop.f32.mrb[0].mxu0
  %4325 = vdwg.mxu0
  %v4326 = vadd.f32 %v4211, %v4321
  %s4327 = scalar_lea.vmem %s55, 16
  %v4328 = vld [vmem:[%s4327] sm:$0xf]
  %v4330 = vsel %vm3867, %v4328, 0
  %4332 = vmatprep.subr.bf16.mxu0 0
  %4333 = vmatpush1.bf16.msra.mxu0 %v3873
  %4334 = vmatprep.subr.bf16.mxu0 0
  %4335 = vmatpush1.bf16.msra.mxu0 0
  %4336 = vmatprep.subr.bf16.mxu0 0
  %4337 = vmatpush1.bf16.msra.mxu0 0
  %4338 = vmatprep.subr.bf16.mxu0 0
  %4339 = vmatpush1.bf16.msra.mxu0 0
  %4340 = vmatprep.subr.bf16.mxu0 0
  %4341 = vmatpush1.bf16.msra.mxu0 0
  %4342 = vmatprep.subr.bf16.mxu0 0
  %4343 = vmatpush1.bf16.msra.mxu0 0
  %4344 = vmatprep.subr.bf16.mxu0 0
  %4345 = vmatpush1.bf16.msra.mxu0 0
  %4346 = vmatprep.subr.bf16.mxu0 0
  %4347 = vmatpush1.bf16.msra.mxu0 0
  %4348 = vmatprep.subr.bf16.mxu0 0
  %4349 = vmatpush1.bf16.msra.mxu0 0
  %4350 = vmatprep.subr.bf16.mxu0 0
  %4351 = vmatpush1.bf16.msra.mxu0 0
  %4352 = vmatprep.subr.bf16.mxu0 0
  %4353 = vmatpush1.bf16.msra.mxu0 0
  %4354 = vmatprep.subr.bf16.mxu0 0
  %4355 = vmatpush1.bf16.msra.mxu0 0
  %4356 = vmatprep.subr.bf16.mxu0 0
  %4357 = vmatpush1.bf16.msra.mxu0 0
  %4358 = vmatprep.subr.bf16.mxu0 0
  %4359 = vmatpush1.bf16.msra.mxu0 0
  %4360 = vmatprep.subr.bf16.mxu0 0
  %4361 = vmatpush1.bf16.msra.mxu0 0
  %4362 = vmatprep.subr.bf16.mxu0 0
  %4363 = vmatpush1.bf16.msra.mxu0 0
  %4364 = vmatprep.mubr.bf16.mxu0 0
  %4365 = vmatmul.mubr.bf16.gmra.mrb[0].mxu0 %v4330
  %v4366 = vpop.f32.mrb[0].mxu0
  %v4367 = vadd.f32 0.0, %v4366
  %v4368 = vpop.f32.mrb[0].mxu0
  %v4369 = vpop.f32.mrb[0].mxu0
  %v4370 = vpop.f32.mrb[0].mxu0
  %4371 = vdwg.mxu0
  %s4372 = scalar_lea.vmem %s67, 96
  %v4373 = vld [vmem:[%s4372] sm:$0xf]
  %v4374 = vld [vmem:[%s4372 + $0x4] sm:$0xf]
  %v4375 = vld [vmem:[%s4372 + $0x8] sm:$0xf]
  %v4376 = vld [vmem:[%s4372 + $0xc] sm:$0xf]
  %v4377 = vld [vmem:[%s4372 + $0x10] sm:$0xf]
  %v4378 = vld [vmem:[%s4372 + $0x14] sm:$0xf]
  %v4379 = vpack.c.bf16 %v4367, %v4367
  %v4386 = vunpack.c.l.b16 %v4373
  %v4387 = vunpack.c.l.b16 %v4374
  %v4388 = vunpack.c.l.b16 %v4375
  %v4389 = vunpack.c.l.b16 %v4376
  %v4390 = vunpack.c.l.b16 %v4377
  %v4391 = vunpack.c.l.b16 %v4378
  %v4392 = vpack.c.b16 %v4387, %v4386
  %v4393 = vpack.c.b16 %v4389, %v4388
  %v4394 = vpack.c.b16 %v4391, %v4390
  %v4399 = vsel %vm341, %v4379, 0
  %4401 = vmatprep.subr.bf16.mxu0 0
  %4402 = vmatpush1.bf16.msra.mxu0 %v4392
  %4403 = vmatprep.subr.bf16.mxu0 0
  %4404 = vmatpush1.bf16.msra.mxu0 %v4393
  %4405 = vmatprep.subr.bf16.mxu0 0
  %4406 = vmatpush1.bf16.msra.mxu0 %v4394
  %4407 = vmatprep.subr.bf16.mxu0 0
  %4408 = vmatpush1.bf16.msra.mxu0 0
  %4409 = vmatprep.subr.bf16.mxu0 0
  %4410 = vmatpush1.bf16.msra.mxu0 0
  %4411 = vmatprep.subr.bf16.mxu0 0
  %4412 = vmatpush1.bf16.msra.mxu0 0
  %4413 = vmatprep.subr.bf16.mxu0 0
  %4414 = vmatpush1.bf16.msra.mxu0 0
  %4415 = vmatprep.subr.bf16.mxu0 0
  %4416 = vmatpush1.bf16.msra.mxu0 0
  %4417 = vmatprep.subr.bf16.mxu0 0
  %4418 = vmatpush1.bf16.msra.mxu0 0
  %4419 = vmatprep.subr.bf16.mxu0 0
  %4420 = vmatpush1.bf16.msra.mxu0 0
  %4421 = vmatprep.subr.bf16.mxu0 0
  %4422 = vmatpush1.bf16.msra.mxu0 0
  %4423 = vmatprep.subr.bf16.mxu0 0
  %4424 = vmatpush1.bf16.msra.mxu0 0
  %4425 = vmatprep.subr.bf16.mxu0 0
  %4426 = vmatpush1.bf16.msra.mxu0 0
  %4427 = vmatprep.subr.bf16.mxu0 0
  %4428 = vmatpush1.bf16.msra.mxu0 0
  %4429 = vmatprep.subr.bf16.mxu0 0
  %4430 = vmatpush1.bf16.msra.mxu0 0
  %4431 = vmatprep.subr.bf16.mxu0 0
  %4432 = vmatpush1.bf16.msra.mxu0 0
  %4433 = vmatprep.mubr.bf16.mxu0 0
  %4434 = vmatmul.mubr.bf16.gmra.mrb[0].mxu0 %v4399
  %v4435 = vpop.f32.mrb[0].mxu0
  %v4436 = vadd.f32 0.0, %v4435
  %v4437 = vpop.f32.mrb[0].mxu0
  %v4438 = vpop.f32.mrb[0].mxu0
  %v4439 = vpop.f32.mrb[0].mxu0
  %4440 = vdwg.mxu0
  %v4441 = vadd.f32 %v4326, %v4436
  %s4442 = scalar_lea.vmem %s55, 20
  %v4443 = vld [vmem:[%s4442] sm:$0xf]
  %v4445 = vsel %vm3867, %v4443, 0
  %4447 = vmatprep.subr.bf16.mxu0 0
  %4448 = vmatpush1.bf16.msra.mxu0 %v3873
  %4449 = vmatprep.subr.bf16.mxu0 0
  %4450 = vmatpush1.bf16.msra.mxu0 0
  %4451 = vmatprep.subr.bf16.mxu0 0
  %4452 = vmatpush1.bf16.msra.mxu0 0
  %4453 = vmatprep.subr.bf16.mxu0 0
  %4454 = vmatpush1.bf16.msra.mxu0 0
  %4455 = vmatprep.subr.bf16.mxu0 0
  %4456 = vmatpush1.bf16.msra.mxu0 0
  %4457 = vmatprep.subr.bf16.mxu0 0
  %4458 = vmatpush1.bf16.msra.mxu0 0
  %4459 = vmatprep.subr.bf16.mxu0 0
  %4460 = vmatpush1.bf16.msra.mxu0 0
  %4461 = vmatprep.subr.bf16.mxu0 0
  %4462 = vmatpush1.bf16.msra.mxu0 0
  %4463 = vmatprep.subr.bf16.mxu0 0
  %4464 = vmatpush1.bf16.msra.mxu0 0
  %4465 = vmatprep.subr.bf16.mxu0 0
  %4466 = vmatpush1.bf16.msra.mxu0 0
  %4467 = vmatprep.subr.bf16.mxu0 0
  %4468 = vmatpush1.bf16.msra.mxu0 0
  %4469 = vmatprep.subr.bf16.mxu0 0
  %4470 = vmatpush1.bf16.msra.mxu0 0
  %4471 = vmatprep.subr.bf16.mxu0 0
  %4472 = vmatpush1.bf16.msra.mxu0 0
  %4473 = vmatprep.subr.bf16.mxu0 0
  %4474 = vmatpush1.bf16.msra.mxu0 0
  %4475 = vmatprep.subr.bf16.mxu0 0
  %4476 = vmatpush1.bf16.msra.mxu0 0
  %4477 = vmatprep.subr.bf16.mxu0 0
  %4478 = vmatpush1.bf16.msra.mxu0 0
  %4479 = vmatprep.mubr.bf16.mxu0 0
  %4480 = vmatmul.mubr.bf16.gmra.mrb[0].mxu0 %v4445
  %v4481 = vpop.f32.mrb[0].mxu0
  %v4482 = vadd.f32 0.0, %v4481
  %v4483 = vpop.f32.mrb[0].mxu0
  %v4484 = vpop.f32.mrb[0].mxu0
  %v4485 = vpop.f32.mrb[0].mxu0
  %4486 = vdwg.mxu0
  %s4487 = scalar_lea.vmem %s67, 120
  %v4488 = vld [vmem:[%s4487] sm:$0xf]
  %v4489 = vld [vmem:[%s4487 + $0x4] sm:$0xf]
  %v4490 = vld [vmem:[%s4487 + $0x8] sm:$0xf]
  %v4491 = vld [vmem:[%s4487 + $0xc] sm:$0xf]
  %v4492 = vld [vmem:[%s4487 + $0x10] sm:$0xf]
  %v4493 = vld [vmem:[%s4487 + $0x14] sm:$0xf]
  %v4494 = vpack.c.bf16 %v4482, %v4482
  %v4501 = vunpack.c.l.b16 %v4488
  %v4502 = vunpack.c.l.b16 %v4489
  %v4503 = vunpack.c.l.b16 %v4490
  %v4504 = vunpack.c.l.b16 %v4491
  %v4505 = vunpack.c.l.b16 %v4492
  %v4506 = vunpack.c.l.b16 %v4493
  %v4507 = vpack.c.b16 %v4502, %v4501
  %v4508 = vpack.c.b16 %v4504, %v4503
  %v4509 = vpack.c.b16 %v4506, %v4505
  %v4514 = vsel %vm341, %v4494, 0
  %4516 = vmatprep.subr.bf16.mxu0 0
  %4517 = vmatpush1.bf16.msra.mxu0 %v4507
  %4518 = vmatprep.subr.bf16.mxu0 0
  %4519 = vmatpush1.bf16.msra.mxu0 %v4508
  %4520 = vmatprep.subr.bf16.mxu0 0
  %4521 = vmatpush1.bf16.msra.mxu0 %v4509
  %4522 = vmatprep.subr.bf16.mxu0 0
  %4523 = vmatpush1.bf16.msra.mxu0 0
  %4524 = vmatprep.subr.bf16.mxu0 0
  %4525 = vmatpush1.bf16.msra.mxu0 0
  %4526 = vmatprep.subr.bf16.mxu0 0
  %4527 = vmatpush1.bf16.msra.mxu0 0
  %4528 = vmatprep.subr.bf16.mxu0 0
  %4529 = vmatpush1.bf16.msra.mxu0 0
  %4530 = vmatprep.subr.bf16.mxu0 0
  %4531 = vmatpush1.bf16.msra.mxu0 0
  %4532 = vmatprep.subr.bf16.mxu0 0
  %4533 = vmatpush1.bf16.msra.mxu0 0
  %4534 = vmatprep.subr.bf16.mxu0 0
  %4535 = vmatpush1.bf16.msra.mxu0 0
  %4536 = vmatprep.subr.bf16.mxu0 0
  %4537 = vmatpush1.bf16.msra.mxu0 0
  %4538 = vmatprep.subr.bf16.mxu0 0
  %4539 = vmatpush1.bf16.msra.mxu0 0
  %4540 = vmatprep.subr.bf16.mxu0 0
  %4541 = vmatpush1.bf16.msra.mxu0 0
  %4542 = vmatprep.subr.bf16.mxu0 0
  %4543 = vmatpush1.bf16.msra.mxu0 0
  %4544 = vmatprep.subr.bf16.mxu0 0
  %4545 = vmatpush1.bf16.msra.mxu0 0
  %4546 = vmatprep.subr.bf16.mxu0 0
  %4547 = vmatpush1.bf16.msra.mxu0 0
  %4548 = vmatprep.mubr.bf16.mxu0 0
  %4549 = vmatmul.mubr.bf16.gmra.mrb[0].mxu0 %v4514
  %v4550 = vpop.f32.mrb[0].mxu0
  %v4551 = vadd.f32 0.0, %v4550
  %v4552 = vpop.f32.mrb[0].mxu0
  %v4553 = vpop.f32.mrb[0].mxu0
  %v4554 = vpop.f32.mrb[0].mxu0
  %4555 = vdwg.mxu0
  %v4556 = vadd.f32 %v4441, %v4551
  %s4557 = scalar_lea.vmem %s55, 24
  %v4558 = vld [vmem:[%s4557] sm:$0xf]
  %v4560 = vsel %vm3867, %v4558, 0
  %4562 = vmatprep.subr.bf16.mxu0 0
  %4563 = vmatpush1.bf16.msra.mxu0 %v3873
  %4564 = vmatprep.subr.bf16.mxu0 0
  %4565 = vmatpush1.bf16.msra.mxu0 0
  %4566 = vmatprep.subr.bf16.mxu0 0
  %4567 = vmatpush1.bf16.msra.mxu0 0
  %4568 = vmatprep.subr.bf16.mxu0 0
  %4569 = vmatpush1.bf16.msra.mxu0 0
  %4570 = vmatprep.subr.bf16.mxu0 0
  %4571 = vmatpush1.bf16.msra.mxu0 0
  %4572 = vmatprep.subr.bf16.mxu0 0
  %4573 = vmatpush1.bf16.msra.mxu0 0
  %4574 = vmatprep.subr.bf16.mxu0 0
  %4575 = vmatpush1.bf16.msra.mxu0 0
  %4576 = vmatprep.subr.bf16.mxu0 0
  %4577 = vmatpush1.bf16.msra.mxu0 0
  %4578 = vmatprep.subr.bf16.mxu0 0
  %4579 = vmatpush1.bf16.msra.mxu0 0
  %4580 = vmatprep.subr.bf16.mxu0 0
  %4581 = vmatpush1.bf16.msra.mxu0 0
  %4582 = vmatprep.subr.bf16.mxu0 0
  %4583 = vmatpush1.bf16.msra.mxu0 0
  %4584 = vmatprep.subr.bf16.mxu0 0
  %4585 = vmatpush1.bf16.msra.mxu0 0
  %4586 = vmatprep.subr.bf16.mxu0 0
  %4587 = vmatpush1.bf16.msra.mxu0 0
  %4588 = vmatprep.subr.bf16.mxu0 0
  %4589 = vmatpush1.bf16.msra.mxu0 0
  %4590 = vmatprep.subr.bf16.mxu0 0
  %4591 = vmatpush1.bf16.msra.mxu0 0
  %4592 = vmatprep.subr.bf16.mxu0 0
  %4593 = vmatpush1.bf16.msra.mxu0 0
  %4594 = vmatprep.mubr.bf16.mxu0 0
  %4595 = vmatmul.mubr.bf16.gmra.mrb[0].mxu0 %v4560
  %v4596 = vpop.f32.mrb[0].mxu0
  %v4597 = vadd.f32 0.0, %v4596
  %v4598 = vpop.f32.mrb[0].mxu0
  %v4599 = vpop.f32.mrb[0].mxu0
  %v4600 = vpop.f32.mrb[0].mxu0
  %4601 = vdwg.mxu0
  %s4602 = scalar_lea.vmem %s67, 144
  %v4603 = vld [vmem:[%s4602] sm:$0xf]
  %v4604 = vld [vmem:[%s4602 + $0x4] sm:$0xf]
  %v4605 = vld [vmem:[%s4602 + $0x8] sm:$0xf]
  %v4606 = vld [vmem:[%s4602 + $0xc] sm:$0xf]
  %v4607 = vld [vmem:[%s4602 + $0x10] sm:$0xf]
  %v4608 = vld [vmem:[%s4602 + $0x14] sm:$0xf]
  %v4609 = vpack.c.bf16 %v4597, %v4597
  %v4616 = vunpack.c.l.b16 %v4603
  %v4617 = vunpack.c.l.b16 %v4604
  %v4618 = vunpack.c.l.b16 %v4605
  %v4619 = vunpack.c.l.b16 %v4606
  %v4620 = vunpack.c.l.b16 %v4607
  %v4621 = vunpack.c.l.b16 %v4608
  %v4622 = vpack.c.b16 %v4617, %v4616
  %v4623 = vpack.c.b16 %v4619, %v4618
  %v4624 = vpack.c.b16 %v4621, %v4620
  %v4629 = vsel %vm341, %v4609, 0
  %4631 = vmatprep.subr.bf16.mxu0 0
  %4632 = vmatpush1.bf16.msra.mxu0 %v4622
  %4633 = vmatprep.subr.bf16.mxu0 0
  %4634 = vmatpush1.bf16.msra.mxu0 %v4623
  %4635 = vmatprep.subr.bf16.mxu0 0
  %4636 = vmatpush1.bf16.msra.mxu0 %v4624
  %4637 = vmatprep.subr.bf16.mxu0 0
  %4638 = vmatpush1.bf16.msra.mxu0 0
  %4639 = vmatprep.subr.bf16.mxu0 0
  %4640 = vmatpush1.bf16.msra.mxu0 0
  %4641 = vmatprep.subr.bf16.mxu0 0
  %4642 = vmatpush1.bf16.msra.mxu0 0
  %4643 = vmatprep.subr.bf16.mxu0 0
  %4644 = vmatpush1.bf16.msra.mxu0 0
  %4645 = vmatprep.subr.bf16.mxu0 0
  %4646 = vmatpush1.bf16.msra.mxu0 0
  %4647 = vmatprep.subr.bf16.mxu0 0
  %4648 = vmatpush1.bf16.msra.mxu0 0
  %4649 = vmatprep.subr.bf16.mxu0 0
  %4650 = vmatpush1.bf16.msra.mxu0 0
  %4651 = vmatprep.subr.bf16.mxu0 0
  %4652 = vmatpush1.bf16.msra.mxu0 0
  %4653 = vmatprep.subr.bf16.mxu0 0
  %4654 = vmatpush1.bf16.msra.mxu0 0
  %4655 = vmatprep.subr.bf16.mxu0 0
  %4656 = vmatpush1.bf16.msra.mxu0 0
  %4657 = vmatprep.subr.bf16.mxu0 0
  %4658 = vmatpush1.bf16.msra.mxu0 0
  %4659 = vmatprep.subr.bf16.mxu0 0
  %4660 = vmatpush1.bf16.msra.mxu0 0
  %4661 = vmatprep.subr.bf16.mxu0 0
  %4662 = vmatpush1.bf16.msra.mxu0 0
  %4663 = vmatprep.mubr.bf16.mxu0 0
  %4664 = vmatmul.mubr.bf16.gmra.mrb[0].mxu0 %v4629
  %v4665 = vpop.f32.mrb[0].mxu0
  %v4666 = vadd.f32 0.0, %v4665
  %v4667 = vpop.f32.mrb[0].mxu0
  %v4668 = vpop.f32.mrb[0].mxu0
  %v4669 = vpop.f32.mrb[0].mxu0
  %4670 = vdwg.mxu0
  %v4671 = vadd.f32 %v4556, %v4666
  %s4672 = scalar_lea.vmem %s55, 28
  %v4673 = vld [vmem:[%s4672] sm:$0xf]
  %v4675 = vsel %vm3867, %v4673, 0
  %4677 = vmatprep.subr.bf16.mxu0 0
  %4678 = vmatpush1.bf16.msra.mxu0 %v3873
  %4679 = vmatprep.subr.bf16.mxu0 0
  %4680 = vmatpush1.bf16.msra.mxu0 0
  %4681 = vmatprep.subr.bf16.mxu0 0
  %4682 = vmatpush1.bf16.msra.mxu0 0
  %4683 = vmatprep.subr.bf16.mxu0 0
  %4684 = vmatpush1.bf16.msra.mxu0 0
  %4685 = vmatprep.subr.bf16.mxu0 0
  %4686 = vmatpush1.bf16.msra.mxu0 0
  %4687 = vmatprep.subr.bf16.mxu0 0
  %4688 = vmatpush1.bf16.msra.mxu0 0
  %4689 = vmatprep.subr.bf16.mxu0 0
  %4690 = vmatpush1.bf16.msra.mxu0 0
  %4691 = vmatprep.subr.bf16.mxu0 0
  %4692 = vmatpush1.bf16.msra.mxu0 0
  %4693 = vmatprep.subr.bf16.mxu0 0
  %4694 = vmatpush1.bf16.msra.mxu0 0
  %4695 = vmatprep.subr.bf16.mxu0 0
  %4696 = vmatpush1.bf16.msra.mxu0 0
  %4697 = vmatprep.subr.bf16.mxu0 0
  %4698 = vmatpush1.bf16.msra.mxu0 0
  %4699 = vmatprep.subr.bf16.mxu0 0
  %4700 = vmatpush1.bf16.msra.mxu0 0
  %4701 = vmatprep.subr.bf16.mxu0 0
  %4702 = vmatpush1.bf16.msra.mxu0 0
  %4703 = vmatprep.subr.bf16.mxu0 0
  %4704 = vmatpush1.bf16.msra.mxu0 0
  %4705 = vmatprep.subr.bf16.mxu0 0
  %4706 = vmatpush1.bf16.msra.mxu0 0
  %4707 = vmatprep.subr.bf16.mxu0 0
  %4708 = vmatpush1.bf16.msra.mxu0 0
  %4709 = vmatprep.mubr.bf16.mxu0 0
  %4710 = vmatmul.mubr.bf16.gmra.mrb[0].mxu0 %v4675
  %v4711 = vpop.f32.mrb[0].mxu0
  %v4712 = vadd.f32 0.0, %v4711
  %v4713 = vpop.f32.mrb[0].mxu0
  %v4714 = vpop.f32.mrb[0].mxu0
  %v4715 = vpop.f32.mrb[0].mxu0
  %4716 = vdwg.mxu0
  %s4717 = scalar_lea.vmem %s67, 168
  %v4718 = vld [vmem:[%s4717] sm:$0xf]
  %v4719 = vld [vmem:[%s4717 + $0x4] sm:$0xf]
  %v4720 = vld [vmem:[%s4717 + $0x8] sm:$0xf]
  %v4721 = vld [vmem:[%s4717 + $0xc] sm:$0xf]
  %v4722 = vld [vmem:[%s4717 + $0x10] sm:$0xf]
  %v4723 = vld [vmem:[%s4717 + $0x14] sm:$0xf]
  %v4724 = vpack.c.bf16 %v4712, %v4712
  %v4731 = vunpack.c.l.b16 %v4718
  %v4732 = vunpack.c.l.b16 %v4719
  %v4733 = vunpack.c.l.b16 %v4720
  %v4734 = vunpack.c.l.b16 %v4721
  %v4735 = vunpack.c.l.b16 %v4722
  %v4736 = vunpack.c.l.b16 %v4723
  %v4737 = vpack.c.b16 %v4732, %v4731
  %v4738 = vpack.c.b16 %v4734, %v4733
  %v4739 = vpack.c.b16 %v4736, %v4735
  %v4744 = vsel %vm341, %v4724, 0
  %4746 = vmatprep.subr.bf16.mxu0 0
  %4747 = vmatpush1.bf16.msra.mxu0 %v4737
  %4748 = vmatprep.subr.bf16.mxu0 0
  %4749 = vmatpush1.bf16.msra.mxu0 %v4738
  %4750 = vmatprep.subr.bf16.mxu0 0
  %4751 = vmatpush1.bf16.msra.mxu0 %v4739
  %4752 = vmatprep.subr.bf16.mxu0 0
  %4753 = vmatpush1.bf16.msra.mxu0 0
  %4754 = vmatprep.subr.bf16.mxu0 0
  %4755 = vmatpush1.bf16.msra.mxu0 0
  %4756 = vmatprep.subr.bf16.mxu0 0
  %4757 = vmatpush1.bf16.msra.mxu0 0
  %4758 = vmatprep.subr.bf16.mxu0 0
  %4759 = vmatpush1.bf16.msra.mxu0 0
  %4760 = vmatprep.subr.bf16.mxu0 0
  %4761 = vmatpush1.bf16.msra.mxu0 0
  %4762 = vmatprep.subr.bf16.mxu0 0
  %4763 = vmatpush1.bf16.msra.mxu0 0
  %4764 = vmatprep.subr.bf16.mxu0 0
  %4765 = vmatpush1.bf16.msra.mxu0 0
  %4766 = vmatprep.subr.bf16.mxu0 0
  %4767 = vmatpush1.bf16.msra.mxu0 0
  %4768 = vmatprep.subr.bf16.mxu0 0
  %4769 = vmatpush1.bf16.msra.mxu0 0
  %4770 = vmatprep.subr.bf16.mxu0 0
  %4771 = vmatpush1.bf16.msra.mxu0 0
  %4772 = vmatprep.subr.bf16.mxu0 0
  %4773 = vmatpush1.bf16.msra.mxu0 0
  %4774 = vmatprep.subr.bf16.mxu0 0
  %4775 = vmatpush1.bf16.msra.mxu0 0
  %4776 = vmatprep.subr.bf16.mxu0 0
  %4777 = vmatpush1.bf16.msra.mxu0 0
  %4778 = vmatprep.mubr.bf16.mxu0 0
  %4779 = vmatmul.mubr.bf16.gmra.mrb[0].mxu0 %v4744
  %v4780 = vpop.f32.mrb[0].mxu0
  %v4781 = vadd.f32 0.0, %v4780
  %v4782 = vpop.f32.mrb[0].mxu0
  %v4783 = vpop.f32.mrb[0].mxu0
  %v4784 = vpop.f32.mrb[0].mxu0
  %4785 = vdwg.mxu0
  %v4786 = vadd.f32 %v4671, %v4781
  %s4787 = scalar_lea.vmem %s55, 32
  %v4788 = vld [vmem:[%s4787] sm:$0xf]
  %v4790 = vsel %vm3867, %v4788, 0
  %4792 = vmatprep.subr.bf16.mxu0 0
  %4793 = vmatpush1.bf16.msra.mxu0 %v3873
  %4794 = vmatprep.subr.bf16.mxu0 0
  %4795 = vmatpush1.bf16.msra.mxu0 0
  %4796 = vmatprep.subr.bf16.mxu0 0
  %4797 = vmatpush1.bf16.msra.mxu0 0
  %4798 = vmatprep.subr.bf16.mxu0 0
  %4799 = vmatpush1.bf16.msra.mxu0 0
  %4800 = vmatprep.subr.bf16.mxu0 0
  %4801 = vmatpush1.bf16.msra.mxu0 0
  %4802 = vmatprep.subr.bf16.mxu0 0
  %4803 = vmatpush1.bf16.msra.mxu0 0
  %4804 = vmatprep.subr.bf16.mxu0 0
  %4805 = vmatpush1.bf16.msra.mxu0 0
  %4806 = vmatprep.subr.bf16.mxu0 0
  %4807 = vmatpush1.bf16.msra.mxu0 0
  %4808 = vmatprep.subr.bf16.mxu0 0
  %4809 = vmatpush1.bf16.msra.mxu0 0
  %4810 = vmatprep.subr.bf16.mxu0 0
  %4811 = vmatpush1.bf16.msra.mxu0 0
  %4812 = vmatprep.subr.bf16.mxu0 0
  %4813 = vmatpush1.bf16.msra.mxu0 0
  %4814 = vmatprep.subr.bf16.mxu0 0
  %4815 = vmatpush1.bf16.msra.mxu0 0
  %4816 = vmatprep.subr.bf16.mxu0 0
  %4817 = vmatpush1.bf16.msra.mxu0 0
  %4818 = vmatprep.subr.bf16.mxu0 0
  %4819 = vmatpush1.bf16.msra.mxu0 0
  %4820 = vmatprep.subr.bf16.mxu0 0
  %4821 = vmatpush1.bf16.msra.mxu0 0
  %4822 = vmatprep.subr.bf16.mxu0 0
  %4823 = vmatpush1.bf16.msra.mxu0 0
  %4824 = vmatprep.mubr.bf16.mxu0 0
  %4825 = vmatmul.mubr.bf16.gmra.mrb[0].mxu0 %v4790
  %v4826 = vpop.f32.mrb[0].mxu0
  %v4827 = vadd.f32 0.0, %v4826
  %v4828 = vpop.f32.mrb[0].mxu0
  %v4829 = vpop.f32.mrb[0].mxu0
  %v4830 = vpop.f32.mrb[0].mxu0
  %4831 = vdwg.mxu0
  %s4832 = scalar_lea.vmem %s67, 192
  %v4833 = vld [vmem:[%s4832] sm:$0xf]
  %v4834 = vld [vmem:[%s4832 + $0x4] sm:$0xf]
  %v4835 = vld [vmem:[%s4832 + $0x8] sm:$0xf]
  %v4836 = vld [vmem:[%s4832 + $0xc] sm:$0xf]
  %v4837 = vld [vmem:[%s4832 + $0x10] sm:$0xf]
  %v4838 = vld [vmem:[%s4832 + $0x14] sm:$0xf]
  %v4839 = vpack.c.bf16 %v4827, %v4827
  %v4846 = vunpack.c.l.b16 %v4833
  %v4847 = vunpack.c.l.b16 %v4834
  %v4848 = vunpack.c.l.b16 %v4835
  %v4849 = vunpack.c.l.b16 %v4836
  %v4850 = vunpack.c.l.b16 %v4837
  %v4851 = vunpack.c.l.b16 %v4838
  %v4852 = vpack.c.b16 %v4847, %v4846
  %v4853 = vpack.c.b16 %v4849, %v4848
  %v4854 = vpack.c.b16 %v4851, %v4850
  %v4859 = vsel %vm341, %v4839, 0
  %4861 = vmatprep.subr.bf16.mxu0 0
  %4862 = vmatpush1.bf16.msra.mxu0 %v4852
  %4863 = vmatprep.subr.bf16.mxu0 0
  %4864 = vmatpush1.bf16.msra.mxu0 %v4853
  %4865 = vmatprep.subr.bf16.mxu0 0
  %4866 = vmatpush1.bf16.msra.mxu0 %v4854
  %4867 = vmatprep.subr.bf16.mxu0 0
  %4868 = vmatpush1.bf16.msra.mxu0 0
  %4869 = vmatprep.subr.bf16.mxu0 0
  %4870 = vmatpush1.bf16.msra.mxu0 0
  %4871 = vmatprep.subr.bf16.mxu0 0
  %4872 = vmatpush1.bf16.msra.mxu0 0
  %4873 = vmatprep.subr.bf16.mxu0 0
  %4874 = vmatpush1.bf16.msra.mxu0 0
  %4875 = vmatprep.subr.bf16.mxu0 0
  %4876 = vmatpush1.bf16.msra.mxu0 0
  %4877 = vmatprep.subr.bf16.mxu0 0
  %4878 = vmatpush1.bf16.msra.mxu0 0
  %4879 = vmatprep.subr.bf16.mxu0 0
  %4880 = vmatpush1.bf16.msra.mxu0 0
  %4881 = vmatprep.subr.bf16.mxu0 0
  %4882 = vmatpush1.bf16.msra.mxu0 0
  %4883 = vmatprep.subr.bf16.mxu0 0
  %4884 = vmatpush1.bf16.msra.mxu0 0
  %4885 = vmatprep.subr.bf16.mxu0 0
  %4886 = vmatpush1.bf16.msra.mxu0 0
  %4887 = vmatprep.subr.bf16.mxu0 0
  %4888 = vmatpush1.bf16.msra.mxu0 0
  %4889 = vmatprep.subr.bf16.mxu0 0
  %4890 = vmatpush1.bf16.msra.mxu0 0
  %4891 = vmatprep.subr.bf16.mxu0 0
  %4892 = vmatpush1.bf16.msra.mxu0 0
  %4893 = vmatprep.mubr.bf16.mxu0 0
  %4894 = vmatmul.mubr.bf16.gmra.mrb[0].mxu0 %v4859
  %v4895 = vpop.f32.mrb[0].mxu0
  %v4896 = vadd.f32 0.0, %v4895
  %v4897 = vpop.f32.mrb[0].mxu0
  %v4898 = vpop.f32.mrb[0].mxu0
  %v4899 = vpop.f32.mrb[0].mxu0
  %4900 = vdwg.mxu0
  %v4901 = vadd.f32 %v4786, %v4896
  %v4902 = vld [vmem:[%s81] sm:$0xf]
  %v4903 = vld [vmem:[%s69] sm:$0x1]
  %v4904 = vld [vmem:[%s71] sm:$0x1]
  %v4905 = vmul.f32 %v4903, %v3740
  %v4907 = vlaneseq
  %v4908 = vshrl.u32 %v4907, 7
  %v4909 = vsub.s32 0, %v4908
  %v4910 = vrot.slane %v4905, %v4909
  %v4912 = vmul.f32 %v3729, %v4910
  %v4914 = vlaneseq
  %v4915 = vshrl.u32 %v4914, 7
  %v4916 = vsub.s32 0, %v4915
  %v4917 = vrot.slane %v4904, %v4916
  %v4919 = vadd.f32 %v4912, %v4917
  %v4920 = vmax.f32 %v4919, 0.0
  %v4921 = vpack.c.bf16 %v4920, %v4920
  %v4923 = vsel %vm3867, %v4902, 0
  %v4926 = vsel %vm3871, %v4921, 0
  %4928 = vmatprep.subr.bf16.mxu0 0
  %4929 = vmatpush1.bf16.msra.mxu0 %v4926
  %4930 = vmatprep.subr.bf16.mxu0 0
  %4931 = vmatpush1.bf16.msra.mxu0 0
  %4932 = vmatprep.subr.bf16.mxu0 0
  %4933 = vmatpush1.bf16.msra.mxu0 0
  %4934 = vmatprep.subr.bf16.mxu0 0
  %4935 = vmatpush1.bf16.msra.mxu0 0
  %4936 = vmatprep.subr.bf16.mxu0 0
  %4937 = vmatpush1.bf16.msra.mxu0 0
  %4938 = vmatprep.subr.bf16.mxu0 0
  %4939 = vmatpush1.bf16.msra.mxu0 0
  %4940 = vmatprep.subr.bf16.mxu0 0
  %4941 = vmatpush1.bf16.msra.mxu0 0
  %4942 = vmatprep.subr.bf16.mxu0 0
  %4943 = vmatpush1.bf16.msra.mxu0 0
  %4944 = vmatprep.subr.bf16.mxu0 0
  %4945 = vmatpush1.bf16.msra.mxu0 0
  %4946 = vmatprep.subr.bf16.mxu0 0
  %4947 = vmatpush1.bf16.msra.mxu0 0
  %4948 = vmatprep.subr.bf16.mxu0 0
  %4949 = vmatpush1.bf16.msra.mxu0 0
  %4950 = vmatprep.subr.bf16.mxu0 0
  %4951 = vmatpush1.bf16.msra.mxu0 0
  %4952 = vmatprep.subr.bf16.mxu0 0
  %4953 = vmatpush1.bf16.msra.mxu0 0
  %4954 = vmatprep.subr.bf16.mxu0 0
  %4955 = vmatpush1.bf16.msra.mxu0 0
  %4956 = vmatprep.subr.bf16.mxu0 0
  %4957 = vmatpush1.bf16.msra.mxu0 0
  %4958 = vmatprep.subr.bf16.mxu0 0
  %4959 = vmatpush1.bf16.msra.mxu0 0
  %4960 = vmatprep.mubr.bf16.mxu0 0
  %4961 = vmatmul.mubr.bf16.gmra.mrb[0].mxu0 %v4923
  %v4962 = vpop.f32.mrb[0].mxu0
  %v4963 = vadd.f32 0.0, %v4962
  %v4964 = vpop.f32.mrb[0].mxu0
  %v4965 = vpop.f32.mrb[0].mxu0
  %v4966 = vpop.f32.mrb[0].mxu0
  %4967 = vdwg.mxu0
  %v4968 = vld [vmem:[%s73] sm:$0xf]
  %v4969 = vld [vmem:[%s73 + $0x4] sm:$0xf]
  %v4970 = vld [vmem:[%s73 + $0x8] sm:$0xf]
  %v4971 = vld [vmem:[%s73 + $0xc] sm:$0xf]
  %v4972 = vld [vmem:[%s73 + $0x10] sm:$0xf]
  %v4973 = vld [vmem:[%s73 + $0x14] sm:$0x3]
  %v4974 = vpack.c.bf16 %v4963, %v4963
  %v4975 = vld [vmem:[%s75] sm:$0x1]
  %v4976 = vld [vmem:[%s77] sm:$0x1]
  %v4977 = vsel %vm1841, %v4901, 0.0
  %v4978 = vrot.slane %v4977, 4
  %v4979 = vadd.f32 %v4977, %v4978
  %v4980 = vrot.slane %v4979, 2
  %v4981 = vadd.f32 %v4979, %v4980
  %v4982 = vrot.slane %v4981, 1
  %v4983 = vadd.f32 %v4981, %v4982
  %v4984 = vmul.f32 %v4983, %v3727
  %v4985 = vsub.f32 %v4901, %v4984
  %v4986 = vmul.f32 %v4985, %v4985
  %v4987 = vsel %vm1841, %v4986, 0.0
  %v4988 = vrot.slane %v4987, 4
  %v4989 = vadd.f32 %v4987, %v4988
  %v4990 = vrot.slane %v4989, 2
  %v4991 = vadd.f32 %v4989, %v4990
  %v4992 = vrot.slane %v4991, 1
  %v4993 = vadd.f32 %v4991, %v4992
  %v4994 = vmul.f32 %v4993, %v3727
  %v4995 = vadd.f32 %v4994, 1e-05
  %v4996 = vrsqrt.pop %v4995
  %v4997 = vmul.f32 %v4975, %v4996
  %v4999 = vlaneseq
  %v5000 = vshrl.u32 %v4999, 7
  %v5001 = vsub.s32 0, %v5000
  %v5002 = vrot.slane %v4997, %v5001
  %v5004 = vmul.f32 %v4985, %v5002
  %v5006 = vlaneseq
  %v5007 = vshrl.u32 %v5006, 7
  %v5008 = vsub.s32 0, %v5007
  %v5009 = vrot.slane %v4976, %v5008
  %v5011 = vadd.f32 %v5004, %v5009
  %v5012 = vmax.f32 %v5011, 0.0
  %v5013 = vpack.c.bf16 %v5012, %v5012
  %v5015 = vsel %vm3871, %v5013, 0
  %5017 = vmatprep.subr.bf16.mxu0 0
  %5018 = vmatpush1.bf16.msra.mxu0 %v5015
  %5019 = vmatprep.subr.bf16.mxu0 0
  %5020 = vmatpush1.bf16.msra.mxu0 0
  %5021 = vmatprep.subr.bf16.mxu0 0
  %5022 = vmatpush1.bf16.msra.mxu0 0
  %5023 = vmatprep.subr.bf16.mxu0 0
  %5024 = vmatpush1.bf16.msra.mxu0 0
  %5025 = vmatprep.subr.bf16.mxu0 0
  %5026 = vmatpush1.bf16.msra.mxu0 0
  %5027 = vmatprep.subr.bf16.mxu0 0
  %5028 = vmatpush1.bf16.msra.mxu0 0
  %5029 = vmatprep.subr.bf16.mxu0 0
  %5030 = vmatpush1.bf16.msra.mxu0 0
  %5031 = vmatprep.subr.bf16.mxu0 0
  %5032 = vmatpush1.bf16.msra.mxu0 0
  %5033 = vmatprep.subr.bf16.mxu0 0
  %5034 = vmatpush1.bf16.msra.mxu0 0
  %5035 = vmatprep.subr.bf16.mxu0 0
  %5036 = vmatpush1.bf16.msra.mxu0 0
  %5037 = vmatprep.subr.bf16.mxu0 0
  %5038 = vmatpush1.bf16.msra.mxu0 0
  %5039 = vmatprep.subr.bf16.mxu0 0
  %5040 = vmatpush1.bf16.msra.mxu0 0
  %5041 = vmatprep.subr.bf16.mxu0 0
  %5042 = vmatpush1.bf16.msra.mxu0 0
  %5043 = vmatprep.subr.bf16.mxu0 0
  %5044 = vmatpush1.bf16.msra.mxu0 0
  %5045 = vmatprep.subr.bf16.mxu0 0
  %5046 = vmatpush1.bf16.msra.mxu0 0
  %5047 = vmatprep.subr.bf16.mxu0 0
  %5048 = vmatpush1.bf16.msra.mxu0 0
  %5049 = vmatprep.mubr.bf16.mxu0 0
  %5050 = vmatmul.mubr.bf16.gmra.mrb[0].mxu0 %v4923
  %v5051 = vpop.f32.mrb[0].mxu0
  %v5052 = vadd.f32 0.0, %v5051
  %v5053 = vpop.f32.mrb[0].mxu0
  %v5054 = vpop.f32.mrb[0].mxu0
  %v5055 = vpop.f32.mrb[0].mxu0
  %5056 = vdwg.mxu0
  %v5057 = vld [vmem:[%s79] sm:$0xf]
  %v5058 = vld [vmem:[%s79 + $0x4] sm:$0x3]
  %v5059 = vpack.c.bf16 %v5052, %v5052
  %v5062 = vunpack.c.l.b16 %v5057
  %v5063 = vunpack.c.l.b16 %v5058
  %v5064 = vpack.c.b16 %v5063, %v5062
  %v5066 = vsel %vm1841, %v5059, 0
  %v5069 = vsel %vm1920, %v5064, 0
  %5071 = vmatprep.subr.bf16.mxu0 0
  %5072 = vmatpush1.bf16.msra.mxu0 %v5069
  %5073 = vmatprep.subr.bf16.mxu0 0
  %5074 = vmatpush1.bf16.msra.mxu0 0
  %5075 = vmatprep.subr.bf16.mxu0 0
  %5076 = vmatpush1.bf16.msra.mxu0 0
  %5077 = vmatprep.subr.bf16.mxu0 0
  %5078 = vmatpush1.bf16.msra.mxu0 0
  %5079 = vmatprep.subr.bf16.mxu0 0
  %5080 = vmatpush1.bf16.msra.mxu0 0
  %5081 = vmatprep.subr.bf16.mxu0 0
  %5082 = vmatpush1.bf16.msra.mxu0 0
  %5083 = vmatprep.subr.bf16.mxu0 0
  %5084 = vmatpush1.bf16.msra.mxu0 0
  %5085 = vmatprep.subr.bf16.mxu0 0
  %5086 = vmatpush1.bf16.msra.mxu0 0
  %5087 = vmatprep.subr.bf16.mxu0 0
  %5088 = vmatpush1.bf16.msra.mxu0 0
  %5089 = vmatprep.subr.bf16.mxu0 0
  %5090 = vmatpush1.bf16.msra.mxu0 0
  %5091 = vmatprep.subr.bf16.mxu0 0
  %5092 = vmatpush1.bf16.msra.mxu0 0
  %5093 = vmatprep.subr.bf16.mxu0 0
  %5094 = vmatpush1.bf16.msra.mxu0 0
  %5095 = vmatprep.subr.bf16.mxu0 0
  %5096 = vmatpush1.bf16.msra.mxu0 0
  %5097 = vmatprep.subr.bf16.mxu0 0
  %5098 = vmatpush1.bf16.msra.mxu0 0
  %5099 = vmatprep.subr.bf16.mxu0 0
  %5100 = vmatpush1.bf16.msra.mxu0 0
  %5101 = vmatprep.subr.bf16.mxu0 0
  %5102 = vmatpush1.bf16.msra.mxu0 0
  %5103 = vmatprep.mubr.bf16.mxu0 0
  %5104 = vmatmul.mubr.bf16.gmra.mrb[0].mxu0 %v5066
  %v5105 = vpop.f32.mrb[0].mxu0
  %v5106 = vadd.f32 0.0, %v5105
  %v5107 = vpop.f32.mrb[0].mxu0
  %v5108 = vpop.f32.mrb[0].mxu0
  %v5109 = vpop.f32.mrb[0].mxu0
  %5110 = vdwg.mxu0
  %v5117 = vunpack.c.l.b16 %v4968
  %v5118 = vunpack.c.l.b16 %v4969
  %v5119 = vunpack.c.l.b16 %v4970
  %v5120 = vunpack.c.l.b16 %v4971
  %v5121 = vunpack.c.l.b16 %v4972
  %v5122 = vunpack.c.l.b16 %v4973
  %v5123 = vpack.c.b16 %v5118, %v5117
  %v5124 = vpack.c.b16 %v5120, %v5119
  %v5125 = vpack.c.b16 %v5122, %v5121
  %v5129 = vsel %vm3719, %v4974, 0
  %v5132 = vsel %vm1920, %v5125, 0
  %5134 = vmatprep.subr.bf16.mxu0 0
  %5135 = vmatpush1.bf16.msra.mxu0 %v5123
  %5136 = vmatprep.subr.bf16.mxu0 0
  %5137 = vmatpush1.bf16.msra.mxu0 %v5124
  %5138 = vmatprep.subr.bf16.mxu0 0
  %5139 = vmatpush1.bf16.msra.mxu0 %v5132
  %5140 = vmatprep.subr.bf16.mxu0 0
  %5141 = vmatpush1.bf16.msra.mxu0 0
  %5142 = vmatprep.subr.bf16.mxu0 0
  %5143 = vmatpush1.bf16.msra.mxu0 0
  %5144 = vmatprep.subr.bf16.mxu0 0
  %5145 = vmatpush1.bf16.msra.mxu0 0
  %5146 = vmatprep.subr.bf16.mxu0 0
  %5147 = vmatpush1.bf16.msra.mxu0 0
  %5148 = vmatprep.subr.bf16.mxu0 0
  %5149 = vmatpush1.bf16.msra.mxu0 0
  %5150 = vmatprep.subr.bf16.mxu0 0
  %5151 = vmatpush1.bf16.msra.mxu0 0
  %5152 = vmatprep.subr.bf16.mxu0 0
  %5153 = vmatpush1.bf16.msra.mxu0 0
  %5154 = vmatprep.subr.bf16.mxu0 0
  %5155 = vmatpush1.bf16.msra.mxu0 0
  %5156 = vmatprep.subr.bf16.mxu0 0
  %5157 = vmatpush1.bf16.msra.mxu0 0
  %5158 = vmatprep.subr.bf16.mxu0 0
  %5159 = vmatpush1.bf16.msra.mxu0 0
  %5160 = vmatprep.subr.bf16.mxu0 0
  %5161 = vmatpush1.bf16.msra.mxu0 0
  %5162 = vmatprep.subr.bf16.mxu0 0
  %5163 = vmatpush1.bf16.msra.mxu0 0
  %5164 = vmatprep.subr.bf16.mxu0 0
  %5165 = vmatpush1.bf16.msra.mxu0 0
  %5166 = vmatprep.mubr.bf16.mxu0 0
  %5167 = vmatmul.mubr.bf16.gmra.mrb[0].mxu0 %v5129
  %v5168 = vpop.f32.mrb[0].mxu0
  %v5169 = vadd.f32 %v5106, %v5168
  %v5170 = vpop.f32.mrb[0].mxu0
  %v5171 = vpop.f32.mrb[0].mxu0
  %v5172 = vpop.f32.mrb[0].mxu0
  %5173 = vdwg.mxu0
  %v5174 = vld [vmem:[%s83] sm:$0x1]
  %v5176 = vlaneseq
  %v5177 = vshrl.u32 %v5176, 7
  %v5178 = vsub.s32 0, %v5177
  %v5179 = vrot.slane %v5174, %v5178
  %v5181 = vadd.f32 %v5169, %v5179
  %5182 = vst [vmem:[%s85] sm:$0xff] %v5181
  // Predicated region
  $region170: #{ensemble_fwd.5} parent=0 // pred_check
    _
  $region171: #{ensemble_fwd.5} parent=0 // pred_check_branch
    %5184 = sbr.rel (0) target = $region173
  $region172: #{ensemble_fwd.5} parent=0 // pred_region
    _
  $region173: #{ensemble_fwd.5} parent=0 // pred_fallthru
    _
  // Predicated region
  $region174: #{ensemble_fwd.5} parent=0 // pred_check
    _
  $region175: #{ensemble_fwd.5} parent=0 // pred_check_branch
    %5186 = sbr.rel (0) target = $region177
  $region176: #{ensemble_fwd.5} parent=0 // pred_region
    _
  $region177: #{ensemble_fwd.5} parent=0 // pred_fallthru
    _

</llo_original>
